<compile_context>
chip_gen: v7x
topology: tpu7x:2x2x1
jax: 0.10.0
libtpu: 0.0.40
codegen_flags: <defaults>
</compile_context>

<pallas_src>
import numpy as np
import jax
import jax.numpy as jnp
from jax.experimental import pallas as pl
from jax.experimental.pallas import tpu as pltpu

VMEM_SPEC = pl.BlockSpec(memory_space=pltpu.MemorySpace.VMEM)

# Architecture constants (fixed by the PyTorch module: fc1 = Linear(7*2*128,.))
C_IN, H_IN, W_IN = 3, 80, 15
C1, KH1, KW1 = 10, 3, 7
C2, KH2, KW2 = 20, 3, 3
H1 = H_IN - KH1 + 1          # 78  conv1 output height
W1 = W_IN - KW1 + 1          # 9   conv1 output width
HP1 = H1 // 3                # 26  after pool1
H2 = HP1 - KH2 + 1           # 24  conv2 output height
W2 = W1 - KW2 + 1            # 7   conv2 output width
HP2 = H2 // 3                # 8   after pool2
T_SEQ = W2                   # 7   LSTM sequence length
HID = 128
FEAT = HP2 * C2 + 6          # 166 LSTM input features


# ---------------------------------------------------------------------------
# Kernel 1: conv1 + ReLU + pool1 + conv2 + ReLU + pool2 + BatchNorm (eval)
# ---------------------------------------------------------------------------
def _conv_stack_kernel(x_ref, w1_ref, b1_ref, w2_ref, b2_ref, sc_ref, sh_ref,
                       o_ref, lhs1_ref, lhs2_ref):
    B = x_ref.shape[0]
    WC = x_ref.shape[2]                   # W_IN * C_IN = 45
    N1 = w1_ref.shape[1]                  # W1 * C1 = 90

    # conv1 (3,7) as a width-folded matmul: rows=(b, ho), K=(kh, w, cin)
    for b in range(B):
        for d in range(KH1):
            lhs1_ref[b * H1:(b + 1) * H1, d * WC:(d + 1) * WC] = x_ref[b, d:d + H1, :]
    c1 = jnp.dot(lhs1_ref[...], w1_ref[...], preferred_element_type=jnp.float32)
    c1 = jnp.maximum(c1 + b1_ref[...], 0.0)

    # maxpool (3,1): slab max of three row-shifted views, then stride-3 row
    # selection on the MXU with a constant 0/1 matrix (no per-row loop).
    m1 = jnp.maximum(jnp.maximum(c1[0:B * H1 - 2, :], c1[1:B * H1 - 1, :]),
                     c1[2:B * H1, :])
    sel1 = (jax.lax.broadcasted_iota(jnp.int32, (HP1, H1 - 2), 1)
            == 3 * jax.lax.broadcasted_iota(jnp.int32, (HP1, H1 - 2), 0)
            ).astype(jnp.float32)
    for b in range(B):
        p1_b = jnp.dot(sel1, m1[b * H1:b * H1 + H1 - 2, :],
                       preferred_element_type=jnp.float32)          # (26, 90)
        # conv2 lhs: rows=(b, ho2), K=(kh, w, c1)
        for d in range(KH2):
            lhs2_ref[b * H2:(b + 1) * H2, d * N1:(d + 1) * N1] = p1_b[d:d + H2, :]

    # conv2 (3,3) as a width-folded matmul
    c2 = jnp.dot(lhs2_ref[...], w2_ref[...], preferred_element_type=jnp.float32)
    c2 = jnp.maximum(c2 + b2_ref[...], 0.0)

    # maxpool (3,1) + BatchNorm2d eval affine (per conv2 channel, tiled over w)
    m2 = jnp.maximum(jnp.maximum(c2[0:B * H2 - 2, :], c2[1:B * H2 - 1, :]),
                     c2[2:B * H2, :])
    sel2 = (jax.lax.broadcasted_iota(jnp.int32, (HP2, H2 - 2), 1)
            == 3 * jax.lax.broadcasted_iota(jnp.int32, (HP2, H2 - 2), 0)
            ).astype(jnp.float32)
    for b in range(B):
        p2_b = jnp.dot(sel2, m2[b * H2:b * H2 + H2 - 2, :],
                       preferred_element_type=jnp.float32)          # (8, 140)
        o_ref[b * HP2:(b + 1) * HP2, :] = p2_b * sc_ref[...] + sh_ref[...]


def conv_stack(xp, pp):
    B = xp.shape[0]
    return pl.pallas_call(
        _conv_stack_kernel,
        out_shape=jax.ShapeDtypeStruct((B * HP2, W2 * C2), jnp.float32),
        in_specs=[VMEM_SPEC] * 7,
        out_specs=VMEM_SPEC,
        scratch_shapes=[
            pltpu.VMEM((B * H1, KH1 * W_IN * C_IN), jnp.float32),   # conv1 lhs
            pltpu.VMEM((B * H2, KH2 * W1 * C1), jnp.float32),       # conv2 lhs
        ],
    )(xp, pp["w1"], pp["b1"], pp["w2"], pp["b2"], pp["bn_sc"], pp["bn_sh"])


# ---------------------------------------------------------------------------
# Kernel 2: fused BiLSTM input projection + merged bidirectional recurrence
#           + tanh + fc1 + ReLU + out + sigmoid
# ---------------------------------------------------------------------------
def _lstm_head_kernel(seq_ref, wih_ref, b_ref, whh_ref, fc1w_ref, fc1b_ref,
                      outw_ref, outb_ref, o_ref, xg_ref, h_ref, c_ref, lo_ref):
    T, H = T_SEQ, HID
    B = seq_ref.shape[0] // T

    # One fused input projection for both directions: (T*B,166) @ (166,1024).
    xg_ref[...] = (jnp.dot(seq_ref[...], wih_ref[...],
                           preferred_element_type=jnp.float32) + b_ref[...])

    whh = whh_ref[...]                      # (2H, 8H), block-diagonal fwd/bwd
    h_ref[...] = jnp.zeros_like(h_ref)
    c_ref[...] = jnp.zeros_like(c_ref)

    # Merged recurrence: one (B,256)@(256,1024) matmul per step covers both
    # directions (fwd at time s, bwd at time T-1-s).
    for s in range(T):                                   # T = 7, static unroll
        g_rec = jnp.dot(h_ref[...], whh, preferred_element_type=jnp.float32)
        for base, t in ((0, s), (4 * H, T - 1 - s)):
            hb = base // 4                               # 0 (fwd) or H (bwd)
            g = g_rec[:, base:base + 4 * H] + xg_ref[t * B:(t + 1) * B,
                                                     base:base + 4 * H]
            i = jax.nn.sigmoid(g[:, 0:H])
            f = jax.nn.sigmoid(g[:, H:2 * H])
            gg = jnp.tanh(g[:, 2 * H:3 * H])
            o = jax.nn.sigmoid(g[:, 3 * H:4 * H])
            c_new = f * c_ref[:, hb:hb + H] + i * gg
            h_new = o * jnp.tanh(c_new)
            c_ref[:, hb:hb + H] = c_new
            h_ref[:, hb:hb + H] = h_new
            # nn.Tanh() on the LSTM output, written straight into the
            # (B, T*2H) layout that fc1 consumes.
            lo_ref[:, t * 2 * H + hb:t * 2 * H + hb + H] = jnp.tanh(h_new)

    # Head: fc1 + ReLU + out + sigmoid.
    # TODO(synk): nn.Dropout(p=0.8)/F.dropout(p=0.2) are training-only RNG
    # masking; identity on the inference path implemented here.
    hfc = jnp.dot(lo_ref[...], fc1w_ref[...], preferred_element_type=jnp.float32)
    hfc = jnp.maximum(hfc + fc1b_ref[...], 0.0)
    logits = jnp.sum(hfc * outw_ref[...], axis=1, keepdims=True) + outb_ref[...]
    o_ref[...] = jax.nn.sigmoid(logits)


def lstm_head(seq, pp):
    B = seq.shape[0] // T_SEQ
    return pl.pallas_call(
        _lstm_head_kernel,
        out_shape=jax.ShapeDtypeStruct((B, 1), jnp.float32),
        in_specs=[VMEM_SPEC] * 8,
        out_specs=VMEM_SPEC,
        scratch_shapes=[
            pltpu.VMEM((T_SEQ * B, 8 * HID), jnp.float32),   # xg (fwd|bwd gates)
            pltpu.VMEM((B, 2 * HID), jnp.float32),           # h_cat
            pltpu.VMEM((B, 2 * HID), jnp.float32),           # c_cat
            pltpu.VMEM((B, T_SEQ * 2 * HID), jnp.float32),   # tanh(lstm_out)
        ],
    )(seq, pp["wih"], pp["b"], pp["whh"], pp["fc1wT"], pp["fc1b"],
      pp["outw"], pp["outb"])


# ---------------------------------------------------------------------------
# Full forward (inference/eval mode): 2 pallas_calls + tiny XLA layout glue
# ---------------------------------------------------------------------------
def cblstm_forward(pp, x, y):
    B = x.shape[0]
    # NCHW -> (B, H, W*C): the only input-layout transpose, done once in XLA.
    xp = jnp.transpose(x, (0, 2, 3, 1)).reshape(B, H_IN, W_IN * C_IN)
    p2 = conv_stack(xp, pp)                                       # (B*8, 140)
    # permute(0,3,2,1)+flatten(2): (b,h)x(w,c) -> rows (t=w, b), cols (h*20+c)
    seq_conv = (p2.reshape(B, HP2, W2, C2).transpose(2, 0, 1, 3)
                .reshape(T_SEQ * B, HP2 * C2))
    # torch.repeat_interleave(y, 7, dim=1).view(-1, 7, 6), time-major rows.
    y_feat = (jnp.repeat(y, T_SEQ, axis=1).reshape(B, T_SEQ, 6)
              .transpose(1, 0, 2).reshape(T_SEQ * B, 6))
    seq = jnp.concatenate([seq_conv, y_feat], axis=1)             # (T*B, 166)
    return lstm_head(seq, pp)


# ---------------------------------------------------------------------------
# Parameters: raw (PyTorch-shaped) init + one-time kernel-layout preparation
# ---------------------------------------------------------------------------
def init_params(key):
    def u(k, shape, fan_in):
        bound = 1.0 / (fan_in ** 0.5)
        return jax.random.uniform(k, shape, jnp.float32, -bound, bound)

    keys = iter(jax.random.split(key, 32))
    p = {}
    p["conv1_w"] = u(next(keys), (C1, C_IN, KH1, KW1), C_IN * KH1 * KW1)
    p["conv1_b"] = u(next(keys), (C1,), C_IN * KH1 * KW1)
    p["conv2_w"] = u(next(keys), (C2, C1, KH2, KW2), C1 * KH2 * KW2)
    p["conv2_b"] = u(next(keys), (C2,), C1 * KH2 * KW2)
    p["bn_gamma"] = 1.0 + 0.1 * jax.random.normal(next(keys), (C2,), jnp.float32)
    p["bn_beta"] = 0.1 * jax.random.normal(next(keys), (C2,), jnp.float32)
    p["bn_mean"] = 0.1 * jax.random.normal(next(keys), (C2,), jnp.float32)
    p["bn_var"] = 1.0 + 0.1 * jnp.abs(jax.random.normal(next(keys), (C2,), jnp.float32))
    for d in ("f", "b"):
        p[f"w_ih_{d}"] = u(next(keys), (4 * HID, FEAT), HID)
        p[f"w_hh_{d}"] = u(next(keys), (4 * HID, HID), HID)
        p[f"b_ih_{d}"] = u(next(keys), (4 * HID,), HID)
        p[f"b_hh_{d}"] = u(next(keys), (4 * HID,), HID)
    p["fc1_w"] = u(next(keys), (HID, T_SEQ * 2 * HID), T_SEQ * 2 * HID)
    p["fc1_b"] = u(next(keys), (HID,), T_SEQ * 2 * HID)
    p["out_w"] = u(next(keys), (1, HID), HID)
    p["out_b"] = u(next(keys), (1,), HID)
    return p


def prepare_params(raw):
    """One-time conversion of PyTorch-layout weights into kernel layouts."""
    # conv1 as width-folded matmul: rows=(kh, w_in, cin), cols=(w_out, cout).
    w1 = np.asarray(raw["conv1_w"], np.float32)
    W1e = np.zeros((KH1 * W_IN * C_IN, W1 * C1), np.float32)
    for kh in range(KH1):
        for wo in range(W1):
            for kw in range(KW1):
                r = kh * (W_IN * C_IN) + (wo + kw) * C_IN
                W1e[r:r + C_IN, wo * C1:(wo + 1) * C1] = w1[:, :, kh, kw].T
    b1e = np.tile(np.asarray(raw["conv1_b"], np.float32), W1)[None, :]

    # conv2 as width-folded matmul: rows=(kh, w_in, c1), cols=(w_out, c2).
    w2 = np.asarray(raw["conv2_w"], np.float32)
    W2e = np.zeros((KH2 * W1 * C1, W2 * C2), np.float32)
    for kh in range(KH2):
        for wo in range(W2):
            for kw in range(KW2):
                r = kh * (W1 * C1) + (wo + kw) * C1
                W2e[r:r + C1, wo * C2:(wo + 1) * C2] = w2[:, :, kh, kw].T
    b2e = np.tile(np.asarray(raw["conv2_b"], np.float32), W2)[None, :]

    sc = np.asarray(raw["bn_gamma"], np.float32) / np.sqrt(
        np.asarray(raw["bn_var"], np.float32) + 1e-5)
    sh = np.asarray(raw["bn_beta"], np.float32) - np.asarray(raw["bn_mean"], np.float32) * sc
    bn_sc = np.tile(sc, W2)[None, :]
    bn_sh = np.tile(sh, W2)[None, :]

    # BiLSTM: fused input projection [fwd gates | bwd gates] and block-diagonal
    # hidden-to-hidden weight so both directions share one matmul per step.
    wih = np.concatenate([np.asarray(raw["w_ih_f"], np.float32).T,
                          np.asarray(raw["w_ih_b"], np.float32).T], axis=1)
    bcat = np.concatenate(
        [np.asarray(raw["b_ih_f"], np.float32) + np.asarray(raw["b_hh_f"], np.float32),
         np.asarray(raw["b_ih_b"], np.float32) + np.asarray(raw["b_hh_b"], np.float32)])[None, :]
    whh = np.zeros((2 * HID, 8 * HID), np.float32)
    whh[0:HID, 0:4 * HID] = np.asarray(raw["w_hh_f"], np.float32).T
    whh[HID:2 * HID, 4 * HID:8 * HID] = np.asarray(raw["w_hh_b"], np.float32).T

    pp = {
        "w1": W1e, "b1": b1e, "w2": W2e, "b2": b2e, "bn_sc": bn_sc, "bn_sh": bn_sh,
        "wih": wih, "b": bcat, "whh": whh,
        "fc1wT": np.asarray(raw["fc1_w"], np.float32).T,
        "fc1b": np.asarray(raw["fc1_b"], np.float32)[None, :],
        "outw": np.asarray(raw["out_w"], np.float32).reshape(1, HID),
        "outb": np.asarray(raw["out_b"], np.float32).reshape(1, 1),
    }
    return {k: jnp.asarray(v) for k, v in pp.items()}


# ---------------------------------------------------------------------------
# Pure-JAX reference of the PyTorch forward (eval mode) for self-check
# ---------------------------------------------------------------------------
def cblstm_reference(raw, x, y):
    dn = ("NCHW", "OIHW", "NCHW")
    z = jax.lax.conv_general_dilated(x, raw["conv1_w"], (1, 1), "VALID", dimension_numbers=dn)
    z = jax.nn.relu(z + raw["conv1_b"][None, :, None, None])
    z = jax.lax.reduce_window(z, -jnp.inf, jax.lax.max, (1, 1, 3, 1), (1, 1, 3, 1), "VALID")
    z = jax.lax.conv_general_dilated(z, raw["conv2_w"], (1, 1), "VALID", dimension_numbers=dn)
    z = jax.nn.relu(z + raw["conv2_b"][None, :, None, None])
    z = jax.lax.reduce_window(z, -jnp.inf, jax.lax.max, (1, 1, 3, 1), (1, 1, 3, 1), "VALID")
    sc = raw["bn_gamma"] / jnp.sqrt(raw["bn_var"] + 1e-5)
    sh = raw["bn_beta"] - raw["bn_mean"] * sc
    z = z * sc[None, :, None, None] + sh[None, :, None, None]
    B = x.shape[0]
    z = jnp.transpose(z, (0, 3, 2, 1)).reshape(B, T_SEQ, HP2 * C2)
    yf = jnp.repeat(y, T_SEQ, axis=1).reshape(B, T_SEQ, 6)
    seq = jnp.concatenate([z, yf], axis=2)

    def run_dir(s, w_ih, w_hh, b_ih, b_hh):
        def step(carry, x_t):
            h, c = carry
            g = x_t @ w_ih.T + b_ih + b_hh + h @ w_hh.T
            i = jax.nn.sigmoid(g[:, :HID]); f = jax.nn.sigmoid(g[:, HID:2 * HID])
            gg = jnp.tanh(g[:, 2 * HID:3 * HID]); o = jax.nn.sigmoid(g[:, 3 * HID:])
            c = f * c + i * gg
            h = o * jnp.tanh(c)
            return (h, c), h
        init = (jnp.zeros((B, HID), jnp.float32), jnp.zeros((B, HID), jnp.float32))
        _, hs = jax.lax.scan(step, init, jnp.transpose(s, (1, 0, 2)))
        return jnp.transpose(hs, (1, 0, 2))

    hf = run_dir(seq, raw["w_ih_f"], raw["w_hh_f"], raw["b_ih_f"], raw["b_hh_f"])
    hb = run_dir(seq[:, ::-1, :], raw["w_ih_b"], raw["w_hh_b"],
                 raw["b_ih_b"], raw["b_hh_b"])[:, ::-1, :]
    lstm_out = jnp.tanh(jnp.concatenate([hf, hb], axis=2)).reshape(B, -1)
    h1 = jax.nn.relu(lstm_out @ raw["fc1_w"].T + raw["fc1_b"])
    return jax.nn.sigmoid(h1 @ raw["out_w"].T + raw["out_b"])


if __name__ == "__main__":
    key = jax.random.PRNGKey(0)
    kp, kx, ky = jax.random.split(key, 3)
    raw = init_params(kp)
    params = prepare_params(raw)

    B = 2
    x = jax.random.normal(kx, (B, C_IN, H_IN, W_IN), jnp.float32)   # NCHW
    y = jax.random.normal(ky, (B, 6), jnp.float32)

    out = jax.jit(cblstm_forward)(params, x, y)
    out = jax.block_until_ready(out)
    assert out.shape == (B, 1), out.shape
    assert bool(jnp.all(jnp.isfinite(out)))

    ref = jax.block_until_ready(jax.jit(cblstm_reference)(raw, x, y))
    assert bool(jnp.max(jnp.abs(out - ref)) < 2e-3), (out, ref)

    print("KERNEL_OK")
</pallas_src>

<mosaic_0001>
module attributes {stable_mosaic.version = 11 : i64} {
  func.func @_conv_stack_kernel(%arg0: memref<2x80x45xf32, #tpu.memory_space<vmem>>, %arg1: memref<135x90xf32, #tpu.memory_space<vmem>>, %arg2: memref<1x90xf32, #tpu.memory_space<vmem>>, %arg3: memref<270x140xf32, #tpu.memory_space<vmem>>, %arg4: memref<1x140xf32, #tpu.memory_space<vmem>>, %arg5: memref<1x140xf32, #tpu.memory_space<vmem>>, %arg6: memref<1x140xf32, #tpu.memory_space<vmem>>, %arg7: memref<16x140xf32, #tpu.memory_space<vmem>>, %arg8: memref<156x135xf32, #tpu.memory_space<vmem>>, %arg9: memref<48x270xf32, #tpu.memory_space<vmem>>) attributes {dimension_semantics = [], scalar_prefetch = 0 : i64, scratch_operands = 2 : i64, tpu.core_type = #tpu.core_type<tc>} {
    %c0 = arith.constant 0 : index
    %c0_0 = arith.constant 0 : index
    %c0_1 = arith.constant 0 : index
    %0 = vector.load %arg0[%c0, %c0_0, %c0_1] : memref<2x80x45xf32, #tpu.memory_space<vmem>>, vector<1x78x45xf32>
    %1 = vector.shape_cast %0 : vector<1x78x45xf32> to vector<78x45xf32>
    %c0_2 = arith.constant 0 : index
    %c0_3 = arith.constant 0 : index
    %2 = vector.load %arg8[%c0_2, %c0_3] : memref<156x135xf32, #tpu.memory_space<vmem>>, vector<78x45xf32>
    tpu.vector_store %arg8[%c0_2, %c0_3], %1 {strides = array<i32>} : memref<156x135xf32, #tpu.memory_space<vmem>>, vector<78x45xf32>,
    %c0_4 = arith.constant 0 : index
    %c1 = arith.constant 1 : index
    %c0_5 = arith.constant 0 : index
    %3 = vector.load %arg0[%c0_4, %c1, %c0_5] : memref<2x80x45xf32, #tpu.memory_space<vmem>>, vector<1x78x45xf32>
    %4 = vector.shape_cast %3 : vector<1x78x45xf32> to vector<78x45xf32>
    %c0_6 = arith.constant 0 : index
    %c45 = arith.constant 45 : index
    %5 = vector.load %arg8[%c0_6, %c45] : memref<156x135xf32, #tpu.memory_space<vmem>>, vector<78x45xf32>
    tpu.vector_store %arg8[%c0_6, %c45], %4 {strides = array<i32>} : memref<156x135xf32, #tpu.memory_space<vmem>>, vector<78x45xf32>,
    %c0_7 = arith.constant 0 : index
    %c2 = arith.constant 2 : index
    %c0_8 = arith.constant 0 : index
    %6 = vector.load %arg0[%c0_7, %c2, %c0_8] : memref<2x80x45xf32, #tpu.memory_space<vmem>>, vector<1x78x45xf32>
    %7 = vector.shape_cast %6 : vector<1x78x45xf32> to vector<78x45xf32>
    %c0_9 = arith.constant 0 : index
    %c90 = arith.constant 90 : index
    %8 = vector.load %arg8[%c0_9, %c90] : memref<156x135xf32, #tpu.memory_space<vmem>>, vector<78x45xf32>
    tpu.vector_store %arg8[%c0_9, %c90], %7 {strides = array<i32>} : memref<156x135xf32, #tpu.memory_space<vmem>>, vector<78x45xf32>,
    %c1_10 = arith.constant 1 : index
    %c0_11 = arith.constant 0 : index
    %c0_12 = arith.constant 0 : index
    %9 = vector.load %arg0[%c1_10, %c0_11, %c0_12] : memref<2x80x45xf32, #tpu.memory_space<vmem>>, vector<1x78x45xf32>
    %10 = vector.shape_cast %9 : vector<1x78x45xf32> to vector<78x45xf32>
    %c78 = arith.constant 78 : index
    %c0_13 = arith.constant 0 : index
    %11 = vector.load %arg8[%c78, %c0_13] : memref<156x135xf32, #tpu.memory_space<vmem>>, vector<78x45xf32>
    tpu.vector_store %arg8[%c78, %c0_13], %10 {strides = array<i32>} : memref<156x135xf32, #tpu.memory_space<vmem>>, vector<78x45xf32>,
    %c1_14 = arith.constant 1 : index
    %c1_15 = arith.constant 1 : index
    %c0_16 = arith.constant 0 : index
    %12 = vector.load %arg0[%c1_14, %c1_15, %c0_16] : memref<2x80x45xf32, #tpu.memory_space<vmem>>, vector<1x78x45xf32>
    %13 = vector.shape_cast %12 : vector<1x78x45xf32> to vector<78x45xf32>
    %c78_17 = arith.constant 78 : index
    %c45_18 = arith.constant 45 : index
    %14 = vector.load %arg8[%c78_17, %c45_18] : memref<156x135xf32, #tpu.memory_space<vmem>>, vector<78x45xf32>
    tpu.vector_store %arg8[%c78_17, %c45_18], %13 {strides = array<i32>} : memref<156x135xf32, #tpu.memory_space<vmem>>, vector<78x45xf32>,
    %c1_19 = arith.constant 1 : index
    %c2_20 = arith.constant 2 : index
    %c0_21 = arith.constant 0 : index
    %15 = vector.load %arg0[%c1_19, %c2_20, %c0_21] : memref<2x80x45xf32, #tpu.memory_space<vmem>>, vector<1x78x45xf32>
    %16 = vector.shape_cast %15 : vector<1x78x45xf32> to vector<78x45xf32>
    %c78_22 = arith.constant 78 : index
    %c90_23 = arith.constant 90 : index
    %17 = vector.load %arg8[%c78_22, %c90_23] : memref<156x135xf32, #tpu.memory_space<vmem>>, vector<78x45xf32>
    tpu.vector_store %arg8[%c78_22, %c90_23], %16 {strides = array<i32>} : memref<156x135xf32, #tpu.memory_space<vmem>>, vector<78x45xf32>,
    %c0_24 = arith.constant 0 : index
    %c0_25 = arith.constant 0 : index
    %18 = vector.load %arg8[%c0_24, %c0_25] : memref<156x135xf32, #tpu.memory_space<vmem>>, vector<156x135xf32>
    %c0_26 = arith.constant 0 : index
    %c0_27 = arith.constant 0 : index
    %19 = vector.load %arg1[%c0_26, %c0_27] : memref<135x90xf32, #tpu.memory_space<vmem>>, vector<135x90xf32>
    %cst = arith.constant dense<0.000000e+00> : vector<156x90xf32>
    %20 = tpu.matmul %18, %19, %cst {dimension_numbers = #tpu.dot_dimension_numbers<[1], [0], [0], [1], [0, 0, 1, 1], [], []>} : vector<156x135xf32>, vector<135x90xf32>, vector<156x90xf32> -> vector<156x90xf32>
    %c0_28 = arith.constant 0 : index
    %c0_29 = arith.constant 0 : index
    %21 = vector.load %arg2[%c0_28, %c0_29] : memref<1x90xf32, #tpu.memory_space<vmem>>, vector<1x90xf32>
    %22 = vector.broadcast %21 : vector<1x90xf32> to vector<156x90xf32>
    %23 = arith.addf %20, %22 : vector<156x90xf32>
    %cst_30 = arith.constant 0.000000e+00 : f32
    %24 = vector.broadcast %cst_30 : f32 to vector<156x90xf32>
    %25 = arith.maximumf %23, %24 : vector<156x90xf32>
    %26 = vector.extract_strided_slice %25 {offsets = [0, 0], sizes = [154, 90], strides = [1, 1]} : vector<156x90xf32> to vector<154x90xf32>
    %27 = vector.extract_strided_slice %25 {offsets = [1, 0], sizes = [154, 90], strides = [1, 1]} : vector<156x90xf32> to vector<154x90xf32>
    %28 = arith.maximumf %26, %27 : vector<154x90xf32>
    %29 = vector.extract_strided_slice %25 {offsets = [2, 0], sizes = [154, 90], strides = [1, 1]} : vector<156x90xf32> to vector<154x90xf32>
    %30 = arith.maximumf %28, %29 : vector<154x90xf32>
    %31 = tpu.iota {dimensions = array<i32: 1>} : vector<26x76xi32>
    %32 = tpu.iota {dimensions = array<i32: 0>} : vector<26x76xi32>
    %c3_i32 = arith.constant 3 : i32
    %33 = vector.broadcast %c3_i32 : i32 to vector<26x76xi32>
    %34 = arith.muli %33, %32 : vector<26x76xi32>
    %35 = arith.cmpi eq, %31, %34 : vector<26x76xi32>
    %36 = arith.extui %35 : vector<26x76xi1> to vector<26x76xi32>
    %37 = arith.sitofp %36 : vector<26x76xi32> to vector<26x76xf32>
    %38 = vector.extract_strided_slice %30 {offsets = [0, 0], sizes = [76, 90], strides = [1, 1]} : vector<154x90xf32> to vector<76x90xf32>
    %cst_31 = arith.constant dense<0.000000e+00> : vector<26x90xf32>
    %39 = tpu.matmul %37, %38, %cst_31 {dimension_numbers = #tpu.dot_dimension_numbers<[1], [0], [0], [1], [0, 0, 1, 1], [], []>} : vector<26x76xf32>, vector<76x90xf32>, vector<26x90xf32> -> vector<26x90xf32>
    %40 = vector.extract_strided_slice %39 {offsets = [0, 0], sizes = [24, 90], strides = [1, 1]} : vector<26x90xf32> to vector<24x90xf32>
    %c0_32 = arith.constant 0 : index
    %c0_33 = arith.constant 0 : index
    %41 = vector.load %arg9[%c0_32, %c0_33] : memref<48x270xf32, #tpu.memory_space<vmem>>, vector<24x90xf32>
    tpu.vector_store %arg9[%c0_32, %c0_33], %40 {strides = array<i32>} : memref<48x270xf32, #tpu.memory_space<vmem>>, vector<24x90xf32>,
    %42 = vector.extract_strided_slice %39 {offsets = [1, 0], sizes = [24, 90], strides = [1, 1]} : vector<26x90xf32> to vector<24x90xf32>
    %c0_34 = arith.constant 0 : index
    %c90_35 = arith.constant 90 : index
    %43 = vector.load %arg9[%c0_34, %c90_35] : memref<48x270xf32, #tpu.memory_space<vmem>>, vector<24x90xf32>
    tpu.vector_store %arg9[%c0_34, %c90_35], %42 {strides = array<i32>} : memref<48x270xf32, #tpu.memory_space<vmem>>, vector<24x90xf32>,
    %44 = vector.extract_strided_slice %39 {offsets = [2, 0], sizes = [24, 90], strides = [1, 1]} : vector<26x90xf32> to vector<24x90xf32>
    %c0_36 = arith.constant 0 : index
    %c180 = arith.constant 180 : index
    %45 = vector.load %arg9[%c0_36, %c180] : memref<48x270xf32, #tpu.memory_space<vmem>>, vector<24x90xf32>
    tpu.vector_store %arg9[%c0_36, %c180], %44 {strides = array<i32>} : memref<48x270xf32, #tpu.memory_space<vmem>>, vector<24x90xf32>,
    %46 = vector.extract_strided_slice %30 {offsets = [78, 0], sizes = [76, 90], strides = [1, 1]} : vector<154x90xf32> to vector<76x90xf32>
    %cst_37 = arith.constant dense<0.000000e+00> : vector<26x90xf32>
    %47 = tpu.matmul %37, %46, %cst_37 {dimension_numbers = #tpu.dot_dimension_numbers<[1], [0], [0], [1], [0, 0, 1, 1], [], []>} : vector<26x76xf32>, vector<76x90xf32>, vector<26x90xf32> -> vector<26x90xf32>
    %48 = vector.extract_strided_slice %47 {offsets = [0, 0], sizes = [24, 90], strides = [1, 1]} : vector<26x90xf32> to vector<24x90xf32>
    %c24 = arith.constant 24 : index
    %c0_38 = arith.constant 0 : index
    %49 = vector.load %arg9[%c24, %c0_38] : memref<48x270xf32, #tpu.memory_space<vmem>>, vector<24x90xf32>
    tpu.vector_store %arg9[%c24, %c0_38], %48 {strides = array<i32>} : memref<48x270xf32, #tpu.memory_space<vmem>>, vector<24x90xf32>,
    %50 = vector.extract_strided_slice %47 {offsets = [1, 0], sizes = [24, 90], strides = [1, 1]} : vector<26x90xf32> to vector<24x90xf32>
    %c24_39 = arith.constant 24 : index
    %c90_40 = arith.constant 90 : index
    %51 = vector.load %arg9[%c24_39, %c90_40] : memref<48x270xf32, #tpu.memory_space<vmem>>, vector<24x90xf32>
    tpu.vector_store %arg9[%c24_39, %c90_40], %50 {strides = array<i32>} : memref<48x270xf32, #tpu.memory_space<vmem>>, vector<24x90xf32>,
    %52 = vector.extract_strided_slice %47 {offsets = [2, 0], sizes = [24, 90], strides = [1, 1]} : vector<26x90xf32> to vector<24x90xf32>
    %c24_41 = arith.constant 24 : index
    %c180_42 = arith.constant 180 : index
    %53 = vector.load %arg9[%c24_41, %c180_42] : memref<48x270xf32, #tpu.memory_space<vmem>>, vector<24x90xf32>
    tpu.vector_store %arg9[%c24_41, %c180_42], %52 {strides = array<i32>} : memref<48x270xf32, #tpu.memory_space<vmem>>, vector<24x90xf32>,
    %c0_43 = arith.constant 0 : index
    %c0_44 = arith.constant 0 : index
    %54 = vector.load %arg9[%c0_43, %c0_44] : memref<48x270xf32, #tpu.memory_space<vmem>>, vector<48x270xf32>
    %c0_45 = arith.constant 0 : index
    %c0_46 = arith.constant 0 : index
    %55 = vector.load %arg3[%c0_45, %c0_46] : memref<270x140xf32, #tpu.memory_space<vmem>>, vector<270x140xf32>
    %cst_47 = arith.constant dense<0.000000e+00> : vector<48x140xf32>
    %56 = tpu.matmul %54, %55, %cst_47 {dimension_numbers = #tpu.dot_dimension_numbers<[1], [0], [0], [1], [0, 0, 1, 1], [], []>} : vector<48x270xf32>, vector<270x140xf32>, vector<48x140xf32> -> vector<48x140xf32>
    %c0_48 = arith.constant 0 : index
    %c0_49 = arith.constant 0 : index
    %57 = vector.load %arg4[%c0_48, %c0_49] : memref<1x140xf32, #tpu.memory_space<vmem>>, vector<1x140xf32>
    %58 = vector.broadcast %57 : vector<1x140xf32> to vector<48x140xf32>
    %59 = arith.addf %56, %58 : vector<48x140xf32>
    %cst_50 = arith.constant 0.000000e+00 : f32
    %60 = vector.broadcast %cst_50 : f32 to vector<48x140xf32>
    %61 = arith.maximumf %59, %60 : vector<48x140xf32>
    %62 = vector.extract_strided_slice %61 {offsets = [0, 0], sizes = [46, 140], strides = [1, 1]} : vector<48x140xf32> to vector<46x140xf32>
    %63 = vector.extract_strided_slice %61 {offsets = [1, 0], sizes = [46, 140], strides = [1, 1]} : vector<48x140xf32> to vector<46x140xf32>
    %64 = arith.maximumf %62, %63 : vector<46x140xf32>
    %65 = vector.extract_strided_slice %61 {offsets = [2, 0], sizes = [46, 140], strides = [1, 1]} : vector<48x140xf32> to vector<46x140xf32>
    %66 = arith.maximumf %64, %65 : vector<46x140xf32>
    %67 = tpu.iota {dimensions = array<i32: 1>} : vector<8x22xi32>
    %68 = tpu.iota {dimensions = array<i32: 0>} : vector<8x22xi32>
    %c3_i32_51 = arith.constant 3 : i32
    %69 = vector.broadcast %c3_i32_51 : i32 to vector<8x22xi32>
    %70 = arith.muli %69, %68 : vector<8x22xi32>
    %71 = arith.cmpi eq, %67, %70 : vector<8x22xi32>
    %72 = arith.extui %71 : vector<8x22xi1> to vector<8x22xi32>
    %73 = arith.sitofp %72 : vector<8x22xi32> to vector<8x22xf32>
    %74 = vector.extract_strided_slice %66 {offsets = [0, 0], sizes = [22, 140], strides = [1, 1]} : vector<46x140xf32> to vector<22x140xf32>
    %cst_52 = arith.constant dense<0.000000e+00> : vector<8x140xf32>
    %75 = tpu.matmul %73, %74, %cst_52 {dimension_numbers = #tpu.dot_dimension_numbers<[1], [0], [0], [1], [0, 0, 1, 1], [], []>} : vector<8x22xf32>, vector<22x140xf32>, vector<8x140xf32> -> vector<8x140xf32>
    %c0_53 = arith.constant 0 : index
    %c0_54 = arith.constant 0 : index
    %76 = vector.load %arg5[%c0_53, %c0_54] : memref<1x140xf32, #tpu.memory_space<vmem>>, vector<1x140xf32>
    %77 = vector.broadcast %76 : vector<1x140xf32> to vector<8x140xf32>
    %78 = arith.mulf %75, %77 : vector<8x140xf32>
    %c0_55 = arith.constant 0 : index
    %c0_56 = arith.constant 0 : index
    %79 = vector.load %arg6[%c0_55, %c0_56] : memref<1x140xf32, #tpu.memory_space<vmem>>, vector<1x140xf32>
    %80 = vector.broadcast %79 : vector<1x140xf32> to vector<8x140xf32>
    %81 = arith.addf %78, %80 : vector<8x140xf32>
    %c0_57 = arith.constant 0 : index
    %c0_58 = arith.constant 0 : index
    %82 = vector.load %arg7[%c0_57, %c0_58] : memref<16x140xf32, #tpu.memory_space<vmem>>, vector<8x140xf32>
    tpu.vector_store %arg7[%c0_57, %c0_58], %81 {strides = array<i32>} : memref<16x140xf32, #tpu.memory_space<vmem>>, vector<8x140xf32>,
    %83 = vector.extract_strided_slice %66 {offsets = [24, 0], sizes = [22, 140], strides = [1, 1]} : vector<46x140xf32> to vector<22x140xf32>
    %cst_59 = arith.constant dense<0.000000e+00> : vector<8x140xf32>
    %84 = tpu.matmul %73, %83, %cst_59 {dimension_numbers = #tpu.dot_dimension_numbers<[1], [0], [0], [1], [0, 0, 1, 1], [], []>} : vector<8x22xf32>, vector<22x140xf32>, vector<8x140xf32> -> vector<8x140xf32>
    %c0_60 = arith.constant 0 : index
    %c0_61 = arith.constant 0 : index
    %85 = vector.load %arg5[%c0_60, %c0_61] : memref<1x140xf32, #tpu.memory_space<vmem>>, vector<1x140xf32>
    %86 = vector.broadcast %85 : vector<1x140xf32> to vector<8x140xf32>
    %87 = arith.mulf %84, %86 : vector<8x140xf32>
    %c0_62 = arith.constant 0 : index
    %c0_63 = arith.constant 0 : index
    %88 = vector.load %arg6[%c0_62, %c0_63] : memref<1x140xf32, #tpu.memory_space<vmem>>, vector<1x140xf32>
    %89 = vector.broadcast %88 : vector<1x140xf32> to vector<8x140xf32>
    %90 = arith.addf %87, %89 : vector<8x140xf32>
    %c8 = arith.constant 8 : index
    %c0_64 = arith.constant 0 : index
    %91 = vector.load %arg7[%c8, %c0_64] : memref<16x140xf32, #tpu.memory_space<vmem>>, vector<8x140xf32>
    tpu.vector_store %arg7[%c8, %c0_64], %90 {strides = array<i32>} : memref<16x140xf32, #tpu.memory_space<vmem>>, vector<8x140xf32>,
    return
  }
}

module attributes {stable_mosaic.version = 11 : i64} {
  func.func @_lstm_head_kernel(%arg0: memref<14x166xf32, #tpu.memory_space<vmem>>, %arg1: memref<166x1024xf32, #tpu.memory_space<vmem>>, %arg2: memref<1x1024xf32, #tpu.memory_space<vmem>>, %arg3: memref<256x1024xf32, #tpu.memory_space<vmem>>, %arg4: memref<1792x128xf32, #tpu.memory_space<vmem>>, %arg5: memref<1x128xf32, #tpu.memory_space<vmem>>, %arg6: memref<1x128xf32, #tpu.memory_space<vmem>>, %arg7: memref<1x1xf32, #tpu.memory_space<vmem>>, %arg8: memref<2x1xf32, #tpu.memory_space<vmem>>, %arg9: memref<14x1024xf32, #tpu.memory_space<vmem>>, %arg10: memref<2x256xf32, #tpu.memory_space<vmem>>, %arg11: memref<2x256xf32, #tpu.memory_space<vmem>>, %arg12: memref<2x1792xf32, #tpu.memory_space<vmem>>) attributes {dimension_semantics = [], scalar_prefetch = 0 : i64, scratch_operands = 4 : i64, tpu.core_type = #tpu.core_type<tc>} {
    %c0 = arith.constant 0 : index
    %c0_0 = arith.constant 0 : index
    %0 = vector.load %arg0[%c0, %c0_0] : memref<14x166xf32, #tpu.memory_space<vmem>>, vector<14x166xf32>
    %c0_1 = arith.constant 0 : index
    %c0_2 = arith.constant 0 : index
    %1 = vector.load %arg1[%c0_1, %c0_2] : memref<166x1024xf32, #tpu.memory_space<vmem>>, vector<166x1024xf32>
    %cst = arith.constant dense<0.000000e+00> : vector<14x1024xf32>
    %2 = tpu.matmul %0, %1, %cst {dimension_numbers = #tpu.dot_dimension_numbers<[1], [0], [0], [1], [0, 0, 1, 1], [], []>} : vector<14x166xf32>, vector<166x1024xf32>, vector<14x1024xf32> -> vector<14x1024xf32>
    %c0_3 = arith.constant 0 : index
    %c0_4 = arith.constant 0 : index
    %3 = vector.load %arg2[%c0_3, %c0_4] : memref<1x1024xf32, #tpu.memory_space<vmem>>, vector<1x1024xf32>
    %4 = vector.broadcast %3 : vector<1x1024xf32> to vector<14x1024xf32>
    %5 = arith.addf %2, %4 : vector<14x1024xf32>
    %c0_5 = arith.constant 0 : index
    %c0_6 = arith.constant 0 : index
    %6 = vector.load %arg9[%c0_5, %c0_6] : memref<14x1024xf32, #tpu.memory_space<vmem>>, vector<14x1024xf32>
    tpu.vector_store %arg9[%c0_5, %c0_6], %5 {strides = array<i32>} : memref<14x1024xf32, #tpu.memory_space<vmem>>, vector<14x1024xf32>,
    %c0_7 = arith.constant 0 : index
    %c0_8 = arith.constant 0 : index
    %7 = vector.load %arg3[%c0_7, %c0_8] : memref<256x1024xf32, #tpu.memory_space<vmem>>, vector<256x1024xf32>
    %cst_9 = arith.constant 0.000000e+00 : f32
    %8 = vector.broadcast %cst_9 : f32 to vector<2x256xf32>
    %c0_10 = arith.constant 0 : index
    %c0_11 = arith.constant 0 : index
    %9 = vector.load %arg10[%c0_10, %c0_11] : memref<2x256xf32, #tpu.memory_space<vmem>>, vector<2x256xf32>
    tpu.vector_store %arg10[%c0_10, %c0_11], %8 {strides = array<i32>} : memref<2x256xf32, #tpu.memory_space<vmem>>, vector<2x256xf32>,
    %cst_12 = arith.constant 0.000000e+00 : f32
    %10 = vector.broadcast %cst_12 : f32 to vector<2x256xf32>
    %c0_13 = arith.constant 0 : index
    %c0_14 = arith.constant 0 : index
    %11 = vector.load %arg11[%c0_13, %c0_14] : memref<2x256xf32, #tpu.memory_space<vmem>>, vector<2x256xf32>
    tpu.vector_store %arg11[%c0_13, %c0_14], %10 {strides = array<i32>} : memref<2x256xf32, #tpu.memory_space<vmem>>, vector<2x256xf32>,
    %c0_15 = arith.constant 0 : index
    %c0_16 = arith.constant 0 : index
    %12 = vector.load %arg10[%c0_15, %c0_16] : memref<2x256xf32, #tpu.memory_space<vmem>>, vector<2x256xf32>
    %cst_17 = arith.constant dense<0.000000e+00> : vector<2x1024xf32>
    %13 = tpu.matmul %12, %7, %cst_17 {dimension_numbers = #tpu.dot_dimension_numbers<[1], [0], [0], [1], [0, 0, 1, 1], [], []>} : vector<2x256xf32>, vector<256x1024xf32>, vector<2x1024xf32> -> vector<2x1024xf32>
    %14 = vector.extract_strided_slice %13 {offsets = [0, 0], sizes = [2, 512], strides = [1, 1]} : vector<2x1024xf32> to vector<2x512xf32>
    %c0_18 = arith.constant 0 : index
    %c0_19 = arith.constant 0 : index
    %15 = vector.load %arg9[%c0_18, %c0_19] : memref<14x1024xf32, #tpu.memory_space<vmem>>, vector<2x512xf32>
    %16 = arith.addf %14, %15 : vector<2x512xf32>
    %17 = vector.extract_strided_slice %16 {offsets = [0, 0], sizes = [2, 128], strides = [1, 1]} : vector<2x512xf32> to vector<2x128xf32>
    %18 = arith.negf %17 : vector<2x128xf32>
    %19 = math.exp %18 : vector<2x128xf32>
    %cst_20 = arith.constant 1.000000e+00 : f32
    %20 = vector.broadcast %cst_20 : f32 to vector<2x128xf32>
    %21 = arith.addf %20, %19 : vector<2x128xf32>
    %22 = arith.divf %20, %21 : vector<2x128xf32>
    %23 = vector.extract_strided_slice %16 {offsets = [0, 128], sizes = [2, 128], strides = [1, 1]} : vector<2x512xf32> to vector<2x128xf32>
    %24 = arith.negf %23 : vector<2x128xf32>
    %25 = math.exp %24 : vector<2x128xf32>
    %cst_21 = arith.constant 1.000000e+00 : f32
    %26 = vector.broadcast %cst_21 : f32 to vector<2x128xf32>
    %27 = arith.addf %26, %25 : vector<2x128xf32>
    %28 = arith.divf %26, %27 : vector<2x128xf32>
    %29 = vector.extract_strided_slice %16 {offsets = [0, 256], sizes = [2, 128], strides = [1, 1]} : vector<2x512xf32> to vector<2x128xf32>
    %30 = math.tanh %29 : vector<2x128xf32>
    %31 = vector.extract_strided_slice %16 {offsets = [0, 384], sizes = [2, 128], strides = [1, 1]} : vector<2x512xf32> to vector<2x128xf32>
    %32 = arith.negf %31 : vector<2x128xf32>
    %33 = math.exp %32 : vector<2x128xf32>
    %cst_22 = arith.constant 1.000000e+00 : f32
    %34 = vector.broadcast %cst_22 : f32 to vector<2x128xf32>
    %35 = arith.addf %34, %33 : vector<2x128xf32>
    %36 = arith.divf %34, %35 : vector<2x128xf32>
    %c0_23 = arith.constant 0 : index
    %c0_24 = arith.constant 0 : index
    %37 = vector.load %arg11[%c0_23, %c0_24] : memref<2x256xf32, #tpu.memory_space<vmem>>, vector<2x128xf32>
    %38 = arith.mulf %28, %37 : vector<2x128xf32>
    %39 = arith.mulf %22, %30 : vector<2x128xf32>
    %40 = arith.addf %38, %39 : vector<2x128xf32>
    %41 = math.tanh %40 : vector<2x128xf32>
    %42 = arith.mulf %36, %41 : vector<2x128xf32>
    %c0_25 = arith.constant 0 : index
    %c0_26 = arith.constant 0 : index
    %43 = vector.load %arg11[%c0_25, %c0_26] : memref<2x256xf32, #tpu.memory_space<vmem>>, vector<2x128xf32>
    tpu.vector_store %arg11[%c0_25, %c0_26], %40 {strides = array<i32>} : memref<2x256xf32, #tpu.memory_space<vmem>>, vector<2x128xf32>,
    %c0_27 = arith.constant 0 : index
    %c0_28 = arith.constant 0 : index
    %44 = vector.load %arg10[%c0_27, %c0_28] : memref<2x256xf32, #tpu.memory_space<vmem>>, vector<2x128xf32>
    tpu.vector_store %arg10[%c0_27, %c0_28], %42 {strides = array<i32>} : memref<2x256xf32, #tpu.memory_space<vmem>>, vector<2x128xf32>,
    %45 = math.tanh %42 : vector<2x128xf32>
    %c0_29 = arith.constant 0 : index
    %c0_30 = arith.constant 0 : index
    %46 = vector.load %arg12[%c0_29, %c0_30] : memref<2x1792xf32, #tpu.memory_space<vmem>>, vector<2x128xf32>
    tpu.vector_store %arg12[%c0_29, %c0_30], %45 {strides = array<i32>} : memref<2x1792xf32, #tpu.memory_space<vmem>>, vector<2x128xf32>,
    %47 = vector.extract_strided_slice %13 {offsets = [0, 512], sizes = [2, 512], strides = [1, 1]} : vector<2x1024xf32> to vector<2x512xf32>
    %c12 = arith.constant 12 : index
    %c512 = arith.constant 512 : index
    %48 = vector.load %arg9[%c12, %c512] : memref<14x1024xf32, #tpu.memory_space<vmem>>, vector<2x512xf32>
    %49 = arith.addf %47, %48 : vector<2x512xf32>
    %50 = vector.extract_strided_slice %49 {offsets = [0, 0], sizes = [2, 128], strides = [1, 1]} : vector<2x512xf32> to vector<2x128xf32>
    %51 = arith.negf %50 : vector<2x128xf32>
    %52 = math.exp %51 : vector<2x128xf32>
    %cst_31 = arith.constant 1.000000e+00 : f32
    %53 = vector.broadcast %cst_31 : f32 to vector<2x128xf32>
    %54 = arith.addf %53, %52 : vector<2x128xf32>
    %55 = arith.divf %53, %54 : vector<2x128xf32>
    %56 = vector.extract_strided_slice %49 {offsets = [0, 128], sizes = [2, 128], strides = [1, 1]} : vector<2x512xf32> to vector<2x128xf32>
    %57 = arith.negf %56 : vector<2x128xf32>
    %58 = math.exp %57 : vector<2x128xf32>
    %cst_32 = arith.constant 1.000000e+00 : f32
    %59 = vector.broadcast %cst_32 : f32 to vector<2x128xf32>
    %60 = arith.addf %59, %58 : vector<2x128xf32>
    %61 = arith.divf %59, %60 : vector<2x128xf32>
    %62 = vector.extract_strided_slice %49 {offsets = [0, 256], sizes = [2, 128], strides = [1, 1]} : vector<2x512xf32> to vector<2x128xf32>
    %63 = math.tanh %62 : vector<2x128xf32>
    %64 = vector.extract_strided_slice %49 {offsets = [0, 384], sizes = [2, 128], strides = [1, 1]} : vector<2x512xf32> to vector<2x128xf32>
    %65 = arith.negf %64 : vector<2x128xf32>
    %66 = math.exp %65 : vector<2x128xf32>
    %cst_33 = arith.constant 1.000000e+00 : f32
    %67 = vector.broadcast %cst_33 : f32 to vector<2x128xf32>
    %68 = arith.addf %67, %66 : vector<2x128xf32>
    %69 = arith.divf %67, %68 : vector<2x128xf32>
    %c0_34 = arith.constant 0 : index
    %c128 = arith.constant 128 : index
    %70 = vector.load %arg11[%c0_34, %c128] : memref<2x256xf32, #tpu.memory_space<vmem>>, vector<2x128xf32>
    %71 = arith.mulf %61, %70 : vector<2x128xf32>
    %72 = arith.mulf %55, %63 : vector<2x128xf32>
    %73 = arith.addf %71, %72 : vector<2x128xf32>
    %74 = math.tanh %73 : vector<2x128xf32>
    %75 = arith.mulf %69, %74 : vector<2x128xf32>
    %c0_35 = arith.constant 0 : index
    %c128_36 = arith.constant 128 : index
    %76 = vector.load %arg11[%c0_35, %c128_36] : memref<2x256xf32, #tpu.memory_space<vmem>>, vector<2x128xf32>
    tpu.vector_store %arg11[%c0_35, %c128_36], %73 {strides = array<i32>} : memref<2x256xf32, #tpu.memory_space<vmem>>, vector<2x128xf32>,
    %c0_37 = arith.constant 0 : index
    %c128_38 = arith.constant 128 : index
    %77 = vector.load %arg10[%c0_37, %c128_38] : memref<2x256xf32, #tpu.memory_space<vmem>>, vector<2x128xf32>
    tpu.vector_store %arg10[%c0_37, %c128_38], %75 {strides = array<i32>} : memref<2x256xf32, #tpu.memory_space<vmem>>, vector<2x128xf32>,
    %78 = math.tanh %75 : vector<2x128xf32>
    %c0_39 = arith.constant 0 : index
    %c1664 = arith.constant 1664 : index
    %79 = vector.load %arg12[%c0_39, %c1664] : memref<2x1792xf32, #tpu.memory_space<vmem>>, vector<2x128xf32>
    tpu.vector_store %arg12[%c0_39, %c1664], %78 {strides = array<i32>} : memref<2x1792xf32, #tpu.memory_space<vmem>>, vector<2x128xf32>,
    %c0_40 = arith.constant 0 : index
    %c0_41 = arith.constant 0 : index
    %80 = vector.load %arg10[%c0_40, %c0_41] : memref<2x256xf32, #tpu.memory_space<vmem>>, vector<2x256xf32>
    %cst_42 = arith.constant dense<0.000000e+00> : vector<2x1024xf32>
    %81 = tpu.matmul %80, %7, %cst_42 {dimension_numbers = #tpu.dot_dimension_numbers<[1], [0], [0], [1], [0, 0, 1, 1], [], []>} : vector<2x256xf32>, vector<256x1024xf32>, vector<2x1024xf32> -> vector<2x1024xf32>
    %82 = vector.extract_strided_slice %81 {offsets = [0, 0], sizes = [2, 512], strides = [1, 1]} : vector<2x1024xf32> to vector<2x512xf32>
    %c2 = arith.constant 2 : index
    %c0_43 = arith.constant 0 : index
    %83 = vector.load %arg9[%c2, %c0_43] : memref<14x1024xf32, #tpu.memory_space<vmem>>, vector<2x512xf32>
    %84 = arith.addf %82, %83 : vector<2x512xf32>
    %85 = vector.extract_strided_slice %84 {offsets = [0, 0], sizes = [2, 128], strides = [1, 1]} : vector<2x512xf32> to vector<2x128xf32>
    %86 = arith.negf %85 : vector<2x128xf32>
    %87 = math.exp %86 : vector<2x128xf32>
    %cst_44 = arith.constant 1.000000e+00 : f32
    %88 = vector.broadcast %cst_44 : f32 to vector<2x128xf32>
    %89 = arith.addf %88, %87 : vector<2x128xf32>
    %90 = arith.divf %88, %89 : vector<2x128xf32>
    %91 = vector.extract_strided_slice %84 {offsets = [0, 128], sizes = [2, 128], strides = [1, 1]} : vector<2x512xf32> to vector<2x128xf32>
    %92 = arith.negf %91 : vector<2x128xf32>
    %93 = math.exp %92 : vector<2x128xf32>
    %cst_45 = arith.constant 1.000000e+00 : f32
    %94 = vector.broadcast %cst_45 : f32 to vector<2x128xf32>
    %95 = arith.addf %94, %93 : vector<2x128xf32>
    %96 = arith.divf %94, %95 : vector<2x128xf32>
    %97 = vector.extract_strided_slice %84 {offsets = [0, 256], sizes = [2, 128], strides = [1, 1]} : vector<2x512xf32> to vector<2x128xf32>
    %98 = math.tanh %97 : vector<2x128xf32>
    %99 = vector.extract_strided_slice %84 {offsets = [0, 384], sizes = [2, 128], strides = [1, 1]} : vector<2x512xf32> to vector<2x128xf32>
    %100 = arith.negf %99 : vector<2x128xf32>
    %101 = math.exp %100 : vector<2x128xf32>
    %cst_46 = arith.constant 1.000000e+00 : f32
    %102 = vector.broadcast %cst_46 : f32 to vector<2x128xf32>
    %103 = arith.addf %102, %101 : vector<2x128xf32>
    %104 = arith.divf %102, %103 : vector<2x128xf32>
    %c0_47 = arith.constant 0 : index
    %c0_48 = arith.constant 0 : index
    %105 = vector.load %arg11[%c0_47, %c0_48] : memref<2x256xf32, #tpu.memory_space<vmem>>, vector<2x128xf32>
    %106 = arith.mulf %96, %105 : vector<2x128xf32>
    %107 = arith.mulf %90, %98 : vector<2x128xf32>
    %108 = arith.addf %106, %107 : vector<2x128xf32>
    %109 = math.tanh %108 : vector<2x128xf32>
    %110 = arith.mulf %104, %109 : vector<2x128xf32>
    %c0_49 = arith.constant 0 : index
    %c0_50 = arith.constant 0 : index
    %111 = vector.load %arg11[%c0_49, %c0_50] : memref<2x256xf32, #tpu.memory_space<vmem>>, vector<2x128xf32>
    tpu.vector_store %arg11[%c0_49, %c0_50], %108 {strides = array<i32>} : memref<2x256xf32, #tpu.memory_space<vmem>>, vector<2x128xf32>,
    %c0_51 = arith.constant 0 : index
    %c0_52 = arith.constant 0 : index
    %112 = vector.load %arg10[%c0_51, %c0_52] : memref<2x256xf32, #tpu.memory_space<vmem>>, vector<2x128xf32>
    tpu.vector_store %arg10[%c0_51, %c0_52], %110 {strides = array<i32>} : memref<2x256xf32, #tpu.memory_space<vmem>>, vector<2x128xf32>,
    %113 = math.tanh %110 : vector<2x128xf32>
    %c0_53 = arith.constant 0 : index
    %c256 = arith.constant 256 : index
    %114 = vector.load %arg12[%c0_53, %c256] : memref<2x1792xf32, #tpu.memory_space<vmem>>, vector<2x128xf32>
    tpu.vector_store %arg12[%c0_53, %c256], %113 {strides = array<i32>} : memref<2x1792xf32, #tpu.memory_space<vmem>>, vector<2x128xf32>,
    %115 = vector.extract_strided_slice %81 {offsets = [0, 512], sizes = [2, 512], strides = [1, 1]} : vector<2x1024xf32> to vector<2x512xf32>
    %c10 = arith.constant 10 : index
    %c512_54 = arith.constant 512 : index
    %116 = vector.load %arg9[%c10, %c512_54] : memref<14x1024xf32, #tpu.memory_space<vmem>>, vector<2x512xf32>
    %117 = arith.addf %115, %116 : vector<2x512xf32>
    %118 = vector.extract_strided_slice %117 {offsets = [0, 0], sizes = [2, 128], strides = [1, 1]} : vector<2x512xf32> to vector<2x128xf32>
    %119 = arith.negf %118 : vector<2x128xf32>
    %120 = math.exp %119 : vector<2x128xf32>
    %cst_55 = arith.constant 1.000000e+00 : f32
    %121 = vector.broadcast %cst_55 : f32 to vector<2x128xf32>
    %122 = arith.addf %121, %120 : vector<2x128xf32>
    %123 = arith.divf %121, %122 : vector<2x128xf32>
    %124 = vector.extract_strided_slice %117 {offsets = [0, 128], sizes = [2, 128], strides = [1, 1]} : vector<2x512xf32> to vector<2x128xf32>
    %125 = arith.negf %124 : vector<2x128xf32>
    %126 = math.exp %125 : vector<2x128xf32>
    %cst_56 = arith.constant 1.000000e+00 : f32
    %127 = vector.broadcast %cst_56 : f32 to vector<2x128xf32>
    %128 = arith.addf %127, %126 : vector<2x128xf32>
    %129 = arith.divf %127, %128 : vector<2x128xf32>
    %130 = vector.extract_strided_slice %117 {offsets = [0, 256], sizes = [2, 128], strides = [1, 1]} : vector<2x512xf32> to vector<2x128xf32>
    %131 = math.tanh %130 : vector<2x128xf32>
    %132 = vector.extract_strided_slice %117 {offsets = [0, 384], sizes = [2, 128], strides = [1, 1]} : vector<2x512xf32> to vector<2x128xf32>
    %133 = arith.negf %132 : vector<2x128xf32>
    %134 = math.exp %133 : vector<2x128xf32>
    %cst_57 = arith.constant 1.000000e+00 : f32
    %135 = vector.broadcast %cst_57 : f32 to vector<2x128xf32>
    %136 = arith.addf %135, %134 : vector<2x128xf32>
    %137 = arith.divf %135, %136 : vector<2x128xf32>
    %c0_58 = arith.constant 0 : index
    %c128_59 = arith.constant 128 : index
    %138 = vector.load %arg11[%c0_58, %c128_59] : memref<2x256xf32, #tpu.memory_space<vmem>>, vector<2x128xf32>
    %139 = arith.mulf %129, %138 : vector<2x128xf32>
    %140 = arith.mulf %123, %131 : vector<2x128xf32>
    %141 = arith.addf %139, %140 : vector<2x128xf32>
    %142 = math.tanh %141 : vector<2x128xf32>
    %143 = arith.mulf %137, %142 : vector<2x128xf32>
    %c0_60 = arith.constant 0 : index
    %c128_61 = arith.constant 128 : index
    %144 = vector.load %arg11[%c0_60, %c128_61] : memref<2x256xf32, #tpu.memory_space<vmem>>, vector<2x128xf32>
    tpu.vector_store %arg11[%c0_60, %c128_61], %141 {strides = array<i32>} : memref<2x256xf32, #tpu.memory_space<vmem>>, vector<2x128xf32>,
    %c0_62 = arith.constant 0 : index
    %c128_63 = arith.constant 128 : index
    %145 = vector.load %arg10[%c0_62, %c128_63] : memref<2x256xf32, #tpu.memory_space<vmem>>, vector<2x128xf32>
    tpu.vector_store %arg10[%c0_62, %c128_63], %143 {strides = array<i32>} : memref<2x256xf32, #tpu.memory_space<vmem>>, vector<2x128xf32>,
    %146 = math.tanh %143 : vector<2x128xf32>
    %c0_64 = arith.constant 0 : index
    %c1408 = arith.constant 1408 : index
    %147 = vector.load %arg12[%c0_64, %c1408] : memref<2x1792xf32, #tpu.memory_space<vmem>>, vector<2x128xf32>
    tpu.vector_store %arg12[%c0_64, %c1408], %146 {strides = array<i32>} : memref<2x1792xf32, #tpu.memory_space<vmem>>, vector<2x128xf32>,
    %c0_65 = arith.constant 0 : index
    %c0_66 = arith.constant 0 : index
    %148 = vector.load %arg10[%c0_65, %c0_66] : memref<2x256xf32, #tpu.memory_space<vmem>>, vector<2x256xf32>
    %cst_67 = arith.constant dense<0.000000e+00> : vector<2x1024xf32>
    %149 = tpu.matmul %148, %7, %cst_67 {dimension_numbers = #tpu.dot_dimension_numbers<[1], [0], [0], [1], [0, 0, 1, 1], [], []>} : vector<2x256xf32>, vector<256x1024xf32>, vector<2x1024xf32> -> vector<2x1024xf32>
    %150 = vector.extract_strided_slice %149 {offsets = [0, 0], sizes = [2, 512], strides = [1, 1]} : vector<2x1024xf32> to vector<2x512xf32>
    %c4 = arith.constant 4 : index
    %c0_68 = arith.constant 0 : index
    %151 = vector.load %arg9[%c4, %c0_68] : memref<14x1024xf32, #tpu.memory_space<vmem>>, vector<2x512xf32>
    %152 = arith.addf %150, %151 : vector<2x512xf32>
    %153 = vector.extract_strided_slice %152 {offsets = [0, 0], sizes = [2, 128], strides = [1, 1]} : vector<2x512xf32> to vector<2x128xf32>
    %154 = arith.negf %153 : vector<2x128xf32>
    %155 = math.exp %154 : vector<2x128xf32>
    %cst_69 = arith.constant 1.000000e+00 : f32
    %156 = vector.broadcast %cst_69 : f32 to vector<2x128xf32>
    %157 = arith.addf %156, %155 : vector<2x128xf32>
    %158 = arith.divf %156, %157 : vector<2x128xf32>
    %159 = vector.extract_strided_slice %152 {offsets = [0, 128], sizes = [2, 128], strides = [1, 1]} : vector<2x512xf32> to vector<2x128xf32>
    %160 = arith.negf %159 : vector<2x128xf32>
    %161 = math.exp %160 : vector<2x128xf32>
    %cst_70 = arith.constant 1.000000e+00 : f32
    %162 = vector.broadcast %cst_70 : f32 to vector<2x128xf32>
    %163 = arith.addf %162, %161 : vector<2x128xf32>
    %164 = arith.divf %162, %163 : vector<2x128xf32>
    %165 = vector.extract_strided_slice %152 {offsets = [0, 256], sizes = [2, 128], strides = [1, 1]} : vector<2x512xf32> to vector<2x128xf32>
    %166 = math.tanh %165 : vector<2x128xf32>
    %167 = vector.extract_strided_slice %152 {offsets = [0, 384], sizes = [2, 128], strides = [1, 1]} : vector<2x512xf32> to vector<2x128xf32>
    %168 = arith.negf %167 : vector<2x128xf32>
    %169 = math.exp %168 : vector<2x128xf32>
    %cst_71 = arith.constant 1.000000e+00 : f32
    %170 = vector.broadcast %cst_71 : f32 to vector<2x128xf32>
    %171 = arith.addf %170, %169 : vector<2x128xf32>
    %172 = arith.divf %170, %171 : vector<2x128xf32>
    %c0_72 = arith.constant 0 : index
    %c0_73 = arith.constant 0 : index
    %173 = vector.load %arg11[%c0_72, %c0_73] : memref<2x256xf32, #tpu.memory_space<vmem>>, vector<2x128xf32>
    %174 = arith.mulf %164, %173 : vector<2x128xf32>
    %175 = arith.mulf %158, %166 : vector<2x128xf32>
    %176 = arith.addf %174, %175 : vector<2x128xf32>
    %177 = math.tanh %176 : vector<2x128xf32>
    %178 = arith.mulf %172, %177 : vector<2x128xf32>
    %c0_74 = arith.constant 0 : index
    %c0_75 = arith.constant 0 : index
    %179 = vector.load %arg11[%c0_74, %c0_75] : memref<2x256xf32, #tpu.memory_space<vmem>>, vector<2x128xf32>
    tpu.vector_store %arg11[%c0_74, %c0_75], %176 {strides = array<i32>} : memref<2x256xf32, #tpu.memory_space<vmem>>, vector<2x128xf32>,
    %c0_76 = arith.constant 0 : index
    %c0_77 = arith.constant 0 : index
    %180 = vector.load %arg10[%c0_76, %c0_77] : memref<2x256xf32, #tpu.memory_space<vmem>>, vector<2x128xf32>
    tpu.vector_store %arg10[%c0_76, %c0_77], %178 {strides = array<i32>} : memref<2x256xf32, #tpu.memory_space<vmem>>, vector<2x128xf32>,
    %181 = math.tanh %178 : vector<2x128xf32>
    %c0_78 = arith.constant 0 : index
    %c512_79 = arith.constant 512 : index
    %182 = vector.load %arg12[%c0_78, %c512_79] : memref<2x1792xf32, #tpu.memory_space<vmem>>, vector<2x128xf32>
    tpu.vector_store %arg12[%c0_78, %c512_79], %181 {strides = array<i32>} : memref<2x1792xf32, #tpu.memory_space<vmem>>, vector<2x128xf32>,
    %183 = vector.extract_strided_slice %149 {offsets = [0, 512], sizes = [2, 512], strides = [1, 1]} : vector<2x1024xf32> to vector<2x512xf32>
    %c8 = arith.constant 8 : index
    %c512_80 = arith.constant 512 : index
    %184 = vector.load %arg9[%c8, %c512_80] : memref<14x1024xf32, #tpu.memory_space<vmem>>, vector<2x512xf32>
    %185 = arith.addf %183, %184 : vector<2x512xf32>
    %186 = vector.extract_strided_slice %185 {offsets = [0, 0], sizes = [2, 128], strides = [1, 1]} : vector<2x512xf32> to vector<2x128xf32>
    %187 = arith.negf %186 : vector<2x128xf32>
    %188 = math.exp %187 : vector<2x128xf32>
    %cst_81 = arith.constant 1.000000e+00 : f32
    %189 = vector.broadcast %cst_81 : f32 to vector<2x128xf32>
    %190 = arith.addf %189, %188 : vector<2x128xf32>
    %191 = arith.divf %189, %190 : vector<2x128xf32>
    %192 = vector.extract_strided_slice %185 {offsets = [0, 128], sizes = [2, 128], strides = [1, 1]} : vector<2x512xf32> to vector<2x128xf32>
    %193 = arith.negf %192 : vector<2x128xf32>
    %194 = math.exp %193 : vector<2x128xf32>
    %cst_82 = arith.constant 1.000000e+00 : f32
    %195 = vector.broadcast %cst_82 : f32 to vector<2x128xf32>
    %196 = arith.addf %195, %194 : vector<2x128xf32>
    %197 = arith.divf %195, %196 : vector<2x128xf32>
    %198 = vector.extract_strided_slice %185 {offsets = [0, 256], sizes = [2, 128], strides = [1, 1]} : vector<2x512xf32> to vector<2x128xf32>
    %199 = math.tanh %198 : vector<2x128xf32>
    %200 = vector.extract_strided_slice %185 {offsets = [0, 384], sizes = [2, 128], strides = [1, 1]} : vector<2x512xf32> to vector<2x128xf32>
    %201 = arith.negf %200 : vector<2x128xf32>
    %202 = math.exp %201 : vector<2x128xf32>
    %cst_83 = arith.constant 1.000000e+00 : f32
    %203 = vector.broadcast %cst_83 : f32 to vector<2x128xf32>
    %204 = arith.addf %203, %202 : vector<2x128xf32>
    %205 = arith.divf %203, %204 : vector<2x128xf32>
    %c0_84 = arith.constant 0 : index
    %c128_85 = arith.constant 128 : index
    %206 = vector.load %arg11[%c0_84, %c128_85] : memref<2x256xf32, #tpu.memory_space<vmem>>, vector<2x128xf32>
    %207 = arith.mulf %197, %206 : vector<2x128xf32>
    %208 = arith.mulf %191, %199 : vector<2x128xf32>
    %209 = arith.addf %207, %208 : vector<2x128xf32>
    %210 = math.tanh %209 : vector<2x128xf32>
    %211 = arith.mulf %205, %210 : vector<2x128xf32>
    %c0_86 = arith.constant 0 : index
    %c128_87 = arith.constant 128 : index
    %212 = vector.load %arg11[%c0_86, %c128_87] : memref<2x256xf32, #tpu.memory_space<vmem>>, vector<2x128xf32>
    tpu.vector_store %arg11[%c0_86, %c128_87], %209 {strides = array<i32>} : memref<2x256xf32, #tpu.memory_space<vmem>>, vector<2x128xf32>,
    %c0_88 = arith.constant 0 : index
    %c128_89 = arith.constant 128 : index
    %213 = vector.load %arg10[%c0_88, %c128_89] : memref<2x256xf32, #tpu.memory_space<vmem>>, vector<2x128xf32>
    tpu.vector_store %arg10[%c0_88, %c128_89], %211 {strides = array<i32>} : memref<2x256xf32, #tpu.memory_space<vmem>>, vector<2x128xf32>,
    %214 = math.tanh %211 : vector<2x128xf32>
    %c0_90 = arith.constant 0 : index
    %c1152 = arith.constant 1152 : index
    %215 = vector.load %arg12[%c0_90, %c1152] : memref<2x1792xf32, #tpu.memory_space<vmem>>, vector<2x128xf32>
    tpu.vector_store %arg12[%c0_90, %c1152], %214 {strides = array<i32>} : memref<2x1792xf32, #tpu.memory_space<vmem>>, vector<2x128xf32>,
    %c0_91 = arith.constant 0 : index
    %c0_92 = arith.constant 0 : index
    %216 = vector.load %arg10[%c0_91, %c0_92] : memref<2x256xf32, #tpu.memory_space<vmem>>, vector<2x256xf32>
    %cst_93 = arith.constant dense<0.000000e+00> : vector<2x1024xf32>
    %217 = tpu.matmul %216, %7, %cst_93 {dimension_numbers = #tpu.dot_dimension_numbers<[1], [0], [0], [1], [0, 0, 1, 1], [], []>} : vector<2x256xf32>, vector<256x1024xf32>, vector<2x1024xf32> -> vector<2x1024xf32>
    %218 = vector.extract_strided_slice %217 {offsets = [0, 0], sizes = [2, 512], strides = [1, 1]} : vector<2x1024xf32> to vector<2x512xf32>
    %c6 = arith.constant 6 : index
    %c0_94 = arith.constant 0 : index
    %219 = vector.load %arg9[%c6, %c0_94] : memref<14x1024xf32, #tpu.memory_space<vmem>>, vector<2x512xf32>
    %220 = arith.addf %218, %219 : vector<2x512xf32>
    %221 = vector.extract_strided_slice %220 {offsets = [0, 0], sizes = [2, 128], strides = [1, 1]} : vector<2x512xf32> to vector<2x128xf32>
    %222 = arith.negf %221 : vector<2x128xf32>
    %223 = math.exp %222 : vector<2x128xf32>
    %cst_95 = arith.constant 1.000000e+00 : f32
    %224 = vector.broadcast %cst_95 : f32 to vector<2x128xf32>
    %225 = arith.addf %224, %223 : vector<2x128xf32>
    %226 = arith.divf %224, %225 : vector<2x128xf32>
    %227 = vector.extract_strided_slice %220 {offsets = [0, 128], sizes = [2, 128], strides = [1, 1]} : vector<2x512xf32> to vector<2x128xf32>
    %228 = arith.negf %227 : vector<2x128xf32>
    %229 = math.exp %228 : vector<2x128xf32>
    %cst_96 = arith.constant 1.000000e+00 : f32
    %230 = vector.broadcast %cst_96 : f32 to vector<2x128xf32>
    %231 = arith.addf %230, %229 : vector<2x128xf32>
    %232 = arith.divf %230, %231 : vector<2x128xf32>
    %233 = vector.extract_strided_slice %220 {offsets = [0, 256], sizes = [2, 128], strides = [1, 1]} : vector<2x512xf32> to vector<2x128xf32>
    %234 = math.tanh %233 : vector<2x128xf32>
    %235 = vector.extract_strided_slice %220 {offsets = [0, 384], sizes = [2, 128], strides = [1, 1]} : vector<2x512xf32> to vector<2x128xf32>
    %236 = arith.negf %235 : vector<2x128xf32>
    %237 = math.exp %236 : vector<2x128xf32>
    %cst_97 = arith.constant 1.000000e+00 : f32
    %238 = vector.broadcast %cst_97 : f32 to vector<2x128xf32>
    %239 = arith.addf %238, %237 : vector<2x128xf32>
    %240 = arith.divf %238, %239 : vector<2x128xf32>
    %c0_98 = arith.constant 0 : index
    %c0_99 = arith.constant 0 : index
    %241 = vector.load %arg11[%c0_98, %c0_99] : memref<2x256xf32, #tpu.memory_space<vmem>>, vector<2x128xf32>
    %242 = arith.mulf %232, %241 : vector<2x128xf32>
    %243 = arith.mulf %226, %234 : vector<2x128xf32>
    %244 = arith.addf %242, %243 : vector<2x128xf32>
    %245 = math.tanh %244 : vector<2x128xf32>
    %246 = arith.mulf %240, %245 : vector<2x128xf32>
    %c0_100 = arith.constant 0 : index
    %c0_101 = arith.constant 0 : index
    %247 = vector.load %arg11[%c0_100, %c0_101] : memref<2x256xf32, #tpu.memory_space<vmem>>, vector<2x128xf32>
    tpu.vector_store %arg11[%c0_100, %c0_101], %244 {strides = array<i32>} : memref<2x256xf32, #tpu.memory_space<vmem>>, vector<2x128xf32>,
    %c0_102 = arith.constant 0 : index
    %c0_103 = arith.constant 0 : index
    %248 = vector.load %arg10[%c0_102, %c0_103] : memref<2x256xf32, #tpu.memory_space<vmem>>, vector<2x128xf32>
    tpu.vector_store %arg10[%c0_102, %c0_103], %246 {strides = array<i32>} : memref<2x256xf32, #tpu.memory_space<vmem>>, vector<2x128xf32>,
    %249 = math.tanh %246 : vector<2x128xf32>
    %c0_104 = arith.constant 0 : index
    %c768 = arith.constant 768 : index
    %250 = vector.load %arg12[%c0_104, %c768] : memref<2x1792xf32, #tpu.memory_space<vmem>>, vector<2x128xf32>
    tpu.vector_store %arg12[%c0_104, %c768], %249 {strides = array<i32>} : memref<2x1792xf32, #tpu.memory_space<vmem>>, vector<2x128xf32>,
    %251 = vector.extract_strided_slice %217 {offsets = [0, 512], sizes = [2, 512], strides = [1, 1]} : vector<2x1024xf32> to vector<2x512xf32>
    %c6_105 = arith.constant 6 : index
    %c512_106 = arith.constant 512 : index
    %252 = vector.load %arg9[%c6_105, %c512_106] : memref<14x1024xf32, #tpu.memory_space<vmem>>, vector<2x512xf32>
    %253 = arith.addf %251, %252 : vector<2x512xf32>
    %254 = vector.extract_strided_slice %253 {offsets = [0, 0], sizes = [2, 128], strides = [1, 1]} : vector<2x512xf32> to vector<2x128xf32>
    %255 = arith.negf %254 : vector<2x128xf32>
    %256 = math.exp %255 : vector<2x128xf32>
    %cst_107 = arith.constant 1.000000e+00 : f32
    %257 = vector.broadcast %cst_107 : f32 to vector<2x128xf32>
    %258 = arith.addf %257, %256 : vector<2x128xf32>
    %259 = arith.divf %257, %258 : vector<2x128xf32>
    %260 = vector.extract_strided_slice %253 {offsets = [0, 128], sizes = [2, 128], strides = [1, 1]} : vector<2x512xf32> to vector<2x128xf32>
    %261 = arith.negf %260 : vector<2x128xf32>
    %262 = math.exp %261 : vector<2x128xf32>
    %cst_108 = arith.constant 1.000000e+00 : f32
    %263 = vector.broadcast %cst_108 : f32 to vector<2x128xf32>
    %264 = arith.addf %263, %262 : vector<2x128xf32>
    %265 = arith.divf %263, %264 : vector<2x128xf32>
    %266 = vector.extract_strided_slice %253 {offsets = [0, 256], sizes = [2, 128], strides = [1, 1]} : vector<2x512xf32> to vector<2x128xf32>
    %267 = math.tanh %266 : vector<2x128xf32>
    %268 = vector.extract_strided_slice %253 {offsets = [0, 384], sizes = [2, 128], strides = [1, 1]} : vector<2x512xf32> to vector<2x128xf32>
    %269 = arith.negf %268 : vector<2x128xf32>
    %270 = math.exp %269 : vector<2x128xf32>
    %cst_109 = arith.constant 1.000000e+00 : f32
    %271 = vector.broadcast %cst_109 : f32 to vector<2x128xf32>
    %272 = arith.addf %271, %270 : vector<2x128xf32>
    %273 = arith.divf %271, %272 : vector<2x128xf32>
    %c0_110 = arith.constant 0 : index
    %c128_111 = arith.constant 128 : index
    %274 = vector.load %arg11[%c0_110, %c128_111] : memref<2x256xf32, #tpu.memory_space<vmem>>, vector<2x128xf32>
    %275 = arith.mulf %265, %274 : vector<2x128xf32>
    %276 = arith.mulf %259, %267 : vector<2x128xf32>
    %277 = arith.addf %275, %276 : vector<2x128xf32>
    %278 = math.tanh %277 : vector<2x128xf32>
    %279 = arith.mulf %273, %278 : vector<2x128xf32>
    %c0_112 = arith.constant 0 : index
    %c128_113 = arith.constant 128 : index
    %280 = vector.load %arg11[%c0_112, %c128_113] : memref<2x256xf32, #tpu.memory_space<vmem>>, vector<2x128xf32>
    tpu.vector_store %arg11[%c0_112, %c128_113], %277 {strides = array<i32>} : memref<2x256xf32, #tpu.memory_space<vmem>>, vector<2x128xf32>,
    %c0_114 = arith.constant 0 : index
    %c128_115 = arith.constant 128 : index
    %281 = vector.load %arg10[%c0_114, %c128_115] : memref<2x256xf32, #tpu.memory_space<vmem>>, vector<2x128xf32>
    tpu.vector_store %arg10[%c0_114, %c128_115], %279 {strides = array<i32>} : memref<2x256xf32, #tpu.memory_space<vmem>>, vector<2x128xf32>,
    %282 = math.tanh %279 : vector<2x128xf32>
    %c0_116 = arith.constant 0 : index
    %c896 = arith.constant 896 : index
    %283 = vector.load %arg12[%c0_116, %c896] : memref<2x1792xf32, #tpu.memory_space<vmem>>, vector<2x128xf32>
    tpu.vector_store %arg12[%c0_116, %c896], %282 {strides = array<i32>} : memref<2x1792xf32, #tpu.memory_space<vmem>>, vector<2x128xf32>,
    %c0_117 = arith.constant 0 : index
    %c0_118 = arith.constant 0 : index
    %284 = vector.load %arg10[%c0_117, %c0_118] : memref<2x256xf32, #tpu.memory_space<vmem>>, vector<2x256xf32>
    %cst_119 = arith.constant dense<0.000000e+00> : vector<2x1024xf32>
    %285 = tpu.matmul %284, %7, %cst_119 {dimension_numbers = #tpu.dot_dimension_numbers<[1], [0], [0], [1], [0, 0, 1, 1], [], []>} : vector<2x256xf32>, vector<256x1024xf32>, vector<2x1024xf32> -> vector<2x1024xf32>
    %286 = vector.extract_strided_slice %285 {offsets = [0, 0], sizes = [2, 512], strides = [1, 1]} : vector<2x1024xf32> to vector<2x512xf32>
    %c8_120 = arith.constant 8 : index
    %c0_121 = arith.constant 0 : index
    %287 = vector.load %arg9[%c8_120, %c0_121] : memref<14x1024xf32, #tpu.memory_space<vmem>>, vector<2x512xf32>
    %288 = arith.addf %286, %287 : vector<2x512xf32>
    %289 = vector.extract_strided_slice %288 {offsets = [0, 0], sizes = [2, 128], strides = [1, 1]} : vector<2x512xf32> to vector<2x128xf32>
    %290 = arith.negf %289 : vector<2x128xf32>
    %291 = math.exp %290 : vector<2x128xf32>
    %cst_122 = arith.constant 1.000000e+00 : f32
    %292 = vector.broadcast %cst_122 : f32 to vector<2x128xf32>
    %293 = arith.addf %292, %291 : vector<2x128xf32>
    %294 = arith.divf %292, %293 : vector<2x128xf32>
    %295 = vector.extract_strided_slice %288 {offsets = [0, 128], sizes = [2, 128], strides = [1, 1]} : vector<2x512xf32> to vector<2x128xf32>
    %296 = arith.negf %295 : vector<2x128xf32>
    %297 = math.exp %296 : vector<2x128xf32>
    %cst_123 = arith.constant 1.000000e+00 : f32
    %298 = vector.broadcast %cst_123 : f32 to vector<2x128xf32>
    %299 = arith.addf %298, %297 : vector<2x128xf32>
    %300 = arith.divf %298, %299 : vector<2x128xf32>
    %301 = vector.extract_strided_slice %288 {offsets = [0, 256], sizes = [2, 128], strides = [1, 1]} : vector<2x512xf32> to vector<2x128xf32>
    %302 = math.tanh %301 : vector<2x128xf32>
    %303 = vector.extract_strided_slice %288 {offsets = [0, 384], sizes = [2, 128], strides = [1, 1]} : vector<2x512xf32> to vector<2x128xf32>
    %304 = arith.negf %303 : vector<2x128xf32>
    %305 = math.exp %304 : vector<2x128xf32>
    %cst_124 = arith.constant 1.000000e+00 : f32
    %306 = vector.broadcast %cst_124 : f32 to vector<2x128xf32>
    %307 = arith.addf %306, %305 : vector<2x128xf32>
    %308 = arith.divf %306, %307 : vector<2x128xf32>
    %c0_125 = arith.constant 0 : index
    %c0_126 = arith.constant 0 : index
    %309 = vector.load %arg11[%c0_125, %c0_126] : memref<2x256xf32, #tpu.memory_space<vmem>>, vector<2x128xf32>
    %310 = arith.mulf %300, %309 : vector<2x128xf32>
    %311 = arith.mulf %294, %302 : vector<2x128xf32>
    %312 = arith.addf %310, %311 : vector<2x128xf32>
    %313 = math.tanh %312 : vector<2x128xf32>
    %314 = arith.mulf %308, %313 : vector<2x128xf32>
    %c0_127 = arith.constant 0 : index
    %c0_128 = arith.constant 0 : index
    %315 = vector.load %arg11[%c0_127, %c0_128] : memref<2x256xf32, #tpu.memory_space<vmem>>, vector<2x128xf32>
    tpu.vector_store %arg11[%c0_127, %c0_128], %312 {strides = array<i32>} : memref<2x256xf32, #tpu.memory_space<vmem>>, vector<2x128xf32>,
    %c0_129 = arith.constant 0 : index
    %c0_130 = arith.constant 0 : index
    %316 = vector.load %arg10[%c0_129, %c0_130] : memref<2x256xf32, #tpu.memory_space<vmem>>, vector<2x128xf32>
    tpu.vector_store %arg10[%c0_129, %c0_130], %314 {strides = array<i32>} : memref<2x256xf32, #tpu.memory_space<vmem>>, vector<2x128xf32>,
    %317 = math.tanh %314 : vector<2x128xf32>
    %c0_131 = arith.constant 0 : index
    %c1024 = arith.constant 1024 : index
    %318 = vector.load %arg12[%c0_131, %c1024] : memref<2x1792xf32, #tpu.memory_space<vmem>>, vector<2x128xf32>
    tpu.vector_store %arg12[%c0_131, %c1024], %317 {strides = array<i32>} : memref<2x1792xf32, #tpu.memory_space<vmem>>, vector<2x128xf32>,
    %319 = vector.extract_strided_slice %285 {offsets = [0, 512], sizes = [2, 512], strides = [1, 1]} : vector<2x1024xf32> to vector<2x512xf32>
    %c4_132 = arith.constant 4 : index
    %c512_133 = arith.constant 512 : index
    %320 = vector.load %arg9[%c4_132, %c512_133] : memref<14x1024xf32, #tpu.memory_space<vmem>>, vector<2x512xf32>
    %321 = arith.addf %319, %320 : vector<2x512xf32>
    %322 = vector.extract_strided_slice %321 {offsets = [0, 0], sizes = [2, 128], strides = [1, 1]} : vector<2x512xf32> to vector<2x128xf32>
    %323 = arith.negf %322 : vector<2x128xf32>
    %324 = math.exp %323 : vector<2x128xf32>
    %cst_134 = arith.constant 1.000000e+00 : f32
    %325 = vector.broadcast %cst_134 : f32 to vector<2x128xf32>
    %326 = arith.addf %325, %324 : vector<2x128xf32>
    %327 = arith.divf %325, %326 : vector<2x128xf32>
    %328 = vector.extract_strided_slice %321 {offsets = [0, 128], sizes = [2, 128], strides = [1, 1]} : vector<2x512xf32> to vector<2x128xf32>
    %329 = arith.negf %328 : vector<2x128xf32>
    %330 = math.exp %329 : vector<2x128xf32>
    %cst_135 = arith.constant 1.000000e+00 : f32
    %331 = vector.broadcast %cst_135 : f32 to vector<2x128xf32>
    %332 = arith.addf %331, %330 : vector<2x128xf32>
    %333 = arith.divf %331, %332 : vector<2x128xf32>
    %334 = vector.extract_strided_slice %321 {offsets = [0, 256], sizes = [2, 128], strides = [1, 1]} : vector<2x512xf32> to vector<2x128xf32>
    %335 = math.tanh %334 : vector<2x128xf32>
    %336 = vector.extract_strided_slice %321 {offsets = [0, 384], sizes = [2, 128], strides = [1, 1]} : vector<2x512xf32> to vector<2x128xf32>
    %337 = arith.negf %336 : vector<2x128xf32>
    %338 = math.exp %337 : vector<2x128xf32>
    %cst_136 = arith.constant 1.000000e+00 : f32
    %339 = vector.broadcast %cst_136 : f32 to vector<2x128xf32>
    %340 = arith.addf %339, %338 : vector<2x128xf32>
    %341 = arith.divf %339, %340 : vector<2x128xf32>
    %c0_137 = arith.constant 0 : index
    %c128_138 = arith.constant 128 : index
    %342 = vector.load %arg11[%c0_137, %c128_138] : memref<2x256xf32, #tpu.memory_space<vmem>>, vector<2x128xf32>
    %343 = arith.mulf %333, %342 : vector<2x128xf32>
    %344 = arith.mulf %327, %335 : vector<2x128xf32>
    %345 = arith.addf %343, %344 : vector<2x128xf32>
    %346 = math.tanh %345 : vector<2x128xf32>
    %347 = arith.mulf %341, %346 : vector<2x128xf32>
    %c0_139 = arith.constant 0 : index
    %c128_140 = arith.constant 128 : index
    %348 = vector.load %arg11[%c0_139, %c128_140] : memref<2x256xf32, #tpu.memory_space<vmem>>, vector<2x128xf32>
    tpu.vector_store %arg11[%c0_139, %c128_140], %345 {strides = array<i32>} : memref<2x256xf32, #tpu.memory_space<vmem>>, vector<2x128xf32>,
    %c0_141 = arith.constant 0 : index
    %c128_142 = arith.constant 128 : index
    %349 = vector.load %arg10[%c0_141, %c128_142] : memref<2x256xf32, #tpu.memory_space<vmem>>, vector<2x128xf32>
    tpu.vector_store %arg10[%c0_141, %c128_142], %347 {strides = array<i32>} : memref<2x256xf32, #tpu.memory_space<vmem>>, vector<2x128xf32>,
    %350 = math.tanh %347 : vector<2x128xf32>
    %c0_143 = arith.constant 0 : index
    %c640 = arith.constant 640 : index
    %351 = vector.load %arg12[%c0_143, %c640] : memref<2x1792xf32, #tpu.memory_space<vmem>>, vector<2x128xf32>
    tpu.vector_store %arg12[%c0_143, %c640], %350 {strides = array<i32>} : memref<2x1792xf32, #tpu.memory_space<vmem>>, vector<2x128xf32>,
    %c0_144 = arith.constant 0 : index
    %c0_145 = arith.constant 0 : index
    %352 = vector.load %arg10[%c0_144, %c0_145] : memref<2x256xf32, #tpu.memory_space<vmem>>, vector<2x256xf32>
    %cst_146 = arith.constant dense<0.000000e+00> : vector<2x1024xf32>
    %353 = tpu.matmul %352, %7, %cst_146 {dimension_numbers = #tpu.dot_dimension_numbers<[1], [0], [0], [1], [0, 0, 1, 1], [], []>} : vector<2x256xf32>, vector<256x1024xf32>, vector<2x1024xf32> -> vector<2x1024xf32>
    %354 = vector.extract_strided_slice %353 {offsets = [0, 0], sizes = [2, 512], strides = [1, 1]} : vector<2x1024xf32> to vector<2x512xf32>
    %c10_147 = arith.constant 10 : index
    %c0_148 = arith.constant 0 : index
    %355 = vector.load %arg9[%c10_147, %c0_148] : memref<14x1024xf32, #tpu.memory_space<vmem>>, vector<2x512xf32>
    %356 = arith.addf %354, %355 : vector<2x512xf32>
    %357 = vector.extract_strided_slice %356 {offsets = [0, 0], sizes = [2, 128], strides = [1, 1]} : vector<2x512xf32> to vector<2x128xf32>
    %358 = arith.negf %357 : vector<2x128xf32>
    %359 = math.exp %358 : vector<2x128xf32>
    %cst_149 = arith.constant 1.000000e+00 : f32
    %360 = vector.broadcast %cst_149 : f32 to vector<2x128xf32>
    %361 = arith.addf %360, %359 : vector<2x128xf32>
    %362 = arith.divf %360, %361 : vector<2x128xf32>
    %363 = vector.extract_strided_slice %356 {offsets = [0, 128], sizes = [2, 128], strides = [1, 1]} : vector<2x512xf32> to vector<2x128xf32>
    %364 = arith.negf %363 : vector<2x128xf32>
    %365 = math.exp %364 : vector<2x128xf32>
    %cst_150 = arith.constant 1.000000e+00 : f32
    %366 = vector.broadcast %cst_150 : f32 to vector<2x128xf32>
    %367 = arith.addf %366, %365 : vector<2x128xf32>
    %368 = arith.divf %366, %367 : vector<2x128xf32>
    %369 = vector.extract_strided_slice %356 {offsets = [0, 256], sizes = [2, 128], strides = [1, 1]} : vector<2x512xf32> to vector<2x128xf32>
    %370 = math.tanh %369 : vector<2x128xf32>
    %371 = vector.extract_strided_slice %356 {offsets = [0, 384], sizes = [2, 128], strides = [1, 1]} : vector<2x512xf32> to vector<2x128xf32>
    %372 = arith.negf %371 : vector<2x128xf32>
    %373 = math.exp %372 : vector<2x128xf32>
    %cst_151 = arith.constant 1.000000e+00 : f32
    %374 = vector.broadcast %cst_151 : f32 to vector<2x128xf32>
    %375 = arith.addf %374, %373 : vector<2x128xf32>
    %376 = arith.divf %374, %375 : vector<2x128xf32>
    %c0_152 = arith.constant 0 : index
    %c0_153 = arith.constant 0 : index
    %377 = vector.load %arg11[%c0_152, %c0_153] : memref<2x256xf32, #tpu.memory_space<vmem>>, vector<2x128xf32>
    %378 = arith.mulf %368, %377 : vector<2x128xf32>
    %379 = arith.mulf %362, %370 : vector<2x128xf32>
    %380 = arith.addf %378, %379 : vector<2x128xf32>
    %381 = math.tanh %380 : vector<2x128xf32>
    %382 = arith.mulf %376, %381 : vector<2x128xf32>
    %c0_154 = arith.constant 0 : index
    %c0_155 = arith.constant 0 : index
    %383 = vector.load %arg11[%c0_154, %c0_155] : memref<2x256xf32, #tpu.memory_space<vmem>>, vector<2x128xf32>
    tpu.vector_store %arg11[%c0_154, %c0_155], %380 {strides = array<i32>} : memref<2x256xf32, #tpu.memory_space<vmem>>, vector<2x128xf32>,
    %c0_156 = arith.constant 0 : index
    %c0_157 = arith.constant 0 : index
    %384 = vector.load %arg10[%c0_156, %c0_157] : memref<2x256xf32, #tpu.memory_space<vmem>>, vector<2x128xf32>
    tpu.vector_store %arg10[%c0_156, %c0_157], %382 {strides = array<i32>} : memref<2x256xf32, #tpu.memory_space<vmem>>, vector<2x128xf32>,
    %385 = math.tanh %382 : vector<2x128xf32>
    %c0_158 = arith.constant 0 : index
    %c1280 = arith.constant 1280 : index
    %386 = vector.load %arg12[%c0_158, %c1280] : memref<2x1792xf32, #tpu.memory_space<vmem>>, vector<2x128xf32>
    tpu.vector_store %arg12[%c0_158, %c1280], %385 {strides = array<i32>} : memref<2x1792xf32, #tpu.memory_space<vmem>>, vector<2x128xf32>,
    %387 = vector.extract_strided_slice %353 {offsets = [0, 512], sizes = [2, 512], strides = [1, 1]} : vector<2x1024xf32> to vector<2x512xf32>
    %c2_159 = arith.constant 2 : index
    %c512_160 = arith.constant 512 : index
    %388 = vector.load %arg9[%c2_159, %c512_160] : memref<14x1024xf32, #tpu.memory_space<vmem>>, vector<2x512xf32>
    %389 = arith.addf %387, %388 : vector<2x512xf32>
    %390 = vector.extract_strided_slice %389 {offsets = [0, 0], sizes = [2, 128], strides = [1, 1]} : vector<2x512xf32> to vector<2x128xf32>
    %391 = arith.negf %390 : vector<2x128xf32>
    %392 = math.exp %391 : vector<2x128xf32>
    %cst_161 = arith.constant 1.000000e+00 : f32
    %393 = vector.broadcast %cst_161 : f32 to vector<2x128xf32>
    %394 = arith.addf %393, %392 : vector<2x128xf32>
    %395 = arith.divf %393, %394 : vector<2x128xf32>
    %396 = vector.extract_strided_slice %389 {offsets = [0, 128], sizes = [2, 128], strides = [1, 1]} : vector<2x512xf32> to vector<2x128xf32>
    %397 = arith.negf %396 : vector<2x128xf32>
    %398 = math.exp %397 : vector<2x128xf32>
    %cst_162 = arith.constant 1.000000e+00 : f32
    %399 = vector.broadcast %cst_162 : f32 to vector<2x128xf32>
    %400 = arith.addf %399, %398 : vector<2x128xf32>
    %401 = arith.divf %399, %400 : vector<2x128xf32>
    %402 = vector.extract_strided_slice %389 {offsets = [0, 256], sizes = [2, 128], strides = [1, 1]} : vector<2x512xf32> to vector<2x128xf32>
    %403 = math.tanh %402 : vector<2x128xf32>
    %404 = vector.extract_strided_slice %389 {offsets = [0, 384], sizes = [2, 128], strides = [1, 1]} : vector<2x512xf32> to vector<2x128xf32>
    %405 = arith.negf %404 : vector<2x128xf32>
    %406 = math.exp %405 : vector<2x128xf32>
    %cst_163 = arith.constant 1.000000e+00 : f32
    %407 = vector.broadcast %cst_163 : f32 to vector<2x128xf32>
    %408 = arith.addf %407, %406 : vector<2x128xf32>
    %409 = arith.divf %407, %408 : vector<2x128xf32>
    %c0_164 = arith.constant 0 : index
    %c128_165 = arith.constant 128 : index
    %410 = vector.load %arg11[%c0_164, %c128_165] : memref<2x256xf32, #tpu.memory_space<vmem>>, vector<2x128xf32>
    %411 = arith.mulf %401, %410 : vector<2x128xf32>
    %412 = arith.mulf %395, %403 : vector<2x128xf32>
    %413 = arith.addf %411, %412 : vector<2x128xf32>
    %414 = math.tanh %413 : vector<2x128xf32>
    %415 = arith.mulf %409, %414 : vector<2x128xf32>
    %c0_166 = arith.constant 0 : index
    %c128_167 = arith.constant 128 : index
    %416 = vector.load %arg11[%c0_166, %c128_167] : memref<2x256xf32, #tpu.memory_space<vmem>>, vector<2x128xf32>
    tpu.vector_store %arg11[%c0_166, %c128_167], %413 {strides = array<i32>} : memref<2x256xf32, #tpu.memory_space<vmem>>, vector<2x128xf32>,
    %c0_168 = arith.constant 0 : index
    %c128_169 = arith.constant 128 : index
    %417 = vector.load %arg10[%c0_168, %c128_169] : memref<2x256xf32, #tpu.memory_space<vmem>>, vector<2x128xf32>
    tpu.vector_store %arg10[%c0_168, %c128_169], %415 {strides = array<i32>} : memref<2x256xf32, #tpu.memory_space<vmem>>, vector<2x128xf32>,
    %418 = math.tanh %415 : vector<2x128xf32>
    %c0_170 = arith.constant 0 : index
    %c384 = arith.constant 384 : index
    %419 = vector.load %arg12[%c0_170, %c384] : memref<2x1792xf32, #tpu.memory_space<vmem>>, vector<2x128xf32>
    tpu.vector_store %arg12[%c0_170, %c384], %418 {strides = array<i32>} : memref<2x1792xf32, #tpu.memory_space<vmem>>, vector<2x128xf32>,
    %c0_171 = arith.constant 0 : index
    %c0_172 = arith.constant 0 : index
    %420 = vector.load %arg10[%c0_171, %c0_172] : memref<2x256xf32, #tpu.memory_space<vmem>>, vector<2x256xf32>
    %cst_173 = arith.constant dense<0.000000e+00> : vector<2x1024xf32>
    %421 = tpu.matmul %420, %7, %cst_173 {dimension_numbers = #tpu.dot_dimension_numbers<[1], [0], [0], [1], [0, 0, 1, 1], [], []>} : vector<2x256xf32>, vector<256x1024xf32>, vector<2x1024xf32> -> vector<2x1024xf32>
    %422 = vector.extract_strided_slice %421 {offsets = [0, 0], sizes = [2, 512], strides = [1, 1]} : vector<2x1024xf32> to vector<2x512xf32>
    %c12_174 = arith.constant 12 : index
    %c0_175 = arith.constant 0 : index
    %423 = vector.load %arg9[%c12_174, %c0_175] : memref<14x1024xf32, #tpu.memory_space<vmem>>, vector<2x512xf32>
    %424 = arith.addf %422, %423 : vector<2x512xf32>
    %425 = vector.extract_strided_slice %424 {offsets = [0, 0], sizes = [2, 128], strides = [1, 1]} : vector<2x512xf32> to vector<2x128xf32>
    %426 = arith.negf %425 : vector<2x128xf32>
    %427 = math.exp %426 : vector<2x128xf32>
    %cst_176 = arith.constant 1.000000e+00 : f32
    %428 = vector.broadcast %cst_176 : f32 to vector<2x128xf32>
    %429 = arith.addf %428, %427 : vector<2x128xf32>
    %430 = arith.divf %428, %429 : vector<2x128xf32>
    %431 = vector.extract_strided_slice %424 {offsets = [0, 128], sizes = [2, 128], strides = [1, 1]} : vector<2x512xf32> to vector<2x128xf32>
    %432 = arith.negf %431 : vector<2x128xf32>
    %433 = math.exp %432 : vector<2x128xf32>
    %cst_177 = arith.constant 1.000000e+00 : f32
    %434 = vector.broadcast %cst_177 : f32 to vector<2x128xf32>
    %435 = arith.addf %434, %433 : vector<2x128xf32>
    %436 = arith.divf %434, %435 : vector<2x128xf32>
    %437 = vector.extract_strided_slice %424 {offsets = [0, 256], sizes = [2, 128], strides = [1, 1]} : vector<2x512xf32> to vector<2x128xf32>
    %438 = math.tanh %437 : vector<2x128xf32>
    %439 = vector.extract_strided_slice %424 {offsets = [0, 384], sizes = [2, 128], strides = [1, 1]} : vector<2x512xf32> to vector<2x128xf32>
    %440 = arith.negf %439 : vector<2x128xf32>
    %441 = math.exp %440 : vector<2x128xf32>
    %cst_178 = arith.constant 1.000000e+00 : f32
    %442 = vector.broadcast %cst_178 : f32 to vector<2x128xf32>
    %443 = arith.addf %442, %441 : vector<2x128xf32>
    %444 = arith.divf %442, %443 : vector<2x128xf32>
    %c0_179 = arith.constant 0 : index
    %c0_180 = arith.constant 0 : index
    %445 = vector.load %arg11[%c0_179, %c0_180] : memref<2x256xf32, #tpu.memory_space<vmem>>, vector<2x128xf32>
    %446 = arith.mulf %436, %445 : vector<2x128xf32>
    %447 = arith.mulf %430, %438 : vector<2x128xf32>
    %448 = arith.addf %446, %447 : vector<2x128xf32>
    %449 = math.tanh %448 : vector<2x128xf32>
    %450 = arith.mulf %444, %449 : vector<2x128xf32>
    %c0_181 = arith.constant 0 : index
    %c0_182 = arith.constant 0 : index
    %451 = vector.load %arg11[%c0_181, %c0_182] : memref<2x256xf32, #tpu.memory_space<vmem>>, vector<2x128xf32>
    tpu.vector_store %arg11[%c0_181, %c0_182], %448 {strides = array<i32>} : memref<2x256xf32, #tpu.memory_space<vmem>>, vector<2x128xf32>,
    %c0_183 = arith.constant 0 : index
    %c0_184 = arith.constant 0 : index
    %452 = vector.load %arg10[%c0_183, %c0_184] : memref<2x256xf32, #tpu.memory_space<vmem>>, vector<2x128xf32>
    tpu.vector_store %arg10[%c0_183, %c0_184], %450 {strides = array<i32>} : memref<2x256xf32, #tpu.memory_space<vmem>>, vector<2x128xf32>,
    %453 = math.tanh %450 : vector<2x128xf32>
    %c0_185 = arith.constant 0 : index
    %c1536 = arith.constant 1536 : index
    %454 = vector.load %arg12[%c0_185, %c1536] : memref<2x1792xf32, #tpu.memory_space<vmem>>, vector<2x128xf32>
    tpu.vector_store %arg12[%c0_185, %c1536], %453 {strides = array<i32>} : memref<2x1792xf32, #tpu.memory_space<vmem>>, vector<2x128xf32>,
    %455 = vector.extract_strided_slice %421 {offsets = [0, 512], sizes = [2, 512], strides = [1, 1]} : vector<2x1024xf32> to vector<2x512xf32>
    %c0_186 = arith.constant 0 : index
    %c512_187 = arith.constant 512 : index
    %456 = vector.load %arg9[%c0_186, %c512_187] : memref<14x1024xf32, #tpu.memory_space<vmem>>, vector<2x512xf32>
    %457 = arith.addf %455, %456 : vector<2x512xf32>
    %458 = vector.extract_strided_slice %457 {offsets = [0, 0], sizes = [2, 128], strides = [1, 1]} : vector<2x512xf32> to vector<2x128xf32>
    %459 = arith.negf %458 : vector<2x128xf32>
    %460 = math.exp %459 : vector<2x128xf32>
    %cst_188 = arith.constant 1.000000e+00 : f32
    %461 = vector.broadcast %cst_188 : f32 to vector<2x128xf32>
    %462 = arith.addf %461, %460 : vector<2x128xf32>
    %463 = arith.divf %461, %462 : vector<2x128xf32>
    %464 = vector.extract_strided_slice %457 {offsets = [0, 128], sizes = [2, 128], strides = [1, 1]} : vector<2x512xf32> to vector<2x128xf32>
    %465 = arith.negf %464 : vector<2x128xf32>
    %466 = math.exp %465 : vector<2x128xf32>
    %cst_189 = arith.constant 1.000000e+00 : f32
    %467 = vector.broadcast %cst_189 : f32 to vector<2x128xf32>
    %468 = arith.addf %467, %466 : vector<2x128xf32>
    %469 = arith.divf %467, %468 : vector<2x128xf32>
    %470 = vector.extract_strided_slice %457 {offsets = [0, 256], sizes = [2, 128], strides = [1, 1]} : vector<2x512xf32> to vector<2x128xf32>
    %471 = math.tanh %470 : vector<2x128xf32>
    %472 = vector.extract_strided_slice %457 {offsets = [0, 384], sizes = [2, 128], strides = [1, 1]} : vector<2x512xf32> to vector<2x128xf32>
    %473 = arith.negf %472 : vector<2x128xf32>
    %474 = math.exp %473 : vector<2x128xf32>
    %cst_190 = arith.constant 1.000000e+00 : f32
    %475 = vector.broadcast %cst_190 : f32 to vector<2x128xf32>
    %476 = arith.addf %475, %474 : vector<2x128xf32>
    %477 = arith.divf %475, %476 : vector<2x128xf32>
    %c0_191 = arith.constant 0 : index
    %c128_192 = arith.constant 128 : index
    %478 = vector.load %arg11[%c0_191, %c128_192] : memref<2x256xf32, #tpu.memory_space<vmem>>, vector<2x128xf32>
    %479 = arith.mulf %469, %478 : vector<2x128xf32>
    %480 = arith.mulf %463, %471 : vector<2x128xf32>
    %481 = arith.addf %479, %480 : vector<2x128xf32>
    %482 = math.tanh %481 : vector<2x128xf32>
    %483 = arith.mulf %477, %482 : vector<2x128xf32>
    %c0_193 = arith.constant 0 : index
    %c128_194 = arith.constant 128 : index
    %484 = vector.load %arg11[%c0_193, %c128_194] : memref<2x256xf32, #tpu.memory_space<vmem>>, vector<2x128xf32>
    tpu.vector_store %arg11[%c0_193, %c128_194], %481 {strides = array<i32>} : memref<2x256xf32, #tpu.memory_space<vmem>>, vector<2x128xf32>,
    %c0_195 = arith.constant 0 : index
    %c128_196 = arith.constant 128 : index
    %485 = vector.load %arg10[%c0_195, %c128_196] : memref<2x256xf32, #tpu.memory_space<vmem>>, vector<2x128xf32>
    tpu.vector_store %arg10[%c0_195, %c128_196], %483 {strides = array<i32>} : memref<2x256xf32, #tpu.memory_space<vmem>>, vector<2x128xf32>,
    %486 = math.tanh %483 : vector<2x128xf32>
    %c0_197 = arith.constant 0 : index
    %c128_198 = arith.constant 128 : index
    %487 = vector.load %arg12[%c0_197, %c128_198] : memref<2x1792xf32, #tpu.memory_space<vmem>>, vector<2x128xf32>
    tpu.vector_store %arg12[%c0_197, %c128_198], %486 {strides = array<i32>} : memref<2x1792xf32, #tpu.memory_space<vmem>>, vector<2x128xf32>,
    %c0_199 = arith.constant 0 : index
    %c0_200 = arith.constant 0 : index
    %488 = vector.load %arg12[%c0_199, %c0_200] : memref<2x1792xf32, #tpu.memory_space<vmem>>, vector<2x1792xf32>
    %c0_201 = arith.constant 0 : index
    %c0_202 = arith.constant 0 : index
    %489 = vector.load %arg4[%c0_201, %c0_202] : memref<1792x128xf32, #tpu.memory_space<vmem>>, vector<1792x128xf32>
    %cst_203 = arith.constant dense<0.000000e+00> : vector<2x128xf32>
    %490 = tpu.matmul %488, %489, %cst_203 {dimension_numbers = #tpu.dot_dimension_numbers<[1], [0], [0], [1], [0, 0, 1, 1], [], []>} : vector<2x1792xf32>, vector<1792x128xf32>, vector<2x128xf32> -> vector<2x128xf32>
    %c0_204 = arith.constant 0 : index
    %c0_205 = arith.constant 0 : index
    %491 = vector.load %arg5[%c0_204, %c0_205] : memref<1x128xf32, #tpu.memory_space<vmem>>, vector<1x128xf32>
    %492 = vector.broadcast %491 : vector<1x128xf32> to vector<2x128xf32>
    %493 = arith.addf %490, %492 : vector<2x128xf32>
    %cst_206 = arith.constant 0.000000e+00 : f32
    %494 = vector.broadcast %cst_206 : f32 to vector<2x128xf32>
    %495 = arith.maximumf %493, %494 : vector<2x128xf32>
    %c0_207 = arith.constant 0 : index
    %c0_208 = arith.constant 0 : index
    %496 = vector.load %arg6[%c0_207, %c0_208] : memref<1x128xf32, #tpu.memory_space<vmem>>, vector<1x128xf32>
    %497 = vector.broadcast %496 : vector<1x128xf32> to vector<2x128xf32>
    %498 = arith.mulf %495, %497 : vector<2x128xf32>
    %cst_209 = arith.constant dense<0.000000e+00> : vector<2xf32>
    %499 = vector.multi_reduction <add>, %498, %cst_209 [1] : vector<2x128xf32> to vector<2xf32>
    %500 = vector.shape_cast %499 : vector<2xf32> to vector<2x1xf32>
    %c0_210 = arith.constant 0 : index
    %c0_211 = arith.constant 0 : index
    %501 = vector.load %arg7[%c0_210, %c0_211] : memref<1x1xf32, #tpu.memory_space<vmem>>, vector<1x1xf32>
    %502 = vector.broadcast %501 : vector<1x1xf32> to vector<2x1xf32>
    %503 = arith.addf %500, %502 : vector<2x1xf32>
    %504 = arith.negf %503 : vector<2x1xf32>
    %505 = math.exp %504 : vector<2x1xf32>
    %cst_212 = arith.constant 1.000000e+00 : f32
    %506 = vector.broadcast %cst_212 : f32 to vector<2x1xf32>
    %507 = arith.addf %506, %505 : vector<2x1xf32>
    %508 = arith.divf %506, %507 : vector<2x1xf32>
    %c0_213 = arith.constant 0 : index
    %c0_214 = arith.constant 0 : index
    %509 = vector.load %arg8[%c0_213, %c0_214] : memref<2x1xf32, #tpu.memory_space<vmem>>, vector<2x1xf32>
    tpu.vector_store %arg8[%c0_213, %c0_214], %508 {strides = array<i32>} : memref<2x1xf32, #tpu.memory_space<vmem>>, vector<2x1xf32>,
    return
  }
}

</mosaic_0001>

<llo_original>
// kernel: cblstm_forward.2
$region0: #{cblstm_forward.2}
  #allocation0 [shape = 'u32[]', space=smem, size = 0x4, offset = 0x4, fixed_abs, tag = 'smem constant byte address 0x4 - core index']
  #allocation1 [shape = 'u32[144,128]{1,0:T(1,128)}', space=vmem, size = 0x12000, scoped, tag = 'internal scratch']
  #allocation2 [shape = 'f32[156,135]{1,0:T(8,128)}', space=vmem, size = 0x28000, scoped, tag = 'scratch operand']
  #allocation3 [shape = 'f32[48,270]{1,0:T(8,128)}', space=vmem, size = 0x12000, scoped, tag = 'scratch operand']
  %s0 = inlined_call_operand.vmem [shape: f32[2,80,45], index: 0, kind: input, shape index: {}]
  %s1 = inlined_call_operand.vmem [shape: f32[135,90], index: 1, kind: input, shape index: {}]
  %s2 = inlined_call_operand.vmem [shape: f32[1,90], index: 2, kind: input, shape index: {}]
  %s3 = inlined_call_operand.vmem [shape: f32[270,140], index: 3, kind: input, shape index: {}]
  %s4 = inlined_call_operand.vmem [shape: f32[1,140], index: 4, kind: input, shape index: {}]
  %s5 = inlined_call_operand.vmem [shape: f32[1,140], index: 5, kind: input, shape index: {}]
  %s6 = inlined_call_operand.vmem [shape: f32[1,140], index: 6, kind: input, shape index: {}]
  %s7 = inlined_call_operand.vmem [shape: f32[16,140], index: 7, kind: output, shape index: {}]
  %s8 = sld [smem:[#allocation0]]
  $region38: #{cblstm_forward.2} parent=0
    _
  %s10 = ssub.s32 1, %s8
  %s11 = scalar_select 0, %s10, %s8
  // Predicated region
  $region2: #{cblstm_forward.2} parent=0 // pred_check
    _
  $region3: #{cblstm_forward.2} parent=0 // pred_check_branch
    %13 = sbr.rel (0) target = $region5
  $region4: #{cblstm_forward.2} parent=0 // pred_region
    _
  $region5: #{cblstm_forward.2} parent=0 // pred_fallthru
    _
  // Predicated region
  $region6: #{cblstm_forward.2} parent=0 // pred_check
    _
  $region7: #{cblstm_forward.2} parent=0 // pred_check_branch
    %15 = sbr.rel (0) target = $region9
  $region8: #{cblstm_forward.2} parent=0 // pred_region
    _
  $region9: #{cblstm_forward.2} parent=0 // pred_fallthru
    _
  // Predicated region
  $region10: #{cblstm_forward.2} parent=0 // pred_check
    _
  $region11: #{cblstm_forward.2} parent=0 // pred_check_branch
    %17 = sbr.rel (0) target = $region13
  $region12: #{cblstm_forward.2} parent=0 // pred_region
    _
  $region13: #{cblstm_forward.2} parent=0 // pred_fallthru
    _
  // Predicated region
  $region14: #{cblstm_forward.2} parent=0 // pred_check
    _
  $region15: #{cblstm_forward.2} parent=0 // pred_check_branch
    %19 = sbr.rel (0) target = $region17
  $region16: #{cblstm_forward.2} parent=0 // pred_region
    _
  $region17: #{cblstm_forward.2} parent=0 // pred_fallthru
    _
  // Predicated region
  $region18: #{cblstm_forward.2} parent=0 // pred_check
    _
  $region19: #{cblstm_forward.2} parent=0 // pred_check_branch
    %21 = sbr.rel (0) target = $region21
  $region20: #{cblstm_forward.2} parent=0 // pred_region
    _
  $region21: #{cblstm_forward.2} parent=0 // pred_fallthru
    _
  // Predicated region
  $region22: #{cblstm_forward.2} parent=0 // pred_check
    _
  $region23: #{cblstm_forward.2} parent=0 // pred_check_branch
    %23 = sbr.rel (0) target = $region25
  $region24: #{cblstm_forward.2} parent=0 // pred_region
    _
  $region25: #{cblstm_forward.2} parent=0 // pred_fallthru
    _
  // Predicated region
  $region26: #{cblstm_forward.2} parent=0 // pred_check
    _
  $region27: #{cblstm_forward.2} parent=0 // pred_check_branch
    %25 = sbr.rel (0) target = $region29
  $region28: #{cblstm_forward.2} parent=0 // pred_region
    _
  $region29: #{cblstm_forward.2} parent=0 // pred_fallthru
    _
  %v26 = vld [vmem:[%s0] sm:$0xff]
  %v27 = vld [vmem:[%s0 + $0x8] sm:$0xff]
  %v28 = vld [vmem:[%s0 + $0x10] sm:$0xff]
  %v29 = vld [vmem:[%s0 + $0x18] sm:$0xff]
  %v30 = vld [vmem:[%s0 + $0x20] sm:$0xff]
  %v31 = vld [vmem:[%s0 + $0x28] sm:$0xff]
  %v32 = vld [vmem:[%s0 + $0x30] sm:$0xff]
  %v33 = vld [vmem:[%s0 + $0x38] sm:$0xff]
  %v34 = vld [vmem:[%s0 + $0x40] sm:$0xff]
  %v35 = vld [vmem:[%s0 + $0x48] sm:$0x3f]
  %vm36 = vcmask 367616
  %37 = vst.msk [vmem:[#allocation2] sm:$0xff] %vm36, %v26
  %38 = vst.msk [vmem:[#allocation2 + $0x10] sm:$0xff] %vm36, %v27
  %39 = vst.msk [vmem:[#allocation2 + $0x20] sm:$0xff] %vm36, %v28
  %40 = vst.msk [vmem:[#allocation2 + $0x30] sm:$0xff] %vm36, %v29
  %41 = vst.msk [vmem:[#allocation2 + $0x40] sm:$0xff] %vm36, %v30
  %42 = vst.msk [vmem:[#allocation2 + $0x50] sm:$0xff] %vm36, %v31
  %43 = vst.msk [vmem:[#allocation2 + $0x60] sm:$0xff] %vm36, %v32
  %44 = vst.msk [vmem:[#allocation2 + $0x70] sm:$0xff] %vm36, %v33
  %45 = vst.msk [vmem:[#allocation2 + $0x80] sm:$0xff] %vm36, %v34
  %vm46 = vcmask 365568
  %47 = vst.msk [vmem:[#allocation2 + $0x90] sm:$0x3f] %vm46, %v35
  %v48 = vld [vmem:[%s0 + $0x1] sm:$0xff]
  %v49 = vld [vmem:[%s0 + $0x9] sm:$0xff]
  %v50 = vld [vmem:[%s0 + $0x11] sm:$0xff]
  %v51 = vld [vmem:[%s0 + $0x19] sm:$0xff]
  %v52 = vld [vmem:[%s0 + $0x21] sm:$0xff]
  %v53 = vld [vmem:[%s0 + $0x29] sm:$0xff]
  %v54 = vld [vmem:[%s0 + $0x31] sm:$0xff]
  %v55 = vld [vmem:[%s0 + $0x39] sm:$0xff]
  %v56 = vld [vmem:[%s0 + $0x41] sm:$0xff]
  %v57 = vld [vmem:[%s0 + $0x49] sm:$0x3f]
  %68 = vrot.lane.b32.xlu0 %v48, 45
  %v69 = vpop.permute.xlu0 %68
  %70 = vrot.lane.b32.xlu0 %v49, 45
  %v71 = vpop.permute.xlu0 %70
  %72 = vrot.lane.b32.xlu0 %v50, 45
  %v73 = vpop.permute.xlu0 %72
  %74 = vrot.lane.b32.xlu0 %v51, 45
  %v75 = vpop.permute.xlu0 %74
  %76 = vrot.lane.b32.xlu0 %v52, 45
  %v77 = vpop.permute.xlu0 %76
  %78 = vrot.lane.b32.xlu0 %v53, 45
  %v79 = vpop.permute.xlu0 %78
  %80 = vrot.lane.b32.xlu0 %v54, 45
  %v81 = vpop.permute.xlu0 %80
  %82 = vrot.lane.b32.xlu0 %v55, 45
  %v83 = vpop.permute.xlu0 %82
  %84 = vrot.lane.b32.xlu0 %v56, 45
  %v85 = vpop.permute.xlu0 %84
  %86 = vrot.lane.b32.xlu0 %v57, 45
  %v87 = vpop.permute.xlu0 %86
  %vm98 = vcmask 736616
  %99 = vst.msk [vmem:[#allocation2] sm:$0xff] %vm98, %v69
  %100 = vst.msk [vmem:[#allocation2 + $0x10] sm:$0xff] %vm98, %v71
  %101 = vst.msk [vmem:[#allocation2 + $0x20] sm:$0xff] %vm98, %v73
  %102 = vst.msk [vmem:[#allocation2 + $0x30] sm:$0xff] %vm98, %v75
  %103 = vst.msk [vmem:[#allocation2 + $0x40] sm:$0xff] %vm98, %v77
  %104 = vst.msk [vmem:[#allocation2 + $0x50] sm:$0xff] %vm98, %v79
  %105 = vst.msk [vmem:[#allocation2 + $0x60] sm:$0xff] %vm98, %v81
  %106 = vst.msk [vmem:[#allocation2 + $0x70] sm:$0xff] %vm98, %v83
  %107 = vst.msk [vmem:[#allocation2 + $0x80] sm:$0xff] %vm98, %v85
  %vm108 = vcmask 734568
  %109 = vst.msk [vmem:[#allocation2 + $0x90] sm:$0x3f] %vm108, %v87
  %v110 = vld [vmem:[%s0 + $0x2] sm:$0xff]
  %v111 = vld [vmem:[%s0 + $0xa] sm:$0xff]
  %v112 = vld [vmem:[%s0 + $0x12] sm:$0xff]
  %v113 = vld [vmem:[%s0 + $0x1a] sm:$0xff]
  %v114 = vld [vmem:[%s0 + $0x22] sm:$0xff]
  %v115 = vld [vmem:[%s0 + $0x2a] sm:$0xff]
  %v116 = vld [vmem:[%s0 + $0x32] sm:$0xff]
  %v117 = vld [vmem:[%s0 + $0x3a] sm:$0xff]
  %v118 = vld [vmem:[%s0 + $0x42] sm:$0xff]
  %v119 = vld [vmem:[%s0 + $0x4a] sm:$0x3f]
  %130 = vrot.lane.b32.xlu0 %v110, 90
  %v131 = vpop.permute.xlu0 %130
  %132 = vrot.lane.b32.xlu0 %v111, 90
  %v133 = vpop.permute.xlu0 %132
  %134 = vrot.lane.b32.xlu0 %v112, 90
  %v135 = vpop.permute.xlu0 %134
  %136 = vrot.lane.b32.xlu0 %v113, 90
  %v137 = vpop.permute.xlu0 %136
  %138 = vrot.lane.b32.xlu0 %v114, 90
  %v139 = vpop.permute.xlu0 %138
  %140 = vrot.lane.b32.xlu0 %v115, 90
  %v141 = vpop.permute.xlu0 %140
  %142 = vrot.lane.b32.xlu0 %v116, 90
  %v143 = vpop.permute.xlu0 %142
  %144 = vrot.lane.b32.xlu0 %v117, 90
  %v145 = vpop.permute.xlu0 %144
  %146 = vrot.lane.b32.xlu0 %v118, 90
  %v147 = vpop.permute.xlu0 %146
  %148 = vrot.lane.b32.xlu0 %v119, 90
  %v149 = vpop.permute.xlu0 %148
  %vm160 = vcmask 1048272
  %161 = vst.msk [vmem:[#allocation2] sm:$0xff] %vm160, %v131
  %vm162 = vcmask 56320
  %163 = vst.msk [vmem:[#allocation2 + $0x8] sm:$0xff] %vm162, %v131
  %164 = vst.msk [vmem:[#allocation2 + $0x10] sm:$0xff] %vm160, %v133
  %165 = vst.msk [vmem:[#allocation2 + $0x18] sm:$0xff] %vm162, %v133
  %166 = vst.msk [vmem:[#allocation2 + $0x20] sm:$0xff] %vm160, %v135
  %167 = vst.msk [vmem:[#allocation2 + $0x28] sm:$0xff] %vm162, %v135
  %168 = vst.msk [vmem:[#allocation2 + $0x30] sm:$0xff] %vm160, %v137
  %169 = vst.msk [vmem:[#allocation2 + $0x38] sm:$0xff] %vm162, %v137
  %170 = vst.msk [vmem:[#allocation2 + $0x40] sm:$0xff] %vm160, %v139
  %171 = vst.msk [vmem:[#allocation2 + $0x48] sm:$0xff] %vm162, %v139
  %172 = vst.msk [vmem:[#allocation2 + $0x50] sm:$0xff] %vm160, %v141
  %173 = vst.msk [vmem:[#allocation2 + $0x58] sm:$0xff] %vm162, %v141
  %174 = vst.msk [vmem:[#allocation2 + $0x60] sm:$0xff] %vm160, %v143
  %175 = vst.msk [vmem:[#allocation2 + $0x68] sm:$0xff] %vm162, %v143
  %176 = vst.msk [vmem:[#allocation2 + $0x70] sm:$0xff] %vm160, %v145
  %177 = vst.msk [vmem:[#allocation2 + $0x78] sm:$0xff] %vm162, %v145
  %178 = vst.msk [vmem:[#allocation2 + $0x80] sm:$0xff] %vm160, %v147
  %179 = vst.msk [vmem:[#allocation2 + $0x88] sm:$0xff] %vm162, %v147
  %vm180 = vcmask 1046224
  %181 = vst.msk [vmem:[#allocation2 + $0x90] sm:$0x3f] %vm180, %v149
  %vm182 = vcmask 54272
  %183 = vst.msk [vmem:[#allocation2 + $0x98] sm:$0x3f] %vm182, %v149
  %s184 = scalar_lea.vmem %s0, 80
  %v185 = vld [vmem:[%s184] sm:$0xff]
  %v186 = vld [vmem:[%s184 + $0x8] sm:$0xff]
  %v187 = vld [vmem:[%s184 + $0x10] sm:$0xff]
  %v188 = vld [vmem:[%s184 + $0x18] sm:$0xff]
  %v189 = vld [vmem:[%s184 + $0x20] sm:$0xff]
  %v190 = vld [vmem:[%s184 + $0x28] sm:$0xff]
  %v191 = vld [vmem:[%s184 + $0x30] sm:$0xff]
  %v192 = vld [vmem:[%s184 + $0x38] sm:$0xff]
  %v193 = vld [vmem:[%s184 + $0x40] sm:$0xff]
  %v194 = vld [vmem:[%s184 + $0x48] sm:$0x3f]
  %vm205 = vcmask 1045504
  %v206 = vrot.slane %v185, 2
  %v207 = vrot.slane %v186, 2
  %v208 = vsel %vm205, %v206, %v207
  %v209 = vrot.slane %v187, 2
  %v210 = vsel %vm205, %v207, %v209
  %v211 = vrot.slane %v188, 2
  %v212 = vsel %vm205, %v209, %v211
  %v213 = vrot.slane %v189, 2
  %v214 = vsel %vm205, %v211, %v213
  %v215 = vrot.slane %v190, 2
  %v216 = vsel %vm205, %v213, %v215
  %v217 = vrot.slane %v191, 2
  %v218 = vsel %vm205, %v215, %v217
  %v219 = vrot.slane %v192, 2
  %v220 = vsel %vm205, %v217, %v219
  %v221 = vrot.slane %v193, 2
  %v222 = vsel %vm205, %v219, %v221
  %v223 = vrot.slane %v194, 2
  %v224 = vsel %vm205, %v221, %v223
  %vm236 = vcmask 367622
  %237 = vst.msk [vmem:[#allocation2 + $0x90] sm:$0xc0] %vm236, %v206
  %238 = vst.msk [vmem:[#allocation2 + $0xa0] sm:$0xff] %vm36, %v208
  %239 = vst.msk [vmem:[#allocation2 + $0xb0] sm:$0xff] %vm36, %v210
  %240 = vst.msk [vmem:[#allocation2 + $0xc0] sm:$0xff] %vm36, %v212
  %241 = vst.msk [vmem:[#allocation2 + $0xd0] sm:$0xff] %vm36, %v214
  %242 = vst.msk [vmem:[#allocation2 + $0xe0] sm:$0xff] %vm36, %v216
  %243 = vst.msk [vmem:[#allocation2 + $0xf0] sm:$0xff] %vm36, %v218
  %244 = vst.msk [vmem:[#allocation2 + $0x100] sm:$0xff] %vm36, %v220
  %245 = vst.msk [vmem:[#allocation2 + $0x110] sm:$0xff] %vm36, %v222
  %246 = vst.msk [vmem:[#allocation2 + $0x120] sm:$0xff] %vm36, %v224
  %vm247 = vcmask 363520
  %248 = vst.msk [vmem:[#allocation2 + $0x130] sm:$0xf] %vm247, %v223
  %v249 = vld [vmem:[%s184 + $0x1] sm:$0xff]
  %v250 = vld [vmem:[%s184 + $0x9] sm:$0xff]
  %v251 = vld [vmem:[%s184 + $0x11] sm:$0xff]
  %v252 = vld [vmem:[%s184 + $0x19] sm:$0xff]
  %v253 = vld [vmem:[%s184 + $0x21] sm:$0xff]
  %v254 = vld [vmem:[%s184 + $0x29] sm:$0xff]
  %v255 = vld [vmem:[%s184 + $0x31] sm:$0xff]
  %v256 = vld [vmem:[%s184 + $0x39] sm:$0xff]
  %v257 = vld [vmem:[%s184 + $0x41] sm:$0xff]
  %v258 = vld [vmem:[%s184 + $0x49] sm:$0x3f]
  %v269 = vrot.slane %v249, 2
  %v270 = vrot.slane %v250, 2
  %v271 = vsel %vm205, %v269, %v270
  %v272 = vrot.slane %v251, 2
  %v273 = vsel %vm205, %v270, %v272
  %v274 = vrot.slane %v252, 2
  %v275 = vsel %vm205, %v272, %v274
  %v276 = vrot.slane %v253, 2
  %v277 = vsel %vm205, %v274, %v276
  %v278 = vrot.slane %v254, 2
  %v279 = vsel %vm205, %v276, %v278
  %v280 = vrot.slane %v255, 2
  %v281 = vsel %vm205, %v278, %v280
  %v282 = vrot.slane %v256, 2
  %v283 = vsel %vm205, %v280, %v282
  %v284 = vrot.slane %v257, 2
  %v285 = vsel %vm205, %v282, %v284
  %v286 = vrot.slane %v258, 2
  %v287 = vsel %vm205, %v284, %v286
  %288 = vrot.lane.b32.xlu0 %v269, 45
  %v289 = vpop.permute.xlu0 %288
  %290 = vrot.lane.b32.xlu0 %v271, 45
  %v291 = vpop.permute.xlu0 %290
  %292 = vrot.lane.b32.xlu0 %v273, 45
  %v293 = vpop.permute.xlu0 %292
  %294 = vrot.lane.b32.xlu0 %v275, 45
  %v295 = vpop.permute.xlu0 %294
  %296 = vrot.lane.b32.xlu0 %v277, 45
  %v297 = vpop.permute.xlu0 %296
  %298 = vrot.lane.b32.xlu0 %v279, 45
  %v299 = vpop.permute.xlu0 %298
  %300 = vrot.lane.b32.xlu0 %v281, 45
  %v301 = vpop.permute.xlu0 %300
  %302 = vrot.lane.b32.xlu0 %v283, 45
  %v303 = vpop.permute.xlu0 %302
  %304 = vrot.lane.b32.xlu0 %v285, 45
  %v305 = vpop.permute.xlu0 %304
  %306 = vrot.lane.b32.xlu0 %v287, 45
  %v307 = vpop.permute.xlu0 %306
  %308 = vrot.lane.b32.xlu0 %v286, 45
  %v309 = vpop.permute.xlu0 %308
  %vm321 = vcmask 736622
  %322 = vst.msk [vmem:[#allocation2 + $0x90] sm:$0xc0] %vm321, %v289
  %323 = vst.msk [vmem:[#allocation2 + $0xa0] sm:$0xff] %vm98, %v291
  %324 = vst.msk [vmem:[#allocation2 + $0xb0] sm:$0xff] %vm98, %v293
  %325 = vst.msk [vmem:[#allocation2 + $0xc0] sm:$0xff] %vm98, %v295
  %326 = vst.msk [vmem:[#allocation2 + $0xd0] sm:$0xff] %vm98, %v297
  %327 = vst.msk [vmem:[#allocation2 + $0xe0] sm:$0xff] %vm98, %v299
  %328 = vst.msk [vmem:[#allocation2 + $0xf0] sm:$0xff] %vm98, %v301
  %329 = vst.msk [vmem:[#allocation2 + $0x100] sm:$0xff] %vm98, %v303
  %330 = vst.msk [vmem:[#allocation2 + $0x110] sm:$0xff] %vm98, %v305
  %331 = vst.msk [vmem:[#allocation2 + $0x120] sm:$0xff] %vm98, %v307
  %vm332 = vcmask 732520
  %333 = vst.msk [vmem:[#allocation2 + $0x130] sm:$0xf] %vm332, %v309
  %v334 = vld [vmem:[%s184 + $0x2] sm:$0xff]
  %v335 = vld [vmem:[%s184 + $0xa] sm:$0xff]
  %v336 = vld [vmem:[%s184 + $0x12] sm:$0xff]
  %v337 = vld [vmem:[%s184 + $0x1a] sm:$0xff]
  %v338 = vld [vmem:[%s184 + $0x22] sm:$0xff]
  %v339 = vld [vmem:[%s184 + $0x2a] sm:$0xff]
  %v340 = vld [vmem:[%s184 + $0x32] sm:$0xff]
  %v341 = vld [vmem:[%s184 + $0x3a] sm:$0xff]
  %v342 = vld [vmem:[%s184 + $0x42] sm:$0xff]
  %v343 = vld [vmem:[%s184 + $0x4a] sm:$0x3f]
  %v354 = vrot.slane %v334, 2
  %v355 = vrot.slane %v335, 2
  %v356 = vsel %vm205, %v354, %v355
  %v357 = vrot.slane %v336, 2
  %v358 = vsel %vm205, %v355, %v357
  %v359 = vrot.slane %v337, 2
  %v360 = vsel %vm205, %v357, %v359
  %v361 = vrot.slane %v338, 2
  %v362 = vsel %vm205, %v359, %v361
  %v363 = vrot.slane %v339, 2
  %v364 = vsel %vm205, %v361, %v363
  %v365 = vrot.slane %v340, 2
  %v366 = vsel %vm205, %v363, %v365
  %v367 = vrot.slane %v341, 2
  %v368 = vsel %vm205, %v365, %v367
  %v369 = vrot.slane %v342, 2
  %v370 = vsel %vm205, %v367, %v369
  %v371 = vrot.slane %v343, 2
  %v372 = vsel %vm205, %v369, %v371
  %373 = vrot.lane.b32.xlu0 %v354, 90
  %v374 = vpop.permute.xlu0 %373
  %375 = vrot.lane.b32.xlu0 %v356, 90
  %v376 = vpop.permute.xlu0 %375
  %377 = vrot.lane.b32.xlu0 %v358, 90
  %v378 = vpop.permute.xlu0 %377
  %379 = vrot.lane.b32.xlu0 %v360, 90
  %v380 = vpop.permute.xlu0 %379
  %381 = vrot.lane.b32.xlu0 %v362, 90
  %v382 = vpop.permute.xlu0 %381
  %383 = vrot.lane.b32.xlu0 %v364, 90
  %v384 = vpop.permute.xlu0 %383
  %385 = vrot.lane.b32.xlu0 %v366, 90
  %v386 = vpop.permute.xlu0 %385
  %387 = vrot.lane.b32.xlu0 %v368, 90
  %v388 = vpop.permute.xlu0 %387
  %389 = vrot.lane.b32.xlu0 %v370, 90
  %v390 = vpop.permute.xlu0 %389
  %391 = vrot.lane.b32.xlu0 %v372, 90
  %v392 = vpop.permute.xlu0 %391
  %393 = vrot.lane.b32.xlu0 %v371, 90
  %v394 = vpop.permute.xlu0 %393
  %vm406 = vcmask 1048278
  %407 = vst.msk [vmem:[#allocation2 + $0x90] sm:$0xc0] %vm406, %v374
  %vm408 = vcmask 56326
  %409 = vst.msk [vmem:[#allocation2 + $0x98] sm:$0xc0] %vm408, %v374
  %410 = vst.msk [vmem:[#allocation2 + $0xa0] sm:$0xff] %vm160, %v376
  %411 = vst.msk [vmem:[#allocation2 + $0xa8] sm:$0xff] %vm162, %v376
  %412 = vst.msk [vmem:[#allocation2 + $0xb0] sm:$0xff] %vm160, %v378
  %413 = vst.msk [vmem:[#allocation2 + $0xb8] sm:$0xff] %vm162, %v378
  %414 = vst.msk [vmem:[#allocation2 + $0xc0] sm:$0xff] %vm160, %v380
  %415 = vst.msk [vmem:[#allocation2 + $0xc8] sm:$0xff] %vm162, %v380
  %416 = vst.msk [vmem:[#allocation2 + $0xd0] sm:$0xff] %vm160, %v382
  %417 = vst.msk [vmem:[#allocation2 + $0xd8] sm:$0xff] %vm162, %v382
  %418 = vst.msk [vmem:[#allocation2 + $0xe0] sm:$0xff] %vm160, %v384
  %419 = vst.msk [vmem:[#allocation2 + $0xe8] sm:$0xff] %vm162, %v384
  %420 = vst.msk [vmem:[#allocation2 + $0xf0] sm:$0xff] %vm160, %v386
  %421 = vst.msk [vmem:[#allocation2 + $0xf8] sm:$0xff] %vm162, %v386
  %422 = vst.msk [vmem:[#allocation2 + $0x100] sm:$0xff] %vm160, %v388
  %423 = vst.msk [vmem:[#allocation2 + $0x108] sm:$0xff] %vm162, %v388
  %424 = vst.msk [vmem:[#allocation2 + $0x110] sm:$0xff] %vm160, %v390
  %425 = vst.msk [vmem:[#allocation2 + $0x118] sm:$0xff] %vm162, %v390
  %426 = vst.msk [vmem:[#allocation2 + $0x120] sm:$0xff] %vm160, %v392
  %427 = vst.msk [vmem:[#allocation2 + $0x128] sm:$0xff] %vm162, %v392
  %vm428 = vcmask 1044176
  %429 = vst.msk [vmem:[#allocation2 + $0x130] sm:$0xf] %vm428, %v394
  %vm430 = vcmask 52224
  %431 = vst.msk [vmem:[#allocation2 + $0x138] sm:$0xf] %vm430, %v394
  %v432 = vld [vmem:[#allocation2] sm:$0xff]
  %v433 = vld [vmem:[#allocation2 + $0x8] sm:$0xff]
  %v434 = vld [vmem:[#allocation2 + $0x10] sm:$0xff]
  %v435 = vld [vmem:[#allocation2 + $0x18] sm:$0xff]
  %v436 = vld [vmem:[#allocation2 + $0x20] sm:$0xff]
  %v437 = vld [vmem:[#allocation2 + $0x28] sm:$0xff]
  %v438 = vld [vmem:[#allocation2 + $0x30] sm:$0xff]
  %v439 = vld [vmem:[#allocation2 + $0x38] sm:$0xff]
  %v440 = vld [vmem:[#allocation2 + $0x40] sm:$0xff]
  %v441 = vld [vmem:[#allocation2 + $0x48] sm:$0xff]
  %v442 = vld [vmem:[#allocation2 + $0x50] sm:$0xff]
  %v443 = vld [vmem:[#allocation2 + $0x58] sm:$0xff]
  %v444 = vld [vmem:[#allocation2 + $0x60] sm:$0xff]
  %v445 = vld [vmem:[#allocation2 + $0x68] sm:$0xff]
  %v446 = vld [vmem:[#allocation2 + $0x70] sm:$0xff]
  %v447 = vld [vmem:[#allocation2 + $0x78] sm:$0xff]
  %v448 = vld [vmem:[#allocation2 + $0x80] sm:$0xff]
  %v449 = vld [vmem:[#allocation2 + $0x88] sm:$0xff]
  %v450 = vld [vmem:[#allocation2 + $0x90] sm:$0xff]
  %v451 = vld [vmem:[#allocation2 + $0x98] sm:$0xff]
  %v452 = vld [vmem:[#allocation2 + $0xa0] sm:$0xff]
  %v453 = vld [vmem:[#allocation2 + $0xa8] sm:$0xff]
  %v454 = vld [vmem:[#allocation2 + $0xb0] sm:$0xff]
  %v455 = vld [vmem:[#allocation2 + $0xb8] sm:$0xff]
  %v456 = vld [vmem:[#allocation2 + $0xc0] sm:$0xff]
  %v457 = vld [vmem:[#allocation2 + $0xc8] sm:$0xff]
  %v458 = vld [vmem:[#allocation2 + $0xd0] sm:$0xff]
  %v459 = vld [vmem:[#allocation2 + $0xd8] sm:$0xff]
  %v460 = vld [vmem:[#allocation2 + $0xe0] sm:$0xff]
  %v461 = vld [vmem:[#allocation2 + $0xe8] sm:$0xff]
  %v462 = vld [vmem:[#allocation2 + $0xf0] sm:$0xff]
  %v463 = vld [vmem:[#allocation2 + $0xf8] sm:$0xff]
  %v464 = vld [vmem:[#allocation2 + $0x100] sm:$0xff]
  %v465 = vld [vmem:[#allocation2 + $0x108] sm:$0xff]
  %v466 = vld [vmem:[#allocation2 + $0x110] sm:$0xff]
  %v467 = vld [vmem:[#allocation2 + $0x118] sm:$0xff]
  %v468 = vld [vmem:[#allocation2 + $0x120] sm:$0xff]
  %v469 = vld [vmem:[#allocation2 + $0x128] sm:$0xff]
  %v470 = vld [vmem:[#allocation2 + $0x130] sm:$0xf]
  %v471 = vld [vmem:[#allocation2 + $0x138] sm:$0xf]
  %v472 = vld [vmem:[%s1] sm:$0xff]
  %v473 = vld [vmem:[%s1 + $0x8] sm:$0xff]
  %v474 = vld [vmem:[%s1 + $0x10] sm:$0xff]
  %v475 = vld [vmem:[%s1 + $0x18] sm:$0xff]
  %v476 = vld [vmem:[%s1 + $0x20] sm:$0xff]
  %v477 = vld [vmem:[%s1 + $0x28] sm:$0xff]
  %v478 = vld [vmem:[%s1 + $0x30] sm:$0xff]
  %v479 = vld [vmem:[%s1 + $0x38] sm:$0xff]
  %v480 = vld [vmem:[%s1 + $0x40] sm:$0xff]
  %v481 = vld [vmem:[%s1 + $0x48] sm:$0xff]
  %v482 = vld [vmem:[%s1 + $0x50] sm:$0xff]
  %v483 = vld [vmem:[%s1 + $0x58] sm:$0xff]
  %v484 = vld [vmem:[%s1 + $0x60] sm:$0xff]
  %v485 = vld [vmem:[%s1 + $0x68] sm:$0xff]
  %v486 = vld [vmem:[%s1 + $0x70] sm:$0xff]
  %v487 = vld [vmem:[%s1 + $0x78] sm:$0xff]
  %v488 = vld [vmem:[%s1 + $0x80] sm:$0x7f]
  %v489 = vld [vmem:[%s2] sm:$0x1]
  %v491 = vlaneseq
  %v492 = vshrl.u32 %v491, 7
  %v493 = vsub.s32 0, %v492
  %v494 = vrot.slane %v489, %v493
  %v497 = vsel %vm162, %v433, 0
  %v500 = vsel %vm162, %v435, 0
  %v503 = vsel %vm162, %v437, 0
  %v506 = vsel %vm162, %v439, 0
  %v509 = vsel %vm162, %v441, 0
  %v512 = vsel %vm162, %v443, 0
  %v515 = vsel %vm162, %v445, 0
  %v518 = vsel %vm162, %v447, 0
  %v521 = vsel %vm162, %v449, 0
  %v524 = vsel %vm162, %v451, 0
  %v527 = vsel %vm162, %v453, 0
  %v530 = vsel %vm162, %v455, 0
  %v533 = vsel %vm162, %v457, 0
  %v536 = vsel %vm162, %v459, 0
  %v539 = vsel %vm162, %v461, 0
  %v542 = vsel %vm162, %v463, 0
  %v545 = vsel %vm162, %v465, 0
  %v548 = vsel %vm162, %v467, 0
  %v551 = vsel %vm162, %v469, 0
  %v554 = vsel %vm162, %v471, 0
  %vm556 = vcmask 1046528
  %v558 = vsel %vm556, %v488, 0
  %560 = vmatprep.subr.mxu0 0.0
  %561 = vmatpush1.msra.mxu0 %v472
  %562 = vmatprep.subr.mxu0 0.0
  %563 = vmatpush1.msra.mxu0 %v473
  %564 = vmatprep.subr.mxu0 0.0
  %565 = vmatpush1.msra.mxu0 %v474
  %566 = vmatprep.subr.mxu0 0.0
  %567 = vmatpush1.msra.mxu0 %v475
  %568 = vmatprep.subr.mxu0 0.0
  %569 = vmatpush1.msra.mxu0 %v476
  %570 = vmatprep.subr.mxu0 0.0
  %571 = vmatpush1.msra.mxu0 %v477
  %572 = vmatprep.subr.mxu0 0.0
  %573 = vmatpush1.msra.mxu0 %v478
  %574 = vmatprep.subr.mxu0 0.0
  %575 = vmatpush1.msra.mxu0 %v479
  %576 = vmatprep.subr.mxu0 0.0
  %577 = vmatpush1.msra.mxu0 %v480
  %578 = vmatprep.subr.mxu0 0.0
  %579 = vmatpush1.msra.mxu0 %v481
  %580 = vmatprep.subr.mxu0 0.0
  %581 = vmatpush1.msra.mxu0 %v482
  %582 = vmatprep.subr.mxu0 0.0
  %583 = vmatpush1.msra.mxu0 %v483
  %584 = vmatprep.subr.mxu0 0.0
  %585 = vmatpush1.msra.mxu0 %v484
  %586 = vmatprep.subr.mxu0 0.0
  %587 = vmatpush1.msra.mxu0 %v485
  %588 = vmatprep.subr.mxu0 0.0
  %589 = vmatpush1.msra.mxu0 %v486
  %590 = vmatprep.subr.mxu0 0.0
  %591 = vmatpush1.msra.mxu0 %v487
  %592 = vmatprep.subr.mxu0 0.0
  %593 = vmatpush1.msra.mxu0 %v558
  %594 = vmatprep.subr.mxu0 0.0
  %595 = vmatpush1.msra.mxu0 0.0
  %596 = vmatprep.subr.mxu0 0.0
  %597 = vmatpush1.msra.mxu0 0.0
  %598 = vmatprep.subr.mxu0 0.0
  %599 = vmatpush1.msra.mxu0 0.0
  %600 = vmatprep.subr.mxu0 0.0
  %601 = vmatpush1.msra.mxu0 0.0
  %602 = vmatprep.subr.mxu0 0.0
  %603 = vmatpush1.msra.mxu0 0.0
  %604 = vmatprep.subr.mxu0 0.0
  %605 = vmatpush1.msra.mxu0 0.0
  %606 = vmatprep.subr.mxu0 0.0
  %607 = vmatpush1.msra.mxu0 0.0
  %608 = vmatprep.subr.mxu0 0.0
  %609 = vmatpush1.msra.mxu0 0.0
  %610 = vmatprep.subr.mxu0 0.0
  %611 = vmatpush1.msra.mxu0 0.0
  %612 = vmatprep.subr.mxu0 0.0
  %613 = vmatpush1.msra.mxu0 0.0
  %614 = vmatprep.subr.mxu0 0.0
  %615 = vmatpush1.msra.mxu0 0.0
  %616 = vmatprep.subr.mxu0 0.0
  %617 = vmatpush1.msra.mxu0 0.0
  %618 = vmatprep.subr.mxu0 0.0
  %619 = vmatpush1.msra.mxu0 0.0
  %620 = vmatprep.subr.mxu0 0.0
  %621 = vmatpush1.msra.mxu0 0.0
  %622 = vmatprep.subr.mxu0 0.0
  %623 = vmatpush1.msra.mxu0 0.0
  %624 = vmatprep.mubr.f32.mxu0 %v497
  %625 = vmatmul.mubr.f32.gmra.mrb[0].mxu0 %v432
  %v626 = vpop.f32.mrb[0].mxu0
  %v627 = vadd.f32 %v494, %v626
  %v628 = vpop.f32.mrb[0].mxu0
  %629 = vmatprep.mubr.f32.mxu0 %v500
  %630 = vmatmul.mubr.f32.gmra.mrb[0].mxu0 %v434
  %v631 = vpop.f32.mrb[0].mxu0
  %v632 = vadd.f32 %v494, %v631
  %v633 = vpop.f32.mrb[0].mxu0
  %634 = vmatprep.mubr.f32.mxu0 %v503
  %635 = vmatmul.mubr.f32.gmra.mrb[0].mxu0 %v436
  %v636 = vpop.f32.mrb[0].mxu0
  %v637 = vadd.f32 %v494, %v636
  %v638 = vpop.f32.mrb[0].mxu0
  %639 = vmatprep.mubr.f32.mxu0 %v506
  %640 = vmatmul.mubr.f32.gmra.mrb[0].mxu0 %v438
  %v641 = vpop.f32.mrb[0].mxu0
  %v642 = vadd.f32 %v494, %v641
  %v643 = vpop.f32.mrb[0].mxu0
  %644 = vmatprep.mubr.f32.mxu0 %v509
  %645 = vmatmul.mubr.f32.gmra.mrb[0].mxu0 %v440
  %v646 = vpop.f32.mrb[0].mxu0
  %v647 = vadd.f32 %v494, %v646
  %v648 = vpop.f32.mrb[0].mxu0
  %649 = vmatprep.mubr.f32.mxu0 %v512
  %650 = vmatmul.mubr.f32.gmra.mrb[0].mxu0 %v442
  %v651 = vpop.f32.mrb[0].mxu0
  %v652 = vadd.f32 %v494, %v651
  %v653 = vpop.f32.mrb[0].mxu0
  %654 = vmatprep.mubr.f32.mxu0 %v515
  %655 = vmatmul.mubr.f32.gmra.mrb[0].mxu0 %v444
  %v656 = vpop.f32.mrb[0].mxu0
  %v657 = vadd.f32 %v494, %v656
  %v658 = vpop.f32.mrb[0].mxu0
  %659 = vmatprep.mubr.f32.mxu0 %v518
  %660 = vmatmul.mubr.f32.gmra.mrb[0].mxu0 %v446
  %v661 = vpop.f32.mrb[0].mxu0
  %v662 = vadd.f32 %v494, %v661
  %v663 = vpop.f32.mrb[0].mxu0
  %664 = vmatprep.mubr.f32.mxu0 %v521
  %665 = vmatmul.mubr.f32.gmra.mrb[0].mxu0 %v448
  %v666 = vpop.f32.mrb[0].mxu0
  %v667 = vadd.f32 %v494, %v666
  %v668 = vpop.f32.mrb[0].mxu0
  %669 = vmatprep.mubr.f32.mxu0 %v524
  %670 = vmatmul.mubr.f32.gmra.mrb[0].mxu0 %v450
  %v671 = vpop.f32.mrb[0].mxu0
  %v672 = vadd.f32 %v494, %v671
  %v673 = vpop.f32.mrb[0].mxu0
  %674 = vmatprep.mubr.f32.mxu0 %v527
  %675 = vmatmul.mubr.f32.gmra.mrb[0].mxu0 %v452
  %v676 = vpop.f32.mrb[0].mxu0
  %v677 = vadd.f32 %v494, %v676
  %v678 = vpop.f32.mrb[0].mxu0
  %679 = vmatprep.mubr.f32.mxu0 %v530
  %680 = vmatmul.mubr.f32.gmra.mrb[0].mxu0 %v454
  %v681 = vpop.f32.mrb[0].mxu0
  %v682 = vadd.f32 %v494, %v681
  %v683 = vpop.f32.mrb[0].mxu0
  %684 = vmatprep.mubr.f32.mxu0 %v533
  %685 = vmatmul.mubr.f32.gmra.mrb[0].mxu0 %v456
  %v686 = vpop.f32.mrb[0].mxu0
  %v687 = vadd.f32 %v494, %v686
  %v688 = vpop.f32.mrb[0].mxu0
  %689 = vmatprep.mubr.f32.mxu0 %v536
  %690 = vmatmul.mubr.f32.gmra.mrb[0].mxu0 %v458
  %v691 = vpop.f32.mrb[0].mxu0
  %v692 = vadd.f32 %v494, %v691
  %v693 = vpop.f32.mrb[0].mxu0
  %694 = vmatprep.mubr.f32.mxu0 %v539
  %695 = vmatmul.mubr.f32.gmra.mrb[0].mxu0 %v460
  %v696 = vpop.f32.mrb[0].mxu0
  %v697 = vadd.f32 %v494, %v696
  %v698 = vpop.f32.mrb[0].mxu0
  %699 = vmatprep.mubr.f32.mxu0 %v542
  %700 = vmatmul.mubr.f32.gmra.mrb[0].mxu0 %v462
  %v701 = vpop.f32.mrb[0].mxu0
  %v702 = vadd.f32 %v494, %v701
  %v703 = vpop.f32.mrb[0].mxu0
  %704 = vmatprep.mubr.f32.mxu0 %v545
  %705 = vmatmul.mubr.f32.gmra.mrb[0].mxu0 %v464
  %v706 = vpop.f32.mrb[0].mxu0
  %v707 = vadd.f32 %v494, %v706
  %v708 = vpop.f32.mrb[0].mxu0
  %709 = vmatprep.mubr.f32.mxu0 %v548
  %710 = vmatmul.mubr.f32.gmra.mrb[0].mxu0 %v466
  %v711 = vpop.f32.mrb[0].mxu0
  %v712 = vadd.f32 %v494, %v711
  %v713 = vpop.f32.mrb[0].mxu0
  %714 = vmatprep.mubr.f32.mxu0 %v551
  %715 = vmatmul.mubr.f32.gmra.mrb[0].mxu0 %v468
  %v716 = vpop.f32.mrb[0].mxu0
  %v717 = vadd.f32 %v494, %v716
  %v718 = vpop.f32.mrb[0].mxu0
  %719 = vmatprep.mubr.f32.mxu0 %v554
  %720 = vmatmul.mubr.f32.gmra.mrb[0].mxu0 %v470
  %v721 = vpop.f32.mrb[0].mxu0
  %v722 = vadd.f32 %v494, %v721
  %v723 = vpop.f32.mrb[0].mxu0
  %724 = vdwg.mxu0
  %v725 = vmax.f32 %v627, 0.0
  %v726 = vmax.f32 %v632, 0.0
  %v727 = vmax.f32 %v637, 0.0
  %v728 = vmax.f32 %v642, 0.0
  %v729 = vmax.f32 %v647, 0.0
  %v730 = vmax.f32 %v652, 0.0
  %v731 = vmax.f32 %v657, 0.0
  %v732 = vmax.f32 %v662, 0.0
  %v733 = vmax.f32 %v667, 0.0
  %v734 = vmax.f32 %v672, 0.0
  %v735 = vmax.f32 %v677, 0.0
  %v736 = vmax.f32 %v682, 0.0
  %v737 = vmax.f32 %v687, 0.0
  %v738 = vmax.f32 %v692, 0.0
  %v739 = vmax.f32 %v697, 0.0
  %v740 = vmax.f32 %v702, 0.0
  %v741 = vmax.f32 %v707, 0.0
  %v742 = vmax.f32 %v712, 0.0
  %v743 = vmax.f32 %v717, 0.0
  %v744 = vmax.f32 %v722, 0.0
  %v765 = vrot.slane %v725, 1
  %v766 = vrot.slane %v726, 1
  %v767 = vsel %vm556, %v765, %v766
  %v768 = vrot.slane %v727, 1
  %v769 = vsel %vm556, %v766, %v768
  %v770 = vrot.slane %v728, 1
  %v771 = vsel %vm556, %v768, %v770
  %v772 = vrot.slane %v729, 1
  %v773 = vsel %vm556, %v770, %v772
  %v774 = vrot.slane %v730, 1
  %v775 = vsel %vm556, %v772, %v774
  %v776 = vrot.slane %v731, 1
  %v777 = vsel %vm556, %v774, %v776
  %v778 = vrot.slane %v732, 1
  %v779 = vsel %vm556, %v776, %v778
  %v780 = vrot.slane %v733, 1
  %v781 = vsel %vm556, %v778, %v780
  %v782 = vrot.slane %v734, 1
  %v783 = vsel %vm556, %v780, %v782
  %v784 = vrot.slane %v735, 1
  %v785 = vsel %vm556, %v782, %v784
  %v786 = vrot.slane %v736, 1
  %v787 = vsel %vm556, %v784, %v786
  %v788 = vrot.slane %v737, 1
  %v789 = vsel %vm556, %v786, %v788
  %v790 = vrot.slane %v738, 1
  %v791 = vsel %vm556, %v788, %v790
  %v792 = vrot.slane %v739, 1
  %v793 = vsel %vm556, %v790, %v792
  %v794 = vrot.slane %v740, 1
  %v795 = vsel %vm556, %v792, %v794
  %v796 = vrot.slane %v741, 1
  %v797 = vsel %vm556, %v794, %v796
  %v798 = vrot.slane %v742, 1
  %v799 = vsel %vm556, %v796, %v798
  %v800 = vrot.slane %v743, 1
  %v801 = vsel %vm556, %v798, %v800
  %v802 = vrot.slane %v744, 1
  %v803 = vsel %vm556, %v800, %v802
  %v824 = vmax.f32 %v725, %v767
  %v825 = vmax.f32 %v726, %v769
  %v826 = vmax.f32 %v727, %v771
  %v827 = vmax.f32 %v728, %v773
  %v828 = vmax.f32 %v729, %v775
  %v829 = vmax.f32 %v730, %v777
  %v830 = vmax.f32 %v731, %v779
  %v831 = vmax.f32 %v732, %v781
  %v832 = vmax.f32 %v733, %v783
  %v833 = vmax.f32 %v734, %v785
  %v834 = vmax.f32 %v735, %v787
  %v835 = vmax.f32 %v736, %v789
  %v836 = vmax.f32 %v737, %v791
  %v837 = vmax.f32 %v738, %v793
  %v838 = vmax.f32 %v739, %v795
  %v839 = vmax.f32 %v740, %v797
  %v840 = vmax.f32 %v741, %v799
  %v841 = vmax.f32 %v742, %v801
  %v842 = vmax.f32 %v743, %v803
  %v843 = vmax.f32 %v744, %v802
  %v844 = vrot.slane %v725, 2
  %v845 = vrot.slane %v726, 2
  %v846 = vsel %vm205, %v844, %v845
  %v847 = vrot.slane %v727, 2
  %v848 = vsel %vm205, %v845, %v847
  %v849 = vrot.slane %v728, 2
  %v850 = vsel %vm205, %v847, %v849
  %v851 = vrot.slane %v729, 2
  %v852 = vsel %vm205, %v849, %v851
  %v853 = vrot.slane %v730, 2
  %v854 = vsel %vm205, %v851, %v853
  %v855 = vrot.slane %v731, 2
  %v856 = vsel %vm205, %v853, %v855
  %v857 = vrot.slane %v732, 2
  %v858 = vsel %vm205, %v855, %v857
  %v859 = vrot.slane %v733, 2
  %v860 = vsel %vm205, %v857, %v859
  %v861 = vrot.slane %v734, 2
  %v862 = vsel %vm205, %v859, %v861
  %v863 = vrot.slane %v735, 2
  %v864 = vsel %vm205, %v861, %v863
  %v865 = vrot.slane %v736, 2
  %v866 = vsel %vm205, %v863, %v865
  %v867 = vrot.slane %v737, 2
  %v868 = vsel %vm205, %v865, %v867
  %v869 = vrot.slane %v738, 2
  %v870 = vsel %vm205, %v867, %v869
  %v871 = vrot.slane %v739, 2
  %v872 = vsel %vm205, %v869, %v871
  %v873 = vrot.slane %v740, 2
  %v874 = vsel %vm205, %v871, %v873
  %v875 = vrot.slane %v741, 2
  %v876 = vsel %vm205, %v873, %v875
  %v877 = vrot.slane %v742, 2
  %v878 = vsel %vm205, %v875, %v877
  %v879 = vrot.slane %v743, 2
  %v880 = vsel %vm205, %v877, %v879
  %v881 = vrot.slane %v744, 2
  %v882 = vsel %vm205, %v879, %v881
  %v903 = vmax.f32 %v824, %v846
  %v904 = vmax.f32 %v825, %v848
  %v905 = vmax.f32 %v826, %v850
  %v906 = vmax.f32 %v827, %v852
  %v907 = vmax.f32 %v828, %v854
  %v908 = vmax.f32 %v829, %v856
  %v909 = vmax.f32 %v830, %v858
  %v910 = vmax.f32 %v831, %v860
  %v911 = vmax.f32 %v832, %v862
  %v912 = vmax.f32 %v833, %v864
  %v913 = vmax.f32 %v834, %v866
  %v914 = vmax.f32 %v835, %v868
  %v915 = vmax.f32 %v836, %v870
  %v916 = vmax.f32 %v837, %v872
  %v917 = vmax.f32 %v838, %v874
  %v918 = vmax.f32 %v839, %v876
  %v919 = vmax.f32 %v840, %v878
  %v920 = vmax.f32 %v841, %v880
  %v921 = vmax.f32 %v842, %v882
  %v922 = vmax.f32 %v843, %v881
  %v923 = vlaneseq
  %v924 = vand.u32 %v923, 127
  %v925 = vlaneseq
  %v926 = vshrl.u32 %v925, 7
  %v927 = vadd.s32 %v926, 8
  %v928 = vadd.s32 %v926, 16
  %v929 = vadd.s32 %v926, 24
  %v930 = vmul.u32 %v926, 3
  %v931 = vmul.u32 %v927, 3
  %v932 = vmul.u32 %v928, 3
  %v933 = vmul.u32 %v929, 3
  %vm934 = vcmp.eq.s32.totalorder %v924, %v930
  %vm935 = vcmp.eq.s32.totalorder %v924, %v931
  %vm936 = vcmp.eq.s32.totalorder %v924, %v932
  %vm937 = vcmp.eq.s32.totalorder %v924, %v933
  %v938 = vsel %vm934, 1, 0
  %v939 = vsel %vm935, 1, 0
  %v940 = vsel %vm936, 1, 0
  %v941 = vsel %vm937, 1, 0
  %v942 = vcvt.s32.f32 %v938
  %v943 = vcvt.s32.f32 %v939
  %v944 = vcvt.s32.f32 %v940
  %v945 = vcvt.s32.f32 %v941
  %vm946 = vcmask 621568
  %v948 = vsel %vm946, %v942, 0
  %v951 = vsel %vm946, %v943, 0
  %v954 = vsel %vm946, %v944, 0
  %v957 = vsel %vm946, %v945, 0
  %vm959 = vcmask 1043456
  %v961 = vsel %vm959, %v912, 0
  %963 = vmatprep.subr.mxu0 0.0
  %964 = vmatpush1.msra.mxu0 %v903
  %965 = vmatprep.subr.mxu0 0.0
  %966 = vmatpush1.msra.mxu0 %v904
  %967 = vmatprep.subr.mxu0 0.0
  %968 = vmatpush1.msra.mxu0 %v905
  %969 = vmatprep.subr.mxu0 0.0
  %970 = vmatpush1.msra.mxu0 %v906
  %971 = vmatprep.subr.mxu0 0.0
  %972 = vmatpush1.msra.mxu0 %v907
  %973 = vmatprep.subr.mxu0 0.0
  %974 = vmatpush1.msra.mxu0 %v908
  %975 = vmatprep.subr.mxu0 0.0
  %976 = vmatpush1.msra.mxu0 %v909
  %977 = vmatprep.subr.mxu0 0.0
  %978 = vmatpush1.msra.mxu0 %v910
  %979 = vmatprep.subr.mxu0 0.0
  %980 = vmatpush1.msra.mxu0 %v911
  %981 = vmatprep.subr.mxu0 0.0
  %982 = vmatpush1.msra.mxu0 %v961
  %983 = vmatprep.subr.mxu0 0.0
  %984 = vmatpush1.msra.mxu0 0.0
  %985 = vmatprep.subr.mxu0 0.0
  %986 = vmatpush1.msra.mxu0 0.0
  %987 = vmatprep.subr.mxu0 0.0
  %988 = vmatpush1.msra.mxu0 0.0
  %989 = vmatprep.subr.mxu0 0.0
  %990 = vmatpush1.msra.mxu0 0.0
  %991 = vmatprep.subr.mxu0 0.0
  %992 = vmatpush1.msra.mxu0 0.0
  %993 = vmatprep.subr.mxu0 0.0
  %994 = vmatpush1.msra.mxu0 0.0
  %995 = vmatprep.subr.mxu0 0.0
  %996 = vmatpush1.msra.mxu0 0.0
  %997 = vmatprep.subr.mxu0 0.0
  %998 = vmatpush1.msra.mxu0 0.0
  %999 = vmatprep.subr.mxu0 0.0
  %1000 = vmatpush1.msra.mxu0 0.0
  %1001 = vmatprep.subr.mxu0 0.0
  %1002 = vmatpush1.msra.mxu0 0.0
  %1003 = vmatprep.subr.mxu0 0.0
  %1004 = vmatpush1.msra.mxu0 0.0
  %1005 = vmatprep.subr.mxu0 0.0
  %1006 = vmatpush1.msra.mxu0 0.0
  %1007 = vmatprep.subr.mxu0 0.0
  %1008 = vmatpush1.msra.mxu0 0.0
  %1009 = vmatprep.subr.mxu0 0.0
  %1010 = vmatpush1.msra.mxu0 0.0
  %1011 = vmatprep.subr.mxu0 0.0
  %1012 = vmatpush1.msra.mxu0 0.0
  %1013 = vmatprep.subr.mxu0 0.0
  %1014 = vmatpush1.msra.mxu0 0.0
  %1015 = vmatprep.subr.mxu0 0.0
  %1016 = vmatpush1.msra.mxu0 0.0
  %1017 = vmatprep.subr.mxu0 0.0
  %1018 = vmatpush1.msra.mxu0 0.0
  %1019 = vmatprep.subr.mxu0 0.0
  %1020 = vmatpush1.msra.mxu0 0.0
  %1021 = vmatprep.subr.mxu0 0.0
  %1022 = vmatpush1.msra.mxu0 0.0
  %1023 = vmatprep.subr.mxu0 0.0
  %1024 = vmatpush1.msra.mxu0 0.0
  %1025 = vmatprep.subr.mxu0 0.0
  %1026 = vmatpush1.msra.mxu0 0.0
  %1027 = vmatprep.mubr.f32.mxu0 0.0
  %1028 = vmatmul.mubr.f32.gmra.mrb[0].mxu0 %v948
  %v1029 = vpop.f32.mrb[0].mxu0
  %v1030 = vadd.f32 0.0, %v1029
  %v1031 = vpop.f32.mrb[0].mxu0
  %1032 = vmatprep.mubr.f32.mxu0 0.0
  %1033 = vmatmul.mubr.f32.gmra.mrb[0].mxu0 %v951
  %v1034 = vpop.f32.mrb[0].mxu0
  %v1035 = vadd.f32 0.0, %v1034
  %v1036 = vpop.f32.mrb[0].mxu0
  %1037 = vmatprep.mubr.f32.mxu0 0.0
  %1038 = vmatmul.mubr.f32.gmra.mrb[0].mxu0 %v954
  %v1039 = vpop.f32.mrb[0].mxu0
  %v1040 = vadd.f32 0.0, %v1039
  %v1041 = vpop.f32.mrb[0].mxu0
  %1042 = vmatprep.mubr.f32.mxu0 0.0
  %1043 = vmatmul.mubr.f32.gmra.mrb[0].mxu0 %v957
  %v1044 = vpop.f32.mrb[0].mxu0
  %v1045 = vadd.f32 0.0, %v1044
  %v1046 = vpop.f32.mrb[0].mxu0
  %1047 = vdwg.mxu0
  %vm1048 = vcmask 736256
  %1049 = vst.msk [vmem:[#allocation3] sm:$0xff] %vm1048, %v1030
  %1050 = vst.msk [vmem:[#allocation3 + $0x18] sm:$0xff] %vm1048, %v1035
  %1051 = vst.msk [vmem:[#allocation3 + $0x30] sm:$0xff] %vm1048, %v1040
  %v1056 = vrot.slane %v1030, 1
  %v1057 = vrot.slane %v1035, 1
  %v1058 = vsel %vm556, %v1056, %v1057
  %v1059 = vrot.slane %v1040, 1
  %v1060 = vsel %vm556, %v1057, %v1059
  %v1061 = vrot.slane %v1045, 1
  %v1062 = vsel %vm556, %v1059, %v1061
  %1063 = vrot.lane.b32.xlu0 %v1058, 90
  %v1064 = vpop.permute.xlu0 %1063
  %1065 = vrot.lane.b32.xlu0 %v1060, 90
  %v1066 = vpop.permute.xlu0 %1065
  %1067 = vrot.lane.b32.xlu0 %v1062, 90
  %v1068 = vpop.permute.xlu0 %1067
  %1072 = vst.msk [vmem:[#allocation3] sm:$0xff] %vm160, %v1064
  %vm1073 = vcmask 424960
  %1074 = vst.msk [vmem:[#allocation3 + $0x8] sm:$0xff] %vm1073, %v1064
  %1075 = vst.msk [vmem:[#allocation3 + $0x18] sm:$0xff] %vm160, %v1066
  %1076 = vst.msk [vmem:[#allocation3 + $0x20] sm:$0xff] %vm1073, %v1066
  %1077 = vst.msk [vmem:[#allocation3 + $0x30] sm:$0xff] %vm160, %v1068
  %1078 = vst.msk [vmem:[#allocation3 + $0x38] sm:$0xff] %vm1073, %v1068
  %v1079 = vrot.slane %v1030, 2
  %v1080 = vrot.slane %v1035, 2
  %v1081 = vsel %vm205, %v1079, %v1080
  %v1082 = vrot.slane %v1040, 2
  %v1083 = vsel %vm205, %v1080, %v1082
  %v1084 = vrot.slane %v1045, 2
  %v1085 = vsel %vm205, %v1082, %v1084
  %1086 = vrot.lane.b32.xlu0 %v1081, 52
  %v1087 = vpop.permute.xlu0 %1086
  %1088 = vrot.lane.b32.xlu0 %v1083, 52
  %v1089 = vpop.permute.xlu0 %1088
  %1090 = vrot.lane.b32.xlu0 %v1085, 52
  %v1091 = vpop.permute.xlu0 %1090
  %vm1095 = vcmask 1047968
  %1096 = vst.msk [vmem:[#allocation3 + $0x8] sm:$0xff] %vm1095, %v1087
  %vm1097 = vcmask 113664
  %1098 = vst.msk [vmem:[#allocation3 + $0x10] sm:$0xff] %vm1097, %v1087
  %1099 = vst.msk [vmem:[#allocation3 + $0x20] sm:$0xff] %vm1095, %v1089
  %1100 = vst.msk [vmem:[#allocation3 + $0x28] sm:$0xff] %vm1097, %v1089
  %1101 = vst.msk [vmem:[#allocation3 + $0x38] sm:$0xff] %vm1095, %v1091
  %1102 = vst.msk [vmem:[#allocation3 + $0x40] sm:$0xff] %vm1097, %v1091
  %vm1113 = vcmask 1041408
  %v1114 = vrot.slane %v912, 6
  %v1115 = vrot.slane %v913, 6
  %v1116 = vsel %vm1113, %v1114, %v1115
  %v1117 = vrot.slane %v914, 6
  %v1118 = vsel %vm1113, %v1115, %v1117
  %v1119 = vrot.slane %v915, 6
  %v1120 = vsel %vm1113, %v1117, %v1119
  %v1121 = vrot.slane %v916, 6
  %v1122 = vsel %vm1113, %v1119, %v1121
  %v1123 = vrot.slane %v917, 6
  %v1124 = vsel %vm1113, %v1121, %v1123
  %v1125 = vrot.slane %v918, 6
  %v1126 = vsel %vm1113, %v1123, %v1125
  %v1127 = vrot.slane %v919, 6
  %v1128 = vsel %vm1113, %v1125, %v1127
  %v1129 = vrot.slane %v920, 6
  %v1130 = vsel %vm1113, %v1127, %v1129
  %v1131 = vrot.slane %v921, 6
  %v1132 = vsel %vm1113, %v1129, %v1131
  %v1133 = vrot.slane %v922, 6
  %v1134 = vsel %vm1113, %v1131, %v1133
  %v1144 = vsel %vm959, %v1134, 0
  %1146 = vmatprep.subr.mxu0 0.0
  %1147 = vmatpush1.msra.mxu0 %v1116
  %1148 = vmatprep.subr.mxu0 0.0
  %1149 = vmatpush1.msra.mxu0 %v1118
  %1150 = vmatprep.subr.mxu0 0.0
  %1151 = vmatpush1.msra.mxu0 %v1120
  %1152 = vmatprep.subr.mxu0 0.0
  %1153 = vmatpush1.msra.mxu0 %v1122
  %1154 = vmatprep.subr.mxu0 0.0
  %1155 = vmatpush1.msra.mxu0 %v1124
  %1156 = vmatprep.subr.mxu0 0.0
  %1157 = vmatpush1.msra.mxu0 %v1126
  %1158 = vmatprep.subr.mxu0 0.0
  %1159 = vmatpush1.msra.mxu0 %v1128
  %1160 = vmatprep.subr.mxu0 0.0
  %1161 = vmatpush1.msra.mxu0 %v1130
  %1162 = vmatprep.subr.mxu0 0.0
  %1163 = vmatpush1.msra.mxu0 %v1132
  %1164 = vmatprep.subr.mxu0 0.0
  %1165 = vmatpush1.msra.mxu0 %v1144
  %1166 = vmatprep.subr.mxu0 0.0
  %1167 = vmatpush1.msra.mxu0 0.0
  %1168 = vmatprep.subr.mxu0 0.0
  %1169 = vmatpush1.msra.mxu0 0.0
  %1170 = vmatprep.subr.mxu0 0.0
  %1171 = vmatpush1.msra.mxu0 0.0
  %1172 = vmatprep.subr.mxu0 0.0
  %1173 = vmatpush1.msra.mxu0 0.0
  %1174 = vmatprep.subr.mxu0 0.0
  %1175 = vmatpush1.msra.mxu0 0.0
  %1176 = vmatprep.subr.mxu0 0.0
  %1177 = vmatpush1.msra.mxu0 0.0
  %1178 = vmatprep.subr.mxu0 0.0
  %1179 = vmatpush1.msra.mxu0 0.0
  %1180 = vmatprep.subr.mxu0 0.0
  %1181 = vmatpush1.msra.mxu0 0.0
  %1182 = vmatprep.subr.mxu0 0.0
  %1183 = vmatpush1.msra.mxu0 0.0
  %1184 = vmatprep.subr.mxu0 0.0
  %1185 = vmatpush1.msra.mxu0 0.0
  %1186 = vmatprep.subr.mxu0 0.0
  %1187 = vmatpush1.msra.mxu0 0.0
  %1188 = vmatprep.subr.mxu0 0.0
  %1189 = vmatpush1.msra.mxu0 0.0
  %1190 = vmatprep.subr.mxu0 0.0
  %1191 = vmatpush1.msra.mxu0 0.0
  %1192 = vmatprep.subr.mxu0 0.0
  %1193 = vmatpush1.msra.mxu0 0.0
  %1194 = vmatprep.subr.mxu0 0.0
  %1195 = vmatpush1.msra.mxu0 0.0
  %1196 = vmatprep.subr.mxu0 0.0
  %1197 = vmatpush1.msra.mxu0 0.0
  %1198 = vmatprep.subr.mxu0 0.0
  %1199 = vmatpush1.msra.mxu0 0.0
  %1200 = vmatprep.subr.mxu0 0.0
  %1201 = vmatpush1.msra.mxu0 0.0
  %1202 = vmatprep.subr.mxu0 0.0
  %1203 = vmatpush1.msra.mxu0 0.0
  %1204 = vmatprep.subr.mxu0 0.0
  %1205 = vmatpush1.msra.mxu0 0.0
  %1206 = vmatprep.subr.mxu0 0.0
  %1207 = vmatpush1.msra.mxu0 0.0
  %1208 = vmatprep.subr.mxu0 0.0
  %1209 = vmatpush1.msra.mxu0 0.0
  %1210 = vmatprep.mubr.f32.mxu0 0.0
  %1211 = vmatmul.mubr.f32.gmra.mrb[0].mxu0 %v948
  %v1212 = vpop.f32.mrb[0].mxu0
  %v1213 = vadd.f32 0.0, %v1212
  %v1214 = vpop.f32.mrb[0].mxu0
  %1215 = vmatprep.mubr.f32.mxu0 0.0
  %1216 = vmatmul.mubr.f32.gmra.mrb[0].mxu0 %v951
  %v1217 = vpop.f32.mrb[0].mxu0
  %v1218 = vadd.f32 0.0, %v1217
  %v1219 = vpop.f32.mrb[0].mxu0
  %1220 = vmatprep.mubr.f32.mxu0 0.0
  %1221 = vmatmul.mubr.f32.gmra.mrb[0].mxu0 %v954
  %v1222 = vpop.f32.mrb[0].mxu0
  %v1223 = vadd.f32 0.0, %v1222
  %v1224 = vpop.f32.mrb[0].mxu0
  %1225 = vmatprep.mubr.f32.mxu0 0.0
  %1226 = vmatmul.mubr.f32.gmra.mrb[0].mxu0 %v957
  %v1227 = vpop.f32.mrb[0].mxu0
  %v1228 = vadd.f32 0.0, %v1227
  %v1229 = vpop.f32.mrb[0].mxu0
  %1230 = vdwg.mxu0
  %1231 = vst.msk [vmem:[#allocation3 + $0x48] sm:$0xff] %vm1048, %v1213
  %1232 = vst.msk [vmem:[#allocation3 + $0x60] sm:$0xff] %vm1048, %v1218
  %1233 = vst.msk [vmem:[#allocation3 + $0x78] sm:$0xff] %vm1048, %v1223
  %v1238 = vrot.slane %v1213, 1
  %v1239 = vrot.slane %v1218, 1
  %v1240 = vsel %vm556, %v1238, %v1239
  %v1241 = vrot.slane %v1223, 1
  %v1242 = vsel %vm556, %v1239, %v1241
  %v1243 = vrot.slane %v1228, 1
  %v1244 = vsel %vm556, %v1241, %v1243
  %1245 = vrot.lane.b32.xlu0 %v1240, 90
  %v1246 = vpop.permute.xlu0 %1245
  %1247 = vrot.lane.b32.xlu0 %v1242, 90
  %v1248 = vpop.permute.xlu0 %1247
  %1249 = vrot.lane.b32.xlu0 %v1244, 90
  %v1250 = vpop.permute.xlu0 %1249
  %1254 = vst.msk [vmem:[#allocation3 + $0x48] sm:$0xff] %vm160, %v1246
  %1255 = vst.msk [vmem:[#allocation3 + $0x50] sm:$0xff] %vm1073, %v1246
  %1256 = vst.msk [vmem:[#allocation3 + $0x60] sm:$0xff] %vm160, %v1248
  %1257 = vst.msk [vmem:[#allocation3 + $0x68] sm:$0xff] %vm1073, %v1248
  %1258 = vst.msk [vmem:[#allocation3 + $0x78] sm:$0xff] %vm160, %v1250
  %1259 = vst.msk [vmem:[#allocation3 + $0x80] sm:$0xff] %vm1073, %v1250
  %v1260 = vrot.slane %v1213, 2
  %v1261 = vrot.slane %v1218, 2
  %v1262 = vsel %vm205, %v1260, %v1261
  %v1263 = vrot.slane %v1223, 2
  %v1264 = vsel %vm205, %v1261, %v1263
  %v1265 = vrot.slane %v1228, 2
  %v1266 = vsel %vm205, %v1263, %v1265
  %1267 = vrot.lane.b32.xlu0 %v1262, 52
  %v1268 = vpop.permute.xlu0 %1267
  %1269 = vrot.lane.b32.xlu0 %v1264, 52
  %v1270 = vpop.permute.xlu0 %1269
  %1271 = vrot.lane.b32.xlu0 %v1266, 52
  %v1272 = vpop.permute.xlu0 %1271
  %1276 = vst.msk [vmem:[#allocation3 + $0x50] sm:$0xff] %vm1095, %v1268
  %1277 = vst.msk [vmem:[#allocation3 + $0x58] sm:$0xff] %vm1097, %v1268
  %1278 = vst.msk [vmem:[#allocation3 + $0x68] sm:$0xff] %vm1095, %v1270
  %1279 = vst.msk [vmem:[#allocation3 + $0x70] sm:$0xff] %vm1097, %v1270
  %1280 = vst.msk [vmem:[#allocation3 + $0x80] sm:$0xff] %vm1095, %v1272
  %1281 = vst.msk [vmem:[#allocation3 + $0x88] sm:$0xff] %vm1097, %v1272
  %v1282 = vld [vmem:[#allocation3] sm:$0xff]
  %v1283 = vld [vmem:[#allocation3 + $0x8] sm:$0xff]
  %v1284 = vld [vmem:[#allocation3 + $0x10] sm:$0xff]
  %v1285 = vld [vmem:[#allocation3 + $0x18] sm:$0xff]
  %v1286 = vld [vmem:[#allocation3 + $0x20] sm:$0xff]
  %v1287 = vld [vmem:[#allocation3 + $0x28] sm:$0xff]
  %v1288 = vld [vmem:[#allocation3 + $0x30] sm:$0xff]
  %v1289 = vld [vmem:[#allocation3 + $0x38] sm:$0xff]
  %v1290 = vld [vmem:[#allocation3 + $0x40] sm:$0xff]
  %v1291 = vld [vmem:[#allocation3 + $0x48] sm:$0xff]
  %v1292 = vld [vmem:[#allocation3 + $0x50] sm:$0xff]
  %v1293 = vld [vmem:[#allocation3 + $0x58] sm:$0xff]
  %v1294 = vld [vmem:[#allocation3 + $0x60] sm:$0xff]
  %v1295 = vld [vmem:[#allocation3 + $0x68] sm:$0xff]
  %v1296 = vld [vmem:[#allocation3 + $0x70] sm:$0xff]
  %v1297 = vld [vmem:[#allocation3 + $0x78] sm:$0xff]
  %v1298 = vld [vmem:[#allocation3 + $0x80] sm:$0xff]
  %v1299 = vld [vmem:[#allocation3 + $0x88] sm:$0xff]
  %v1300 = vld [vmem:[%s3] sm:$0xff]
  %v1301 = vld [vmem:[%s3 + $0x8] sm:$0xff]
  %v1302 = vld [vmem:[%s3 + $0x10] sm:$0xff]
  %v1303 = vld [vmem:[%s3 + $0x18] sm:$0xff]
  %v1304 = vld [vmem:[%s3 + $0x20] sm:$0xff]
  %v1305 = vld [vmem:[%s3 + $0x28] sm:$0xff]
  %v1306 = vld [vmem:[%s3 + $0x30] sm:$0xff]
  %v1307 = vld [vmem:[%s3 + $0x38] sm:$0xff]
  %v1308 = vld [vmem:[%s3 + $0x40] sm:$0xff]
  %v1309 = vld [vmem:[%s3 + $0x48] sm:$0xff]
  %v1310 = vld [vmem:[%s3 + $0x50] sm:$0xff]
  %v1311 = vld [vmem:[%s3 + $0x58] sm:$0xff]
  %v1312 = vld [vmem:[%s3 + $0x60] sm:$0xff]
  %v1313 = vld [vmem:[%s3 + $0x68] sm:$0xff]
  %v1314 = vld [vmem:[%s3 + $0x70] sm:$0xff]
  %v1315 = vld [vmem:[%s3 + $0x78] sm:$0xff]
  %v1316 = vld [vmem:[%s3 + $0x80] sm:$0xff]
  %v1317 = vld [vmem:[%s3 + $0x88] sm:$0xff]
  %v1318 = vld [vmem:[%s3 + $0x90] sm:$0xff]
  %v1319 = vld [vmem:[%s3 + $0x98] sm:$0xff]
  %v1320 = vld [vmem:[%s3 + $0xa0] sm:$0xff]
  %v1321 = vld [vmem:[%s3 + $0xa8] sm:$0xff]
  %v1322 = vld [vmem:[%s3 + $0xb0] sm:$0xff]
  %v1323 = vld [vmem:[%s3 + $0xb8] sm:$0xff]
  %v1324 = vld [vmem:[%s3 + $0xc0] sm:$0xff]
  %v1325 = vld [vmem:[%s3 + $0xc8] sm:$0xff]
  %v1326 = vld [vmem:[%s3 + $0xd0] sm:$0xff]
  %v1327 = vld [vmem:[%s3 + $0xd8] sm:$0xff]
  %v1328 = vld [vmem:[%s3 + $0xe0] sm:$0xff]
  %v1329 = vld [vmem:[%s3 + $0xe8] sm:$0xff]
  %v1330 = vld [vmem:[%s3 + $0xf0] sm:$0xff]
  %v1331 = vld [vmem:[%s3 + $0xf8] sm:$0xff]
  %v1332 = vld [vmem:[%s3 + $0x100] sm:$0xff]
  %v1333 = vld [vmem:[%s3 + $0x108] sm:$0xff]
  %v1334 = vld [vmem:[%s3 + $0x110] sm:$0xff]
  %v1335 = vld [vmem:[%s3 + $0x118] sm:$0xff]
  %v1336 = vld [vmem:[%s3 + $0x120] sm:$0xff]
  %v1337 = vld [vmem:[%s3 + $0x128] sm:$0xff]
  %v1338 = vld [vmem:[%s3 + $0x130] sm:$0xff]
  %v1339 = vld [vmem:[%s3 + $0x138] sm:$0xff]
  %v1340 = vld [vmem:[%s3 + $0x140] sm:$0xff]
  %v1341 = vld [vmem:[%s3 + $0x148] sm:$0xff]
  %v1342 = vld [vmem:[%s3 + $0x150] sm:$0xff]
  %v1343 = vld [vmem:[%s3 + $0x158] sm:$0xff]
  %v1344 = vld [vmem:[%s3 + $0x160] sm:$0xff]
  %v1345 = vld [vmem:[%s3 + $0x168] sm:$0xff]
  %v1346 = vld [vmem:[%s3 + $0x170] sm:$0xff]
  %v1347 = vld [vmem:[%s3 + $0x178] sm:$0xff]
  %v1348 = vld [vmem:[%s3 + $0x180] sm:$0xff]
  %v1349 = vld [vmem:[%s3 + $0x188] sm:$0xff]
  %v1350 = vld [vmem:[%s3 + $0x190] sm:$0xff]
  %v1351 = vld [vmem:[%s3 + $0x198] sm:$0xff]
  %v1352 = vld [vmem:[%s3 + $0x1a0] sm:$0xff]
  %v1353 = vld [vmem:[%s3 + $0x1a8] sm:$0xff]
  %v1354 = vld [vmem:[%s3 + $0x1b0] sm:$0xff]
  %v1355 = vld [vmem:[%s3 + $0x1b8] sm:$0xff]
  %v1356 = vld [vmem:[%s3 + $0x1c0] sm:$0xff]
  %v1357 = vld [vmem:[%s3 + $0x1c8] sm:$0xff]
  %v1358 = vld [vmem:[%s3 + $0x1d0] sm:$0xff]
  %v1359 = vld [vmem:[%s3 + $0x1d8] sm:$0xff]
  %v1360 = vld [vmem:[%s3 + $0x1e0] sm:$0xff]
  %v1361 = vld [vmem:[%s3 + $0x1e8] sm:$0xff]
  %v1362 = vld [vmem:[%s3 + $0x1f0] sm:$0xff]
  %v1363 = vld [vmem:[%s3 + $0x1f8] sm:$0xff]
  %v1364 = vld [vmem:[%s3 + $0x200] sm:$0xff]
  %v1365 = vld [vmem:[%s3 + $0x208] sm:$0xff]
  %v1366 = vld [vmem:[%s3 + $0x210] sm:$0x3f]
  %v1367 = vld [vmem:[%s3 + $0x218] sm:$0x3f]
  %v1368 = vld [vmem:[%s4] sm:$0x3]
  %v1370 = vlaneseq
  %v1371 = vshrl.u32 %v1370, 7
  %v1372 = vsub.s32 0, %v1371
  %v1373 = vrot.slane %v1368, %v1372
  %v1374 = vlaneseq
  %v1375 = vshrl.u32 %v1374, 7
  %v1376 = vsub.s32 1, %v1375
  %v1377 = vrot.slane %v1368, %v1376
  %v1381 = vsel %vm1097, %v1284, 0
  %v1384 = vsel %vm1097, %v1287, 0
  %v1387 = vsel %vm1097, %v1290, 0
  %v1390 = vsel %vm1097, %v1293, 0
  %v1393 = vsel %vm1097, %v1296, 0
  %v1396 = vsel %vm1097, %v1299, 0
  %v1399 = vsel %vm205, %v1366, 0
  %v1402 = vsel %vm205, %v1367, 0
  %1404 = vmatprep.subr.mxu0 %v1301
  %1405 = vmatpush1.msra.mxu0 %v1300
  %1406 = vmatprep.subr.mxu0 %v1303
  %1407 = vmatpush1.msra.mxu0 %v1302
  %1408 = vmatprep.subr.mxu0 %v1305
  %1409 = vmatpush1.msra.mxu0 %v1304
  %1410 = vmatprep.subr.mxu0 %v1307
  %1411 = vmatpush1.msra.mxu0 %v1306
  %1412 = vmatprep.subr.mxu0 %v1309
  %1413 = vmatpush1.msra.mxu0 %v1308
  %1414 = vmatprep.subr.mxu0 %v1311
  %1415 = vmatpush1.msra.mxu0 %v1310
  %1416 = vmatprep.subr.mxu0 %v1313
  %1417 = vmatpush1.msra.mxu0 %v1312
  %1418 = vmatprep.subr.mxu0 %v1315
  %1419 = vmatpush1.msra.mxu0 %v1314
  %1420 = vmatprep.subr.mxu0 %v1317
  %1421 = vmatpush1.msra.mxu0 %v1316
  %1422 = vmatprep.subr.mxu0 %v1319
  %1423 = vmatpush1.msra.mxu0 %v1318
  %1424 = vmatprep.subr.mxu0 %v1321
  %1425 = vmatpush1.msra.mxu0 %v1320
  %1426 = vmatprep.subr.mxu0 %v1323
  %1427 = vmatpush1.msra.mxu0 %v1322
  %1428 = vmatprep.subr.mxu0 %v1325
  %1429 = vmatpush1.msra.mxu0 %v1324
  %1430 = vmatprep.subr.mxu0 %v1327
  %1431 = vmatpush1.msra.mxu0 %v1326
  %1432 = vmatprep.subr.mxu0 %v1329
  %1433 = vmatpush1.msra.mxu0 %v1328
  %1434 = vmatprep.subr.mxu0 %v1331
  %1435 = vmatpush1.msra.mxu0 %v1330
  %1436 = vmatprep.subr.mxu0 %v1333
  %1437 = vmatpush1.msra.mxu0 %v1332
  %1438 = vmatprep.subr.mxu0 %v1335
  %1439 = vmatpush1.msra.mxu0 %v1334
  %1440 = vmatprep.subr.mxu0 %v1337
  %1441 = vmatpush1.msra.mxu0 %v1336
  %1442 = vmatprep.subr.mxu0 %v1339
  %1443 = vmatpush1.msra.mxu0 %v1338
  %1444 = vmatprep.subr.mxu0 %v1341
  %1445 = vmatpush1.msra.mxu0 %v1340
  %1446 = vmatprep.subr.mxu0 %v1343
  %1447 = vmatpush1.msra.mxu0 %v1342
  %1448 = vmatprep.subr.mxu0 %v1345
  %1449 = vmatpush1.msra.mxu0 %v1344
  %1450 = vmatprep.subr.mxu0 %v1347
  %1451 = vmatpush1.msra.mxu0 %v1346
  %1452 = vmatprep.subr.mxu0 %v1349
  %1453 = vmatpush1.msra.mxu0 %v1348
  %1454 = vmatprep.subr.mxu0 %v1351
  %1455 = vmatpush1.msra.mxu0 %v1350
  %1456 = vmatprep.subr.mxu0 %v1353
  %1457 = vmatpush1.msra.mxu0 %v1352
  %1458 = vmatprep.subr.mxu0 %v1355
  %1459 = vmatpush1.msra.mxu0 %v1354
  %1460 = vmatprep.subr.mxu0 %v1357
  %1461 = vmatpush1.msra.mxu0 %v1356
  %1462 = vmatprep.subr.mxu0 %v1359
  %1463 = vmatpush1.msra.mxu0 %v1358
  %1464 = vmatprep.subr.mxu0 %v1361
  %1465 = vmatpush1.msra.mxu0 %v1360
  %1466 = vmatprep.subr.mxu0 %v1363
  %1467 = vmatpush1.msra.mxu0 %v1362
  %1468 = vmatprep.mubr.f32.mxu0 %v1283
  %1469 = vmatmul.mubr.f32.gmra.mrb[0].mxu0 %v1282
  %v1470 = vpop.f32.mrb[0].mxu0
  %v1471 = vadd.f32 %v1373, %v1470
  %v1472 = vpop.f32.mrb[0].mxu0
  %v1473 = vadd.f32 %v1377, %v1472
  %1474 = vmatprep.mubr.f32.mxu0 %v1286
  %1475 = vmatmul.mubr.f32.gmra.mrb[0].mxu0 %v1285
  %v1476 = vpop.f32.mrb[0].mxu0
  %v1477 = vadd.f32 %v1373, %v1476
  %v1478 = vpop.f32.mrb[0].mxu0
  %v1479 = vadd.f32 %v1377, %v1478
  %1480 = vmatprep.mubr.f32.mxu0 %v1289
  %1481 = vmatmul.mubr.f32.gmra.mrb[0].mxu0 %v1288
  %v1482 = vpop.f32.mrb[0].mxu0
  %v1483 = vadd.f32 %v1373, %v1482
  %v1484 = vpop.f32.mrb[0].mxu0
  %v1485 = vadd.f32 %v1377, %v1484
  %1486 = vmatprep.mubr.f32.mxu0 %v1292
  %1487 = vmatmul.mubr.f32.gmra.mrb[0].mxu0 %v1291
  %v1488 = vpop.f32.mrb[0].mxu0
  %v1489 = vadd.f32 %v1373, %v1488
  %v1490 = vpop.f32.mrb[0].mxu0
  %v1491 = vadd.f32 %v1377, %v1490
  %1492 = vmatprep.mubr.f32.mxu0 %v1295
  %1493 = vmatmul.mubr.f32.gmra.mrb[0].mxu0 %v1294
  %v1494 = vpop.f32.mrb[0].mxu0
  %v1495 = vadd.f32 %v1373, %v1494
  %v1496 = vpop.f32.mrb[0].mxu0
  %v1497 = vadd.f32 %v1377, %v1496
  %1498 = vmatprep.mubr.f32.mxu0 %v1298
  %1499 = vmatmul.mubr.f32.gmra.mrb[0].mxu0 %v1297
  %v1500 = vpop.f32.mrb[0].mxu0
  %v1501 = vadd.f32 %v1373, %v1500
  %v1502 = vpop.f32.mrb[0].mxu0
  %v1503 = vadd.f32 %v1377, %v1502
  %1504 = vdwg.mxu0
  %1505 = vmatprep.subr.mxu0 %v1365
  %1506 = vmatpush1.msra.mxu0 %v1364
  %1507 = vmatprep.subr.mxu0 %v1402
  %1508 = vmatpush1.msra.mxu0 %v1399
  %1509 = vmatprep.subr.mxu0 0.0
  %1510 = vmatpush1.msra.mxu0 0.0
  %1511 = vmatprep.subr.mxu0 0.0
  %1512 = vmatpush1.msra.mxu0 0.0
  %1513 = vmatprep.subr.mxu0 0.0
  %1514 = vmatpush1.msra.mxu0 0.0
  %1515 = vmatprep.subr.mxu0 0.0
  %1516 = vmatpush1.msra.mxu0 0.0
  %1517 = vmatprep.subr.mxu0 0.0
  %1518 = vmatpush1.msra.mxu0 0.0
  %1519 = vmatprep.subr.mxu0 0.0
  %1520 = vmatpush1.msra.mxu0 0.0
  %1521 = vmatprep.subr.mxu0 0.0
  %1522 = vmatpush1.msra.mxu0 0.0
  %1523 = vmatprep.subr.mxu0 0.0
  %1524 = vmatpush1.msra.mxu0 0.0
  %1525 = vmatprep.subr.mxu0 0.0
  %1526 = vmatpush1.msra.mxu0 0.0
  %1527 = vmatprep.subr.mxu0 0.0
  %1528 = vmatpush1.msra.mxu0 0.0
  %1529 = vmatprep.subr.mxu0 0.0
  %1530 = vmatpush1.msra.mxu0 0.0
  %1531 = vmatprep.subr.mxu0 0.0
  %1532 = vmatpush1.msra.mxu0 0.0
  %1533 = vmatprep.subr.mxu0 0.0
  %1534 = vmatpush1.msra.mxu0 0.0
  %1535 = vmatprep.subr.mxu0 0.0
  %1536 = vmatpush1.msra.mxu0 0.0
  %1537 = vmatprep.subr.mxu0 0.0
  %1538 = vmatpush1.msra.mxu0 0.0
  %1539 = vmatprep.subr.mxu0 0.0
  %1540 = vmatpush1.msra.mxu0 0.0
  %1541 = vmatprep.subr.mxu0 0.0
  %1542 = vmatpush1.msra.mxu0 0.0
  %1543 = vmatprep.subr.mxu0 0.0
  %1544 = vmatpush1.msra.mxu0 0.0
  %1545 = vmatprep.subr.mxu0 0.0
  %1546 = vmatpush1.msra.mxu0 0.0
  %1547 = vmatprep.subr.mxu0 0.0
  %1548 = vmatpush1.msra.mxu0 0.0
  %1549 = vmatprep.subr.mxu0 0.0
  %1550 = vmatpush1.msra.mxu0 0.0
  %1551 = vmatprep.subr.mxu0 0.0
  %1552 = vmatpush1.msra.mxu0 0.0
  %1553 = vmatprep.subr.mxu0 0.0
  %1554 = vmatpush1.msra.mxu0 0.0
  %1555 = vmatprep.subr.mxu0 0.0
  %1556 = vmatpush1.msra.mxu0 0.0
  %1557 = vmatprep.subr.mxu0 0.0
  %1558 = vmatpush1.msra.mxu0 0.0
  %1559 = vmatprep.subr.mxu0 0.0
  %1560 = vmatpush1.msra.mxu0 0.0
  %1561 = vmatprep.subr.mxu0 0.0
  %1562 = vmatpush1.msra.mxu0 0.0
  %1563 = vmatprep.subr.mxu0 0.0
  %1564 = vmatpush1.msra.mxu0 0.0
  %1565 = vmatprep.subr.mxu0 0.0
  %1566 = vmatpush1.msra.mxu0 0.0
  %1567 = vmatprep.subr.mxu0 0.0
  %1568 = vmatpush1.msra.mxu0 0.0
  %1569 = vmatprep.mubr.f32.mxu0 0.0
  %1570 = vmatmul.mubr.f32.gmra.mrb[0].mxu0 %v1381
  %v1571 = vpop.f32.mrb[0].mxu0
  %v1572 = vadd.f32 %v1471, %v1571
  %v1573 = vpop.f32.mrb[0].mxu0
  %v1574 = vadd.f32 %v1473, %v1573
  %1575 = vmatprep.mubr.f32.mxu0 0.0
  %1576 = vmatmul.mubr.f32.gmra.mrb[0].mxu0 %v1384
  %v1577 = vpop.f32.mrb[0].mxu0
  %v1578 = vadd.f32 %v1477, %v1577
  %v1579 = vpop.f32.mrb[0].mxu0
  %v1580 = vadd.f32 %v1479, %v1579
  %1581 = vmatprep.mubr.f32.mxu0 0.0
  %1582 = vmatmul.mubr.f32.gmra.mrb[0].mxu0 %v1387
  %v1583 = vpop.f32.mrb[0].mxu0
  %v1584 = vadd.f32 %v1483, %v1583
  %v1585 = vpop.f32.mrb[0].mxu0
  %v1586 = vadd.f32 %v1485, %v1585
  %1587 = vmatprep.mubr.f32.mxu0 0.0
  %1588 = vmatmul.mubr.f32.gmra.mrb[0].mxu0 %v1390
  %v1589 = vpop.f32.mrb[0].mxu0
  %v1590 = vadd.f32 %v1489, %v1589
  %v1591 = vpop.f32.mrb[0].mxu0
  %v1592 = vadd.f32 %v1491, %v1591
  %1593 = vmatprep.mubr.f32.mxu0 0.0
  %1594 = vmatmul.mubr.f32.gmra.mrb[0].mxu0 %v1393
  %v1595 = vpop.f32.mrb[0].mxu0
  %v1596 = vadd.f32 %v1495, %v1595
  %v1597 = vpop.f32.mrb[0].mxu0
  %v1598 = vadd.f32 %v1497, %v1597
  %1599 = vmatprep.mubr.f32.mxu0 0.0
  %1600 = vmatmul.mubr.f32.gmra.mrb[0].mxu0 %v1396
  %v1601 = vpop.f32.mrb[0].mxu0
  %v1602 = vadd.f32 %v1501, %v1601
  %v1603 = vpop.f32.mrb[0].mxu0
  %v1604 = vadd.f32 %v1503, %v1603
  %1605 = vdwg.mxu0
  %v1606 = vmax.f32 %v1572, 0.0
  %v1607 = vmax.f32 %v1574, 0.0
  %v1608 = vmax.f32 %v1578, 0.0
  %v1609 = vmax.f32 %v1580, 0.0
  %v1610 = vmax.f32 %v1584, 0.0
  %v1611 = vmax.f32 %v1586, 0.0
  %v1612 = vmax.f32 %v1590, 0.0
  %v1613 = vmax.f32 %v1592, 0.0
  %v1614 = vmax.f32 %v1596, 0.0
  %v1615 = vmax.f32 %v1598, 0.0
  %v1616 = vmax.f32 %v1602, 0.0
  %v1617 = vmax.f32 %v1604, 0.0
  %v1630 = vrot.slane %v1606, 1
  %v1631 = vrot.slane %v1608, 1
  %v1632 = vsel %vm556, %v1630, %v1631
  %v1633 = vrot.slane %v1607, 1
  %v1634 = vrot.slane %v1609, 1
  %v1635 = vsel %vm556, %v1633, %v1634
  %v1636 = vrot.slane %v1610, 1
  %v1637 = vsel %vm556, %v1631, %v1636
  %v1638 = vrot.slane %v1611, 1
  %v1639 = vsel %vm556, %v1634, %v1638
  %v1640 = vrot.slane %v1612, 1
  %v1641 = vsel %vm556, %v1636, %v1640
  %v1642 = vrot.slane %v1613, 1
  %v1643 = vsel %vm556, %v1638, %v1642
  %v1644 = vrot.slane %v1614, 1
  %v1645 = vsel %vm556, %v1640, %v1644
  %v1646 = vrot.slane %v1615, 1
  %v1647 = vsel %vm556, %v1642, %v1646
  %v1648 = vrot.slane %v1616, 1
  %v1649 = vsel %vm556, %v1644, %v1648
  %v1650 = vrot.slane %v1617, 1
  %v1651 = vsel %vm556, %v1646, %v1650
  %v1664 = vmax.f32 %v1606, %v1632
  %v1665 = vmax.f32 %v1607, %v1635
  %v1666 = vmax.f32 %v1608, %v1637
  %v1667 = vmax.f32 %v1609, %v1639
  %v1668 = vmax.f32 %v1610, %v1641
  %v1669 = vmax.f32 %v1611, %v1643
  %v1670 = vmax.f32 %v1612, %v1645
  %v1671 = vmax.f32 %v1613, %v1647
  %v1672 = vmax.f32 %v1614, %v1649
  %v1673 = vmax.f32 %v1615, %v1651
  %v1674 = vmax.f32 %v1616, %v1648
  %v1675 = vmax.f32 %v1617, %v1650
  %v1676 = vrot.slane %v1606, 2
  %v1677 = vrot.slane %v1608, 2
  %v1678 = vsel %vm205, %v1676, %v1677
  %v1679 = vrot.slane %v1607, 2
  %v1680 = vrot.slane %v1609, 2
  %v1681 = vsel %vm205, %v1679, %v1680
  %v1682 = vrot.slane %v1610, 2
  %v1683 = vsel %vm205, %v1677, %v1682
  %v1684 = vrot.slane %v1611, 2
  %v1685 = vsel %vm205, %v1680, %v1684
  %v1686 = vrot.slane %v1612, 2
  %v1687 = vsel %vm205, %v1682, %v1686
  %v1688 = vrot.slane %v1613, 2
  %v1689 = vsel %vm205, %v1684, %v1688
  %v1690 = vrot.slane %v1614, 2
  %v1691 = vsel %vm205, %v1686, %v1690
  %v1692 = vrot.slane %v1615, 2
  %v1693 = vsel %vm205, %v1688, %v1692
  %v1694 = vrot.slane %v1616, 2
  %v1695 = vsel %vm205, %v1690, %v1694
  %v1696 = vrot.slane %v1617, 2
  %v1697 = vsel %vm205, %v1692, %v1696
  %v1710 = vmax.f32 %v1664, %v1678
  %v1711 = vmax.f32 %v1665, %v1681
  %v1712 = vmax.f32 %v1666, %v1683
  %v1713 = vmax.f32 %v1667, %v1685
  %v1714 = vmax.f32 %v1668, %v1687
  %v1715 = vmax.f32 %v1669, %v1689
  %v1716 = vmax.f32 %v1670, %v1691
  %v1717 = vmax.f32 %v1671, %v1693
  %v1718 = vmax.f32 %v1672, %v1695
  %v1719 = vmax.f32 %v1673, %v1697
  %v1720 = vmax.f32 %v1674, %v1694
  %v1721 = vmax.f32 %v1675, %v1696
  %vm1722 = vcmask 179200
  %v1723 = vsel %vm1722, %v942, 0
  %v1726 = vsel %vm205, %v1714, 0
  %v1729 = vsel %vm205, %v1715, 0
  %1731 = vmatprep.subr.mxu0 %v1711
  %1732 = vmatpush1.msra.mxu0 %v1710
  %1733 = vmatprep.subr.mxu0 %v1713
  %1734 = vmatpush1.msra.mxu0 %v1712
  %1735 = vmatprep.subr.mxu0 %v1729
  %1736 = vmatpush1.msra.mxu0 %v1726
  %1737 = vmatprep.subr.mxu0 0.0
  %1738 = vmatpush1.msra.mxu0 0.0
  %1739 = vmatprep.subr.mxu0 0.0
  %1740 = vmatpush1.msra.mxu0 0.0
  %1741 = vmatprep.subr.mxu0 0.0
  %1742 = vmatpush1.msra.mxu0 0.0
  %1743 = vmatprep.subr.mxu0 0.0
  %1744 = vmatpush1.msra.mxu0 0.0
  %1745 = vmatprep.subr.mxu0 0.0
  %1746 = vmatpush1.msra.mxu0 0.0
  %1747 = vmatprep.subr.mxu0 0.0
  %1748 = vmatpush1.msra.mxu0 0.0
  %1749 = vmatprep.subr.mxu0 0.0
  %1750 = vmatpush1.msra.mxu0 0.0
  %1751 = vmatprep.subr.mxu0 0.0
  %1752 = vmatpush1.msra.mxu0 0.0
  %1753 = vmatprep.subr.mxu0 0.0
  %1754 = vmatpush1.msra.mxu0 0.0
  %1755 = vmatprep.subr.mxu0 0.0
  %1756 = vmatpush1.msra.mxu0 0.0
  %1757 = vmatprep.subr.mxu0 0.0
  %1758 = vmatpush1.msra.mxu0 0.0
  %1759 = vmatprep.subr.mxu0 0.0
  %1760 = vmatpush1.msra.mxu0 0.0
  %1761 = vmatprep.subr.mxu0 0.0
  %1762 = vmatpush1.msra.mxu0 0.0
  %1763 = vmatprep.subr.mxu0 0.0
  %1764 = vmatpush1.msra.mxu0 0.0
  %1765 = vmatprep.subr.mxu0 0.0
  %1766 = vmatpush1.msra.mxu0 0.0
  %1767 = vmatprep.subr.mxu0 0.0
  %1768 = vmatpush1.msra.mxu0 0.0
  %1769 = vmatprep.subr.mxu0 0.0
  %1770 = vmatpush1.msra.mxu0 0.0
  %1771 = vmatprep.subr.mxu0 0.0
  %1772 = vmatpush1.msra.mxu0 0.0
  %1773 = vmatprep.subr.mxu0 0.0
  %1774 = vmatpush1.msra.mxu0 0.0
  %1775 = vmatprep.subr.mxu0 0.0
  %1776 = vmatpush1.msra.mxu0 0.0
  %1777 = vmatprep.subr.mxu0 0.0
  %1778 = vmatpush1.msra.mxu0 0.0
  %1779 = vmatprep.subr.mxu0 0.0
  %1780 = vmatpush1.msra.mxu0 0.0
  %1781 = vmatprep.subr.mxu0 0.0
  %1782 = vmatpush1.msra.mxu0 0.0
  %1783 = vmatprep.subr.mxu0 0.0
  %1784 = vmatpush1.msra.mxu0 0.0
  %1785 = vmatprep.subr.mxu0 0.0
  %1786 = vmatpush1.msra.mxu0 0.0
  %1787 = vmatprep.subr.mxu0 0.0
  %1788 = vmatpush1.msra.mxu0 0.0
  %1789 = vmatprep.subr.mxu0 0.0
  %1790 = vmatpush1.msra.mxu0 0.0
  %1791 = vmatprep.subr.mxu0 0.0
  %1792 = vmatpush1.msra.mxu0 0.0
  %1793 = vmatprep.subr.mxu0 0.0
  %1794 = vmatpush1.msra.mxu0 0.0
  %1795 = vmatprep.mubr.f32.mxu0 0.0
  %1796 = vmatmul.mubr.f32.gmra.mrb[0].mxu0 %v1723
  %v1797 = vpop.f32.mrb[0].mxu0
  %v1798 = vadd.f32 0.0, %v1797
  %v1799 = vpop.f32.mrb[0].mxu0
  %v1800 = vadd.f32 0.0, %v1799
  %1801 = vdwg.mxu0
  %v1802 = vld [vmem:[%s5] sm:$0x3]
  %v1804 = vlaneseq
  %v1805 = vshrl.u32 %v1804, 7
  %v1806 = vsub.s32 0, %v1805
  %v1807 = vrot.slane %v1802, %v1806
  %v1808 = vlaneseq
  %v1809 = vshrl.u32 %v1808, 7
  %v1810 = vsub.s32 1, %v1809
  %v1811 = vrot.slane %v1802, %v1810
  %v1814 = vmul.f32 %v1798, %v1807
  %v1815 = vmul.f32 %v1800, %v1811
  %v1816 = vld [vmem:[%s6] sm:$0x3]
  %v1818 = vlaneseq
  %v1819 = vshrl.u32 %v1818, 7
  %v1820 = vsub.s32 0, %v1819
  %v1821 = vrot.slane %v1816, %v1820
  %v1822 = vlaneseq
  %v1823 = vshrl.u32 %v1822, 7
  %v1824 = vsub.s32 1, %v1823
  %v1825 = vrot.slane %v1816, %v1824
  %v1828 = vadd.f32 %v1814, %v1821
  %v1829 = vadd.f32 %v1815, %v1825
  %1830 = vst [vmem:[%s7] sm:$0xff] %v1828
  %vm1831 = vcmask 97280
  %1832 = vst.msk [vmem:[%s7 + $0x8] sm:$0xff] %vm1831, %v1829
  %v1834 = vsel %vm205, %v1720, 0
  %v1837 = vsel %vm205, %v1721, 0
  %1839 = vmatprep.subr.mxu0 %v1717
  %1840 = vmatpush1.msra.mxu0 %v1716
  %1841 = vmatprep.subr.mxu0 %v1719
  %1842 = vmatpush1.msra.mxu0 %v1718
  %1843 = vmatprep.subr.mxu0 %v1837
  %1844 = vmatpush1.msra.mxu0 %v1834
  %1845 = vmatprep.subr.mxu0 0.0
  %1846 = vmatpush1.msra.mxu0 0.0
  %1847 = vmatprep.subr.mxu0 0.0
  %1848 = vmatpush1.msra.mxu0 0.0
  %1849 = vmatprep.subr.mxu0 0.0
  %1850 = vmatpush1.msra.mxu0 0.0
  %1851 = vmatprep.subr.mxu0 0.0
  %1852 = vmatpush1.msra.mxu0 0.0
  %1853 = vmatprep.subr.mxu0 0.0
  %1854 = vmatpush1.msra.mxu0 0.0
  %1855 = vmatprep.subr.mxu0 0.0
  %1856 = vmatpush1.msra.mxu0 0.0
  %1857 = vmatprep.subr.mxu0 0.0
  %1858 = vmatpush1.msra.mxu0 0.0
  %1859 = vmatprep.subr.mxu0 0.0
  %1860 = vmatpush1.msra.mxu0 0.0
  %1861 = vmatprep.subr.mxu0 0.0
  %1862 = vmatpush1.msra.mxu0 0.0
  %1863 = vmatprep.subr.mxu0 0.0
  %1864 = vmatpush1.msra.mxu0 0.0
  %1865 = vmatprep.subr.mxu0 0.0
  %1866 = vmatpush1.msra.mxu0 0.0
  %1867 = vmatprep.subr.mxu0 0.0
  %1868 = vmatpush1.msra.mxu0 0.0
  %1869 = vmatprep.subr.mxu0 0.0
  %1870 = vmatpush1.msra.mxu0 0.0
  %1871 = vmatprep.subr.mxu0 0.0
  %1872 = vmatpush1.msra.mxu0 0.0
  %1873 = vmatprep.subr.mxu0 0.0
  %1874 = vmatpush1.msra.mxu0 0.0
  %1875 = vmatprep.subr.mxu0 0.0
  %1876 = vmatpush1.msra.mxu0 0.0
  %1877 = vmatprep.subr.mxu0 0.0
  %1878 = vmatpush1.msra.mxu0 0.0
  %1879 = vmatprep.subr.mxu0 0.0
  %1880 = vmatpush1.msra.mxu0 0.0
  %1881 = vmatprep.subr.mxu0 0.0
  %1882 = vmatpush1.msra.mxu0 0.0
  %1883 = vmatprep.subr.mxu0 0.0
  %1884 = vmatpush1.msra.mxu0 0.0
  %1885 = vmatprep.subr.mxu0 0.0
  %1886 = vmatpush1.msra.mxu0 0.0
  %1887 = vmatprep.subr.mxu0 0.0
  %1888 = vmatpush1.msra.mxu0 0.0
  %1889 = vmatprep.subr.mxu0 0.0
  %1890 = vmatpush1.msra.mxu0 0.0
  %1891 = vmatprep.subr.mxu0 0.0
  %1892 = vmatpush1.msra.mxu0 0.0
  %1893 = vmatprep.subr.mxu0 0.0
  %1894 = vmatpush1.msra.mxu0 0.0
  %1895 = vmatprep.subr.mxu0 0.0
  %1896 = vmatpush1.msra.mxu0 0.0
  %1897 = vmatprep.subr.mxu0 0.0
  %1898 = vmatpush1.msra.mxu0 0.0
  %1899 = vmatprep.subr.mxu0 0.0
  %1900 = vmatpush1.msra.mxu0 0.0
  %1901 = vmatprep.subr.mxu0 0.0
  %1902 = vmatpush1.msra.mxu0 0.0
  %1903 = vmatprep.mubr.f32.mxu0 0.0
  %1904 = vmatmul.mubr.f32.gmra.mrb[0].mxu0 %v1723
  %v1905 = vpop.f32.mrb[0].mxu0
  %v1906 = vadd.f32 0.0, %v1905
  %v1907 = vpop.f32.mrb[0].mxu0
  %v1908 = vadd.f32 0.0, %v1907
  %1909 = vdwg.mxu0
  %v1910 = vld [vmem:[%s5] sm:$0x3]
  %v1912 = vlaneseq
  %v1913 = vshrl.u32 %v1912, 7
  %v1914 = vsub.s32 0, %v1913
  %v1915 = vrot.slane %v1910, %v1914
  %v1916 = vlaneseq
  %v1917 = vshrl.u32 %v1916, 7
  %v1918 = vsub.s32 1, %v1917
  %v1919 = vrot.slane %v1910, %v1918
  %v1922 = vmul.f32 %v1906, %v1915
  %v1923 = vmul.f32 %v1908, %v1919
  %v1924 = vld [vmem:[%s6] sm:$0x3]
  %v1926 = vlaneseq
  %v1927 = vshrl.u32 %v1926, 7
  %v1928 = vsub.s32 0, %v1927
  %v1929 = vrot.slane %v1924, %v1928
  %v1930 = vlaneseq
  %v1931 = vshrl.u32 %v1930, 7
  %v1932 = vsub.s32 1, %v1931
  %v1933 = vrot.slane %v1924, %v1932
  %v1936 = vadd.f32 %v1922, %v1929
  %v1937 = vadd.f32 %v1923, %v1933
  %1938 = vst [vmem:[%s7 + $0x10] sm:$0xff] %v1936
  %1939 = vst.msk [vmem:[%s7 + $0x18] sm:$0xff] %vm1831, %v1937
  // Predicated region
  $region30: #{cblstm_forward.2} parent=0 // pred_check
    _
  $region31: #{cblstm_forward.2} parent=0 // pred_check_branch
    %1941 = sbr.rel (0) target = $region33
  $region32: #{cblstm_forward.2} parent=0 // pred_region
    _
  $region33: #{cblstm_forward.2} parent=0 // pred_fallthru
    _
  // Predicated region
  $region34: #{cblstm_forward.2} parent=0 // pred_check
    _
  $region35: #{cblstm_forward.2} parent=0 // pred_check_branch
    %1943 = sbr.rel (0) target = $region37
  $region36: #{cblstm_forward.2} parent=0 // pred_region
    _
  $region37: #{cblstm_forward.2} parent=0 // pred_fallthru
    _

// kernel: cblstm_forward.3
$region0: #{cblstm_forward.3}
  #allocation0 [shape = 'u32[]', space=smem, size = 0x4, offset = 0x4, fixed_abs, tag = 'smem constant byte address 0x4 - core index']
  #allocation1 [shape = 'u32[144,128]{1,0:T(1,128)}', space=vmem, size = 0x12000, scoped, tag = 'internal scratch']
  #allocation2 [shape = 'f32[14,1024]{1,0:T(8,128)}', space=vmem, size = 0x10000, scoped, tag = 'scratch operand']
  #allocation3 [shape = 'f32[2,256]{1,0:T(2,128)}', space=vmem, size = 0x800, scoped, tag = 'scratch operand']
  #allocation4 [shape = 'f32[2,256]{1,0:T(2,128)}', space=vmem, size = 0x800, scoped, tag = 'scratch operand']
  #allocation5 [shape = 'f32[2,1792]{1,0:T(2,128)}', space=vmem, size = 0x3800, scoped, tag = 'scratch operand']
  #allocation6 [shape = 'f32[1,1]{1,0:T(1,128)S(1)}', space=vmem, size = 0x200, scoped, tag = 'scoped memory for cblstm_forward.3']
  %s0 = inlined_call_operand.vmem [shape: f32[14,166], index: 0, kind: input, shape index: {}]
  %s1 = inlined_call_operand.hbm [shape: f32[166,1024], index: 1, kind: input, shape index: {}]
  %s2 = inlined_call_operand.vmem [shape: f32[1,1024], index: 2, kind: input, shape index: {}]
  %s3 = inlined_call_operand.vmem [shape: f32[256,1024], index: 3, kind: input, shape index: {}]
  %s4 = inlined_call_operand.hbm [shape: f32[1792,128], index: 4, kind: input, shape index: {}]
  %s5 = inlined_call_operand.vmem [shape: f32[1,128], index: 5, kind: input, shape index: {}]
  %s6 = inlined_call_operand.vmem [shape: f32[1,128], index: 6, kind: input, shape index: {}]
  %s7 = inlined_call_operand.<no memory space> [shape: f32[1,1], index: 7, kind: input, shape index: {}]
  %s8 = inlined_call_operand.vmem [shape: f32[2,1], index: 8, kind: output, shape index: {}]
  %s9 = sld [smem:[#allocation0]]
  $region50: #{cblstm_forward.3} parent=0
    _
  %s11 = ssub.s32 1, %s9
  %s12 = scalar_select 0, %s11, %s9
  %v13 = vstv %s7
  %14 = vst [vmem:[#allocation6] sm:$0x1] %v13
  $region1: #{cblstm_forward.3} parent=0
    #allocation7 [shape = 'u8[688128]{0}', space=vmem, size = 0xa8000, scoped, tag = 'input window, operand 1, single buffered']
    #allocation8 [shape = 's32[1]{0}', space=sflag, size = 0x4, scoped, tag = 'scoped memory for cblstm_forward.3']
    #allocation9 [shape = 'u8[917504]{0}', space=vmem, size = 0xe0000, scoped, tag = 'input window, operand 4, single buffered']
    #allocation10 [shape = 's32[1]{0}', space=sflag, size = 0x4, scoped, tag = 'scoped memory for cblstm_forward.3']
    %15 = vsyncpa [#allocation8], 0
    %16 = vsyncpa [#allocation10], 0
    // Predicated region
    $region2: #{cblstm_forward.3} parent=1 // pred_check
      _
    $region3: #{cblstm_forward.3} parent=1 // pred_check_branch
      %18 = sbr.rel (0) target = $region5
    $region4: #{cblstm_forward.3} parent=1 // pred_region
      _
    $region5: #{cblstm_forward.3} parent=1 // pred_fallthru
      _
    // Predicated region
    $region6: #{cblstm_forward.3} parent=1 // pred_check
      _
    $region7: #{cblstm_forward.3} parent=1 // pred_check_branch
      %20 = sbr.rel (0) target = $region9
    $region8: #{cblstm_forward.3} parent=1 // pred_region
      %s22 = ssub.s32 21504, 21504
      %23 = vsyncadd [#allocation8], %s22
      %s24 = sshll.u32 [#allocation7], 4
      %s25 = int_to_ptr.vmem [resolvable:$true] %s24
      %30 = dma.hbm_to_vmem [thread:$0]  %s1, 21504, %s25, [#allocation8], 1024, 1024, 64
    $region9: #{cblstm_forward.3} parent=1 // pred_fallthru
      _
    // Predicated region
    $region10: #{cblstm_forward.3} parent=1 // pred_check
      _
    $region11: #{cblstm_forward.3} parent=1 // pred_check_branch
      %32 = sbr.rel (0) target = $region13
    $region12: #{cblstm_forward.3} parent=1 // pred_region
      _
    $region13: #{cblstm_forward.3} parent=1 // pred_fallthru
      _
    // Predicated region
    $region14: #{cblstm_forward.3} parent=1 // pred_check
      _
    $region15: #{cblstm_forward.3} parent=1 // pred_check_branch
      %34 = sbr.rel (0) target = $region17
    $region16: #{cblstm_forward.3} parent=1 // pred_region
      _
    $region17: #{cblstm_forward.3} parent=1 // pred_fallthru
      _
    // Predicated region
    $region18: #{cblstm_forward.3} parent=1 // pred_check
      _
    $region19: #{cblstm_forward.3} parent=1 // pred_check_branch
      %36 = sbr.rel (0) target = $region21
    $region20: #{cblstm_forward.3} parent=1 // pred_region
      %s38 = ssub.s32 28672, 28672
      %39 = vsyncadd [#allocation10], %s38
      %s40 = sshll.u32 [#allocation9], 4
      %s41 = int_to_ptr.vmem [resolvable:$true] %s40
      %46 = dma.hbm_to_vmem [thread:$0]  %s4, 28672, %s41, [#allocation10], 128, 128, 8
    $region21: #{cblstm_forward.3} parent=1 // pred_fallthru
      _
    // Predicated region
    $region22: #{cblstm_forward.3} parent=1 // pred_check
      _
    $region23: #{cblstm_forward.3} parent=1 // pred_check_branch
      %48 = sbr.rel (0) target = $region25
    $region24: #{cblstm_forward.3} parent=1 // pred_region
      _
    $region25: #{cblstm_forward.3} parent=1 // pred_fallthru
      _
    // Predicated region
    $region26: #{cblstm_forward.3} parent=1 // pred_check
      _
    $region27: #{cblstm_forward.3} parent=1 // pred_check_branch
      %50 = sbr.rel (0) target = $region29
    $region28: #{cblstm_forward.3} parent=1 // pred_region
      _
    $region29: #{cblstm_forward.3} parent=1 // pred_fallthru
      _
    // Predicated region
    $region30: #{cblstm_forward.3} parent=1 // pred_check
      _
    $region31: #{cblstm_forward.3} parent=1 // pred_check_branch
      %52 = sbr.rel (0) target = $region33
    $region32: #{cblstm_forward.3} parent=1 // pred_region
      _
    $region33: #{cblstm_forward.3} parent=1 // pred_fallthru
      _
    // Predicated region
    $region34: #{cblstm_forward.3} parent=1 // pred_check
      _
    $region35: #{cblstm_forward.3} parent=1 // pred_check_branch
      %54 = sbr.rel (0) target = $region37
    $region36: #{cblstm_forward.3} parent=1 // pred_region
      %55 = dma.done [#allocation8], 21504
    $region37: #{cblstm_forward.3} parent=1 // pred_fallthru
      _
    // Predicated region
    $region38: #{cblstm_forward.3} parent=1 // pred_check
      _
    $region39: #{cblstm_forward.3} parent=1 // pred_check_branch
      %57 = sbr.rel (0) target = $region41
    $region40: #{cblstm_forward.3} parent=1 // pred_region
      %58 = dma.done [#allocation10], 28672
    $region41: #{cblstm_forward.3} parent=1 // pred_fallthru
      _
    %v59 = vld [vmem:[%s0] sm:$0xff]
    %v60 = vld [vmem:[%s0 + $0x8] sm:$0xff]
    %v61 = vld [vmem:[%s0 + $0x10] sm:$0x3f]
    %v62 = vld [vmem:[%s0 + $0x18] sm:$0x3f]
    %v63 = vld [vmem:[#allocation7] sm:$0xff]
    %v64 = vld [vmem:[#allocation7 + $0x8] sm:$0xff]
    %v65 = vld [vmem:[#allocation7 + $0x10] sm:$0xff]
    %v66 = vld [vmem:[#allocation7 + $0x18] sm:$0xff]
    %v67 = vld [vmem:[#allocation7 + $0x20] sm:$0xff]
    %v68 = vld [vmem:[#allocation7 + $0x28] sm:$0xff]
    %v69 = vld [vmem:[#allocation7 + $0x30] sm:$0xff]
    %v70 = vld [vmem:[#allocation7 + $0x38] sm:$0xff]
    %v71 = vld [vmem:[#allocation7 + $0x40] sm:$0xff]
    %v72 = vld [vmem:[#allocation7 + $0x48] sm:$0xff]
    %v73 = vld [vmem:[#allocation7 + $0x50] sm:$0xff]
    %v74 = vld [vmem:[#allocation7 + $0x58] sm:$0xff]
    %v75 = vld [vmem:[#allocation7 + $0x60] sm:$0xff]
    %v76 = vld [vmem:[#allocation7 + $0x68] sm:$0xff]
    %v77 = vld [vmem:[#allocation7 + $0x70] sm:$0xff]
    %v78 = vld [vmem:[#allocation7 + $0x78] sm:$0xff]
    %v79 = vld [vmem:[#allocation7 + $0x80] sm:$0xff]
    %v80 = vld [vmem:[#allocation7 + $0x88] sm:$0xff]
    %v81 = vld [vmem:[#allocation7 + $0x90] sm:$0xff]
    %v82 = vld [vmem:[#allocation7 + $0x98] sm:$0xff]
    %v83 = vld [vmem:[#allocation7 + $0xa0] sm:$0xff]
    %v84 = vld [vmem:[#allocation7 + $0xa8] sm:$0xff]
    %v85 = vld [vmem:[#allocation7 + $0xb0] sm:$0xff]
    %v86 = vld [vmem:[#allocation7 + $0xb8] sm:$0xff]
    %v87 = vld [vmem:[#allocation7 + $0xc0] sm:$0xff]
    %v88 = vld [vmem:[#allocation7 + $0xc8] sm:$0xff]
    %v89 = vld [vmem:[#allocation7 + $0xd0] sm:$0xff]
    %v90 = vld [vmem:[#allocation7 + $0xd8] sm:$0xff]
    %v91 = vld [vmem:[#allocation7 + $0xe0] sm:$0xff]
    %v92 = vld [vmem:[#allocation7 + $0xe8] sm:$0xff]
    %v93 = vld [vmem:[#allocation7 + $0xf0] sm:$0xff]
    %v94 = vld [vmem:[#allocation7 + $0xf8] sm:$0xff]
    %v95 = vld [vmem:[#allocation7 + $0x100] sm:$0xff]
    %v96 = vld [vmem:[#allocation7 + $0x108] sm:$0xff]
    %v97 = vld [vmem:[#allocation7 + $0x110] sm:$0xff]
    %v98 = vld [vmem:[#allocation7 + $0x118] sm:$0xff]
    %v99 = vld [vmem:[#allocation7 + $0x120] sm:$0xff]
    %v100 = vld [vmem:[#allocation7 + $0x128] sm:$0xff]
    %v101 = vld [vmem:[#allocation7 + $0x130] sm:$0xff]
    %v102 = vld [vmem:[#allocation7 + $0x138] sm:$0xff]
    %v103 = vld [vmem:[#allocation7 + $0x140] sm:$0xff]
    %v104 = vld [vmem:[#allocation7 + $0x148] sm:$0xff]
    %v105 = vld [vmem:[#allocation7 + $0x150] sm:$0xff]
    %v106 = vld [vmem:[#allocation7 + $0x158] sm:$0xff]
    %v107 = vld [vmem:[#allocation7 + $0x160] sm:$0xff]
    %v108 = vld [vmem:[#allocation7 + $0x168] sm:$0xff]
    %v109 = vld [vmem:[#allocation7 + $0x170] sm:$0xff]
    %v110 = vld [vmem:[#allocation7 + $0x178] sm:$0xff]
    %v111 = vld [vmem:[#allocation7 + $0x180] sm:$0xff]
    %v112 = vld [vmem:[#allocation7 + $0x188] sm:$0xff]
    %v113 = vld [vmem:[#allocation7 + $0x190] sm:$0xff]
    %v114 = vld [vmem:[#allocation7 + $0x198] sm:$0xff]
    %v115 = vld [vmem:[#allocation7 + $0x1a0] sm:$0xff]
    %v116 = vld [vmem:[#allocation7 + $0x1a8] sm:$0xff]
    %v117 = vld [vmem:[#allocation7 + $0x1b0] sm:$0xff]
    %v118 = vld [vmem:[#allocation7 + $0x1b8] sm:$0xff]
    %v119 = vld [vmem:[#allocation7 + $0x1c0] sm:$0xff]
    %v120 = vld [vmem:[#allocation7 + $0x1c8] sm:$0xff]
    %v121 = vld [vmem:[#allocation7 + $0x1d0] sm:$0xff]
    %v122 = vld [vmem:[#allocation7 + $0x1d8] sm:$0xff]
    %v123 = vld [vmem:[#allocation7 + $0x1e0] sm:$0xff]
    %v124 = vld [vmem:[#allocation7 + $0x1e8] sm:$0xff]
    %v125 = vld [vmem:[#allocation7 + $0x1f0] sm:$0xff]
    %v126 = vld [vmem:[#allocation7 + $0x1f8] sm:$0xff]
    %v127 = vld [vmem:[#allocation7 + $0x200] sm:$0xff]
    %v128 = vld [vmem:[#allocation7 + $0x208] sm:$0xff]
    %v129 = vld [vmem:[#allocation7 + $0x210] sm:$0xff]
    %v130 = vld [vmem:[#allocation7 + $0x218] sm:$0xff]
    %v131 = vld [vmem:[#allocation7 + $0x220] sm:$0xff]
    %v132 = vld [vmem:[#allocation7 + $0x228] sm:$0xff]
    %v133 = vld [vmem:[#allocation7 + $0x230] sm:$0xff]
    %v134 = vld [vmem:[#allocation7 + $0x238] sm:$0xff]
    %v135 = vld [vmem:[#allocation7 + $0x240] sm:$0xff]
    %v136 = vld [vmem:[#allocation7 + $0x248] sm:$0xff]
    %v137 = vld [vmem:[#allocation7 + $0x250] sm:$0xff]
    %v138 = vld [vmem:[#allocation7 + $0x258] sm:$0xff]
    %v139 = vld [vmem:[#allocation7 + $0x260] sm:$0xff]
    %v140 = vld [vmem:[#allocation7 + $0x268] sm:$0xff]
    %v141 = vld [vmem:[#allocation7 + $0x270] sm:$0xff]
    %v142 = vld [vmem:[#allocation7 + $0x278] sm:$0xff]
    %v143 = vld [vmem:[#allocation7 + $0x280] sm:$0xff]
    %v144 = vld [vmem:[#allocation7 + $0x288] sm:$0xff]
    %v145 = vld [vmem:[#allocation7 + $0x290] sm:$0xff]
    %v146 = vld [vmem:[#allocation7 + $0x298] sm:$0xff]
    %v147 = vld [vmem:[#allocation7 + $0x2a0] sm:$0xff]
    %v148 = vld [vmem:[#allocation7 + $0x2a8] sm:$0xff]
    %v149 = vld [vmem:[#allocation7 + $0x2b0] sm:$0xff]
    %v150 = vld [vmem:[#allocation7 + $0x2b8] sm:$0xff]
    %v151 = vld [vmem:[#allocation7 + $0x2c0] sm:$0xff]
    %v152 = vld [vmem:[#allocation7 + $0x2c8] sm:$0xff]
    %v153 = vld [vmem:[#allocation7 + $0x2d0] sm:$0xff]
    %v154 = vld [vmem:[#allocation7 + $0x2d8] sm:$0xff]
    %v155 = vld [vmem:[#allocation7 + $0x2e0] sm:$0xff]
    %v156 = vld [vmem:[#allocation7 + $0x2e8] sm:$0xff]
    %v157 = vld [vmem:[#allocation7 + $0x2f0] sm:$0xff]
    %v158 = vld [vmem:[#allocation7 + $0x2f8] sm:$0xff]
    %v159 = vld [vmem:[#allocation7 + $0x300] sm:$0xff]
    %v160 = vld [vmem:[#allocation7 + $0x308] sm:$0xff]
    %v161 = vld [vmem:[#allocation7 + $0x310] sm:$0xff]
    %v162 = vld [vmem:[#allocation7 + $0x318] sm:$0xff]
    %v163 = vld [vmem:[#allocation7 + $0x320] sm:$0xff]
    %v164 = vld [vmem:[#allocation7 + $0x328] sm:$0xff]
    %v165 = vld [vmem:[#allocation7 + $0x330] sm:$0xff]
    %v166 = vld [vmem:[#allocation7 + $0x338] sm:$0xff]
    %v167 = vld [vmem:[#allocation7 + $0x340] sm:$0xff]
    %v168 = vld [vmem:[#allocation7 + $0x348] sm:$0xff]
    %v169 = vld [vmem:[#allocation7 + $0x350] sm:$0xff]
    %v170 = vld [vmem:[#allocation7 + $0x358] sm:$0xff]
    %v171 = vld [vmem:[#allocation7 + $0x360] sm:$0xff]
    %v172 = vld [vmem:[#allocation7 + $0x368] sm:$0xff]
    %v173 = vld [vmem:[#allocation7 + $0x370] sm:$0xff]
    %v174 = vld [vmem:[#allocation7 + $0x378] sm:$0xff]
    %v175 = vld [vmem:[#allocation7 + $0x380] sm:$0xff]
    %v176 = vld [vmem:[#allocation7 + $0x388] sm:$0xff]
    %v177 = vld [vmem:[#allocation7 + $0x390] sm:$0xff]
    %v178 = vld [vmem:[#allocation7 + $0x398] sm:$0xff]
    %v179 = vld [vmem:[#allocation7 + $0x3a0] sm:$0xff]
    %v180 = vld [vmem:[#allocation7 + $0x3a8] sm:$0xff]
    %v181 = vld [vmem:[#allocation7 + $0x3b0] sm:$0xff]
    %v182 = vld [vmem:[#allocation7 + $0x3b8] sm:$0xff]
    %v183 = vld [vmem:[#allocation7 + $0x3c0] sm:$0xff]
    %v184 = vld [vmem:[#allocation7 + $0x3c8] sm:$0xff]
    %v185 = vld [vmem:[#allocation7 + $0x3d0] sm:$0xff]
    %v186 = vld [vmem:[#allocation7 + $0x3d8] sm:$0xff]
    %v187 = vld [vmem:[#allocation7 + $0x3e0] sm:$0xff]
    %v188 = vld [vmem:[#allocation7 + $0x3e8] sm:$0xff]
    %v189 = vld [vmem:[#allocation7 + $0x3f0] sm:$0xff]
    %v190 = vld [vmem:[#allocation7 + $0x3f8] sm:$0xff]
    %v191 = vld [vmem:[#allocation7 + $0x400] sm:$0xff]
    %v192 = vld [vmem:[#allocation7 + $0x408] sm:$0xff]
    %v193 = vld [vmem:[#allocation7 + $0x410] sm:$0xff]
    %v194 = vld [vmem:[#allocation7 + $0x418] sm:$0xff]
    %v195 = vld [vmem:[#allocation7 + $0x420] sm:$0xff]
    %v196 = vld [vmem:[#allocation7 + $0x428] sm:$0xff]
    %v197 = vld [vmem:[#allocation7 + $0x430] sm:$0xff]
    %v198 = vld [vmem:[#allocation7 + $0x438] sm:$0xff]
    %v199 = vld [vmem:[#allocation7 + $0x440] sm:$0xff]
    %v200 = vld [vmem:[#allocation7 + $0x448] sm:$0xff]
    %v201 = vld [vmem:[#allocation7 + $0x450] sm:$0xff]
    %v202 = vld [vmem:[#allocation7 + $0x458] sm:$0xff]
    %v203 = vld [vmem:[#allocation7 + $0x460] sm:$0xff]
    %v204 = vld [vmem:[#allocation7 + $0x468] sm:$0xff]
    %v205 = vld [vmem:[#allocation7 + $0x470] sm:$0xff]
    %v206 = vld [vmem:[#allocation7 + $0x478] sm:$0xff]
    %v207 = vld [vmem:[#allocation7 + $0x480] sm:$0xff]
    %v208 = vld [vmem:[#allocation7 + $0x488] sm:$0xff]
    %v209 = vld [vmem:[#allocation7 + $0x490] sm:$0xff]
    %v210 = vld [vmem:[#allocation7 + $0x498] sm:$0xff]
    %v211 = vld [vmem:[#allocation7 + $0x4a0] sm:$0xff]
    %v212 = vld [vmem:[#allocation7 + $0x4a8] sm:$0xff]
    %v213 = vld [vmem:[#allocation7 + $0x4b0] sm:$0xff]
    %v214 = vld [vmem:[#allocation7 + $0x4b8] sm:$0xff]
    %v215 = vld [vmem:[#allocation7 + $0x4c0] sm:$0xff]
    %v216 = vld [vmem:[#allocation7 + $0x4c8] sm:$0xff]
    %v217 = vld [vmem:[#allocation7 + $0x4d0] sm:$0xff]
    %v218 = vld [vmem:[#allocation7 + $0x4d8] sm:$0xff]
    %v219 = vld [vmem:[#allocation7 + $0x4e0] sm:$0xff]
    %v220 = vld [vmem:[#allocation7 + $0x4e8] sm:$0xff]
    %v221 = vld [vmem:[#allocation7 + $0x4f0] sm:$0xff]
    %v222 = vld [vmem:[#allocation7 + $0x4f8] sm:$0xff]
    %v223 = vld [vmem:[#allocation7 + $0x500] sm:$0x3f]
    %v224 = vld [vmem:[#allocation7 + $0x508] sm:$0x3f]
    %v225 = vld [vmem:[#allocation7 + $0x510] sm:$0x3f]
    %v226 = vld [vmem:[#allocation7 + $0x518] sm:$0x3f]
    %v227 = vld [vmem:[#allocation7 + $0x520] sm:$0x3f]
    %v228 = vld [vmem:[#allocation7 + $0x528] sm:$0x3f]
    %v229 = vld [vmem:[#allocation7 + $0x530] sm:$0x3f]
    %v230 = vld [vmem:[#allocation7 + $0x538] sm:$0x3f]
    %v231 = vld [vmem:[%s2] sm:$0xff]
    %v233 = vlaneseq
    %v234 = vshrl.u32 %v233, 7
    %v235 = vsub.s32 0, %v234
    %v236 = vrot.slane %v231, %v235
    %v237 = vlaneseq
    %v238 = vshrl.u32 %v237, 7
    %v239 = vsub.s32 1, %v238
    %v240 = vrot.slane %v231, %v239
    %v241 = vlaneseq
    %v242 = vshrl.u32 %v241, 7
    %v243 = vsub.s32 2, %v242
    %v244 = vrot.slane %v231, %v243
    %v245 = vlaneseq
    %v246 = vshrl.u32 %v245, 7
    %v247 = vsub.s32 3, %v246
    %v248 = vrot.slane %v231, %v247
    %v249 = vlaneseq
    %v250 = vshrl.u32 %v249, 7
    %v251 = vsub.s32 4, %v250
    %v252 = vrot.slane %v231, %v251
    %v253 = vlaneseq
    %v254 = vshrl.u32 %v253, 7
    %v255 = vsub.s32 5, %v254
    %v256 = vrot.slane %v231, %v255
    %v257 = vlaneseq
    %v258 = vshrl.u32 %v257, 7
    %v259 = vsub.s32 6, %v258
    %v260 = vrot.slane %v231, %v259
    %v261 = vlaneseq
    %v262 = vshrl.u32 %v261, 7
    %v263 = vsub.s32 7, %v262
    %v264 = vrot.slane %v231, %v263
    %vm273 = vcmask 310272
    %v275 = vsel %vm273, %v60, 0
    %v278 = vsel %vm273, %v62, 0
    %vm280 = vcmask 1045504
    %v282 = vsel %vm280, %v223, 0
    %v285 = vsel %vm280, %v224, 0
    %v288 = vsel %vm280, %v225, 0
    %v291 = vsel %vm280, %v226, 0
    %v294 = vsel %vm280, %v227, 0
    %v297 = vsel %vm280, %v228, 0
    %v300 = vsel %vm280, %v229, 0
    %v303 = vsel %vm280, %v230, 0
    %305 = vmatprep.subr.mxu0 %v64
    %306 = vmatpush1.msra.mxu0 %v63
    %307 = vmatprep.subr.mxu0 %v72
    %308 = vmatpush1.msra.mxu0 %v71
    %309 = vmatprep.subr.mxu0 %v80
    %310 = vmatpush1.msra.mxu0 %v79
    %311 = vmatprep.subr.mxu0 %v88
    %312 = vmatpush1.msra.mxu0 %v87
    %313 = vmatprep.subr.mxu0 %v96
    %314 = vmatpush1.msra.mxu0 %v95
    %315 = vmatprep.subr.mxu0 %v104
    %316 = vmatpush1.msra.mxu0 %v103
    %317 = vmatprep.subr.mxu0 %v112
    %318 = vmatpush1.msra.mxu0 %v111
    %319 = vmatprep.subr.mxu0 %v120
    %320 = vmatpush1.msra.mxu0 %v119
    %321 = vmatprep.subr.mxu0 %v128
    %322 = vmatpush1.msra.mxu0 %v127
    %323 = vmatprep.subr.mxu0 %v136
    %324 = vmatpush1.msra.mxu0 %v135
    %325 = vmatprep.subr.mxu0 %v144
    %326 = vmatpush1.msra.mxu0 %v143
    %327 = vmatprep.subr.mxu0 %v152
    %328 = vmatpush1.msra.mxu0 %v151
    %329 = vmatprep.subr.mxu0 %v160
    %330 = vmatpush1.msra.mxu0 %v159
    %331 = vmatprep.subr.mxu0 %v168
    %332 = vmatpush1.msra.mxu0 %v167
    %333 = vmatprep.subr.mxu0 %v176
    %334 = vmatpush1.msra.mxu0 %v175
    %335 = vmatprep.subr.mxu0 %v184
    %336 = vmatpush1.msra.mxu0 %v183
    %337 = vmatprep.subr.mxu0 %v192
    %338 = vmatpush1.msra.mxu0 %v191
    %339 = vmatprep.subr.mxu0 %v200
    %340 = vmatpush1.msra.mxu0 %v199
    %341 = vmatprep.subr.mxu0 %v208
    %342 = vmatpush1.msra.mxu0 %v207
    %343 = vmatprep.subr.mxu0 %v216
    %344 = vmatpush1.msra.mxu0 %v215
    %345 = vmatprep.subr.mxu0 %v285
    %346 = vmatpush1.msra.mxu0 %v282
    %347 = vmatprep.subr.mxu0 0.0
    %348 = vmatpush1.msra.mxu0 0.0
    %349 = vmatprep.subr.mxu0 0.0
    %350 = vmatpush1.msra.mxu0 0.0
    %351 = vmatprep.subr.mxu0 0.0
    %352 = vmatpush1.msra.mxu0 0.0
    %353 = vmatprep.subr.mxu0 0.0
    %354 = vmatpush1.msra.mxu0 0.0
    %355 = vmatprep.subr.mxu0 0.0
    %356 = vmatpush1.msra.mxu0 0.0
    %357 = vmatprep.subr.mxu0 0.0
    %358 = vmatpush1.msra.mxu0 0.0
    %359 = vmatprep.subr.mxu0 0.0
    %360 = vmatpush1.msra.mxu0 0.0
    %361 = vmatprep.subr.mxu0 0.0
    %362 = vmatpush1.msra.mxu0 0.0
    %363 = vmatprep.subr.mxu0 0.0
    %364 = vmatpush1.msra.mxu0 0.0
    %365 = vmatprep.subr.mxu0 0.0
    %366 = vmatpush1.msra.mxu0 0.0
    %367 = vmatprep.subr.mxu0 0.0
    %368 = vmatpush1.msra.mxu0 0.0
    %369 = vmatprep.mubr.f32.mxu0 %v275
    %370 = vmatmul.mubr.f32.gmra.mrb[0].mxu0 %v59
    %v371 = vpop.f32.mrb[0].mxu0
    %v372 = vadd.f32 %v236, %v371
    %v373 = vpop.f32.mrb[0].mxu0
    %v374 = vadd.f32 %v240, %v373
    %375 = vmatprep.mubr.f32.mxu0 %v278
    %376 = vmatmul.mubr.f32.gmra.mrb[0].mxu0 %v61
    %v377 = vpop.f32.mrb[0].mxu0
    %v378 = vadd.f32 %v236, %v377
    %v379 = vpop.f32.mrb[0].mxu0
    %v380 = vadd.f32 %v240, %v379
    %381 = vdwg.mxu0
    %382 = vmatprep.subr.mxu0 %v66
    %383 = vmatpush1.msra.mxu0 %v65
    %384 = vmatprep.subr.mxu0 %v74
    %385 = vmatpush1.msra.mxu0 %v73
    %386 = vmatprep.subr.mxu0 %v82
    %387 = vmatpush1.msra.mxu0 %v81
    %388 = vmatprep.subr.mxu0 %v90
    %389 = vmatpush1.msra.mxu0 %v89
    %390 = vmatprep.subr.mxu0 %v98
    %391 = vmatpush1.msra.mxu0 %v97
    %392 = vmatprep.subr.mxu0 %v106
    %393 = vmatpush1.msra.mxu0 %v105
    %394 = vmatprep.subr.mxu0 %v114
    %395 = vmatpush1.msra.mxu0 %v113
    %396 = vmatprep.subr.mxu0 %v122
    %397 = vmatpush1.msra.mxu0 %v121
    %398 = vmatprep.subr.mxu0 %v130
    %399 = vmatpush1.msra.mxu0 %v129
    %400 = vmatprep.subr.mxu0 %v138
    %401 = vmatpush1.msra.mxu0 %v137
    %402 = vmatprep.subr.mxu0 %v146
    %403 = vmatpush1.msra.mxu0 %v145
    %404 = vmatprep.subr.mxu0 %v154
    %405 = vmatpush1.msra.mxu0 %v153
    %406 = vmatprep.subr.mxu0 %v162
    %407 = vmatpush1.msra.mxu0 %v161
    %408 = vmatprep.subr.mxu0 %v170
    %409 = vmatpush1.msra.mxu0 %v169
    %410 = vmatprep.subr.mxu0 %v178
    %411 = vmatpush1.msra.mxu0 %v177
    %412 = vmatprep.subr.mxu0 %v186
    %413 = vmatpush1.msra.mxu0 %v185
    %414 = vmatprep.subr.mxu0 %v194
    %415 = vmatpush1.msra.mxu0 %v193
    %416 = vmatprep.subr.mxu0 %v202
    %417 = vmatpush1.msra.mxu0 %v201
    %418 = vmatprep.subr.mxu0 %v210
    %419 = vmatpush1.msra.mxu0 %v209
    %420 = vmatprep.subr.mxu0 %v218
    %421 = vmatpush1.msra.mxu0 %v217
    %422 = vmatprep.subr.mxu0 %v291
    %423 = vmatpush1.msra.mxu0 %v288
    %424 = vmatprep.subr.mxu0 0.0
    %425 = vmatpush1.msra.mxu0 0.0
    %426 = vmatprep.subr.mxu0 0.0
    %427 = vmatpush1.msra.mxu0 0.0
    %428 = vmatprep.subr.mxu0 0.0
    %429 = vmatpush1.msra.mxu0 0.0
    %430 = vmatprep.subr.mxu0 0.0
    %431 = vmatpush1.msra.mxu0 0.0
    %432 = vmatprep.subr.mxu0 0.0
    %433 = vmatpush1.msra.mxu0 0.0
    %434 = vmatprep.subr.mxu0 0.0
    %435 = vmatpush1.msra.mxu0 0.0
    %436 = vmatprep.subr.mxu0 0.0
    %437 = vmatpush1.msra.mxu0 0.0
    %438 = vmatprep.subr.mxu0 0.0
    %439 = vmatpush1.msra.mxu0 0.0
    %440 = vmatprep.subr.mxu0 0.0
    %441 = vmatpush1.msra.mxu0 0.0
    %442 = vmatprep.subr.mxu0 0.0
    %443 = vmatpush1.msra.mxu0 0.0
    %444 = vmatprep.subr.mxu0 0.0
    %445 = vmatpush1.msra.mxu0 0.0
    %446 = vmatprep.mubr.f32.mxu0 %v275
    %447 = vmatmul.mubr.f32.gmra.mrb[0].mxu0 %v59
    %v448 = vpop.f32.mrb[0].mxu0
    %v449 = vadd.f32 %v244, %v448
    %v450 = vpop.f32.mrb[0].mxu0
    %v451 = vadd.f32 %v248, %v450
    %452 = vmatprep.mubr.f32.mxu0 %v278
    %453 = vmatmul.mubr.f32.gmra.mrb[0].mxu0 %v61
    %v454 = vpop.f32.mrb[0].mxu0
    %v455 = vadd.f32 %v244, %v454
    %v456 = vpop.f32.mrb[0].mxu0
    %v457 = vadd.f32 %v248, %v456
    %458 = vdwg.mxu0
    %459 = vmatprep.subr.mxu0 %v68
    %460 = vmatpush1.msra.mxu0 %v67
    %461 = vmatprep.subr.mxu0 %v76
    %462 = vmatpush1.msra.mxu0 %v75
    %463 = vmatprep.subr.mxu0 %v84
    %464 = vmatpush1.msra.mxu0 %v83
    %465 = vmatprep.subr.mxu0 %v92
    %466 = vmatpush1.msra.mxu0 %v91
    %467 = vmatprep.subr.mxu0 %v100
    %468 = vmatpush1.msra.mxu0 %v99
    %469 = vmatprep.subr.mxu0 %v108
    %470 = vmatpush1.msra.mxu0 %v107
    %471 = vmatprep.subr.mxu0 %v116
    %472 = vmatpush1.msra.mxu0 %v115
    %473 = vmatprep.subr.mxu0 %v124
    %474 = vmatpush1.msra.mxu0 %v123
    %475 = vmatprep.subr.mxu0 %v132
    %476 = vmatpush1.msra.mxu0 %v131
    %477 = vmatprep.subr.mxu0 %v140
    %478 = vmatpush1.msra.mxu0 %v139
    %479 = vmatprep.subr.mxu0 %v148
    %480 = vmatpush1.msra.mxu0 %v147
    %481 = vmatprep.subr.mxu0 %v156
    %482 = vmatpush1.msra.mxu0 %v155
    %483 = vmatprep.subr.mxu0 %v164
    %484 = vmatpush1.msra.mxu0 %v163
    %485 = vmatprep.subr.mxu0 %v172
    %486 = vmatpush1.msra.mxu0 %v171
    %487 = vmatprep.subr.mxu0 %v180
    %488 = vmatpush1.msra.mxu0 %v179
    %489 = vmatprep.subr.mxu0 %v188
    %490 = vmatpush1.msra.mxu0 %v187
    %491 = vmatprep.subr.mxu0 %v196
    %492 = vmatpush1.msra.mxu0 %v195
    %493 = vmatprep.subr.mxu0 %v204
    %494 = vmatpush1.msra.mxu0 %v203
    %495 = vmatprep.subr.mxu0 %v212
    %496 = vmatpush1.msra.mxu0 %v211
    %497 = vmatprep.subr.mxu0 %v220
    %498 = vmatpush1.msra.mxu0 %v219
    %499 = vmatprep.subr.mxu0 %v297
    %500 = vmatpush1.msra.mxu0 %v294
    %501 = vmatprep.subr.mxu0 0.0
    %502 = vmatpush1.msra.mxu0 0.0
    %503 = vmatprep.subr.mxu0 0.0
    %504 = vmatpush1.msra.mxu0 0.0
    %505 = vmatprep.subr.mxu0 0.0
    %506 = vmatpush1.msra.mxu0 0.0
    %507 = vmatprep.subr.mxu0 0.0
    %508 = vmatpush1.msra.mxu0 0.0
    %509 = vmatprep.subr.mxu0 0.0
    %510 = vmatpush1.msra.mxu0 0.0
    %511 = vmatprep.subr.mxu0 0.0
    %512 = vmatpush1.msra.mxu0 0.0
    %513 = vmatprep.subr.mxu0 0.0
    %514 = vmatpush1.msra.mxu0 0.0
    %515 = vmatprep.subr.mxu0 0.0
    %516 = vmatpush1.msra.mxu0 0.0
    %517 = vmatprep.subr.mxu0 0.0
    %518 = vmatpush1.msra.mxu0 0.0
    %519 = vmatprep.subr.mxu0 0.0
    %520 = vmatpush1.msra.mxu0 0.0
    %521 = vmatprep.subr.mxu0 0.0
    %522 = vmatpush1.msra.mxu0 0.0
    %523 = vmatprep.mubr.f32.mxu0 %v275
    %524 = vmatmul.mubr.f32.gmra.mrb[0].mxu0 %v59
    %v525 = vpop.f32.mrb[0].mxu0
    %v526 = vadd.f32 %v252, %v525
    %v527 = vpop.f32.mrb[0].mxu0
    %v528 = vadd.f32 %v256, %v527
    %529 = vmatprep.mubr.f32.mxu0 %v278
    %530 = vmatmul.mubr.f32.gmra.mrb[0].mxu0 %v61
    %v531 = vpop.f32.mrb[0].mxu0
    %v532 = vadd.f32 %v252, %v531
    %v533 = vpop.f32.mrb[0].mxu0
    %v534 = vadd.f32 %v256, %v533
    %535 = vdwg.mxu0
    %536 = vmatprep.subr.mxu0 %v70
    %537 = vmatpush1.msra.mxu0 %v69
    %538 = vmatprep.subr.mxu0 %v78
    %539 = vmatpush1.msra.mxu0 %v77
    %540 = vmatprep.subr.mxu0 %v86
    %541 = vmatpush1.msra.mxu0 %v85
    %542 = vmatprep.subr.mxu0 %v94
    %543 = vmatpush1.msra.mxu0 %v93
    %544 = vmatprep.subr.mxu0 %v102
    %545 = vmatpush1.msra.mxu0 %v101
    %546 = vmatprep.subr.mxu0 %v110
    %547 = vmatpush1.msra.mxu0 %v109
    %548 = vmatprep.subr.mxu0 %v118
    %549 = vmatpush1.msra.mxu0 %v117
    %550 = vmatprep.subr.mxu0 %v126
    %551 = vmatpush1.msra.mxu0 %v125
    %552 = vmatprep.subr.mxu0 %v134
    %553 = vmatpush1.msra.mxu0 %v133
    %554 = vmatprep.subr.mxu0 %v142
    %555 = vmatpush1.msra.mxu0 %v141
    %556 = vmatprep.subr.mxu0 %v150
    %557 = vmatpush1.msra.mxu0 %v149
    %558 = vmatprep.subr.mxu0 %v158
    %559 = vmatpush1.msra.mxu0 %v157
    %560 = vmatprep.subr.mxu0 %v166
    %561 = vmatpush1.msra.mxu0 %v165
    %562 = vmatprep.subr.mxu0 %v174
    %563 = vmatpush1.msra.mxu0 %v173
    %564 = vmatprep.subr.mxu0 %v182
    %565 = vmatpush1.msra.mxu0 %v181
    %566 = vmatprep.subr.mxu0 %v190
    %567 = vmatpush1.msra.mxu0 %v189
    %568 = vmatprep.subr.mxu0 %v198
    %569 = vmatpush1.msra.mxu0 %v197
    %570 = vmatprep.subr.mxu0 %v206
    %571 = vmatpush1.msra.mxu0 %v205
    %572 = vmatprep.subr.mxu0 %v214
    %573 = vmatpush1.msra.mxu0 %v213
    %574 = vmatprep.subr.mxu0 %v222
    %575 = vmatpush1.msra.mxu0 %v221
    %576 = vmatprep.subr.mxu0 %v303
    %577 = vmatpush1.msra.mxu0 %v300
    %578 = vmatprep.subr.mxu0 0.0
    %579 = vmatpush1.msra.mxu0 0.0
    %580 = vmatprep.subr.mxu0 0.0
    %581 = vmatpush1.msra.mxu0 0.0
    %582 = vmatprep.subr.mxu0 0.0
    %583 = vmatpush1.msra.mxu0 0.0
    %584 = vmatprep.subr.mxu0 0.0
    %585 = vmatpush1.msra.mxu0 0.0
    %586 = vmatprep.subr.mxu0 0.0
    %587 = vmatpush1.msra.mxu0 0.0
    %588 = vmatprep.subr.mxu0 0.0
    %589 = vmatpush1.msra.mxu0 0.0
    %590 = vmatprep.subr.mxu0 0.0
    %591 = vmatpush1.msra.mxu0 0.0
    %592 = vmatprep.subr.mxu0 0.0
    %593 = vmatpush1.msra.mxu0 0.0
    %594 = vmatprep.subr.mxu0 0.0
    %595 = vmatpush1.msra.mxu0 0.0
    %596 = vmatprep.subr.mxu0 0.0
    %597 = vmatpush1.msra.mxu0 0.0
    %598 = vmatprep.subr.mxu0 0.0
    %599 = vmatpush1.msra.mxu0 0.0
    %600 = vmatprep.mubr.f32.mxu0 %v275
    %601 = vmatmul.mubr.f32.gmra.mrb[0].mxu0 %v59
    %v602 = vpop.f32.mrb[0].mxu0
    %v603 = vadd.f32 %v260, %v602
    %v604 = vpop.f32.mrb[0].mxu0
    %v605 = vadd.f32 %v264, %v604
    %606 = vmatprep.mubr.f32.mxu0 %v278
    %607 = vmatmul.mubr.f32.gmra.mrb[0].mxu0 %v61
    %v608 = vpop.f32.mrb[0].mxu0
    %v609 = vadd.f32 %v260, %v608
    %v610 = vpop.f32.mrb[0].mxu0
    %v611 = vadd.f32 %v264, %v610
    %612 = vdwg.mxu0
    %613 = vst [vmem:[#allocation2] sm:$0xff] %v372
    %614 = vst [vmem:[#allocation2 + $0x8] sm:$0xff] %v374
    %615 = vst [vmem:[#allocation2 + $0x10] sm:$0xff] %v449
    %616 = vst [vmem:[#allocation2 + $0x18] sm:$0xff] %v451
    %617 = vst [vmem:[#allocation2 + $0x20] sm:$0xff] %v526
    %618 = vst [vmem:[#allocation2 + $0x28] sm:$0xff] %v528
    %619 = vst [vmem:[#allocation2 + $0x30] sm:$0xff] %v603
    %620 = vst [vmem:[#allocation2 + $0x38] sm:$0xff] %v605
    %621 = vst [vmem:[#allocation2 + $0x40] sm:$0x3f] %v378
    %622 = vst [vmem:[#allocation2 + $0x48] sm:$0x3f] %v380
    %623 = vst [vmem:[#allocation2 + $0x50] sm:$0x3f] %v455
    %624 = vst [vmem:[#allocation2 + $0x58] sm:$0x3f] %v457
    %625 = vst [vmem:[#allocation2 + $0x60] sm:$0x3f] %v532
    %626 = vst [vmem:[#allocation2 + $0x68] sm:$0x3f] %v534
    %627 = vst [vmem:[#allocation2 + $0x70] sm:$0x3f] %v609
    %628 = vst [vmem:[#allocation2 + $0x78] sm:$0x3f] %v611
    %v629 = vld [vmem:[%s3] sm:$0xff]
    %v630 = vld [vmem:[%s3 + $0x8] sm:$0xff]
    %v631 = vld [vmem:[%s3 + $0x10] sm:$0xff]
    %v632 = vld [vmem:[%s3 + $0x18] sm:$0xff]
    %v633 = vld [vmem:[%s3 + $0x20] sm:$0xff]
    %v634 = vld [vmem:[%s3 + $0x28] sm:$0xff]
    %v635 = vld [vmem:[%s3 + $0x30] sm:$0xff]
    %v636 = vld [vmem:[%s3 + $0x38] sm:$0xff]
    %v637 = vld [vmem:[%s3 + $0x40] sm:$0xff]
    %v638 = vld [vmem:[%s3 + $0x48] sm:$0xff]
    %v639 = vld [vmem:[%s3 + $0x50] sm:$0xff]
    %v640 = vld [vmem:[%s3 + $0x58] sm:$0xff]
    %v641 = vld [vmem:[%s3 + $0x60] sm:$0xff]
    %v642 = vld [vmem:[%s3 + $0x68] sm:$0xff]
    %v643 = vld [vmem:[%s3 + $0x70] sm:$0xff]
    %v644 = vld [vmem:[%s3 + $0x78] sm:$0xff]
    %v645 = vld [vmem:[%s3 + $0x80] sm:$0xff]
    %v646 = vld [vmem:[%s3 + $0x88] sm:$0xff]
    %v647 = vld [vmem:[%s3 + $0x90] sm:$0xff]
    %v648 = vld [vmem:[%s3 + $0x98] sm:$0xff]
    %v649 = vld [vmem:[%s3 + $0xa0] sm:$0xff]
    %v650 = vld [vmem:[%s3 + $0xa8] sm:$0xff]
    %v651 = vld [vmem:[%s3 + $0xb0] sm:$0xff]
    %v652 = vld [vmem:[%s3 + $0xb8] sm:$0xff]
    %v653 = vld [vmem:[%s3 + $0xc0] sm:$0xff]
    %v654 = vld [vmem:[%s3 + $0xc8] sm:$0xff]
    %v655 = vld [vmem:[%s3 + $0xd0] sm:$0xff]
    %v656 = vld [vmem:[%s3 + $0xd8] sm:$0xff]
    %v657 = vld [vmem:[%s3 + $0xe0] sm:$0xff]
    %v658 = vld [vmem:[%s3 + $0xe8] sm:$0xff]
    %v659 = vld [vmem:[%s3 + $0xf0] sm:$0xff]
    %v660 = vld [vmem:[%s3 + $0xf8] sm:$0xff]
    %v661 = vld [vmem:[%s3 + $0x100] sm:$0xff]
    %v662 = vld [vmem:[%s3 + $0x108] sm:$0xff]
    %v663 = vld [vmem:[%s3 + $0x110] sm:$0xff]
    %v664 = vld [vmem:[%s3 + $0x118] sm:$0xff]
    %v665 = vld [vmem:[%s3 + $0x120] sm:$0xff]
    %v666 = vld [vmem:[%s3 + $0x128] sm:$0xff]
    %v667 = vld [vmem:[%s3 + $0x130] sm:$0xff]
    %v668 = vld [vmem:[%s3 + $0x138] sm:$0xff]
    %v669 = vld [vmem:[%s3 + $0x140] sm:$0xff]
    %v670 = vld [vmem:[%s3 + $0x148] sm:$0xff]
    %v671 = vld [vmem:[%s3 + $0x150] sm:$0xff]
    %v672 = vld [vmem:[%s3 + $0x158] sm:$0xff]
    %v673 = vld [vmem:[%s3 + $0x160] sm:$0xff]
    %v674 = vld [vmem:[%s3 + $0x168] sm:$0xff]
    %v675 = vld [vmem:[%s3 + $0x170] sm:$0xff]
    %v676 = vld [vmem:[%s3 + $0x178] sm:$0xff]
    %v677 = vld [vmem:[%s3 + $0x180] sm:$0xff]
    %v678 = vld [vmem:[%s3 + $0x188] sm:$0xff]
    %v679 = vld [vmem:[%s3 + $0x190] sm:$0xff]
    %v680 = vld [vmem:[%s3 + $0x198] sm:$0xff]
    %v681 = vld [vmem:[%s3 + $0x1a0] sm:$0xff]
    %v682 = vld [vmem:[%s3 + $0x1a8] sm:$0xff]
    %v683 = vld [vmem:[%s3 + $0x1b0] sm:$0xff]
    %v684 = vld [vmem:[%s3 + $0x1b8] sm:$0xff]
    %v685 = vld [vmem:[%s3 + $0x1c0] sm:$0xff]
    %v686 = vld [vmem:[%s3 + $0x1c8] sm:$0xff]
    %v687 = vld [vmem:[%s3 + $0x1d0] sm:$0xff]
    %v688 = vld [vmem:[%s3 + $0x1d8] sm:$0xff]
    %v689 = vld [vmem:[%s3 + $0x1e0] sm:$0xff]
    %v690 = vld [vmem:[%s3 + $0x1e8] sm:$0xff]
    %v691 = vld [vmem:[%s3 + $0x1f0] sm:$0xff]
    %v692 = vld [vmem:[%s3 + $0x1f8] sm:$0xff]
    %v693 = vld [vmem:[%s3 + $0x200] sm:$0xff]
    %v694 = vld [vmem:[%s3 + $0x208] sm:$0xff]
    %v695 = vld [vmem:[%s3 + $0x210] sm:$0xff]
    %v696 = vld [vmem:[%s3 + $0x218] sm:$0xff]
    %v697 = vld [vmem:[%s3 + $0x220] sm:$0xff]
    %v698 = vld [vmem:[%s3 + $0x228] sm:$0xff]
    %v699 = vld [vmem:[%s3 + $0x230] sm:$0xff]
    %v700 = vld [vmem:[%s3 + $0x238] sm:$0xff]
    %v701 = vld [vmem:[%s3 + $0x240] sm:$0xff]
    %v702 = vld [vmem:[%s3 + $0x248] sm:$0xff]
    %v703 = vld [vmem:[%s3 + $0x250] sm:$0xff]
    %v704 = vld [vmem:[%s3 + $0x258] sm:$0xff]
    %v705 = vld [vmem:[%s3 + $0x260] sm:$0xff]
    %v706 = vld [vmem:[%s3 + $0x268] sm:$0xff]
    %v707 = vld [vmem:[%s3 + $0x270] sm:$0xff]
    %v708 = vld [vmem:[%s3 + $0x278] sm:$0xff]
    %v709 = vld [vmem:[%s3 + $0x280] sm:$0xff]
    %v710 = vld [vmem:[%s3 + $0x288] sm:$0xff]
    %v711 = vld [vmem:[%s3 + $0x290] sm:$0xff]
    %v712 = vld [vmem:[%s3 + $0x298] sm:$0xff]
    %v713 = vld [vmem:[%s3 + $0x2a0] sm:$0xff]
    %v714 = vld [vmem:[%s3 + $0x2a8] sm:$0xff]
    %v715 = vld [vmem:[%s3 + $0x2b0] sm:$0xff]
    %v716 = vld [vmem:[%s3 + $0x2b8] sm:$0xff]
    %v717 = vld [vmem:[%s3 + $0x2c0] sm:$0xff]
    %v718 = vld [vmem:[%s3 + $0x2c8] sm:$0xff]
    %v719 = vld [vmem:[%s3 + $0x2d0] sm:$0xff]
    %v720 = vld [vmem:[%s3 + $0x2d8] sm:$0xff]
    %v721 = vld [vmem:[%s3 + $0x2e0] sm:$0xff]
    %v722 = vld [vmem:[%s3 + $0x2e8] sm:$0xff]
    %v723 = vld [vmem:[%s3 + $0x2f0] sm:$0xff]
    %v724 = vld [vmem:[%s3 + $0x2f8] sm:$0xff]
    %v725 = vld [vmem:[%s3 + $0x300] sm:$0xff]
    %v726 = vld [vmem:[%s3 + $0x308] sm:$0xff]
    %v727 = vld [vmem:[%s3 + $0x310] sm:$0xff]
    %v728 = vld [vmem:[%s3 + $0x318] sm:$0xff]
    %v729 = vld [vmem:[%s3 + $0x320] sm:$0xff]
    %v730 = vld [vmem:[%s3 + $0x328] sm:$0xff]
    %v731 = vld [vmem:[%s3 + $0x330] sm:$0xff]
    %v732 = vld [vmem:[%s3 + $0x338] sm:$0xff]
    %v733 = vld [vmem:[%s3 + $0x340] sm:$0xff]
    %v734 = vld [vmem:[%s3 + $0x348] sm:$0xff]
    %v735 = vld [vmem:[%s3 + $0x350] sm:$0xff]
    %v736 = vld [vmem:[%s3 + $0x358] sm:$0xff]
    %v737 = vld [vmem:[%s3 + $0x360] sm:$0xff]
    %v738 = vld [vmem:[%s3 + $0x368] sm:$0xff]
    %v739 = vld [vmem:[%s3 + $0x370] sm:$0xff]
    %v740 = vld [vmem:[%s3 + $0x378] sm:$0xff]
    %v741 = vld [vmem:[%s3 + $0x380] sm:$0xff]
    %v742 = vld [vmem:[%s3 + $0x388] sm:$0xff]
    %v743 = vld [vmem:[%s3 + $0x390] sm:$0xff]
    %v744 = vld [vmem:[%s3 + $0x398] sm:$0xff]
    %v745 = vld [vmem:[%s3 + $0x3a0] sm:$0xff]
    %v746 = vld [vmem:[%s3 + $0x3a8] sm:$0xff]
    %v747 = vld [vmem:[%s3 + $0x3b0] sm:$0xff]
    %v748 = vld [vmem:[%s3 + $0x3b8] sm:$0xff]
    %v749 = vld [vmem:[%s3 + $0x3c0] sm:$0xff]
    %v750 = vld [vmem:[%s3 + $0x3c8] sm:$0xff]
    %v751 = vld [vmem:[%s3 + $0x3d0] sm:$0xff]
    %v752 = vld [vmem:[%s3 + $0x3d8] sm:$0xff]
    %v753 = vld [vmem:[%s3 + $0x3e0] sm:$0xff]
    %v754 = vld [vmem:[%s3 + $0x3e8] sm:$0xff]
    %v755 = vld [vmem:[%s3 + $0x3f0] sm:$0xff]
    %v756 = vld [vmem:[%s3 + $0x3f8] sm:$0xff]
    %v757 = vld [vmem:[%s3 + $0x400] sm:$0xff]
    %v758 = vld [vmem:[%s3 + $0x408] sm:$0xff]
    %v759 = vld [vmem:[%s3 + $0x410] sm:$0xff]
    %v760 = vld [vmem:[%s3 + $0x418] sm:$0xff]
    %v761 = vld [vmem:[%s3 + $0x420] sm:$0xff]
    %v762 = vld [vmem:[%s3 + $0x428] sm:$0xff]
    %v763 = vld [vmem:[%s3 + $0x430] sm:$0xff]
    %v764 = vld [vmem:[%s3 + $0x438] sm:$0xff]
    %v765 = vld [vmem:[%s3 + $0x440] sm:$0xff]
    %v766 = vld [vmem:[%s3 + $0x448] sm:$0xff]
    %v767 = vld [vmem:[%s3 + $0x450] sm:$0xff]
    %v768 = vld [vmem:[%s3 + $0x458] sm:$0xff]
    %v769 = vld [vmem:[%s3 + $0x460] sm:$0xff]
    %v770 = vld [vmem:[%s3 + $0x468] sm:$0xff]
    %v771 = vld [vmem:[%s3 + $0x470] sm:$0xff]
    %v772 = vld [vmem:[%s3 + $0x478] sm:$0xff]
    %v773 = vld [vmem:[%s3 + $0x480] sm:$0xff]
    %v774 = vld [vmem:[%s3 + $0x488] sm:$0xff]
    %v775 = vld [vmem:[%s3 + $0x490] sm:$0xff]
    %v776 = vld [vmem:[%s3 + $0x498] sm:$0xff]
    %v777 = vld [vmem:[%s3 + $0x4a0] sm:$0xff]
    %v778 = vld [vmem:[%s3 + $0x4a8] sm:$0xff]
    %v779 = vld [vmem:[%s3 + $0x4b0] sm:$0xff]
    %v780 = vld [vmem:[%s3 + $0x4b8] sm:$0xff]
    %v781 = vld [vmem:[%s3 + $0x4c0] sm:$0xff]
    %v782 = vld [vmem:[%s3 + $0x4c8] sm:$0xff]
    %v783 = vld [vmem:[%s3 + $0x4d0] sm:$0xff]
    %v784 = vld [vmem:[%s3 + $0x4d8] sm:$0xff]
    %v785 = vld [vmem:[%s3 + $0x4e0] sm:$0xff]
    %v786 = vld [vmem:[%s3 + $0x4e8] sm:$0xff]
    %v787 = vld [vmem:[%s3 + $0x4f0] sm:$0xff]
    %v788 = vld [vmem:[%s3 + $0x4f8] sm:$0xff]
    %v789 = vld [vmem:[%s3 + $0x500] sm:$0xff]
    %v790 = vld [vmem:[%s3 + $0x508] sm:$0xff]
    %v791 = vld [vmem:[%s3 + $0x510] sm:$0xff]
    %v792 = vld [vmem:[%s3 + $0x518] sm:$0xff]
    %v793 = vld [vmem:[%s3 + $0x520] sm:$0xff]
    %v794 = vld [vmem:[%s3 + $0x528] sm:$0xff]
    %v795 = vld [vmem:[%s3 + $0x530] sm:$0xff]
    %v796 = vld [vmem:[%s3 + $0x538] sm:$0xff]
    %v797 = vld [vmem:[%s3 + $0x540] sm:$0xff]
    %v798 = vld [vmem:[%s3 + $0x548] sm:$0xff]
    %v799 = vld [vmem:[%s3 + $0x550] sm:$0xff]
    %v800 = vld [vmem:[%s3 + $0x558] sm:$0xff]
    %v801 = vld [vmem:[%s3 + $0x560] sm:$0xff]
    %v802 = vld [vmem:[%s3 + $0x568] sm:$0xff]
    %v803 = vld [vmem:[%s3 + $0x570] sm:$0xff]
    %v804 = vld [vmem:[%s3 + $0x578] sm:$0xff]
    %v805 = vld [vmem:[%s3 + $0x580] sm:$0xff]
    %v806 = vld [vmem:[%s3 + $0x588] sm:$0xff]
    %v807 = vld [vmem:[%s3 + $0x590] sm:$0xff]
    %v808 = vld [vmem:[%s3 + $0x598] sm:$0xff]
    %v809 = vld [vmem:[%s3 + $0x5a0] sm:$0xff]
    %v810 = vld [vmem:[%s3 + $0x5a8] sm:$0xff]
    %v811 = vld [vmem:[%s3 + $0x5b0] sm:$0xff]
    %v812 = vld [vmem:[%s3 + $0x5b8] sm:$0xff]
    %v813 = vld [vmem:[%s3 + $0x5c0] sm:$0xff]
    %v814 = vld [vmem:[%s3 + $0x5c8] sm:$0xff]
    %v815 = vld [vmem:[%s3 + $0x5d0] sm:$0xff]
    %v816 = vld [vmem:[%s3 + $0x5d8] sm:$0xff]
    %v817 = vld [vmem:[%s3 + $0x5e0] sm:$0xff]
    %v818 = vld [vmem:[%s3 + $0x5e8] sm:$0xff]
    %v819 = vld [vmem:[%s3 + $0x5f0] sm:$0xff]
    %v820 = vld [vmem:[%s3 + $0x5f8] sm:$0xff]
    %v821 = vld [vmem:[%s3 + $0x600] sm:$0xff]
    %v822 = vld [vmem:[%s3 + $0x608] sm:$0xff]
    %v823 = vld [vmem:[%s3 + $0x610] sm:$0xff]
    %v824 = vld [vmem:[%s3 + $0x618] sm:$0xff]
    %v825 = vld [vmem:[%s3 + $0x620] sm:$0xff]
    %v826 = vld [vmem:[%s3 + $0x628] sm:$0xff]
    %v827 = vld [vmem:[%s3 + $0x630] sm:$0xff]
    %v828 = vld [vmem:[%s3 + $0x638] sm:$0xff]
    %v829 = vld [vmem:[%s3 + $0x640] sm:$0xff]
    %v830 = vld [vmem:[%s3 + $0x648] sm:$0xff]
    %v831 = vld [vmem:[%s3 + $0x650] sm:$0xff]
    %v832 = vld [vmem:[%s3 + $0x658] sm:$0xff]
    %v833 = vld [vmem:[%s3 + $0x660] sm:$0xff]
    %v834 = vld [vmem:[%s3 + $0x668] sm:$0xff]
    %v835 = vld [vmem:[%s3 + $0x670] sm:$0xff]
    %v836 = vld [vmem:[%s3 + $0x678] sm:$0xff]
    %v837 = vld [vmem:[%s3 + $0x680] sm:$0xff]
    %v838 = vld [vmem:[%s3 + $0x688] sm:$0xff]
    %v839 = vld [vmem:[%s3 + $0x690] sm:$0xff]
    %v840 = vld [vmem:[%s3 + $0x698] sm:$0xff]
    %v841 = vld [vmem:[%s3 + $0x6a0] sm:$0xff]
    %v842 = vld [vmem:[%s3 + $0x6a8] sm:$0xff]
    %v843 = vld [vmem:[%s3 + $0x6b0] sm:$0xff]
    %v844 = vld [vmem:[%s3 + $0x6b8] sm:$0xff]
    %v845 = vld [vmem:[%s3 + $0x6c0] sm:$0xff]
    %v846 = vld [vmem:[%s3 + $0x6c8] sm:$0xff]
    %v847 = vld [vmem:[%s3 + $0x6d0] sm:$0xff]
    %v848 = vld [vmem:[%s3 + $0x6d8] sm:$0xff]
    %v849 = vld [vmem:[%s3 + $0x6e0] sm:$0xff]
    %v850 = vld [vmem:[%s3 + $0x6e8] sm:$0xff]
    %v851 = vld [vmem:[%s3 + $0x6f0] sm:$0xff]
    %v852 = vld [vmem:[%s3 + $0x6f8] sm:$0xff]
    %v853 = vld [vmem:[%s3 + $0x700] sm:$0xff]
    %v854 = vld [vmem:[%s3 + $0x708] sm:$0xff]
    %v855 = vld [vmem:[%s3 + $0x710] sm:$0xff]
    %v856 = vld [vmem:[%s3 + $0x718] sm:$0xff]
    %v857 = vld [vmem:[%s3 + $0x720] sm:$0xff]
    %v858 = vld [vmem:[%s3 + $0x728] sm:$0xff]
    %v859 = vld [vmem:[%s3 + $0x730] sm:$0xff]
    %v860 = vld [vmem:[%s3 + $0x738] sm:$0xff]
    %v861 = vld [vmem:[%s3 + $0x740] sm:$0xff]
    %v862 = vld [vmem:[%s3 + $0x748] sm:$0xff]
    %v863 = vld [vmem:[%s3 + $0x750] sm:$0xff]
    %v864 = vld [vmem:[%s3 + $0x758] sm:$0xff]
    %v865 = vld [vmem:[%s3 + $0x760] sm:$0xff]
    %v866 = vld [vmem:[%s3 + $0x768] sm:$0xff]
    %v867 = vld [vmem:[%s3 + $0x770] sm:$0xff]
    %v868 = vld [vmem:[%s3 + $0x778] sm:$0xff]
    %v869 = vld [vmem:[%s3 + $0x780] sm:$0xff]
    %v870 = vld [vmem:[%s3 + $0x788] sm:$0xff]
    %v871 = vld [vmem:[%s3 + $0x790] sm:$0xff]
    %v872 = vld [vmem:[%s3 + $0x798] sm:$0xff]
    %v873 = vld [vmem:[%s3 + $0x7a0] sm:$0xff]
    %v874 = vld [vmem:[%s3 + $0x7a8] sm:$0xff]
    %v875 = vld [vmem:[%s3 + $0x7b0] sm:$0xff]
    %v876 = vld [vmem:[%s3 + $0x7b8] sm:$0xff]
    %v877 = vld [vmem:[%s3 + $0x7c0] sm:$0xff]
    %v878 = vld [vmem:[%s3 + $0x7c8] sm:$0xff]
    %v879 = vld [vmem:[%s3 + $0x7d0] sm:$0xff]
    %v880 = vld [vmem:[%s3 + $0x7d8] sm:$0xff]
    %v881 = vld [vmem:[%s3 + $0x7e0] sm:$0xff]
    %v882 = vld [vmem:[%s3 + $0x7e8] sm:$0xff]
    %v883 = vld [vmem:[%s3 + $0x7f0] sm:$0xff]
    %v884 = vld [vmem:[%s3 + $0x7f8] sm:$0xff]
    %885 = vst [vmem:[#allocation3] sm:$0xf] 0.0
    %886 = vst [vmem:[#allocation4] sm:$0xf] 0.0
    %v887 = vld [vmem:[#allocation3] sm:$0xf]
    %v890 = vunpack.c.l.s4 1983009808
    %v891 = vunpack.c.0.s8 %v890
    %v892 = vlaneseq
    %v893 = vshrl.u32 %v892, 7
    %v894 = vsub.s32 %v891, %v893
    %v895 = vrot.slane %v887, %v894
    %v896 = vcombine.high %v895, %v895
    %899 = vmatprep.subr.mxu0 %v630
    %900 = vmatpush1.msra.mxu0 %v629
    %901 = vmatprep.subr.mxu0 %v638
    %902 = vmatpush1.msra.mxu0 %v637
    %903 = vmatprep.subr.mxu0 %v646
    %904 = vmatpush1.msra.mxu0 %v645
    %905 = vmatprep.subr.mxu0 %v654
    %906 = vmatpush1.msra.mxu0 %v653
    %907 = vmatprep.subr.mxu0 %v662
    %908 = vmatpush1.msra.mxu0 %v661
    %909 = vmatprep.subr.mxu0 %v670
    %910 = vmatpush1.msra.mxu0 %v669
    %911 = vmatprep.subr.mxu0 %v678
    %912 = vmatpush1.msra.mxu0 %v677
    %913 = vmatprep.subr.mxu0 %v686
    %914 = vmatpush1.msra.mxu0 %v685
    %915 = vmatprep.subr.mxu0 %v694
    %916 = vmatpush1.msra.mxu0 %v693
    %917 = vmatprep.subr.mxu0 %v702
    %918 = vmatpush1.msra.mxu0 %v701
    %919 = vmatprep.subr.mxu0 %v710
    %920 = vmatpush1.msra.mxu0 %v709
    %921 = vmatprep.subr.mxu0 %v718
    %922 = vmatpush1.msra.mxu0 %v717
    %923 = vmatprep.subr.mxu0 %v726
    %924 = vmatpush1.msra.mxu0 %v725
    %925 = vmatprep.subr.mxu0 %v734
    %926 = vmatpush1.msra.mxu0 %v733
    %927 = vmatprep.subr.mxu0 %v742
    %928 = vmatpush1.msra.mxu0 %v741
    %929 = vmatprep.subr.mxu0 %v750
    %930 = vmatpush1.msra.mxu0 %v749
    %931 = vmatprep.subr.mxu0 %v758
    %932 = vmatpush1.msra.mxu0 %v757
    %933 = vmatprep.subr.mxu0 %v766
    %934 = vmatpush1.msra.mxu0 %v765
    %935 = vmatprep.subr.mxu0 %v774
    %936 = vmatpush1.msra.mxu0 %v773
    %937 = vmatprep.subr.mxu0 %v782
    %938 = vmatpush1.msra.mxu0 %v781
    %939 = vmatprep.subr.mxu0 %v790
    %940 = vmatpush1.msra.mxu0 %v789
    %941 = vmatprep.subr.mxu0 %v798
    %942 = vmatpush1.msra.mxu0 %v797
    %943 = vmatprep.subr.mxu0 %v806
    %944 = vmatpush1.msra.mxu0 %v805
    %945 = vmatprep.subr.mxu0 %v814
    %946 = vmatpush1.msra.mxu0 %v813
    %947 = vmatprep.subr.mxu0 %v822
    %948 = vmatpush1.msra.mxu0 %v821
    %949 = vmatprep.subr.mxu0 %v830
    %950 = vmatpush1.msra.mxu0 %v829
    %951 = vmatprep.subr.mxu0 %v838
    %952 = vmatpush1.msra.mxu0 %v837
    %953 = vmatprep.subr.mxu0 %v846
    %954 = vmatpush1.msra.mxu0 %v845
    %955 = vmatprep.subr.mxu0 %v854
    %956 = vmatpush1.msra.mxu0 %v853
    %957 = vmatprep.subr.mxu0 %v862
    %958 = vmatpush1.msra.mxu0 %v861
    %959 = vmatprep.subr.mxu0 %v870
    %960 = vmatpush1.msra.mxu0 %v869
    %961 = vmatprep.subr.mxu0 %v878
    %962 = vmatpush1.msra.mxu0 %v877
    %963 = vmatprep.mubr.f32.mxu0 %v896
    %964 = vmatmul.mubr.f32.gmra.mrb[0].mxu0 %v895
    %v965 = vpop.f32.mrb[0].mxu0
    %v966 = vadd.f32 0.0, %v965
    %v967 = vpop.f32.mrb[0].mxu0
    %v968 = vadd.f32 0.0, %v967
    %969 = vdwg.mxu0
    %970 = vmatprep.subr.mxu0 %v632
    %971 = vmatpush1.msra.mxu0 %v631
    %972 = vmatprep.subr.mxu0 %v640
    %973 = vmatpush1.msra.mxu0 %v639
    %974 = vmatprep.subr.mxu0 %v648
    %975 = vmatpush1.msra.mxu0 %v647
    %976 = vmatprep.subr.mxu0 %v656
    %977 = vmatpush1.msra.mxu0 %v655
    %978 = vmatprep.subr.mxu0 %v664
    %979 = vmatpush1.msra.mxu0 %v663
    %980 = vmatprep.subr.mxu0 %v672
    %981 = vmatpush1.msra.mxu0 %v671
    %982 = vmatprep.subr.mxu0 %v680
    %983 = vmatpush1.msra.mxu0 %v679
    %984 = vmatprep.subr.mxu0 %v688
    %985 = vmatpush1.msra.mxu0 %v687
    %986 = vmatprep.subr.mxu0 %v696
    %987 = vmatpush1.msra.mxu0 %v695
    %988 = vmatprep.subr.mxu0 %v704
    %989 = vmatpush1.msra.mxu0 %v703
    %990 = vmatprep.subr.mxu0 %v712
    %991 = vmatpush1.msra.mxu0 %v711
    %992 = vmatprep.subr.mxu0 %v720
    %993 = vmatpush1.msra.mxu0 %v719
    %994 = vmatprep.subr.mxu0 %v728
    %995 = vmatpush1.msra.mxu0 %v727
    %996 = vmatprep.subr.mxu0 %v736
    %997 = vmatpush1.msra.mxu0 %v735
    %998 = vmatprep.subr.mxu0 %v744
    %999 = vmatpush1.msra.mxu0 %v743
    %1000 = vmatprep.subr.mxu0 %v752
    %1001 = vmatpush1.msra.mxu0 %v751
    %1002 = vmatprep.subr.mxu0 %v760
    %1003 = vmatpush1.msra.mxu0 %v759
    %1004 = vmatprep.subr.mxu0 %v768
    %1005 = vmatpush1.msra.mxu0 %v767
    %1006 = vmatprep.subr.mxu0 %v776
    %1007 = vmatpush1.msra.mxu0 %v775
    %1008 = vmatprep.subr.mxu0 %v784
    %1009 = vmatpush1.msra.mxu0 %v783
    %1010 = vmatprep.subr.mxu0 %v792
    %1011 = vmatpush1.msra.mxu0 %v791
    %1012 = vmatprep.subr.mxu0 %v800
    %1013 = vmatpush1.msra.mxu0 %v799
    %1014 = vmatprep.subr.mxu0 %v808
    %1015 = vmatpush1.msra.mxu0 %v807
    %1016 = vmatprep.subr.mxu0 %v816
    %1017 = vmatpush1.msra.mxu0 %v815
    %1018 = vmatprep.subr.mxu0 %v824
    %1019 = vmatpush1.msra.mxu0 %v823
    %1020 = vmatprep.subr.mxu0 %v832
    %1021 = vmatpush1.msra.mxu0 %v831
    %1022 = vmatprep.subr.mxu0 %v840
    %1023 = vmatpush1.msra.mxu0 %v839
    %1024 = vmatprep.subr.mxu0 %v848
    %1025 = vmatpush1.msra.mxu0 %v847
    %1026 = vmatprep.subr.mxu0 %v856
    %1027 = vmatpush1.msra.mxu0 %v855
    %1028 = vmatprep.subr.mxu0 %v864
    %1029 = vmatpush1.msra.mxu0 %v863
    %1030 = vmatprep.subr.mxu0 %v872
    %1031 = vmatpush1.msra.mxu0 %v871
    %1032 = vmatprep.subr.mxu0 %v880
    %1033 = vmatpush1.msra.mxu0 %v879
    %1034 = vmatprep.mubr.f32.mxu0 %v896
    %1035 = vmatmul.mubr.f32.gmra.mrb[0].mxu0 %v895
    %v1036 = vpop.f32.mrb[0].mxu0
    %v1037 = vadd.f32 0.0, %v1036
    %v1038 = vpop.f32.mrb[0].mxu0
    %v1039 = vadd.f32 0.0, %v1038
    %1040 = vdwg.mxu0
    %1041 = vmatprep.subr.mxu0 %v634
    %1042 = vmatpush1.msra.mxu0 %v633
    %1043 = vmatprep.subr.mxu0 %v642
    %1044 = vmatpush1.msra.mxu0 %v641
    %1045 = vmatprep.subr.mxu0 %v650
    %1046 = vmatpush1.msra.mxu0 %v649
    %1047 = vmatprep.subr.mxu0 %v658
    %1048 = vmatpush1.msra.mxu0 %v657
    %1049 = vmatprep.subr.mxu0 %v666
    %1050 = vmatpush1.msra.mxu0 %v665
    %1051 = vmatprep.subr.mxu0 %v674
    %1052 = vmatpush1.msra.mxu0 %v673
    %1053 = vmatprep.subr.mxu0 %v682
    %1054 = vmatpush1.msra.mxu0 %v681
    %1055 = vmatprep.subr.mxu0 %v690
    %1056 = vmatpush1.msra.mxu0 %v689
    %1057 = vmatprep.subr.mxu0 %v698
    %1058 = vmatpush1.msra.mxu0 %v697
    %1059 = vmatprep.subr.mxu0 %v706
    %1060 = vmatpush1.msra.mxu0 %v705
    %1061 = vmatprep.subr.mxu0 %v714
    %1062 = vmatpush1.msra.mxu0 %v713
    %1063 = vmatprep.subr.mxu0 %v722
    %1064 = vmatpush1.msra.mxu0 %v721
    %1065 = vmatprep.subr.mxu0 %v730
    %1066 = vmatpush1.msra.mxu0 %v729
    %1067 = vmatprep.subr.mxu0 %v738
    %1068 = vmatpush1.msra.mxu0 %v737
    %1069 = vmatprep.subr.mxu0 %v746
    %1070 = vmatpush1.msra.mxu0 %v745
    %1071 = vmatprep.subr.mxu0 %v754
    %1072 = vmatpush1.msra.mxu0 %v753
    %1073 = vmatprep.subr.mxu0 %v762
    %1074 = vmatpush1.msra.mxu0 %v761
    %1075 = vmatprep.subr.mxu0 %v770
    %1076 = vmatpush1.msra.mxu0 %v769
    %1077 = vmatprep.subr.mxu0 %v778
    %1078 = vmatpush1.msra.mxu0 %v777
    %1079 = vmatprep.subr.mxu0 %v786
    %1080 = vmatpush1.msra.mxu0 %v785
    %1081 = vmatprep.subr.mxu0 %v794
    %1082 = vmatpush1.msra.mxu0 %v793
    %1083 = vmatprep.subr.mxu0 %v802
    %1084 = vmatpush1.msra.mxu0 %v801
    %1085 = vmatprep.subr.mxu0 %v810
    %1086 = vmatpush1.msra.mxu0 %v809
    %1087 = vmatprep.subr.mxu0 %v818
    %1088 = vmatpush1.msra.mxu0 %v817
    %1089 = vmatprep.subr.mxu0 %v826
    %1090 = vmatpush1.msra.mxu0 %v825
    %1091 = vmatprep.subr.mxu0 %v834
    %1092 = vmatpush1.msra.mxu0 %v833
    %1093 = vmatprep.subr.mxu0 %v842
    %1094 = vmatpush1.msra.mxu0 %v841
    %1095 = vmatprep.subr.mxu0 %v850
    %1096 = vmatpush1.msra.mxu0 %v849
    %1097 = vmatprep.subr.mxu0 %v858
    %1098 = vmatpush1.msra.mxu0 %v857
    %1099 = vmatprep.subr.mxu0 %v866
    %1100 = vmatpush1.msra.mxu0 %v865
    %1101 = vmatprep.subr.mxu0 %v874
    %1102 = vmatpush1.msra.mxu0 %v873
    %1103 = vmatprep.subr.mxu0 %v882
    %1104 = vmatpush1.msra.mxu0 %v881
    %1105 = vmatprep.mubr.f32.mxu0 %v896
    %1106 = vmatmul.mubr.f32.gmra.mrb[0].mxu0 %v895
    %v1107 = vpop.f32.mrb[0].mxu0
    %v1108 = vadd.f32 0.0, %v1107
    %v1109 = vpop.f32.mrb[0].mxu0
    %v1110 = vadd.f32 0.0, %v1109
    %1111 = vdwg.mxu0
    %1112 = vmatprep.subr.mxu0 %v636
    %1113 = vmatpush1.msra.mxu0 %v635
    %1114 = vmatprep.subr.mxu0 %v644
    %1115 = vmatpush1.msra.mxu0 %v643
    %1116 = vmatprep.subr.mxu0 %v652
    %1117 = vmatpush1.msra.mxu0 %v651
    %1118 = vmatprep.subr.mxu0 %v660
    %1119 = vmatpush1.msra.mxu0 %v659
    %1120 = vmatprep.subr.mxu0 %v668
    %1121 = vmatpush1.msra.mxu0 %v667
    %1122 = vmatprep.subr.mxu0 %v676
    %1123 = vmatpush1.msra.mxu0 %v675
    %1124 = vmatprep.subr.mxu0 %v684
    %1125 = vmatpush1.msra.mxu0 %v683
    %1126 = vmatprep.subr.mxu0 %v692
    %1127 = vmatpush1.msra.mxu0 %v691
    %1128 = vmatprep.subr.mxu0 %v700
    %1129 = vmatpush1.msra.mxu0 %v699
    %1130 = vmatprep.subr.mxu0 %v708
    %1131 = vmatpush1.msra.mxu0 %v707
    %1132 = vmatprep.subr.mxu0 %v716
    %1133 = vmatpush1.msra.mxu0 %v715
    %1134 = vmatprep.subr.mxu0 %v724
    %1135 = vmatpush1.msra.mxu0 %v723
    %1136 = vmatprep.subr.mxu0 %v732
    %1137 = vmatpush1.msra.mxu0 %v731
    %1138 = vmatprep.subr.mxu0 %v740
    %1139 = vmatpush1.msra.mxu0 %v739
    %1140 = vmatprep.subr.mxu0 %v748
    %1141 = vmatpush1.msra.mxu0 %v747
    %1142 = vmatprep.subr.mxu0 %v756
    %1143 = vmatpush1.msra.mxu0 %v755
    %1144 = vmatprep.subr.mxu0 %v764
    %1145 = vmatpush1.msra.mxu0 %v763
    %1146 = vmatprep.subr.mxu0 %v772
    %1147 = vmatpush1.msra.mxu0 %v771
    %1148 = vmatprep.subr.mxu0 %v780
    %1149 = vmatpush1.msra.mxu0 %v779
    %1150 = vmatprep.subr.mxu0 %v788
    %1151 = vmatpush1.msra.mxu0 %v787
    %1152 = vmatprep.subr.mxu0 %v796
    %1153 = vmatpush1.msra.mxu0 %v795
    %1154 = vmatprep.subr.mxu0 %v804
    %1155 = vmatpush1.msra.mxu0 %v803
    %1156 = vmatprep.subr.mxu0 %v812
    %1157 = vmatpush1.msra.mxu0 %v811
    %1158 = vmatprep.subr.mxu0 %v820
    %1159 = vmatpush1.msra.mxu0 %v819
    %1160 = vmatprep.subr.mxu0 %v828
    %1161 = vmatpush1.msra.mxu0 %v827
    %1162 = vmatprep.subr.mxu0 %v836
    %1163 = vmatpush1.msra.mxu0 %v835
    %1164 = vmatprep.subr.mxu0 %v844
    %1165 = vmatpush1.msra.mxu0 %v843
    %1166 = vmatprep.subr.mxu0 %v852
    %1167 = vmatpush1.msra.mxu0 %v851
    %1168 = vmatprep.subr.mxu0 %v860
    %1169 = vmatpush1.msra.mxu0 %v859
    %1170 = vmatprep.subr.mxu0 %v868
    %1171 = vmatpush1.msra.mxu0 %v867
    %1172 = vmatprep.subr.mxu0 %v876
    %1173 = vmatpush1.msra.mxu0 %v875
    %1174 = vmatprep.subr.mxu0 %v884
    %1175 = vmatpush1.msra.mxu0 %v883
    %1176 = vmatprep.mubr.f32.mxu0 %v896
    %1177 = vmatmul.mubr.f32.gmra.mrb[0].mxu0 %v895
    %v1178 = vpop.f32.mrb[0].mxu0
    %v1179 = vadd.f32 0.0, %v1178
    %v1180 = vpop.f32.mrb[0].mxu0
    %v1181 = vadd.f32 0.0, %v1180
    %1182 = vdwg.mxu0
    %v1183 = vld [vmem:[#allocation2] sm:$0x3]
    %v1184 = vld [vmem:[#allocation2 + $0x8] sm:$0x3]
    %v1185 = vld [vmem:[#allocation2 + $0x10] sm:$0x3]
    %v1186 = vld [vmem:[#allocation2 + $0x18] sm:$0x3]
    %v1187 = vadd.f32 %v966, %v1183
    %v1188 = vadd.f32 %v968, %v1184
    %v1189 = vadd.f32 %v1037, %v1185
    %v1190 = vadd.f32 %v1039, %v1186
    %v1191 = vxor.u32 %v1187, 2147483648
    %v1192 = vmul.f32 %v1191, 1.442695
    %v1193 = vpow.pop %v1192
    %v1194 = vadd.f32 %v1193, 1.0
    %v1195 = vrcp.pop %v1194
    %v1196 = vmul.f32 1.0, %v1195
    %v1197 = vxor.u32 %v1188, 2147483648
    %v1198 = vmul.f32 %v1197, 1.442695
    %v1199 = vpow.pop %v1198
    %v1200 = vadd.f32 %v1199, 1.0
    %v1201 = vrcp.pop %v1200
    %v1202 = vmul.f32 1.0, %v1201
    %v1203 = vtanh.pop %v1189
    %v1204 = vxor.u32 %v1190, 2147483648
    %v1205 = vmul.f32 %v1204, 1.442695
    %v1206 = vpow.pop %v1205
    %v1207 = vadd.f32 %v1206, 1.0
    %v1208 = vrcp.pop %v1207
    %v1209 = vmul.f32 1.0, %v1208
    %v1210 = vld [vmem:[#allocation4] sm:$0x3]
    %v1211 = vmul.f32 %v1202, %v1210
    %v1212 = vmul.f32 %v1196, %v1203
    %v1213 = vadd.f32 %v1211, %v1212
    %v1214 = vtanh.pop %v1213
    %v1215 = vmul.f32 %v1209, %v1214
    %1216 = vst [vmem:[#allocation4] sm:$0x3] %v1213
    %1217 = vst [vmem:[#allocation3] sm:$0x3] %v1215
    %v1218 = vtanh.pop %v1215
    %1219 = vst [vmem:[#allocation5] sm:$0x3] %v1218
    %v1220 = vld [vmem:[#allocation2 + $0x60] sm:$0x30]
    %v1221 = vld [vmem:[#allocation2 + $0x68] sm:$0x30]
    %v1222 = vld [vmem:[#allocation2 + $0x70] sm:$0x30]
    %v1223 = vld [vmem:[#allocation2 + $0x78] sm:$0x30]
    %v1228 = vrot.slane %v1220, 4
    %v1229 = vrot.slane %v1221, 4
    %v1230 = vrot.slane %v1222, 4
    %v1231 = vrot.slane %v1223, 4
    %v1236 = vadd.f32 %v1108, %v1228
    %v1237 = vadd.f32 %v1110, %v1229
    %v1238 = vadd.f32 %v1179, %v1230
    %v1239 = vadd.f32 %v1181, %v1231
    %v1240 = vxor.u32 %v1236, 2147483648
    %v1241 = vmul.f32 %v1240, 1.442695
    %v1242 = vpow.pop %v1241
    %v1243 = vadd.f32 %v1242, 1.0
    %v1244 = vrcp.pop %v1243
    %v1245 = vmul.f32 1.0, %v1244
    %v1246 = vxor.u32 %v1237, 2147483648
    %v1247 = vmul.f32 %v1246, 1.442695
    %v1248 = vpow.pop %v1247
    %v1249 = vadd.f32 %v1248, 1.0
    %v1250 = vrcp.pop %v1249
    %v1251 = vmul.f32 1.0, %v1250
    %v1252 = vtanh.pop %v1238
    %v1253 = vxor.u32 %v1239, 2147483648
    %v1254 = vmul.f32 %v1253, 1.442695
    %v1255 = vpow.pop %v1254
    %v1256 = vadd.f32 %v1255, 1.0
    %v1257 = vrcp.pop %v1256
    %v1258 = vmul.f32 1.0, %v1257
    %v1259 = vld [vmem:[#allocation4 + $0x2] sm:$0x3]
    %v1260 = vmul.f32 %v1251, %v1259
    %v1261 = vmul.f32 %v1245, %v1252
    %v1262 = vadd.f32 %v1260, %v1261
    %v1263 = vtanh.pop %v1262
    %v1264 = vmul.f32 %v1258, %v1263
    %1265 = vst [vmem:[#allocation4 + $0x2] sm:$0x3] %v1262
    %1266 = vst [vmem:[#allocation3 + $0x2] sm:$0x3] %v1264
    %v1267 = vtanh.pop %v1264
    %1268 = vst [vmem:[#allocation5 + $0x1a] sm:$0x3] %v1267
    %v1269 = vld [vmem:[#allocation3] sm:$0xf]
    %v1272 = vunpack.c.l.s4 1983009808
    %v1273 = vunpack.c.0.s8 %v1272
    %v1274 = vlaneseq
    %v1275 = vshrl.u32 %v1274, 7
    %v1276 = vsub.s32 %v1273, %v1275
    %v1277 = vrot.slane %v1269, %v1276
    %v1278 = vcombine.high %v1277, %v1277
    %1281 = vmatprep.subr.mxu0 %v630
    %1282 = vmatpush1.msra.mxu0 %v629
    %1283 = vmatprep.subr.mxu0 %v638
    %1284 = vmatpush1.msra.mxu0 %v637
    %1285 = vmatprep.subr.mxu0 %v646
    %1286 = vmatpush1.msra.mxu0 %v645
    %1287 = vmatprep.subr.mxu0 %v654
    %1288 = vmatpush1.msra.mxu0 %v653
    %1289 = vmatprep.subr.mxu0 %v662
    %1290 = vmatpush1.msra.mxu0 %v661
    %1291 = vmatprep.subr.mxu0 %v670
    %1292 = vmatpush1.msra.mxu0 %v669
    %1293 = vmatprep.subr.mxu0 %v678
    %1294 = vmatpush1.msra.mxu0 %v677
    %1295 = vmatprep.subr.mxu0 %v686
    %1296 = vmatpush1.msra.mxu0 %v685
    %1297 = vmatprep.subr.mxu0 %v694
    %1298 = vmatpush1.msra.mxu0 %v693
    %1299 = vmatprep.subr.mxu0 %v702
    %1300 = vmatpush1.msra.mxu0 %v701
    %1301 = vmatprep.subr.mxu0 %v710
    %1302 = vmatpush1.msra.mxu0 %v709
    %1303 = vmatprep.subr.mxu0 %v718
    %1304 = vmatpush1.msra.mxu0 %v717
    %1305 = vmatprep.subr.mxu0 %v726
    %1306 = vmatpush1.msra.mxu0 %v725
    %1307 = vmatprep.subr.mxu0 %v734
    %1308 = vmatpush1.msra.mxu0 %v733
    %1309 = vmatprep.subr.mxu0 %v742
    %1310 = vmatpush1.msra.mxu0 %v741
    %1311 = vmatprep.subr.mxu0 %v750
    %1312 = vmatpush1.msra.mxu0 %v749
    %1313 = vmatprep.subr.mxu0 %v758
    %1314 = vmatpush1.msra.mxu0 %v757
    %1315 = vmatprep.subr.mxu0 %v766
    %1316 = vmatpush1.msra.mxu0 %v765
    %1317 = vmatprep.subr.mxu0 %v774
    %1318 = vmatpush1.msra.mxu0 %v773
    %1319 = vmatprep.subr.mxu0 %v782
    %1320 = vmatpush1.msra.mxu0 %v781
    %1321 = vmatprep.subr.mxu0 %v790
    %1322 = vmatpush1.msra.mxu0 %v789
    %1323 = vmatprep.subr.mxu0 %v798
    %1324 = vmatpush1.msra.mxu0 %v797
    %1325 = vmatprep.subr.mxu0 %v806
    %1326 = vmatpush1.msra.mxu0 %v805
    %1327 = vmatprep.subr.mxu0 %v814
    %1328 = vmatpush1.msra.mxu0 %v813
    %1329 = vmatprep.subr.mxu0 %v822
    %1330 = vmatpush1.msra.mxu0 %v821
    %1331 = vmatprep.subr.mxu0 %v830
    %1332 = vmatpush1.msra.mxu0 %v829
    %1333 = vmatprep.subr.mxu0 %v838
    %1334 = vmatpush1.msra.mxu0 %v837
    %1335 = vmatprep.subr.mxu0 %v846
    %1336 = vmatpush1.msra.mxu0 %v845
    %1337 = vmatprep.subr.mxu0 %v854
    %1338 = vmatpush1.msra.mxu0 %v853
    %1339 = vmatprep.subr.mxu0 %v862
    %1340 = vmatpush1.msra.mxu0 %v861
    %1341 = vmatprep.subr.mxu0 %v870
    %1342 = vmatpush1.msra.mxu0 %v869
    %1343 = vmatprep.subr.mxu0 %v878
    %1344 = vmatpush1.msra.mxu0 %v877
    %1345 = vmatprep.mubr.f32.mxu0 %v1278
    %1346 = vmatmul.mubr.f32.gmra.mrb[0].mxu0 %v1277
    %v1347 = vpop.f32.mrb[0].mxu0
    %v1348 = vadd.f32 0.0, %v1347
    %v1349 = vpop.f32.mrb[0].mxu0
    %v1350 = vadd.f32 0.0, %v1349
    %1351 = vdwg.mxu0
    %1352 = vmatprep.subr.mxu0 %v632
    %1353 = vmatpush1.msra.mxu0 %v631
    %1354 = vmatprep.subr.mxu0 %v640
    %1355 = vmatpush1.msra.mxu0 %v639
    %1356 = vmatprep.subr.mxu0 %v648
    %1357 = vmatpush1.msra.mxu0 %v647
    %1358 = vmatprep.subr.mxu0 %v656
    %1359 = vmatpush1.msra.mxu0 %v655
    %1360 = vmatprep.subr.mxu0 %v664
    %1361 = vmatpush1.msra.mxu0 %v663
    %1362 = vmatprep.subr.mxu0 %v672
    %1363 = vmatpush1.msra.mxu0 %v671
    %1364 = vmatprep.subr.mxu0 %v680
    %1365 = vmatpush1.msra.mxu0 %v679
    %1366 = vmatprep.subr.mxu0 %v688
    %1367 = vmatpush1.msra.mxu0 %v687
    %1368 = vmatprep.subr.mxu0 %v696
    %1369 = vmatpush1.msra.mxu0 %v695
    %1370 = vmatprep.subr.mxu0 %v704
    %1371 = vmatpush1.msra.mxu0 %v703
    %1372 = vmatprep.subr.mxu0 %v712
    %1373 = vmatpush1.msra.mxu0 %v711
    %1374 = vmatprep.subr.mxu0 %v720
    %1375 = vmatpush1.msra.mxu0 %v719
    %1376 = vmatprep.subr.mxu0 %v728
    %1377 = vmatpush1.msra.mxu0 %v727
    %1378 = vmatprep.subr.mxu0 %v736
    %1379 = vmatpush1.msra.mxu0 %v735
    %1380 = vmatprep.subr.mxu0 %v744
    %1381 = vmatpush1.msra.mxu0 %v743
    %1382 = vmatprep.subr.mxu0 %v752
    %1383 = vmatpush1.msra.mxu0 %v751
    %1384 = vmatprep.subr.mxu0 %v760
    %1385 = vmatpush1.msra.mxu0 %v759
    %1386 = vmatprep.subr.mxu0 %v768
    %1387 = vmatpush1.msra.mxu0 %v767
    %1388 = vmatprep.subr.mxu0 %v776
    %1389 = vmatpush1.msra.mxu0 %v775
    %1390 = vmatprep.subr.mxu0 %v784
    %1391 = vmatpush1.msra.mxu0 %v783
    %1392 = vmatprep.subr.mxu0 %v792
    %1393 = vmatpush1.msra.mxu0 %v791
    %1394 = vmatprep.subr.mxu0 %v800
    %1395 = vmatpush1.msra.mxu0 %v799
    %1396 = vmatprep.subr.mxu0 %v808
    %1397 = vmatpush1.msra.mxu0 %v807
    %1398 = vmatprep.subr.mxu0 %v816
    %1399 = vmatpush1.msra.mxu0 %v815
    %1400 = vmatprep.subr.mxu0 %v824
    %1401 = vmatpush1.msra.mxu0 %v823
    %1402 = vmatprep.subr.mxu0 %v832
    %1403 = vmatpush1.msra.mxu0 %v831
    %1404 = vmatprep.subr.mxu0 %v840
    %1405 = vmatpush1.msra.mxu0 %v839
    %1406 = vmatprep.subr.mxu0 %v848
    %1407 = vmatpush1.msra.mxu0 %v847
    %1408 = vmatprep.subr.mxu0 %v856
    %1409 = vmatpush1.msra.mxu0 %v855
    %1410 = vmatprep.subr.mxu0 %v864
    %1411 = vmatpush1.msra.mxu0 %v863
    %1412 = vmatprep.subr.mxu0 %v872
    %1413 = vmatpush1.msra.mxu0 %v871
    %1414 = vmatprep.subr.mxu0 %v880
    %1415 = vmatpush1.msra.mxu0 %v879
    %1416 = vmatprep.mubr.f32.mxu0 %v1278
    %1417 = vmatmul.mubr.f32.gmra.mrb[0].mxu0 %v1277
    %v1418 = vpop.f32.mrb[0].mxu0
    %v1419 = vadd.f32 0.0, %v1418
    %v1420 = vpop.f32.mrb[0].mxu0
    %v1421 = vadd.f32 0.0, %v1420
    %1422 = vdwg.mxu0
    %1423 = vmatprep.subr.mxu0 %v634
    %1424 = vmatpush1.msra.mxu0 %v633
    %1425 = vmatprep.subr.mxu0 %v642
    %1426 = vmatpush1.msra.mxu0 %v641
    %1427 = vmatprep.subr.mxu0 %v650
    %1428 = vmatpush1.msra.mxu0 %v649
    %1429 = vmatprep.subr.mxu0 %v658
    %1430 = vmatpush1.msra.mxu0 %v657
    %1431 = vmatprep.subr.mxu0 %v666
    %1432 = vmatpush1.msra.mxu0 %v665
    %1433 = vmatprep.subr.mxu0 %v674
    %1434 = vmatpush1.msra.mxu0 %v673
    %1435 = vmatprep.subr.mxu0 %v682
    %1436 = vmatpush1.msra.mxu0 %v681
    %1437 = vmatprep.subr.mxu0 %v690
    %1438 = vmatpush1.msra.mxu0 %v689
    %1439 = vmatprep.subr.mxu0 %v698
    %1440 = vmatpush1.msra.mxu0 %v697
    %1441 = vmatprep.subr.mxu0 %v706
    %1442 = vmatpush1.msra.mxu0 %v705
    %1443 = vmatprep.subr.mxu0 %v714
    %1444 = vmatpush1.msra.mxu0 %v713
    %1445 = vmatprep.subr.mxu0 %v722
    %1446 = vmatpush1.msra.mxu0 %v721
    %1447 = vmatprep.subr.mxu0 %v730
    %1448 = vmatpush1.msra.mxu0 %v729
    %1449 = vmatprep.subr.mxu0 %v738
    %1450 = vmatpush1.msra.mxu0 %v737
    %1451 = vmatprep.subr.mxu0 %v746
    %1452 = vmatpush1.msra.mxu0 %v745
    %1453 = vmatprep.subr.mxu0 %v754
    %1454 = vmatpush1.msra.mxu0 %v753
    %1455 = vmatprep.subr.mxu0 %v762
    %1456 = vmatpush1.msra.mxu0 %v761
    %1457 = vmatprep.subr.mxu0 %v770
    %1458 = vmatpush1.msra.mxu0 %v769
    %1459 = vmatprep.subr.mxu0 %v778
    %1460 = vmatpush1.msra.mxu0 %v777
    %1461 = vmatprep.subr.mxu0 %v786
    %1462 = vmatpush1.msra.mxu0 %v785
    %1463 = vmatprep.subr.mxu0 %v794
    %1464 = vmatpush1.msra.mxu0 %v793
    %1465 = vmatprep.subr.mxu0 %v802
    %1466 = vmatpush1.msra.mxu0 %v801
    %1467 = vmatprep.subr.mxu0 %v810
    %1468 = vmatpush1.msra.mxu0 %v809
    %1469 = vmatprep.subr.mxu0 %v818
    %1470 = vmatpush1.msra.mxu0 %v817
    %1471 = vmatprep.subr.mxu0 %v826
    %1472 = vmatpush1.msra.mxu0 %v825
    %1473 = vmatprep.subr.mxu0 %v834
    %1474 = vmatpush1.msra.mxu0 %v833
    %1475 = vmatprep.subr.mxu0 %v842
    %1476 = vmatpush1.msra.mxu0 %v841
    %1477 = vmatprep.subr.mxu0 %v850
    %1478 = vmatpush1.msra.mxu0 %v849
    %1479 = vmatprep.subr.mxu0 %v858
    %1480 = vmatpush1.msra.mxu0 %v857
    %1481 = vmatprep.subr.mxu0 %v866
    %1482 = vmatpush1.msra.mxu0 %v865
    %1483 = vmatprep.subr.mxu0 %v874
    %1484 = vmatpush1.msra.mxu0 %v873
    %1485 = vmatprep.subr.mxu0 %v882
    %1486 = vmatpush1.msra.mxu0 %v881
    %1487 = vmatprep.mubr.f32.mxu0 %v1278
    %1488 = vmatmul.mubr.f32.gmra.mrb[0].mxu0 %v1277
    %v1489 = vpop.f32.mrb[0].mxu0
    %v1490 = vadd.f32 0.0, %v1489
    %v1491 = vpop.f32.mrb[0].mxu0
    %v1492 = vadd.f32 0.0, %v1491
    %1493 = vdwg.mxu0
    %1494 = vmatprep.subr.mxu0 %v636
    %1495 = vmatpush1.msra.mxu0 %v635
    %1496 = vmatprep.subr.mxu0 %v644
    %1497 = vmatpush1.msra.mxu0 %v643
    %1498 = vmatprep.subr.mxu0 %v652
    %1499 = vmatpush1.msra.mxu0 %v651
    %1500 = vmatprep.subr.mxu0 %v660
    %1501 = vmatpush1.msra.mxu0 %v659
    %1502 = vmatprep.subr.mxu0 %v668
    %1503 = vmatpush1.msra.mxu0 %v667
    %1504 = vmatprep.subr.mxu0 %v676
    %1505 = vmatpush1.msra.mxu0 %v675
    %1506 = vmatprep.subr.mxu0 %v684
    %1507 = vmatpush1.msra.mxu0 %v683
    %1508 = vmatprep.subr.mxu0 %v692
    %1509 = vmatpush1.msra.mxu0 %v691
    %1510 = vmatprep.subr.mxu0 %v700
    %1511 = vmatpush1.msra.mxu0 %v699
    %1512 = vmatprep.subr.mxu0 %v708
    %1513 = vmatpush1.msra.mxu0 %v707
    %1514 = vmatprep.subr.mxu0 %v716
    %1515 = vmatpush1.msra.mxu0 %v715
    %1516 = vmatprep.subr.mxu0 %v724
    %1517 = vmatpush1.msra.mxu0 %v723
    %1518 = vmatprep.subr.mxu0 %v732
    %1519 = vmatpush1.msra.mxu0 %v731
    %1520 = vmatprep.subr.mxu0 %v740
    %1521 = vmatpush1.msra.mxu0 %v739
    %1522 = vmatprep.subr.mxu0 %v748
    %1523 = vmatpush1.msra.mxu0 %v747
    %1524 = vmatprep.subr.mxu0 %v756
    %1525 = vmatpush1.msra.mxu0 %v755
    %1526 = vmatprep.subr.mxu0 %v764
    %1527 = vmatpush1.msra.mxu0 %v763
    %1528 = vmatprep.subr.mxu0 %v772
    %1529 = vmatpush1.msra.mxu0 %v771
    %1530 = vmatprep.subr.mxu0 %v780
    %1531 = vmatpush1.msra.mxu0 %v779
    %1532 = vmatprep.subr.mxu0 %v788
    %1533 = vmatpush1.msra.mxu0 %v787
    %1534 = vmatprep.subr.mxu0 %v796
    %1535 = vmatpush1.msra.mxu0 %v795
    %1536 = vmatprep.subr.mxu0 %v804
    %1537 = vmatpush1.msra.mxu0 %v803
    %1538 = vmatprep.subr.mxu0 %v812
    %1539 = vmatpush1.msra.mxu0 %v811
    %1540 = vmatprep.subr.mxu0 %v820
    %1541 = vmatpush1.msra.mxu0 %v819
    %1542 = vmatprep.subr.mxu0 %v828
    %1543 = vmatpush1.msra.mxu0 %v827
    %1544 = vmatprep.subr.mxu0 %v836
    %1545 = vmatpush1.msra.mxu0 %v835
    %1546 = vmatprep.subr.mxu0 %v844
    %1547 = vmatpush1.msra.mxu0 %v843
    %1548 = vmatprep.subr.mxu0 %v852
    %1549 = vmatpush1.msra.mxu0 %v851
    %1550 = vmatprep.subr.mxu0 %v860
    %1551 = vmatpush1.msra.mxu0 %v859
    %1552 = vmatprep.subr.mxu0 %v868
    %1553 = vmatpush1.msra.mxu0 %v867
    %1554 = vmatprep.subr.mxu0 %v876
    %1555 = vmatpush1.msra.mxu0 %v875
    %1556 = vmatprep.subr.mxu0 %v884
    %1557 = vmatpush1.msra.mxu0 %v883
    %1558 = vmatprep.mubr.f32.mxu0 %v1278
    %1559 = vmatmul.mubr.f32.gmra.mrb[0].mxu0 %v1277
    %v1560 = vpop.f32.mrb[0].mxu0
    %v1561 = vadd.f32 0.0, %v1560
    %v1562 = vpop.f32.mrb[0].mxu0
    %v1563 = vadd.f32 0.0, %v1562
    %1564 = vdwg.mxu0
    %v1565 = vld [vmem:[#allocation2] sm:$0xc]
    %v1566 = vld [vmem:[#allocation2 + $0x8] sm:$0xc]
    %v1567 = vld [vmem:[#allocation2 + $0x10] sm:$0xc]
    %v1568 = vld [vmem:[#allocation2 + $0x18] sm:$0xc]
    %v1573 = vrot.slane %v1565, 2
    %v1574 = vrot.slane %v1566, 2
    %v1575 = vrot.slane %v1567, 2
    %v1576 = vrot.slane %v1568, 2
    %v1581 = vadd.f32 %v1348, %v1573
    %v1582 = vadd.f32 %v1350, %v1574
    %v1583 = vadd.f32 %v1419, %v1575
    %v1584 = vadd.f32 %v1421, %v1576
    %v1585 = vxor.u32 %v1581, 2147483648
    %v1586 = vmul.f32 %v1585, 1.442695
    %v1587 = vpow.pop %v1586
    %v1588 = vadd.f32 %v1587, 1.0
    %v1589 = vrcp.pop %v1588
    %v1590 = vmul.f32 1.0, %v1589
    %v1591 = vxor.u32 %v1582, 2147483648
    %v1592 = vmul.f32 %v1591, 1.442695
    %v1593 = vpow.pop %v1592
    %v1594 = vadd.f32 %v1593, 1.0
    %v1595 = vrcp.pop %v1594
    %v1596 = vmul.f32 1.0, %v1595
    %v1597 = vtanh.pop %v1583
    %v1598 = vxor.u32 %v1584, 2147483648
    %v1599 = vmul.f32 %v1598, 1.442695
    %v1600 = vpow.pop %v1599
    %v1601 = vadd.f32 %v1600, 1.0
    %v1602 = vrcp.pop %v1601
    %v1603 = vmul.f32 1.0, %v1602
    %v1604 = vld [vmem:[#allocation4] sm:$0x3]
    %v1605 = vmul.f32 %v1596, %v1604
    %v1606 = vmul.f32 %v1590, %v1597
    %v1607 = vadd.f32 %v1605, %v1606
    %v1608 = vtanh.pop %v1607
    %v1609 = vmul.f32 %v1603, %v1608
    %1610 = vst [vmem:[#allocation4] sm:$0x3] %v1607
    %1611 = vst [vmem:[#allocation3] sm:$0x3] %v1609
    %v1612 = vtanh.pop %v1609
    %1613 = vst [vmem:[#allocation5 + $0x4] sm:$0x3] %v1612
    %v1614 = vld [vmem:[#allocation2 + $0x60] sm:$0xc]
    %v1615 = vld [vmem:[#allocation2 + $0x68] sm:$0xc]
    %v1616 = vld [vmem:[#allocation2 + $0x70] sm:$0xc]
    %v1617 = vld [vmem:[#allocation2 + $0x78] sm:$0xc]
    %v1622 = vrot.slane %v1614, 2
    %v1623 = vrot.slane %v1615, 2
    %v1624 = vrot.slane %v1616, 2
    %v1625 = vrot.slane %v1617, 2
    %v1630 = vadd.f32 %v1490, %v1622
    %v1631 = vadd.f32 %v1492, %v1623
    %v1632 = vadd.f32 %v1561, %v1624
    %v1633 = vadd.f32 %v1563, %v1625
    %v1634 = vxor.u32 %v1630, 2147483648
    %v1635 = vmul.f32 %v1634, 1.442695
    %v1636 = vpow.pop %v1635
    %v1637 = vadd.f32 %v1636, 1.0
    %v1638 = vrcp.pop %v1637
    %v1639 = vmul.f32 1.0, %v1638
    %v1640 = vxor.u32 %v1631, 2147483648
    %v1641 = vmul.f32 %v1640, 1.442695
    %v1642 = vpow.pop %v1641
    %v1643 = vadd.f32 %v1642, 1.0
    %v1644 = vrcp.pop %v1643
    %v1645 = vmul.f32 1.0, %v1644
    %v1646 = vtanh.pop %v1632
    %v1647 = vxor.u32 %v1633, 2147483648
    %v1648 = vmul.f32 %v1647, 1.442695
    %v1649 = vpow.pop %v1648
    %v1650 = vadd.f32 %v1649, 1.0
    %v1651 = vrcp.pop %v1650
    %v1652 = vmul.f32 1.0, %v1651
    %v1653 = vld [vmem:[#allocation4 + $0x2] sm:$0x3]
    %v1654 = vmul.f32 %v1645, %v1653
    %v1655 = vmul.f32 %v1639, %v1646
    %v1656 = vadd.f32 %v1654, %v1655
    %v1657 = vtanh.pop %v1656
    %v1658 = vmul.f32 %v1652, %v1657
    %1659 = vst [vmem:[#allocation4 + $0x2] sm:$0x3] %v1656
    %1660 = vst [vmem:[#allocation3 + $0x2] sm:$0x3] %v1658
    %v1661 = vtanh.pop %v1658
    %1662 = vst [vmem:[#allocation5 + $0x16] sm:$0x3] %v1661
    %v1663 = vld [vmem:[#allocation3] sm:$0xf]
    %v1666 = vunpack.c.l.s4 1983009808
    %v1667 = vunpack.c.0.s8 %v1666
    %v1668 = vlaneseq
    %v1669 = vshrl.u32 %v1668, 7
    %v1670 = vsub.s32 %v1667, %v1669
    %v1671 = vrot.slane %v1663, %v1670
    %v1672 = vcombine.high %v1671, %v1671
    %1675 = vmatprep.subr.mxu0 %v630
    %1676 = vmatpush1.msra.mxu0 %v629
    %1677 = vmatprep.subr.mxu0 %v638
    %1678 = vmatpush1.msra.mxu0 %v637
    %1679 = vmatprep.subr.mxu0 %v646
    %1680 = vmatpush1.msra.mxu0 %v645
    %1681 = vmatprep.subr.mxu0 %v654
    %1682 = vmatpush1.msra.mxu0 %v653
    %1683 = vmatprep.subr.mxu0 %v662
    %1684 = vmatpush1.msra.mxu0 %v661
    %1685 = vmatprep.subr.mxu0 %v670
    %1686 = vmatpush1.msra.mxu0 %v669
    %1687 = vmatprep.subr.mxu0 %v678
    %1688 = vmatpush1.msra.mxu0 %v677
    %1689 = vmatprep.subr.mxu0 %v686
    %1690 = vmatpush1.msra.mxu0 %v685
    %1691 = vmatprep.subr.mxu0 %v694
    %1692 = vmatpush1.msra.mxu0 %v693
    %1693 = vmatprep.subr.mxu0 %v702
    %1694 = vmatpush1.msra.mxu0 %v701
    %1695 = vmatprep.subr.mxu0 %v710
    %1696 = vmatpush1.msra.mxu0 %v709
    %1697 = vmatprep.subr.mxu0 %v718
    %1698 = vmatpush1.msra.mxu0 %v717
    %1699 = vmatprep.subr.mxu0 %v726
    %1700 = vmatpush1.msra.mxu0 %v725
    %1701 = vmatprep.subr.mxu0 %v734
    %1702 = vmatpush1.msra.mxu0 %v733
    %1703 = vmatprep.subr.mxu0 %v742
    %1704 = vmatpush1.msra.mxu0 %v741
    %1705 = vmatprep.subr.mxu0 %v750
    %1706 = vmatpush1.msra.mxu0 %v749
    %1707 = vmatprep.subr.mxu0 %v758
    %1708 = vmatpush1.msra.mxu0 %v757
    %1709 = vmatprep.subr.mxu0 %v766
    %1710 = vmatpush1.msra.mxu0 %v765
    %1711 = vmatprep.subr.mxu0 %v774
    %1712 = vmatpush1.msra.mxu0 %v773
    %1713 = vmatprep.subr.mxu0 %v782
    %1714 = vmatpush1.msra.mxu0 %v781
    %1715 = vmatprep.subr.mxu0 %v790
    %1716 = vmatpush1.msra.mxu0 %v789
    %1717 = vmatprep.subr.mxu0 %v798
    %1718 = vmatpush1.msra.mxu0 %v797
    %1719 = vmatprep.subr.mxu0 %v806
    %1720 = vmatpush1.msra.mxu0 %v805
    %1721 = vmatprep.subr.mxu0 %v814
    %1722 = vmatpush1.msra.mxu0 %v813
    %1723 = vmatprep.subr.mxu0 %v822
    %1724 = vmatpush1.msra.mxu0 %v821
    %1725 = vmatprep.subr.mxu0 %v830
    %1726 = vmatpush1.msra.mxu0 %v829
    %1727 = vmatprep.subr.mxu0 %v838
    %1728 = vmatpush1.msra.mxu0 %v837
    %1729 = vmatprep.subr.mxu0 %v846
    %1730 = vmatpush1.msra.mxu0 %v845
    %1731 = vmatprep.subr.mxu0 %v854
    %1732 = vmatpush1.msra.mxu0 %v853
    %1733 = vmatprep.subr.mxu0 %v862
    %1734 = vmatpush1.msra.mxu0 %v861
    %1735 = vmatprep.subr.mxu0 %v870
    %1736 = vmatpush1.msra.mxu0 %v869
    %1737 = vmatprep.subr.mxu0 %v878
    %1738 = vmatpush1.msra.mxu0 %v877
    %1739 = vmatprep.mubr.f32.mxu0 %v1672
    %1740 = vmatmul.mubr.f32.gmra.mrb[0].mxu0 %v1671
    %v1741 = vpop.f32.mrb[0].mxu0
    %v1742 = vadd.f32 0.0, %v1741
    %v1743 = vpop.f32.mrb[0].mxu0
    %v1744 = vadd.f32 0.0, %v1743
    %1745 = vdwg.mxu0
    %1746 = vmatprep.subr.mxu0 %v632
    %1747 = vmatpush1.msra.mxu0 %v631
    %1748 = vmatprep.subr.mxu0 %v640
    %1749 = vmatpush1.msra.mxu0 %v639
    %1750 = vmatprep.subr.mxu0 %v648
    %1751 = vmatpush1.msra.mxu0 %v647
    %1752 = vmatprep.subr.mxu0 %v656
    %1753 = vmatpush1.msra.mxu0 %v655
    %1754 = vmatprep.subr.mxu0 %v664
    %1755 = vmatpush1.msra.mxu0 %v663
    %1756 = vmatprep.subr.mxu0 %v672
    %1757 = vmatpush1.msra.mxu0 %v671
    %1758 = vmatprep.subr.mxu0 %v680
    %1759 = vmatpush1.msra.mxu0 %v679
    %1760 = vmatprep.subr.mxu0 %v688
    %1761 = vmatpush1.msra.mxu0 %v687
    %1762 = vmatprep.subr.mxu0 %v696
    %1763 = vmatpush1.msra.mxu0 %v695
    %1764 = vmatprep.subr.mxu0 %v704
    %1765 = vmatpush1.msra.mxu0 %v703
    %1766 = vmatprep.subr.mxu0 %v712
    %1767 = vmatpush1.msra.mxu0 %v711
    %1768 = vmatprep.subr.mxu0 %v720
    %1769 = vmatpush1.msra.mxu0 %v719
    %1770 = vmatprep.subr.mxu0 %v728
    %1771 = vmatpush1.msra.mxu0 %v727
    %1772 = vmatprep.subr.mxu0 %v736
    %1773 = vmatpush1.msra.mxu0 %v735
    %1774 = vmatprep.subr.mxu0 %v744
    %1775 = vmatpush1.msra.mxu0 %v743
    %1776 = vmatprep.subr.mxu0 %v752
    %1777 = vmatpush1.msra.mxu0 %v751
    %1778 = vmatprep.subr.mxu0 %v760
    %1779 = vmatpush1.msra.mxu0 %v759
    %1780 = vmatprep.subr.mxu0 %v768
    %1781 = vmatpush1.msra.mxu0 %v767
    %1782 = vmatprep.subr.mxu0 %v776
    %1783 = vmatpush1.msra.mxu0 %v775
    %1784 = vmatprep.subr.mxu0 %v784
    %1785 = vmatpush1.msra.mxu0 %v783
    %1786 = vmatprep.subr.mxu0 %v792
    %1787 = vmatpush1.msra.mxu0 %v791
    %1788 = vmatprep.subr.mxu0 %v800
    %1789 = vmatpush1.msra.mxu0 %v799
    %1790 = vmatprep.subr.mxu0 %v808
    %1791 = vmatpush1.msra.mxu0 %v807
    %1792 = vmatprep.subr.mxu0 %v816
    %1793 = vmatpush1.msra.mxu0 %v815
    %1794 = vmatprep.subr.mxu0 %v824
    %1795 = vmatpush1.msra.mxu0 %v823
    %1796 = vmatprep.subr.mxu0 %v832
    %1797 = vmatpush1.msra.mxu0 %v831
    %1798 = vmatprep.subr.mxu0 %v840
    %1799 = vmatpush1.msra.mxu0 %v839
    %1800 = vmatprep.subr.mxu0 %v848
    %1801 = vmatpush1.msra.mxu0 %v847
    %1802 = vmatprep.subr.mxu0 %v856
    %1803 = vmatpush1.msra.mxu0 %v855
    %1804 = vmatprep.subr.mxu0 %v864
    %1805 = vmatpush1.msra.mxu0 %v863
    %1806 = vmatprep.subr.mxu0 %v872
    %1807 = vmatpush1.msra.mxu0 %v871
    %1808 = vmatprep.subr.mxu0 %v880
    %1809 = vmatpush1.msra.mxu0 %v879
    %1810 = vmatprep.mubr.f32.mxu0 %v1672
    %1811 = vmatmul.mubr.f32.gmra.mrb[0].mxu0 %v1671
    %v1812 = vpop.f32.mrb[0].mxu0
    %v1813 = vadd.f32 0.0, %v1812
    %v1814 = vpop.f32.mrb[0].mxu0
    %v1815 = vadd.f32 0.0, %v1814
    %1816 = vdwg.mxu0
    %1817 = vmatprep.subr.mxu0 %v634
    %1818 = vmatpush1.msra.mxu0 %v633
    %1819 = vmatprep.subr.mxu0 %v642
    %1820 = vmatpush1.msra.mxu0 %v641
    %1821 = vmatprep.subr.mxu0 %v650
    %1822 = vmatpush1.msra.mxu0 %v649
    %1823 = vmatprep.subr.mxu0 %v658
    %1824 = vmatpush1.msra.mxu0 %v657
    %1825 = vmatprep.subr.mxu0 %v666
    %1826 = vmatpush1.msra.mxu0 %v665
    %1827 = vmatprep.subr.mxu0 %v674
    %1828 = vmatpush1.msra.mxu0 %v673
    %1829 = vmatprep.subr.mxu0 %v682
    %1830 = vmatpush1.msra.mxu0 %v681
    %1831 = vmatprep.subr.mxu0 %v690
    %1832 = vmatpush1.msra.mxu0 %v689
    %1833 = vmatprep.subr.mxu0 %v698
    %1834 = vmatpush1.msra.mxu0 %v697
    %1835 = vmatprep.subr.mxu0 %v706
    %1836 = vmatpush1.msra.mxu0 %v705
    %1837 = vmatprep.subr.mxu0 %v714
    %1838 = vmatpush1.msra.mxu0 %v713
    %1839 = vmatprep.subr.mxu0 %v722
    %1840 = vmatpush1.msra.mxu0 %v721
    %1841 = vmatprep.subr.mxu0 %v730
    %1842 = vmatpush1.msra.mxu0 %v729
    %1843 = vmatprep.subr.mxu0 %v738
    %1844 = vmatpush1.msra.mxu0 %v737
    %1845 = vmatprep.subr.mxu0 %v746
    %1846 = vmatpush1.msra.mxu0 %v745
    %1847 = vmatprep.subr.mxu0 %v754
    %1848 = vmatpush1.msra.mxu0 %v753
    %1849 = vmatprep.subr.mxu0 %v762
    %1850 = vmatpush1.msra.mxu0 %v761
    %1851 = vmatprep.subr.mxu0 %v770
    %1852 = vmatpush1.msra.mxu0 %v769
    %1853 = vmatprep.subr.mxu0 %v778
    %1854 = vmatpush1.msra.mxu0 %v777
    %1855 = vmatprep.subr.mxu0 %v786
    %1856 = vmatpush1.msra.mxu0 %v785
    %1857 = vmatprep.subr.mxu0 %v794
    %1858 = vmatpush1.msra.mxu0 %v793
    %1859 = vmatprep.subr.mxu0 %v802
    %1860 = vmatpush1.msra.mxu0 %v801
    %1861 = vmatprep.subr.mxu0 %v810
    %1862 = vmatpush1.msra.mxu0 %v809
    %1863 = vmatprep.subr.mxu0 %v818
    %1864 = vmatpush1.msra.mxu0 %v817
    %1865 = vmatprep.subr.mxu0 %v826
    %1866 = vmatpush1.msra.mxu0 %v825
    %1867 = vmatprep.subr.mxu0 %v834
    %1868 = vmatpush1.msra.mxu0 %v833
    %1869 = vmatprep.subr.mxu0 %v842
    %1870 = vmatpush1.msra.mxu0 %v841
    %1871 = vmatprep.subr.mxu0 %v850
    %1872 = vmatpush1.msra.mxu0 %v849
    %1873 = vmatprep.subr.mxu0 %v858
    %1874 = vmatpush1.msra.mxu0 %v857
    %1875 = vmatprep.subr.mxu0 %v866
    %1876 = vmatpush1.msra.mxu0 %v865
    %1877 = vmatprep.subr.mxu0 %v874
    %1878 = vmatpush1.msra.mxu0 %v873
    %1879 = vmatprep.subr.mxu0 %v882
    %1880 = vmatpush1.msra.mxu0 %v881
    %1881 = vmatprep.mubr.f32.mxu0 %v1672
    %1882 = vmatmul.mubr.f32.gmra.mrb[0].mxu0 %v1671
    %v1883 = vpop.f32.mrb[0].mxu0
    %v1884 = vadd.f32 0.0, %v1883
    %v1885 = vpop.f32.mrb[0].mxu0
    %v1886 = vadd.f32 0.0, %v1885
    %1887 = vdwg.mxu0
    %1888 = vmatprep.subr.mxu0 %v636
    %1889 = vmatpush1.msra.mxu0 %v635
    %1890 = vmatprep.subr.mxu0 %v644
    %1891 = vmatpush1.msra.mxu0 %v643
    %1892 = vmatprep.subr.mxu0 %v652
    %1893 = vmatpush1.msra.mxu0 %v651
    %1894 = vmatprep.subr.mxu0 %v660
    %1895 = vmatpush1.msra.mxu0 %v659
    %1896 = vmatprep.subr.mxu0 %v668
    %1897 = vmatpush1.msra.mxu0 %v667
    %1898 = vmatprep.subr.mxu0 %v676
    %1899 = vmatpush1.msra.mxu0 %v675
    %1900 = vmatprep.subr.mxu0 %v684
    %1901 = vmatpush1.msra.mxu0 %v683
    %1902 = vmatprep.subr.mxu0 %v692
    %1903 = vmatpush1.msra.mxu0 %v691
    %1904 = vmatprep.subr.mxu0 %v700
    %1905 = vmatpush1.msra.mxu0 %v699
    %1906 = vmatprep.subr.mxu0 %v708
    %1907 = vmatpush1.msra.mxu0 %v707
    %1908 = vmatprep.subr.mxu0 %v716
    %1909 = vmatpush1.msra.mxu0 %v715
    %1910 = vmatprep.subr.mxu0 %v724
    %1911 = vmatpush1.msra.mxu0 %v723
    %1912 = vmatprep.subr.mxu0 %v732
    %1913 = vmatpush1.msra.mxu0 %v731
    %1914 = vmatprep.subr.mxu0 %v740
    %1915 = vmatpush1.msra.mxu0 %v739
    %1916 = vmatprep.subr.mxu0 %v748
    %1917 = vmatpush1.msra.mxu0 %v747
    %1918 = vmatprep.subr.mxu0 %v756
    %1919 = vmatpush1.msra.mxu0 %v755
    %1920 = vmatprep.subr.mxu0 %v764
    %1921 = vmatpush1.msra.mxu0 %v763
    %1922 = vmatprep.subr.mxu0 %v772
    %1923 = vmatpush1.msra.mxu0 %v771
    %1924 = vmatprep.subr.mxu0 %v780
    %1925 = vmatpush1.msra.mxu0 %v779
    %1926 = vmatprep.subr.mxu0 %v788
    %1927 = vmatpush1.msra.mxu0 %v787
    %1928 = vmatprep.subr.mxu0 %v796
    %1929 = vmatpush1.msra.mxu0 %v795
    %1930 = vmatprep.subr.mxu0 %v804
    %1931 = vmatpush1.msra.mxu0 %v803
    %1932 = vmatprep.subr.mxu0 %v812
    %1933 = vmatpush1.msra.mxu0 %v811
    %1934 = vmatprep.subr.mxu0 %v820
    %1935 = vmatpush1.msra.mxu0 %v819
    %1936 = vmatprep.subr.mxu0 %v828
    %1937 = vmatpush1.msra.mxu0 %v827
    %1938 = vmatprep.subr.mxu0 %v836
    %1939 = vmatpush1.msra.mxu0 %v835
    %1940 = vmatprep.subr.mxu0 %v844
    %1941 = vmatpush1.msra.mxu0 %v843
    %1942 = vmatprep.subr.mxu0 %v852
    %1943 = vmatpush1.msra.mxu0 %v851
    %1944 = vmatprep.subr.mxu0 %v860
    %1945 = vmatpush1.msra.mxu0 %v859
    %1946 = vmatprep.subr.mxu0 %v868
    %1947 = vmatpush1.msra.mxu0 %v867
    %1948 = vmatprep.subr.mxu0 %v876
    %1949 = vmatpush1.msra.mxu0 %v875
    %1950 = vmatprep.subr.mxu0 %v884
    %1951 = vmatpush1.msra.mxu0 %v883
    %1952 = vmatprep.mubr.f32.mxu0 %v1672
    %1953 = vmatmul.mubr.f32.gmra.mrb[0].mxu0 %v1671
    %v1954 = vpop.f32.mrb[0].mxu0
    %v1955 = vadd.f32 0.0, %v1954
    %v1956 = vpop.f32.mrb[0].mxu0
    %v1957 = vadd.f32 0.0, %v1956
    %1958 = vdwg.mxu0
    %v1959 = vld [vmem:[#allocation2] sm:$0x30]
    %v1960 = vld [vmem:[#allocation2 + $0x8] sm:$0x30]
    %v1961 = vld [vmem:[#allocation2 + $0x10] sm:$0x30]
    %v1962 = vld [vmem:[#allocation2 + $0x18] sm:$0x30]
    %v1967 = vrot.slane %v1959, 4
    %v1968 = vrot.slane %v1960, 4
    %v1969 = vrot.slane %v1961, 4
    %v1970 = vrot.slane %v1962, 4
    %v1975 = vadd.f32 %v1742, %v1967
    %v1976 = vadd.f32 %v1744, %v1968
    %v1977 = vadd.f32 %v1813, %v1969
    %v1978 = vadd.f32 %v1815, %v1970
    %v1979 = vxor.u32 %v1975, 2147483648
    %v1980 = vmul.f32 %v1979, 1.442695
    %v1981 = vpow.pop %v1980
    %v1982 = vadd.f32 %v1981, 1.0
    %v1983 = vrcp.pop %v1982
    %v1984 = vmul.f32 1.0, %v1983
    %v1985 = vxor.u32 %v1976, 2147483648
    %v1986 = vmul.f32 %v1985, 1.442695
    %v1987 = vpow.pop %v1986
    %v1988 = vadd.f32 %v1987, 1.0
    %v1989 = vrcp.pop %v1988
    %v1990 = vmul.f32 1.0, %v1989
    %v1991 = vtanh.pop %v1977
    %v1992 = vxor.u32 %v1978, 2147483648
    %v1993 = vmul.f32 %v1992, 1.442695
    %v1994 = vpow.pop %v1993
    %v1995 = vadd.f32 %v1994, 1.0
    %v1996 = vrcp.pop %v1995
    %v1997 = vmul.f32 1.0, %v1996
    %v1998 = vld [vmem:[#allocation4] sm:$0x3]
    %v1999 = vmul.f32 %v1990, %v1998
    %v2000 = vmul.f32 %v1984, %v1991
    %v2001 = vadd.f32 %v1999, %v2000
    %v2002 = vtanh.pop %v2001
    %v2003 = vmul.f32 %v1997, %v2002
    %2004 = vst [vmem:[#allocation4] sm:$0x3] %v2001
    %2005 = vst [vmem:[#allocation3] sm:$0x3] %v2003
    %v2006 = vtanh.pop %v2003
    %2007 = vst [vmem:[#allocation5 + $0x8] sm:$0x3] %v2006
    %v2008 = vld [vmem:[#allocation2 + $0x60] sm:$0x3]
    %v2009 = vld [vmem:[#allocation2 + $0x68] sm:$0x3]
    %v2010 = vld [vmem:[#allocation2 + $0x70] sm:$0x3]
    %v2011 = vld [vmem:[#allocation2 + $0x78] sm:$0x3]
    %v2012 = vadd.f32 %v1884, %v2008
    %v2013 = vadd.f32 %v1886, %v2009
    %v2014 = vadd.f32 %v1955, %v2010
    %v2015 = vadd.f32 %v1957, %v2011
    %v2016 = vxor.u32 %v2012, 2147483648
    %v2017 = vmul.f32 %v2016, 1.442695
    %v2018 = vpow.pop %v2017
    %v2019 = vadd.f32 %v2018, 1.0
    %v2020 = vrcp.pop %v2019
    %v2021 = vmul.f32 1.0, %v2020
    %v2022 = vxor.u32 %v2013, 2147483648
    %v2023 = vmul.f32 %v2022, 1.442695
    %v2024 = vpow.pop %v2023
    %v2025 = vadd.f32 %v2024, 1.0
    %v2026 = vrcp.pop %v2025
    %v2027 = vmul.f32 1.0, %v2026
    %v2028 = vtanh.pop %v2014
    %v2029 = vxor.u32 %v2015, 2147483648
    %v2030 = vmul.f32 %v2029, 1.442695
    %v2031 = vpow.pop %v2030
    %v2032 = vadd.f32 %v2031, 1.0
    %v2033 = vrcp.pop %v2032
    %v2034 = vmul.f32 1.0, %v2033
    %v2035 = vld [vmem:[#allocation4 + $0x2] sm:$0x3]
    %v2036 = vmul.f32 %v2027, %v2035
    %v2037 = vmul.f32 %v2021, %v2028
    %v2038 = vadd.f32 %v2036, %v2037
    %v2039 = vtanh.pop %v2038
    %v2040 = vmul.f32 %v2034, %v2039
    %2041 = vst [vmem:[#allocation4 + $0x2] sm:$0x3] %v2038
    %2042 = vst [vmem:[#allocation3 + $0x2] sm:$0x3] %v2040
    %v2043 = vtanh.pop %v2040
    %2044 = vst [vmem:[#allocation5 + $0x12] sm:$0x3] %v2043
    %v2045 = vld [vmem:[#allocation3] sm:$0xf]
    %v2048 = vunpack.c.l.s4 1983009808
    %v2049 = vunpack.c.0.s8 %v2048
    %v2050 = vlaneseq
    %v2051 = vshrl.u32 %v2050, 7
    %v2052 = vsub.s32 %v2049, %v2051
    %v2053 = vrot.slane %v2045, %v2052
    %v2054 = vcombine.high %v2053, %v2053
    %2057 = vmatprep.subr.mxu0 %v630
    %2058 = vmatpush1.msra.mxu0 %v629
    %2059 = vmatprep.subr.mxu0 %v638
    %2060 = vmatpush1.msra.mxu0 %v637
    %2061 = vmatprep.subr.mxu0 %v646
    %2062 = vmatpush1.msra.mxu0 %v645
    %2063 = vmatprep.subr.mxu0 %v654
    %2064 = vmatpush1.msra.mxu0 %v653
    %2065 = vmatprep.subr.mxu0 %v662
    %2066 = vmatpush1.msra.mxu0 %v661
    %2067 = vmatprep.subr.mxu0 %v670
    %2068 = vmatpush1.msra.mxu0 %v669
    %2069 = vmatprep.subr.mxu0 %v678
    %2070 = vmatpush1.msra.mxu0 %v677
    %2071 = vmatprep.subr.mxu0 %v686
    %2072 = vmatpush1.msra.mxu0 %v685
    %2073 = vmatprep.subr.mxu0 %v694
    %2074 = vmatpush1.msra.mxu0 %v693
    %2075 = vmatprep.subr.mxu0 %v702
    %2076 = vmatpush1.msra.mxu0 %v701
    %2077 = vmatprep.subr.mxu0 %v710
    %2078 = vmatpush1.msra.mxu0 %v709
    %2079 = vmatprep.subr.mxu0 %v718
    %2080 = vmatpush1.msra.mxu0 %v717
    %2081 = vmatprep.subr.mxu0 %v726
    %2082 = vmatpush1.msra.mxu0 %v725
    %2083 = vmatprep.subr.mxu0 %v734
    %2084 = vmatpush1.msra.mxu0 %v733
    %2085 = vmatprep.subr.mxu0 %v742
    %2086 = vmatpush1.msra.mxu0 %v741
    %2087 = vmatprep.subr.mxu0 %v750
    %2088 = vmatpush1.msra.mxu0 %v749
    %2089 = vmatprep.subr.mxu0 %v758
    %2090 = vmatpush1.msra.mxu0 %v757
    %2091 = vmatprep.subr.mxu0 %v766
    %2092 = vmatpush1.msra.mxu0 %v765
    %2093 = vmatprep.subr.mxu0 %v774
    %2094 = vmatpush1.msra.mxu0 %v773
    %2095 = vmatprep.subr.mxu0 %v782
    %2096 = vmatpush1.msra.mxu0 %v781
    %2097 = vmatprep.subr.mxu0 %v790
    %2098 = vmatpush1.msra.mxu0 %v789
    %2099 = vmatprep.subr.mxu0 %v798
    %2100 = vmatpush1.msra.mxu0 %v797
    %2101 = vmatprep.subr.mxu0 %v806
    %2102 = vmatpush1.msra.mxu0 %v805
    %2103 = vmatprep.subr.mxu0 %v814
    %2104 = vmatpush1.msra.mxu0 %v813
    %2105 = vmatprep.subr.mxu0 %v822
    %2106 = vmatpush1.msra.mxu0 %v821
    %2107 = vmatprep.subr.mxu0 %v830
    %2108 = vmatpush1.msra.mxu0 %v829
    %2109 = vmatprep.subr.mxu0 %v838
    %2110 = vmatpush1.msra.mxu0 %v837
    %2111 = vmatprep.subr.mxu0 %v846
    %2112 = vmatpush1.msra.mxu0 %v845
    %2113 = vmatprep.subr.mxu0 %v854
    %2114 = vmatpush1.msra.mxu0 %v853
    %2115 = vmatprep.subr.mxu0 %v862
    %2116 = vmatpush1.msra.mxu0 %v861
    %2117 = vmatprep.subr.mxu0 %v870
    %2118 = vmatpush1.msra.mxu0 %v869
    %2119 = vmatprep.subr.mxu0 %v878
    %2120 = vmatpush1.msra.mxu0 %v877
    %2121 = vmatprep.mubr.f32.mxu0 %v2054
    %2122 = vmatmul.mubr.f32.gmra.mrb[0].mxu0 %v2053
    %v2123 = vpop.f32.mrb[0].mxu0
    %v2124 = vadd.f32 0.0, %v2123
    %v2125 = vpop.f32.mrb[0].mxu0
    %v2126 = vadd.f32 0.0, %v2125
    %2127 = vdwg.mxu0
    %2128 = vmatprep.subr.mxu0 %v632
    %2129 = vmatpush1.msra.mxu0 %v631
    %2130 = vmatprep.subr.mxu0 %v640
    %2131 = vmatpush1.msra.mxu0 %v639
    %2132 = vmatprep.subr.mxu0 %v648
    %2133 = vmatpush1.msra.mxu0 %v647
    %2134 = vmatprep.subr.mxu0 %v656
    %2135 = vmatpush1.msra.mxu0 %v655
    %2136 = vmatprep.subr.mxu0 %v664
    %2137 = vmatpush1.msra.mxu0 %v663
    %2138 = vmatprep.subr.mxu0 %v672
    %2139 = vmatpush1.msra.mxu0 %v671
    %2140 = vmatprep.subr.mxu0 %v680
    %2141 = vmatpush1.msra.mxu0 %v679
    %2142 = vmatprep.subr.mxu0 %v688
    %2143 = vmatpush1.msra.mxu0 %v687
    %2144 = vmatprep.subr.mxu0 %v696
    %2145 = vmatpush1.msra.mxu0 %v695
    %2146 = vmatprep.subr.mxu0 %v704
    %2147 = vmatpush1.msra.mxu0 %v703
    %2148 = vmatprep.subr.mxu0 %v712
    %2149 = vmatpush1.msra.mxu0 %v711
    %2150 = vmatprep.subr.mxu0 %v720
    %2151 = vmatpush1.msra.mxu0 %v719
    %2152 = vmatprep.subr.mxu0 %v728
    %2153 = vmatpush1.msra.mxu0 %v727
    %2154 = vmatprep.subr.mxu0 %v736
    %2155 = vmatpush1.msra.mxu0 %v735
    %2156 = vmatprep.subr.mxu0 %v744
    %2157 = vmatpush1.msra.mxu0 %v743
    %2158 = vmatprep.subr.mxu0 %v752
    %2159 = vmatpush1.msra.mxu0 %v751
    %2160 = vmatprep.subr.mxu0 %v760
    %2161 = vmatpush1.msra.mxu0 %v759
    %2162 = vmatprep.subr.mxu0 %v768
    %2163 = vmatpush1.msra.mxu0 %v767
    %2164 = vmatprep.subr.mxu0 %v776
    %2165 = vmatpush1.msra.mxu0 %v775
    %2166 = vmatprep.subr.mxu0 %v784
    %2167 = vmatpush1.msra.mxu0 %v783
    %2168 = vmatprep.subr.mxu0 %v792
    %2169 = vmatpush1.msra.mxu0 %v791
    %2170 = vmatprep.subr.mxu0 %v800
    %2171 = vmatpush1.msra.mxu0 %v799
    %2172 = vmatprep.subr.mxu0 %v808
    %2173 = vmatpush1.msra.mxu0 %v807
    %2174 = vmatprep.subr.mxu0 %v816
    %2175 = vmatpush1.msra.mxu0 %v815
    %2176 = vmatprep.subr.mxu0 %v824
    %2177 = vmatpush1.msra.mxu0 %v823
    %2178 = vmatprep.subr.mxu0 %v832
    %2179 = vmatpush1.msra.mxu0 %v831
    %2180 = vmatprep.subr.mxu0 %v840
    %2181 = vmatpush1.msra.mxu0 %v839
    %2182 = vmatprep.subr.mxu0 %v848
    %2183 = vmatpush1.msra.mxu0 %v847
    %2184 = vmatprep.subr.mxu0 %v856
    %2185 = vmatpush1.msra.mxu0 %v855
    %2186 = vmatprep.subr.mxu0 %v864
    %2187 = vmatpush1.msra.mxu0 %v863
    %2188 = vmatprep.subr.mxu0 %v872
    %2189 = vmatpush1.msra.mxu0 %v871
    %2190 = vmatprep.subr.mxu0 %v880
    %2191 = vmatpush1.msra.mxu0 %v879
    %2192 = vmatprep.mubr.f32.mxu0 %v2054
    %2193 = vmatmul.mubr.f32.gmra.mrb[0].mxu0 %v2053
    %v2194 = vpop.f32.mrb[0].mxu0
    %v2195 = vadd.f32 0.0, %v2194
    %v2196 = vpop.f32.mrb[0].mxu0
    %v2197 = vadd.f32 0.0, %v2196
    %2198 = vdwg.mxu0
    %2199 = vmatprep.subr.mxu0 %v634
    %2200 = vmatpush1.msra.mxu0 %v633
    %2201 = vmatprep.subr.mxu0 %v642
    %2202 = vmatpush1.msra.mxu0 %v641
    %2203 = vmatprep.subr.mxu0 %v650
    %2204 = vmatpush1.msra.mxu0 %v649
    %2205 = vmatprep.subr.mxu0 %v658
    %2206 = vmatpush1.msra.mxu0 %v657
    %2207 = vmatprep.subr.mxu0 %v666
    %2208 = vmatpush1.msra.mxu0 %v665
    %2209 = vmatprep.subr.mxu0 %v674
    %2210 = vmatpush1.msra.mxu0 %v673
    %2211 = vmatprep.subr.mxu0 %v682
    %2212 = vmatpush1.msra.mxu0 %v681
    %2213 = vmatprep.subr.mxu0 %v690
    %2214 = vmatpush1.msra.mxu0 %v689
    %2215 = vmatprep.subr.mxu0 %v698
    %2216 = vmatpush1.msra.mxu0 %v697
    %2217 = vmatprep.subr.mxu0 %v706
    %2218 = vmatpush1.msra.mxu0 %v705
    %2219 = vmatprep.subr.mxu0 %v714
    %2220 = vmatpush1.msra.mxu0 %v713
    %2221 = vmatprep.subr.mxu0 %v722
    %2222 = vmatpush1.msra.mxu0 %v721
    %2223 = vmatprep.subr.mxu0 %v730
    %2224 = vmatpush1.msra.mxu0 %v729
    %2225 = vmatprep.subr.mxu0 %v738
    %2226 = vmatpush1.msra.mxu0 %v737
    %2227 = vmatprep.subr.mxu0 %v746
    %2228 = vmatpush1.msra.mxu0 %v745
    %2229 = vmatprep.subr.mxu0 %v754
    %2230 = vmatpush1.msra.mxu0 %v753
    %2231 = vmatprep.subr.mxu0 %v762
    %2232 = vmatpush1.msra.mxu0 %v761
    %2233 = vmatprep.subr.mxu0 %v770
    %2234 = vmatpush1.msra.mxu0 %v769
    %2235 = vmatprep.subr.mxu0 %v778
    %2236 = vmatpush1.msra.mxu0 %v777
    %2237 = vmatprep.subr.mxu0 %v786
    %2238 = vmatpush1.msra.mxu0 %v785
    %2239 = vmatprep.subr.mxu0 %v794
    %2240 = vmatpush1.msra.mxu0 %v793
    %2241 = vmatprep.subr.mxu0 %v802
    %2242 = vmatpush1.msra.mxu0 %v801
    %2243 = vmatprep.subr.mxu0 %v810
    %2244 = vmatpush1.msra.mxu0 %v809
    %2245 = vmatprep.subr.mxu0 %v818
    %2246 = vmatpush1.msra.mxu0 %v817
    %2247 = vmatprep.subr.mxu0 %v826
    %2248 = vmatpush1.msra.mxu0 %v825
    %2249 = vmatprep.subr.mxu0 %v834
    %2250 = vmatpush1.msra.mxu0 %v833
    %2251 = vmatprep.subr.mxu0 %v842
    %2252 = vmatpush1.msra.mxu0 %v841
    %2253 = vmatprep.subr.mxu0 %v850
    %2254 = vmatpush1.msra.mxu0 %v849
    %2255 = vmatprep.subr.mxu0 %v858
    %2256 = vmatpush1.msra.mxu0 %v857
    %2257 = vmatprep.subr.mxu0 %v866
    %2258 = vmatpush1.msra.mxu0 %v865
    %2259 = vmatprep.subr.mxu0 %v874
    %2260 = vmatpush1.msra.mxu0 %v873
    %2261 = vmatprep.subr.mxu0 %v882
    %2262 = vmatpush1.msra.mxu0 %v881
    %2263 = vmatprep.mubr.f32.mxu0 %v2054
    %2264 = vmatmul.mubr.f32.gmra.mrb[0].mxu0 %v2053
    %v2265 = vpop.f32.mrb[0].mxu0
    %v2266 = vadd.f32 0.0, %v2265
    %v2267 = vpop.f32.mrb[0].mxu0
    %v2268 = vadd.f32 0.0, %v2267
    %2269 = vdwg.mxu0
    %2270 = vmatprep.subr.mxu0 %v636
    %2271 = vmatpush1.msra.mxu0 %v635
    %2272 = vmatprep.subr.mxu0 %v644
    %2273 = vmatpush1.msra.mxu0 %v643
    %2274 = vmatprep.subr.mxu0 %v652
    %2275 = vmatpush1.msra.mxu0 %v651
    %2276 = vmatprep.subr.mxu0 %v660
    %2277 = vmatpush1.msra.mxu0 %v659
    %2278 = vmatprep.subr.mxu0 %v668
    %2279 = vmatpush1.msra.mxu0 %v667
    %2280 = vmatprep.subr.mxu0 %v676
    %2281 = vmatpush1.msra.mxu0 %v675
    %2282 = vmatprep.subr.mxu0 %v684
    %2283 = vmatpush1.msra.mxu0 %v683
    %2284 = vmatprep.subr.mxu0 %v692
    %2285 = vmatpush1.msra.mxu0 %v691
    %2286 = vmatprep.subr.mxu0 %v700
    %2287 = vmatpush1.msra.mxu0 %v699
    %2288 = vmatprep.subr.mxu0 %v708
    %2289 = vmatpush1.msra.mxu0 %v707
    %2290 = vmatprep.subr.mxu0 %v716
    %2291 = vmatpush1.msra.mxu0 %v715
    %2292 = vmatprep.subr.mxu0 %v724
    %2293 = vmatpush1.msra.mxu0 %v723
    %2294 = vmatprep.subr.mxu0 %v732
    %2295 = vmatpush1.msra.mxu0 %v731
    %2296 = vmatprep.subr.mxu0 %v740
    %2297 = vmatpush1.msra.mxu0 %v739
    %2298 = vmatprep.subr.mxu0 %v748
    %2299 = vmatpush1.msra.mxu0 %v747
    %2300 = vmatprep.subr.mxu0 %v756
    %2301 = vmatpush1.msra.mxu0 %v755
    %2302 = vmatprep.subr.mxu0 %v764
    %2303 = vmatpush1.msra.mxu0 %v763
    %2304 = vmatprep.subr.mxu0 %v772
    %2305 = vmatpush1.msra.mxu0 %v771
    %2306 = vmatprep.subr.mxu0 %v780
    %2307 = vmatpush1.msra.mxu0 %v779
    %2308 = vmatprep.subr.mxu0 %v788
    %2309 = vmatpush1.msra.mxu0 %v787
    %2310 = vmatprep.subr.mxu0 %v796
    %2311 = vmatpush1.msra.mxu0 %v795
    %2312 = vmatprep.subr.mxu0 %v804
    %2313 = vmatpush1.msra.mxu0 %v803
    %2314 = vmatprep.subr.mxu0 %v812
    %2315 = vmatpush1.msra.mxu0 %v811
    %2316 = vmatprep.subr.mxu0 %v820
    %2317 = vmatpush1.msra.mxu0 %v819
    %2318 = vmatprep.subr.mxu0 %v828
    %2319 = vmatpush1.msra.mxu0 %v827
    %2320 = vmatprep.subr.mxu0 %v836
    %2321 = vmatpush1.msra.mxu0 %v835
    %2322 = vmatprep.subr.mxu0 %v844
    %2323 = vmatpush1.msra.mxu0 %v843
    %2324 = vmatprep.subr.mxu0 %v852
    %2325 = vmatpush1.msra.mxu0 %v851
    %2326 = vmatprep.subr.mxu0 %v860
    %2327 = vmatpush1.msra.mxu0 %v859
    %2328 = vmatprep.subr.mxu0 %v868
    %2329 = vmatpush1.msra.mxu0 %v867
    %2330 = vmatprep.subr.mxu0 %v876
    %2331 = vmatpush1.msra.mxu0 %v875
    %2332 = vmatprep.subr.mxu0 %v884
    %2333 = vmatpush1.msra.mxu0 %v883
    %2334 = vmatprep.mubr.f32.mxu0 %v2054
    %2335 = vmatmul.mubr.f32.gmra.mrb[0].mxu0 %v2053
    %v2336 = vpop.f32.mrb[0].mxu0
    %v2337 = vadd.f32 0.0, %v2336
    %v2338 = vpop.f32.mrb[0].mxu0
    %v2339 = vadd.f32 0.0, %v2338
    %2340 = vdwg.mxu0
    %v2341 = vld [vmem:[#allocation2] sm:$0xc0]
    %v2342 = vld [vmem:[#allocation2 + $0x8] sm:$0xc0]
    %v2343 = vld [vmem:[#allocation2 + $0x10] sm:$0xc0]
    %v2344 = vld [vmem:[#allocation2 + $0x18] sm:$0xc0]
    %v2349 = vrot.slane %v2341, 6
    %v2350 = vrot.slane %v2342, 6
    %v2351 = vrot.slane %v2343, 6
    %v2352 = vrot.slane %v2344, 6
    %v2357 = vadd.f32 %v2124, %v2349
    %v2358 = vadd.f32 %v2126, %v2350
    %v2359 = vadd.f32 %v2195, %v2351
    %v2360 = vadd.f32 %v2197, %v2352
    %v2361 = vxor.u32 %v2357, 2147483648
    %v2362 = vmul.f32 %v2361, 1.442695
    %v2363 = vpow.pop %v2362
    %v2364 = vadd.f32 %v2363, 1.0
    %v2365 = vrcp.pop %v2364
    %v2366 = vmul.f32 1.0, %v2365
    %v2367 = vxor.u32 %v2358, 2147483648
    %v2368 = vmul.f32 %v2367, 1.442695
    %v2369 = vpow.pop %v2368
    %v2370 = vadd.f32 %v2369, 1.0
    %v2371 = vrcp.pop %v2370
    %v2372 = vmul.f32 1.0, %v2371
    %v2373 = vtanh.pop %v2359
    %v2374 = vxor.u32 %v2360, 2147483648
    %v2375 = vmul.f32 %v2374, 1.442695
    %v2376 = vpow.pop %v2375
    %v2377 = vadd.f32 %v2376, 1.0
    %v2378 = vrcp.pop %v2377
    %v2379 = vmul.f32 1.0, %v2378
    %v2380 = vld [vmem:[#allocation4] sm:$0x3]
    %v2381 = vmul.f32 %v2372, %v2380
    %v2382 = vmul.f32 %v2366, %v2373
    %v2383 = vadd.f32 %v2381, %v2382
    %v2384 = vtanh.pop %v2383
    %v2385 = vmul.f32 %v2379, %v2384
    %2386 = vst [vmem:[#allocation4] sm:$0x3] %v2383
    %2387 = vst [vmem:[#allocation3] sm:$0x3] %v2385
    %v2388 = vtanh.pop %v2385
    %2389 = vst [vmem:[#allocation5 + $0xc] sm:$0x3] %v2388
    %v2390 = vld [vmem:[#allocation2 + $0x20] sm:$0xc0]
    %v2391 = vld [vmem:[#allocation2 + $0x28] sm:$0xc0]
    %v2392 = vld [vmem:[#allocation2 + $0x30] sm:$0xc0]
    %v2393 = vld [vmem:[#allocation2 + $0x38] sm:$0xc0]
    %v2398 = vrot.slane %v2390, 6
    %v2399 = vrot.slane %v2391, 6
    %v2400 = vrot.slane %v2392, 6
    %v2401 = vrot.slane %v2393, 6
    %v2406 = vadd.f32 %v2266, %v2398
    %v2407 = vadd.f32 %v2268, %v2399
    %v2408 = vadd.f32 %v2337, %v2400
    %v2409 = vadd.f32 %v2339, %v2401
    %v2410 = vxor.u32 %v2406, 2147483648
    %v2411 = vmul.f32 %v2410, 1.442695
    %v2412 = vpow.pop %v2411
    %v2413 = vadd.f32 %v2412, 1.0
    %v2414 = vrcp.pop %v2413
    %v2415 = vmul.f32 1.0, %v2414
    %v2416 = vxor.u32 %v2407, 2147483648
    %v2417 = vmul.f32 %v2416, 1.442695
    %v2418 = vpow.pop %v2417
    %v2419 = vadd.f32 %v2418, 1.0
    %v2420 = vrcp.pop %v2419
    %v2421 = vmul.f32 1.0, %v2420
    %v2422 = vtanh.pop %v2408
    %v2423 = vxor.u32 %v2409, 2147483648
    %v2424 = vmul.f32 %v2423, 1.442695
    %v2425 = vpow.pop %v2424
    %v2426 = vadd.f32 %v2425, 1.0
    %v2427 = vrcp.pop %v2426
    %v2428 = vmul.f32 1.0, %v2427
    %v2429 = vld [vmem:[#allocation4 + $0x2] sm:$0x3]
    %v2430 = vmul.f32 %v2421, %v2429
    %v2431 = vmul.f32 %v2415, %v2422
    %v2432 = vadd.f32 %v2430, %v2431
    %v2433 = vtanh.pop %v2432
    %v2434 = vmul.f32 %v2428, %v2433
    %2435 = vst [vmem:[#allocation4 + $0x2] sm:$0x3] %v2432
    %2436 = vst [vmem:[#allocation3 + $0x2] sm:$0x3] %v2434
    %v2437 = vtanh.pop %v2434
    %2438 = vst [vmem:[#allocation5 + $0xe] sm:$0x3] %v2437
    %v2439 = vld [vmem:[#allocation3] sm:$0xf]
    %v2442 = vunpack.c.l.s4 1983009808
    %v2443 = vunpack.c.0.s8 %v2442
    %v2444 = vlaneseq
    %v2445 = vshrl.u32 %v2444, 7
    %v2446 = vsub.s32 %v2443, %v2445
    %v2447 = vrot.slane %v2439, %v2446
    %v2448 = vcombine.high %v2447, %v2447
    %2451 = vmatprep.subr.mxu0 %v630
    %2452 = vmatpush1.msra.mxu0 %v629
    %2453 = vmatprep.subr.mxu0 %v638
    %2454 = vmatpush1.msra.mxu0 %v637
    %2455 = vmatprep.subr.mxu0 %v646
    %2456 = vmatpush1.msra.mxu0 %v645
    %2457 = vmatprep.subr.mxu0 %v654
    %2458 = vmatpush1.msra.mxu0 %v653
    %2459 = vmatprep.subr.mxu0 %v662
    %2460 = vmatpush1.msra.mxu0 %v661
    %2461 = vmatprep.subr.mxu0 %v670
    %2462 = vmatpush1.msra.mxu0 %v669
    %2463 = vmatprep.subr.mxu0 %v678
    %2464 = vmatpush1.msra.mxu0 %v677
    %2465 = vmatprep.subr.mxu0 %v686
    %2466 = vmatpush1.msra.mxu0 %v685
    %2467 = vmatprep.subr.mxu0 %v694
    %2468 = vmatpush1.msra.mxu0 %v693
    %2469 = vmatprep.subr.mxu0 %v702
    %2470 = vmatpush1.msra.mxu0 %v701
    %2471 = vmatprep.subr.mxu0 %v710
    %2472 = vmatpush1.msra.mxu0 %v709
    %2473 = vmatprep.subr.mxu0 %v718
    %2474 = vmatpush1.msra.mxu0 %v717
    %2475 = vmatprep.subr.mxu0 %v726
    %2476 = vmatpush1.msra.mxu0 %v725
    %2477 = vmatprep.subr.mxu0 %v734
    %2478 = vmatpush1.msra.mxu0 %v733
    %2479 = vmatprep.subr.mxu0 %v742
    %2480 = vmatpush1.msra.mxu0 %v741
    %2481 = vmatprep.subr.mxu0 %v750
    %2482 = vmatpush1.msra.mxu0 %v749
    %2483 = vmatprep.subr.mxu0 %v758
    %2484 = vmatpush1.msra.mxu0 %v757
    %2485 = vmatprep.subr.mxu0 %v766
    %2486 = vmatpush1.msra.mxu0 %v765
    %2487 = vmatprep.subr.mxu0 %v774
    %2488 = vmatpush1.msra.mxu0 %v773
    %2489 = vmatprep.subr.mxu0 %v782
    %2490 = vmatpush1.msra.mxu0 %v781
    %2491 = vmatprep.subr.mxu0 %v790
    %2492 = vmatpush1.msra.mxu0 %v789
    %2493 = vmatprep.subr.mxu0 %v798
    %2494 = vmatpush1.msra.mxu0 %v797
    %2495 = vmatprep.subr.mxu0 %v806
    %2496 = vmatpush1.msra.mxu0 %v805
    %2497 = vmatprep.subr.mxu0 %v814
    %2498 = vmatpush1.msra.mxu0 %v813
    %2499 = vmatprep.subr.mxu0 %v822
    %2500 = vmatpush1.msra.mxu0 %v821
    %2501 = vmatprep.subr.mxu0 %v830
    %2502 = vmatpush1.msra.mxu0 %v829
    %2503 = vmatprep.subr.mxu0 %v838
    %2504 = vmatpush1.msra.mxu0 %v837
    %2505 = vmatprep.subr.mxu0 %v846
    %2506 = vmatpush1.msra.mxu0 %v845
    %2507 = vmatprep.subr.mxu0 %v854
    %2508 = vmatpush1.msra.mxu0 %v853
    %2509 = vmatprep.subr.mxu0 %v862
    %2510 = vmatpush1.msra.mxu0 %v861
    %2511 = vmatprep.subr.mxu0 %v870
    %2512 = vmatpush1.msra.mxu0 %v869
    %2513 = vmatprep.subr.mxu0 %v878
    %2514 = vmatpush1.msra.mxu0 %v877
    %2515 = vmatprep.mubr.f32.mxu0 %v2448
    %2516 = vmatmul.mubr.f32.gmra.mrb[0].mxu0 %v2447
    %v2517 = vpop.f32.mrb[0].mxu0
    %v2518 = vadd.f32 0.0, %v2517
    %v2519 = vpop.f32.mrb[0].mxu0
    %v2520 = vadd.f32 0.0, %v2519
    %2521 = vdwg.mxu0
    %2522 = vmatprep.subr.mxu0 %v632
    %2523 = vmatpush1.msra.mxu0 %v631
    %2524 = vmatprep.subr.mxu0 %v640
    %2525 = vmatpush1.msra.mxu0 %v639
    %2526 = vmatprep.subr.mxu0 %v648
    %2527 = vmatpush1.msra.mxu0 %v647
    %2528 = vmatprep.subr.mxu0 %v656
    %2529 = vmatpush1.msra.mxu0 %v655
    %2530 = vmatprep.subr.mxu0 %v664
    %2531 = vmatpush1.msra.mxu0 %v663
    %2532 = vmatprep.subr.mxu0 %v672
    %2533 = vmatpush1.msra.mxu0 %v671
    %2534 = vmatprep.subr.mxu0 %v680
    %2535 = vmatpush1.msra.mxu0 %v679
    %2536 = vmatprep.subr.mxu0 %v688
    %2537 = vmatpush1.msra.mxu0 %v687
    %2538 = vmatprep.subr.mxu0 %v696
    %2539 = vmatpush1.msra.mxu0 %v695
    %2540 = vmatprep.subr.mxu0 %v704
    %2541 = vmatpush1.msra.mxu0 %v703
    %2542 = vmatprep.subr.mxu0 %v712
    %2543 = vmatpush1.msra.mxu0 %v711
    %2544 = vmatprep.subr.mxu0 %v720
    %2545 = vmatpush1.msra.mxu0 %v719
    %2546 = vmatprep.subr.mxu0 %v728
    %2547 = vmatpush1.msra.mxu0 %v727
    %2548 = vmatprep.subr.mxu0 %v736
    %2549 = vmatpush1.msra.mxu0 %v735
    %2550 = vmatprep.subr.mxu0 %v744
    %2551 = vmatpush1.msra.mxu0 %v743
    %2552 = vmatprep.subr.mxu0 %v752
    %2553 = vmatpush1.msra.mxu0 %v751
    %2554 = vmatprep.subr.mxu0 %v760
    %2555 = vmatpush1.msra.mxu0 %v759
    %2556 = vmatprep.subr.mxu0 %v768
    %2557 = vmatpush1.msra.mxu0 %v767
    %2558 = vmatprep.subr.mxu0 %v776
    %2559 = vmatpush1.msra.mxu0 %v775
    %2560 = vmatprep.subr.mxu0 %v784
    %2561 = vmatpush1.msra.mxu0 %v783
    %2562 = vmatprep.subr.mxu0 %v792
    %2563 = vmatpush1.msra.mxu0 %v791
    %2564 = vmatprep.subr.mxu0 %v800
    %2565 = vmatpush1.msra.mxu0 %v799
    %2566 = vmatprep.subr.mxu0 %v808
    %2567 = vmatpush1.msra.mxu0 %v807
    %2568 = vmatprep.subr.mxu0 %v816
    %2569 = vmatpush1.msra.mxu0 %v815
    %2570 = vmatprep.subr.mxu0 %v824
    %2571 = vmatpush1.msra.mxu0 %v823
    %2572 = vmatprep.subr.mxu0 %v832
    %2573 = vmatpush1.msra.mxu0 %v831
    %2574 = vmatprep.subr.mxu0 %v840
    %2575 = vmatpush1.msra.mxu0 %v839
    %2576 = vmatprep.subr.mxu0 %v848
    %2577 = vmatpush1.msra.mxu0 %v847
    %2578 = vmatprep.subr.mxu0 %v856
    %2579 = vmatpush1.msra.mxu0 %v855
    %2580 = vmatprep.subr.mxu0 %v864
    %2581 = vmatpush1.msra.mxu0 %v863
    %2582 = vmatprep.subr.mxu0 %v872
    %2583 = vmatpush1.msra.mxu0 %v871
    %2584 = vmatprep.subr.mxu0 %v880
    %2585 = vmatpush1.msra.mxu0 %v879
    %2586 = vmatprep.mubr.f32.mxu0 %v2448
    %2587 = vmatmul.mubr.f32.gmra.mrb[0].mxu0 %v2447
    %v2588 = vpop.f32.mrb[0].mxu0
    %v2589 = vadd.f32 0.0, %v2588
    %v2590 = vpop.f32.mrb[0].mxu0
    %v2591 = vadd.f32 0.0, %v2590
    %2592 = vdwg.mxu0
    %2593 = vmatprep.subr.mxu0 %v634
    %2594 = vmatpush1.msra.mxu0 %v633
    %2595 = vmatprep.subr.mxu0 %v642
    %2596 = vmatpush1.msra.mxu0 %v641
    %2597 = vmatprep.subr.mxu0 %v650
    %2598 = vmatpush1.msra.mxu0 %v649
    %2599 = vmatprep.subr.mxu0 %v658
    %2600 = vmatpush1.msra.mxu0 %v657
    %2601 = vmatprep.subr.mxu0 %v666
    %2602 = vmatpush1.msra.mxu0 %v665
    %2603 = vmatprep.subr.mxu0 %v674
    %2604 = vmatpush1.msra.mxu0 %v673
    %2605 = vmatprep.subr.mxu0 %v682
    %2606 = vmatpush1.msra.mxu0 %v681
    %2607 = vmatprep.subr.mxu0 %v690
    %2608 = vmatpush1.msra.mxu0 %v689
    %2609 = vmatprep.subr.mxu0 %v698
    %2610 = vmatpush1.msra.mxu0 %v697
    %2611 = vmatprep.subr.mxu0 %v706
    %2612 = vmatpush1.msra.mxu0 %v705
    %2613 = vmatprep.subr.mxu0 %v714
    %2614 = vmatpush1.msra.mxu0 %v713
    %2615 = vmatprep.subr.mxu0 %v722
    %2616 = vmatpush1.msra.mxu0 %v721
    %2617 = vmatprep.subr.mxu0 %v730
    %2618 = vmatpush1.msra.mxu0 %v729
    %2619 = vmatprep.subr.mxu0 %v738
    %2620 = vmatpush1.msra.mxu0 %v737
    %2621 = vmatprep.subr.mxu0 %v746
    %2622 = vmatpush1.msra.mxu0 %v745
    %2623 = vmatprep.subr.mxu0 %v754
    %2624 = vmatpush1.msra.mxu0 %v753
    %2625 = vmatprep.subr.mxu0 %v762
    %2626 = vmatpush1.msra.mxu0 %v761
    %2627 = vmatprep.subr.mxu0 %v770
    %2628 = vmatpush1.msra.mxu0 %v769
    %2629 = vmatprep.subr.mxu0 %v778
    %2630 = vmatpush1.msra.mxu0 %v777
    %2631 = vmatprep.subr.mxu0 %v786
    %2632 = vmatpush1.msra.mxu0 %v785
    %2633 = vmatprep.subr.mxu0 %v794
    %2634 = vmatpush1.msra.mxu0 %v793
    %2635 = vmatprep.subr.mxu0 %v802
    %2636 = vmatpush1.msra.mxu0 %v801
    %2637 = vmatprep.subr.mxu0 %v810
    %2638 = vmatpush1.msra.mxu0 %v809
    %2639 = vmatprep.subr.mxu0 %v818
    %2640 = vmatpush1.msra.mxu0 %v817
    %2641 = vmatprep.subr.mxu0 %v826
    %2642 = vmatpush1.msra.mxu0 %v825
    %2643 = vmatprep.subr.mxu0 %v834
    %2644 = vmatpush1.msra.mxu0 %v833
    %2645 = vmatprep.subr.mxu0 %v842
    %2646 = vmatpush1.msra.mxu0 %v841
    %2647 = vmatprep.subr.mxu0 %v850
    %2648 = vmatpush1.msra.mxu0 %v849
    %2649 = vmatprep.subr.mxu0 %v858
    %2650 = vmatpush1.msra.mxu0 %v857
    %2651 = vmatprep.subr.mxu0 %v866
    %2652 = vmatpush1.msra.mxu0 %v865
    %2653 = vmatprep.subr.mxu0 %v874
    %2654 = vmatpush1.msra.mxu0 %v873
    %2655 = vmatprep.subr.mxu0 %v882
    %2656 = vmatpush1.msra.mxu0 %v881
    %2657 = vmatprep.mubr.f32.mxu0 %v2448
    %2658 = vmatmul.mubr.f32.gmra.mrb[0].mxu0 %v2447
    %v2659 = vpop.f32.mrb[0].mxu0
    %v2660 = vadd.f32 0.0, %v2659
    %v2661 = vpop.f32.mrb[0].mxu0
    %v2662 = vadd.f32 0.0, %v2661
    %2663 = vdwg.mxu0
    %2664 = vmatprep.subr.mxu0 %v636
    %2665 = vmatpush1.msra.mxu0 %v635
    %2666 = vmatprep.subr.mxu0 %v644
    %2667 = vmatpush1.msra.mxu0 %v643
    %2668 = vmatprep.subr.mxu0 %v652
    %2669 = vmatpush1.msra.mxu0 %v651
    %2670 = vmatprep.subr.mxu0 %v660
    %2671 = vmatpush1.msra.mxu0 %v659
    %2672 = vmatprep.subr.mxu0 %v668
    %2673 = vmatpush1.msra.mxu0 %v667
    %2674 = vmatprep.subr.mxu0 %v676
    %2675 = vmatpush1.msra.mxu0 %v675
    %2676 = vmatprep.subr.mxu0 %v684
    %2677 = vmatpush1.msra.mxu0 %v683
    %2678 = vmatprep.subr.mxu0 %v692
    %2679 = vmatpush1.msra.mxu0 %v691
    %2680 = vmatprep.subr.mxu0 %v700
    %2681 = vmatpush1.msra.mxu0 %v699
    %2682 = vmatprep.subr.mxu0 %v708
    %2683 = vmatpush1.msra.mxu0 %v707
    %2684 = vmatprep.subr.mxu0 %v716
    %2685 = vmatpush1.msra.mxu0 %v715
    %2686 = vmatprep.subr.mxu0 %v724
    %2687 = vmatpush1.msra.mxu0 %v723
    %2688 = vmatprep.subr.mxu0 %v732
    %2689 = vmatpush1.msra.mxu0 %v731
    %2690 = vmatprep.subr.mxu0 %v740
    %2691 = vmatpush1.msra.mxu0 %v739
    %2692 = vmatprep.subr.mxu0 %v748
    %2693 = vmatpush1.msra.mxu0 %v747
    %2694 = vmatprep.subr.mxu0 %v756
    %2695 = vmatpush1.msra.mxu0 %v755
    %2696 = vmatprep.subr.mxu0 %v764
    %2697 = vmatpush1.msra.mxu0 %v763
    %2698 = vmatprep.subr.mxu0 %v772
    %2699 = vmatpush1.msra.mxu0 %v771
    %2700 = vmatprep.subr.mxu0 %v780
    %2701 = vmatpush1.msra.mxu0 %v779
    %2702 = vmatprep.subr.mxu0 %v788
    %2703 = vmatpush1.msra.mxu0 %v787
    %2704 = vmatprep.subr.mxu0 %v796
    %2705 = vmatpush1.msra.mxu0 %v795
    %2706 = vmatprep.subr.mxu0 %v804
    %2707 = vmatpush1.msra.mxu0 %v803
    %2708 = vmatprep.subr.mxu0 %v812
    %2709 = vmatpush1.msra.mxu0 %v811
    %2710 = vmatprep.subr.mxu0 %v820
    %2711 = vmatpush1.msra.mxu0 %v819
    %2712 = vmatprep.subr.mxu0 %v828
    %2713 = vmatpush1.msra.mxu0 %v827
    %2714 = vmatprep.subr.mxu0 %v836
    %2715 = vmatpush1.msra.mxu0 %v835
    %2716 = vmatprep.subr.mxu0 %v844
    %2717 = vmatpush1.msra.mxu0 %v843
    %2718 = vmatprep.subr.mxu0 %v852
    %2719 = vmatpush1.msra.mxu0 %v851
    %2720 = vmatprep.subr.mxu0 %v860
    %2721 = vmatpush1.msra.mxu0 %v859
    %2722 = vmatprep.subr.mxu0 %v868
    %2723 = vmatpush1.msra.mxu0 %v867
    %2724 = vmatprep.subr.mxu0 %v876
    %2725 = vmatpush1.msra.mxu0 %v875
    %2726 = vmatprep.subr.mxu0 %v884
    %2727 = vmatpush1.msra.mxu0 %v883
    %2728 = vmatprep.mubr.f32.mxu0 %v2448
    %2729 = vmatmul.mubr.f32.gmra.mrb[0].mxu0 %v2447
    %v2730 = vpop.f32.mrb[0].mxu0
    %v2731 = vadd.f32 0.0, %v2730
    %v2732 = vpop.f32.mrb[0].mxu0
    %v2733 = vadd.f32 0.0, %v2732
    %2734 = vdwg.mxu0
    %v2735 = vld [vmem:[#allocation2 + $0x40] sm:$0x3]
    %v2736 = vld [vmem:[#allocation2 + $0x48] sm:$0x3]
    %v2737 = vld [vmem:[#allocation2 + $0x50] sm:$0x3]
    %v2738 = vld [vmem:[#allocation2 + $0x58] sm:$0x3]
    %v2739 = vadd.f32 %v2518, %v2735
    %v2740 = vadd.f32 %v2520, %v2736
    %v2741 = vadd.f32 %v2589, %v2737
    %v2742 = vadd.f32 %v2591, %v2738
    %v2743 = vxor.u32 %v2739, 2147483648
    %v2744 = vmul.f32 %v2743, 1.442695
    %v2745 = vpow.pop %v2744
    %v2746 = vadd.f32 %v2745, 1.0
    %v2747 = vrcp.pop %v2746
    %v2748 = vmul.f32 1.0, %v2747
    %v2749 = vxor.u32 %v2740, 2147483648
    %v2750 = vmul.f32 %v2749, 1.442695
    %v2751 = vpow.pop %v2750
    %v2752 = vadd.f32 %v2751, 1.0
    %v2753 = vrcp.pop %v2752
    %v2754 = vmul.f32 1.0, %v2753
    %v2755 = vtanh.pop %v2741
    %v2756 = vxor.u32 %v2742, 2147483648
    %v2757 = vmul.f32 %v2756, 1.442695
    %v2758 = vpow.pop %v2757
    %v2759 = vadd.f32 %v2758, 1.0
    %v2760 = vrcp.pop %v2759
    %v2761 = vmul.f32 1.0, %v2760
    %v2762 = vld [vmem:[#allocation4] sm:$0x3]
    %v2763 = vmul.f32 %v2754, %v2762
    %v2764 = vmul.f32 %v2748, %v2755
    %v2765 = vadd.f32 %v2763, %v2764
    %v2766 = vtanh.pop %v2765
    %v2767 = vmul.f32 %v2761, %v2766
    %2768 = vst [vmem:[#allocation4] sm:$0x3] %v2765
    %2769 = vst [vmem:[#allocation3] sm:$0x3] %v2767
    %v2770 = vtanh.pop %v2767
    %2771 = vst [vmem:[#allocation5 + $0x10] sm:$0x3] %v2770
    %v2772 = vld [vmem:[#allocation2 + $0x20] sm:$0x30]
    %v2773 = vld [vmem:[#allocation2 + $0x28] sm:$0x30]
    %v2774 = vld [vmem:[#allocation2 + $0x30] sm:$0x30]
    %v2775 = vld [vmem:[#allocation2 + $0x38] sm:$0x30]
    %v2780 = vrot.slane %v2772, 4
    %v2781 = vrot.slane %v2773, 4
    %v2782 = vrot.slane %v2774, 4
    %v2783 = vrot.slane %v2775, 4
    %v2788 = vadd.f32 %v2660, %v2780
    %v2789 = vadd.f32 %v2662, %v2781
    %v2790 = vadd.f32 %v2731, %v2782
    %v2791 = vadd.f32 %v2733, %v2783
    %v2792 = vxor.u32 %v2788, 2147483648
    %v2793 = vmul.f32 %v2792, 1.442695
    %v2794 = vpow.pop %v2793
    %v2795 = vadd.f32 %v2794, 1.0
    %v2796 = vrcp.pop %v2795
    %v2797 = vmul.f32 1.0, %v2796
    %v2798 = vxor.u32 %v2789, 2147483648
    %v2799 = vmul.f32 %v2798, 1.442695
    %v2800 = vpow.pop %v2799
    %v2801 = vadd.f32 %v2800, 1.0
    %v2802 = vrcp.pop %v2801
    %v2803 = vmul.f32 1.0, %v2802
    %v2804 = vtanh.pop %v2790
    %v2805 = vxor.u32 %v2791, 2147483648
    %v2806 = vmul.f32 %v2805, 1.442695
    %v2807 = vpow.pop %v2806
    %v2808 = vadd.f32 %v2807, 1.0
    %v2809 = vrcp.pop %v2808
    %v2810 = vmul.f32 1.0, %v2809
    %v2811 = vld [vmem:[#allocation4 + $0x2] sm:$0x3]
    %v2812 = vmul.f32 %v2803, %v2811
    %v2813 = vmul.f32 %v2797, %v2804
    %v2814 = vadd.f32 %v2812, %v2813
    %v2815 = vtanh.pop %v2814
    %v2816 = vmul.f32 %v2810, %v2815
    %2817 = vst [vmem:[#allocation4 + $0x2] sm:$0x3] %v2814
    %2818 = vst [vmem:[#allocation3 + $0x2] sm:$0x3] %v2816
    %v2819 = vtanh.pop %v2816
    %2820 = vst [vmem:[#allocation5 + $0xa] sm:$0x3] %v2819
    %v2821 = vld [vmem:[#allocation3] sm:$0xf]
    %v2824 = vunpack.c.l.s4 1983009808
    %v2825 = vunpack.c.0.s8 %v2824
    %v2826 = vlaneseq
    %v2827 = vshrl.u32 %v2826, 7
    %v2828 = vsub.s32 %v2825, %v2827
    %v2829 = vrot.slane %v2821, %v2828
    %v2830 = vcombine.high %v2829, %v2829
    %2833 = vmatprep.subr.mxu0 %v630
    %2834 = vmatpush1.msra.mxu0 %v629
    %2835 = vmatprep.subr.mxu0 %v638
    %2836 = vmatpush1.msra.mxu0 %v637
    %2837 = vmatprep.subr.mxu0 %v646
    %2838 = vmatpush1.msra.mxu0 %v645
    %2839 = vmatprep.subr.mxu0 %v654
    %2840 = vmatpush1.msra.mxu0 %v653
    %2841 = vmatprep.subr.mxu0 %v662
    %2842 = vmatpush1.msra.mxu0 %v661
    %2843 = vmatprep.subr.mxu0 %v670
    %2844 = vmatpush1.msra.mxu0 %v669
    %2845 = vmatprep.subr.mxu0 %v678
    %2846 = vmatpush1.msra.mxu0 %v677
    %2847 = vmatprep.subr.mxu0 %v686
    %2848 = vmatpush1.msra.mxu0 %v685
    %2849 = vmatprep.subr.mxu0 %v694
    %2850 = vmatpush1.msra.mxu0 %v693
    %2851 = vmatprep.subr.mxu0 %v702
    %2852 = vmatpush1.msra.mxu0 %v701
    %2853 = vmatprep.subr.mxu0 %v710
    %2854 = vmatpush1.msra.mxu0 %v709
    %2855 = vmatprep.subr.mxu0 %v718
    %2856 = vmatpush1.msra.mxu0 %v717
    %2857 = vmatprep.subr.mxu0 %v726
    %2858 = vmatpush1.msra.mxu0 %v725
    %2859 = vmatprep.subr.mxu0 %v734
    %2860 = vmatpush1.msra.mxu0 %v733
    %2861 = vmatprep.subr.mxu0 %v742
    %2862 = vmatpush1.msra.mxu0 %v741
    %2863 = vmatprep.subr.mxu0 %v750
    %2864 = vmatpush1.msra.mxu0 %v749
    %2865 = vmatprep.subr.mxu0 %v758
    %2866 = vmatpush1.msra.mxu0 %v757
    %2867 = vmatprep.subr.mxu0 %v766
    %2868 = vmatpush1.msra.mxu0 %v765
    %2869 = vmatprep.subr.mxu0 %v774
    %2870 = vmatpush1.msra.mxu0 %v773
    %2871 = vmatprep.subr.mxu0 %v782
    %2872 = vmatpush1.msra.mxu0 %v781
    %2873 = vmatprep.subr.mxu0 %v790
    %2874 = vmatpush1.msra.mxu0 %v789
    %2875 = vmatprep.subr.mxu0 %v798
    %2876 = vmatpush1.msra.mxu0 %v797
    %2877 = vmatprep.subr.mxu0 %v806
    %2878 = vmatpush1.msra.mxu0 %v805
    %2879 = vmatprep.subr.mxu0 %v814
    %2880 = vmatpush1.msra.mxu0 %v813
    %2881 = vmatprep.subr.mxu0 %v822
    %2882 = vmatpush1.msra.mxu0 %v821
    %2883 = vmatprep.subr.mxu0 %v830
    %2884 = vmatpush1.msra.mxu0 %v829
    %2885 = vmatprep.subr.mxu0 %v838
    %2886 = vmatpush1.msra.mxu0 %v837
    %2887 = vmatprep.subr.mxu0 %v846
    %2888 = vmatpush1.msra.mxu0 %v845
    %2889 = vmatprep.subr.mxu0 %v854
    %2890 = vmatpush1.msra.mxu0 %v853
    %2891 = vmatprep.subr.mxu0 %v862
    %2892 = vmatpush1.msra.mxu0 %v861
    %2893 = vmatprep.subr.mxu0 %v870
    %2894 = vmatpush1.msra.mxu0 %v869
    %2895 = vmatprep.subr.mxu0 %v878
    %2896 = vmatpush1.msra.mxu0 %v877
    %2897 = vmatprep.mubr.f32.mxu0 %v2830
    %2898 = vmatmul.mubr.f32.gmra.mrb[0].mxu0 %v2829
    %v2899 = vpop.f32.mrb[0].mxu0
    %v2900 = vadd.f32 0.0, %v2899
    %v2901 = vpop.f32.mrb[0].mxu0
    %v2902 = vadd.f32 0.0, %v2901
    %2903 = vdwg.mxu0
    %2904 = vmatprep.subr.mxu0 %v632
    %2905 = vmatpush1.msra.mxu0 %v631
    %2906 = vmatprep.subr.mxu0 %v640
    %2907 = vmatpush1.msra.mxu0 %v639
    %2908 = vmatprep.subr.mxu0 %v648
    %2909 = vmatpush1.msra.mxu0 %v647
    %2910 = vmatprep.subr.mxu0 %v656
    %2911 = vmatpush1.msra.mxu0 %v655
    %2912 = vmatprep.subr.mxu0 %v664
    %2913 = vmatpush1.msra.mxu0 %v663
    %2914 = vmatprep.subr.mxu0 %v672
    %2915 = vmatpush1.msra.mxu0 %v671
    %2916 = vmatprep.subr.mxu0 %v680
    %2917 = vmatpush1.msra.mxu0 %v679
    %2918 = vmatprep.subr.mxu0 %v688
    %2919 = vmatpush1.msra.mxu0 %v687
    %2920 = vmatprep.subr.mxu0 %v696
    %2921 = vmatpush1.msra.mxu0 %v695
    %2922 = vmatprep.subr.mxu0 %v704
    %2923 = vmatpush1.msra.mxu0 %v703
    %2924 = vmatprep.subr.mxu0 %v712
    %2925 = vmatpush1.msra.mxu0 %v711
    %2926 = vmatprep.subr.mxu0 %v720
    %2927 = vmatpush1.msra.mxu0 %v719
    %2928 = vmatprep.subr.mxu0 %v728
    %2929 = vmatpush1.msra.mxu0 %v727
    %2930 = vmatprep.subr.mxu0 %v736
    %2931 = vmatpush1.msra.mxu0 %v735
    %2932 = vmatprep.subr.mxu0 %v744
    %2933 = vmatpush1.msra.mxu0 %v743
    %2934 = vmatprep.subr.mxu0 %v752
    %2935 = vmatpush1.msra.mxu0 %v751
    %2936 = vmatprep.subr.mxu0 %v760
    %2937 = vmatpush1.msra.mxu0 %v759
    %2938 = vmatprep.subr.mxu0 %v768
    %2939 = vmatpush1.msra.mxu0 %v767
    %2940 = vmatprep.subr.mxu0 %v776
    %2941 = vmatpush1.msra.mxu0 %v775
    %2942 = vmatprep.subr.mxu0 %v784
    %2943 = vmatpush1.msra.mxu0 %v783
    %2944 = vmatprep.subr.mxu0 %v792
    %2945 = vmatpush1.msra.mxu0 %v791
    %2946 = vmatprep.subr.mxu0 %v800
    %2947 = vmatpush1.msra.mxu0 %v799
    %2948 = vmatprep.subr.mxu0 %v808
    %2949 = vmatpush1.msra.mxu0 %v807
    %2950 = vmatprep.subr.mxu0 %v816
    %2951 = vmatpush1.msra.mxu0 %v815
    %2952 = vmatprep.subr.mxu0 %v824
    %2953 = vmatpush1.msra.mxu0 %v823
    %2954 = vmatprep.subr.mxu0 %v832
    %2955 = vmatpush1.msra.mxu0 %v831
    %2956 = vmatprep.subr.mxu0 %v840
    %2957 = vmatpush1.msra.mxu0 %v839
    %2958 = vmatprep.subr.mxu0 %v848
    %2959 = vmatpush1.msra.mxu0 %v847
    %2960 = vmatprep.subr.mxu0 %v856
    %2961 = vmatpush1.msra.mxu0 %v855
    %2962 = vmatprep.subr.mxu0 %v864
    %2963 = vmatpush1.msra.mxu0 %v863
    %2964 = vmatprep.subr.mxu0 %v872
    %2965 = vmatpush1.msra.mxu0 %v871
    %2966 = vmatprep.subr.mxu0 %v880
    %2967 = vmatpush1.msra.mxu0 %v879
    %2968 = vmatprep.mubr.f32.mxu0 %v2830
    %2969 = vmatmul.mubr.f32.gmra.mrb[0].mxu0 %v2829
    %v2970 = vpop.f32.mrb[0].mxu0
    %v2971 = vadd.f32 0.0, %v2970
    %v2972 = vpop.f32.mrb[0].mxu0
    %v2973 = vadd.f32 0.0, %v2972
    %2974 = vdwg.mxu0
    %2975 = vmatprep.subr.mxu0 %v634
    %2976 = vmatpush1.msra.mxu0 %v633
    %2977 = vmatprep.subr.mxu0 %v642
    %2978 = vmatpush1.msra.mxu0 %v641
    %2979 = vmatprep.subr.mxu0 %v650
    %2980 = vmatpush1.msra.mxu0 %v649
    %2981 = vmatprep.subr.mxu0 %v658
    %2982 = vmatpush1.msra.mxu0 %v657
    %2983 = vmatprep.subr.mxu0 %v666
    %2984 = vmatpush1.msra.mxu0 %v665
    %2985 = vmatprep.subr.mxu0 %v674
    %2986 = vmatpush1.msra.mxu0 %v673
    %2987 = vmatprep.subr.mxu0 %v682
    %2988 = vmatpush1.msra.mxu0 %v681
    %2989 = vmatprep.subr.mxu0 %v690
    %2990 = vmatpush1.msra.mxu0 %v689
    %2991 = vmatprep.subr.mxu0 %v698
    %2992 = vmatpush1.msra.mxu0 %v697
    %2993 = vmatprep.subr.mxu0 %v706
    %2994 = vmatpush1.msra.mxu0 %v705
    %2995 = vmatprep.subr.mxu0 %v714
    %2996 = vmatpush1.msra.mxu0 %v713
    %2997 = vmatprep.subr.mxu0 %v722
    %2998 = vmatpush1.msra.mxu0 %v721
    %2999 = vmatprep.subr.mxu0 %v730
    %3000 = vmatpush1.msra.mxu0 %v729
    %3001 = vmatprep.subr.mxu0 %v738
    %3002 = vmatpush1.msra.mxu0 %v737
    %3003 = vmatprep.subr.mxu0 %v746
    %3004 = vmatpush1.msra.mxu0 %v745
    %3005 = vmatprep.subr.mxu0 %v754
    %3006 = vmatpush1.msra.mxu0 %v753
    %3007 = vmatprep.subr.mxu0 %v762
    %3008 = vmatpush1.msra.mxu0 %v761
    %3009 = vmatprep.subr.mxu0 %v770
    %3010 = vmatpush1.msra.mxu0 %v769
    %3011 = vmatprep.subr.mxu0 %v778
    %3012 = vmatpush1.msra.mxu0 %v777
    %3013 = vmatprep.subr.mxu0 %v786
    %3014 = vmatpush1.msra.mxu0 %v785
    %3015 = vmatprep.subr.mxu0 %v794
    %3016 = vmatpush1.msra.mxu0 %v793
    %3017 = vmatprep.subr.mxu0 %v802
    %3018 = vmatpush1.msra.mxu0 %v801
    %3019 = vmatprep.subr.mxu0 %v810
    %3020 = vmatpush1.msra.mxu0 %v809
    %3021 = vmatprep.subr.mxu0 %v818
    %3022 = vmatpush1.msra.mxu0 %v817
    %3023 = vmatprep.subr.mxu0 %v826
    %3024 = vmatpush1.msra.mxu0 %v825
    %3025 = vmatprep.subr.mxu0 %v834
    %3026 = vmatpush1.msra.mxu0 %v833
    %3027 = vmatprep.subr.mxu0 %v842
    %3028 = vmatpush1.msra.mxu0 %v841
    %3029 = vmatprep.subr.mxu0 %v850
    %3030 = vmatpush1.msra.mxu0 %v849
    %3031 = vmatprep.subr.mxu0 %v858
    %3032 = vmatpush1.msra.mxu0 %v857
    %3033 = vmatprep.subr.mxu0 %v866
    %3034 = vmatpush1.msra.mxu0 %v865
    %3035 = vmatprep.subr.mxu0 %v874
    %3036 = vmatpush1.msra.mxu0 %v873
    %3037 = vmatprep.subr.mxu0 %v882
    %3038 = vmatpush1.msra.mxu0 %v881
    %3039 = vmatprep.mubr.f32.mxu0 %v2830
    %3040 = vmatmul.mubr.f32.gmra.mrb[0].mxu0 %v2829
    %v3041 = vpop.f32.mrb[0].mxu0
    %v3042 = vadd.f32 0.0, %v3041
    %v3043 = vpop.f32.mrb[0].mxu0
    %v3044 = vadd.f32 0.0, %v3043
    %3045 = vdwg.mxu0
    %3046 = vmatprep.subr.mxu0 %v636
    %3047 = vmatpush1.msra.mxu0 %v635
    %3048 = vmatprep.subr.mxu0 %v644
    %3049 = vmatpush1.msra.mxu0 %v643
    %3050 = vmatprep.subr.mxu0 %v652
    %3051 = vmatpush1.msra.mxu0 %v651
    %3052 = vmatprep.subr.mxu0 %v660
    %3053 = vmatpush1.msra.mxu0 %v659
    %3054 = vmatprep.subr.mxu0 %v668
    %3055 = vmatpush1.msra.mxu0 %v667
    %3056 = vmatprep.subr.mxu0 %v676
    %3057 = vmatpush1.msra.mxu0 %v675
    %3058 = vmatprep.subr.mxu0 %v684
    %3059 = vmatpush1.msra.mxu0 %v683
    %3060 = vmatprep.subr.mxu0 %v692
    %3061 = vmatpush1.msra.mxu0 %v691
    %3062 = vmatprep.subr.mxu0 %v700
    %3063 = vmatpush1.msra.mxu0 %v699
    %3064 = vmatprep.subr.mxu0 %v708
    %3065 = vmatpush1.msra.mxu0 %v707
    %3066 = vmatprep.subr.mxu0 %v716
    %3067 = vmatpush1.msra.mxu0 %v715
    %3068 = vmatprep.subr.mxu0 %v724
    %3069 = vmatpush1.msra.mxu0 %v723
    %3070 = vmatprep.subr.mxu0 %v732
    %3071 = vmatpush1.msra.mxu0 %v731
    %3072 = vmatprep.subr.mxu0 %v740
    %3073 = vmatpush1.msra.mxu0 %v739
    %3074 = vmatprep.subr.mxu0 %v748
    %3075 = vmatpush1.msra.mxu0 %v747
    %3076 = vmatprep.subr.mxu0 %v756
    %3077 = vmatpush1.msra.mxu0 %v755
    %3078 = vmatprep.subr.mxu0 %v764
    %3079 = vmatpush1.msra.mxu0 %v763
    %3080 = vmatprep.subr.mxu0 %v772
    %3081 = vmatpush1.msra.mxu0 %v771
    %3082 = vmatprep.subr.mxu0 %v780
    %3083 = vmatpush1.msra.mxu0 %v779
    %3084 = vmatprep.subr.mxu0 %v788
    %3085 = vmatpush1.msra.mxu0 %v787
    %3086 = vmatprep.subr.mxu0 %v796
    %3087 = vmatpush1.msra.mxu0 %v795
    %3088 = vmatprep.subr.mxu0 %v804
    %3089 = vmatpush1.msra.mxu0 %v803
    %3090 = vmatprep.subr.mxu0 %v812
    %3091 = vmatpush1.msra.mxu0 %v811
    %3092 = vmatprep.subr.mxu0 %v820
    %3093 = vmatpush1.msra.mxu0 %v819
    %3094 = vmatprep.subr.mxu0 %v828
    %3095 = vmatpush1.msra.mxu0 %v827
    %3096 = vmatprep.subr.mxu0 %v836
    %3097 = vmatpush1.msra.mxu0 %v835
    %3098 = vmatprep.subr.mxu0 %v844
    %3099 = vmatpush1.msra.mxu0 %v843
    %3100 = vmatprep.subr.mxu0 %v852
    %3101 = vmatpush1.msra.mxu0 %v851
    %3102 = vmatprep.subr.mxu0 %v860
    %3103 = vmatpush1.msra.mxu0 %v859
    %3104 = vmatprep.subr.mxu0 %v868
    %3105 = vmatpush1.msra.mxu0 %v867
    %3106 = vmatprep.subr.mxu0 %v876
    %3107 = vmatpush1.msra.mxu0 %v875
    %3108 = vmatprep.subr.mxu0 %v884
    %3109 = vmatpush1.msra.mxu0 %v883
    %3110 = vmatprep.mubr.f32.mxu0 %v2830
    %3111 = vmatmul.mubr.f32.gmra.mrb[0].mxu0 %v2829
    %v3112 = vpop.f32.mrb[0].mxu0
    %v3113 = vadd.f32 0.0, %v3112
    %v3114 = vpop.f32.mrb[0].mxu0
    %v3115 = vadd.f32 0.0, %v3114
    %3116 = vdwg.mxu0
    %v3117 = vld [vmem:[#allocation2 + $0x40] sm:$0xc]
    %v3118 = vld [vmem:[#allocation2 + $0x48] sm:$0xc]
    %v3119 = vld [vmem:[#allocation2 + $0x50] sm:$0xc]
    %v3120 = vld [vmem:[#allocation2 + $0x58] sm:$0xc]
    %v3125 = vrot.slane %v3117, 2
    %v3126 = vrot.slane %v3118, 2
    %v3127 = vrot.slane %v3119, 2
    %v3128 = vrot.slane %v3120, 2
    %v3133 = vadd.f32 %v2900, %v3125
    %v3134 = vadd.f32 %v2902, %v3126
    %v3135 = vadd.f32 %v2971, %v3127
    %v3136 = vadd.f32 %v2973, %v3128
    %v3137 = vxor.u32 %v3133, 2147483648
    %v3138 = vmul.f32 %v3137, 1.442695
    %v3139 = vpow.pop %v3138
    %v3140 = vadd.f32 %v3139, 1.0
    %v3141 = vrcp.pop %v3140
    %v3142 = vmul.f32 1.0, %v3141
    %v3143 = vxor.u32 %v3134, 2147483648
    %v3144 = vmul.f32 %v3143, 1.442695
    %v3145 = vpow.pop %v3144
    %v3146 = vadd.f32 %v3145, 1.0
    %v3147 = vrcp.pop %v3146
    %v3148 = vmul.f32 1.0, %v3147
    %v3149 = vtanh.pop %v3135
    %v3150 = vxor.u32 %v3136, 2147483648
    %v3151 = vmul.f32 %v3150, 1.442695
    %v3152 = vpow.pop %v3151
    %v3153 = vadd.f32 %v3152, 1.0
    %v3154 = vrcp.pop %v3153
    %v3155 = vmul.f32 1.0, %v3154
    %v3156 = vld [vmem:[#allocation4] sm:$0x3]
    %v3157 = vmul.f32 %v3148, %v3156
    %v3158 = vmul.f32 %v3142, %v3149
    %v3159 = vadd.f32 %v3157, %v3158
    %v3160 = vtanh.pop %v3159
    %v3161 = vmul.f32 %v3155, %v3160
    %3162 = vst [vmem:[#allocation4] sm:$0x3] %v3159
    %3163 = vst [vmem:[#allocation3] sm:$0x3] %v3161
    %v3164 = vtanh.pop %v3161
    %3165 = vst [vmem:[#allocation5 + $0x14] sm:$0x3] %v3164
    %v3166 = vld [vmem:[#allocation2 + $0x20] sm:$0xc]
    %v3167 = vld [vmem:[#allocation2 + $0x28] sm:$0xc]
    %v3168 = vld [vmem:[#allocation2 + $0x30] sm:$0xc]
    %v3169 = vld [vmem:[#allocation2 + $0x38] sm:$0xc]
    %v3174 = vrot.slane %v3166, 2
    %v3175 = vrot.slane %v3167, 2
    %v3176 = vrot.slane %v3168, 2
    %v3177 = vrot.slane %v3169, 2
    %v3182 = vadd.f32 %v3042, %v3174
    %v3183 = vadd.f32 %v3044, %v3175
    %v3184 = vadd.f32 %v3113, %v3176
    %v3185 = vadd.f32 %v3115, %v3177
    %v3186 = vxor.u32 %v3182, 2147483648
    %v3187 = vmul.f32 %v3186, 1.442695
    %v3188 = vpow.pop %v3187
    %v3189 = vadd.f32 %v3188, 1.0
    %v3190 = vrcp.pop %v3189
    %v3191 = vmul.f32 1.0, %v3190
    %v3192 = vxor.u32 %v3183, 2147483648
    %v3193 = vmul.f32 %v3192, 1.442695
    %v3194 = vpow.pop %v3193
    %v3195 = vadd.f32 %v3194, 1.0
    %v3196 = vrcp.pop %v3195
    %v3197 = vmul.f32 1.0, %v3196
    %v3198 = vtanh.pop %v3184
    %v3199 = vxor.u32 %v3185, 2147483648
    %v3200 = vmul.f32 %v3199, 1.442695
    %v3201 = vpow.pop %v3200
    %v3202 = vadd.f32 %v3201, 1.0
    %v3203 = vrcp.pop %v3202
    %v3204 = vmul.f32 1.0, %v3203
    %v3205 = vld [vmem:[#allocation4 + $0x2] sm:$0x3]
    %v3206 = vmul.f32 %v3197, %v3205
    %v3207 = vmul.f32 %v3191, %v3198
    %v3208 = vadd.f32 %v3206, %v3207
    %v3209 = vtanh.pop %v3208
    %v3210 = vmul.f32 %v3204, %v3209
    %3211 = vst [vmem:[#allocation4 + $0x2] sm:$0x3] %v3208
    %3212 = vst [vmem:[#allocation3 + $0x2] sm:$0x3] %v3210
    %v3213 = vtanh.pop %v3210
    %3214 = vst [vmem:[#allocation5 + $0x6] sm:$0x3] %v3213
    %v3215 = vld [vmem:[#allocation3] sm:$0xf]
    %v3218 = vunpack.c.l.s4 1983009808
    %v3219 = vunpack.c.0.s8 %v3218
    %v3220 = vlaneseq
    %v3221 = vshrl.u32 %v3220, 7
    %v3222 = vsub.s32 %v3219, %v3221
    %v3223 = vrot.slane %v3215, %v3222
    %v3224 = vcombine.high %v3223, %v3223
    %3227 = vmatprep.subr.mxu0 %v630
    %3228 = vmatpush1.msra.mxu0 %v629
    %3229 = vmatprep.subr.mxu0 %v638
    %3230 = vmatpush1.msra.mxu0 %v637
    %3231 = vmatprep.subr.mxu0 %v646
    %3232 = vmatpush1.msra.mxu0 %v645
    %3233 = vmatprep.subr.mxu0 %v654
    %3234 = vmatpush1.msra.mxu0 %v653
    %3235 = vmatprep.subr.mxu0 %v662
    %3236 = vmatpush1.msra.mxu0 %v661
    %3237 = vmatprep.subr.mxu0 %v670
    %3238 = vmatpush1.msra.mxu0 %v669
    %3239 = vmatprep.subr.mxu0 %v678
    %3240 = vmatpush1.msra.mxu0 %v677
    %3241 = vmatprep.subr.mxu0 %v686
    %3242 = vmatpush1.msra.mxu0 %v685
    %3243 = vmatprep.subr.mxu0 %v694
    %3244 = vmatpush1.msra.mxu0 %v693
    %3245 = vmatprep.subr.mxu0 %v702
    %3246 = vmatpush1.msra.mxu0 %v701
    %3247 = vmatprep.subr.mxu0 %v710
    %3248 = vmatpush1.msra.mxu0 %v709
    %3249 = vmatprep.subr.mxu0 %v718
    %3250 = vmatpush1.msra.mxu0 %v717
    %3251 = vmatprep.subr.mxu0 %v726
    %3252 = vmatpush1.msra.mxu0 %v725
    %3253 = vmatprep.subr.mxu0 %v734
    %3254 = vmatpush1.msra.mxu0 %v733
    %3255 = vmatprep.subr.mxu0 %v742
    %3256 = vmatpush1.msra.mxu0 %v741
    %3257 = vmatprep.subr.mxu0 %v750
    %3258 = vmatpush1.msra.mxu0 %v749
    %3259 = vmatprep.subr.mxu0 %v758
    %3260 = vmatpush1.msra.mxu0 %v757
    %3261 = vmatprep.subr.mxu0 %v766
    %3262 = vmatpush1.msra.mxu0 %v765
    %3263 = vmatprep.subr.mxu0 %v774
    %3264 = vmatpush1.msra.mxu0 %v773
    %3265 = vmatprep.subr.mxu0 %v782
    %3266 = vmatpush1.msra.mxu0 %v781
    %3267 = vmatprep.subr.mxu0 %v790
    %3268 = vmatpush1.msra.mxu0 %v789
    %3269 = vmatprep.subr.mxu0 %v798
    %3270 = vmatpush1.msra.mxu0 %v797
    %3271 = vmatprep.subr.mxu0 %v806
    %3272 = vmatpush1.msra.mxu0 %v805
    %3273 = vmatprep.subr.mxu0 %v814
    %3274 = vmatpush1.msra.mxu0 %v813
    %3275 = vmatprep.subr.mxu0 %v822
    %3276 = vmatpush1.msra.mxu0 %v821
    %3277 = vmatprep.subr.mxu0 %v830
    %3278 = vmatpush1.msra.mxu0 %v829
    %3279 = vmatprep.subr.mxu0 %v838
    %3280 = vmatpush1.msra.mxu0 %v837
    %3281 = vmatprep.subr.mxu0 %v846
    %3282 = vmatpush1.msra.mxu0 %v845
    %3283 = vmatprep.subr.mxu0 %v854
    %3284 = vmatpush1.msra.mxu0 %v853
    %3285 = vmatprep.subr.mxu0 %v862
    %3286 = vmatpush1.msra.mxu0 %v861
    %3287 = vmatprep.subr.mxu0 %v870
    %3288 = vmatpush1.msra.mxu0 %v869
    %3289 = vmatprep.subr.mxu0 %v878
    %3290 = vmatpush1.msra.mxu0 %v877
    %3291 = vmatprep.mubr.f32.mxu0 %v3224
    %3292 = vmatmul.mubr.f32.gmra.mrb[0].mxu0 %v3223
    %v3293 = vpop.f32.mrb[0].mxu0
    %v3294 = vadd.f32 0.0, %v3293
    %v3295 = vpop.f32.mrb[0].mxu0
    %v3296 = vadd.f32 0.0, %v3295
    %3297 = vdwg.mxu0
    %3298 = vmatprep.subr.mxu0 %v632
    %3299 = vmatpush1.msra.mxu0 %v631
    %3300 = vmatprep.subr.mxu0 %v640
    %3301 = vmatpush1.msra.mxu0 %v639
    %3302 = vmatprep.subr.mxu0 %v648
    %3303 = vmatpush1.msra.mxu0 %v647
    %3304 = vmatprep.subr.mxu0 %v656
    %3305 = vmatpush1.msra.mxu0 %v655
    %3306 = vmatprep.subr.mxu0 %v664
    %3307 = vmatpush1.msra.mxu0 %v663
    %3308 = vmatprep.subr.mxu0 %v672
    %3309 = vmatpush1.msra.mxu0 %v671
    %3310 = vmatprep.subr.mxu0 %v680
    %3311 = vmatpush1.msra.mxu0 %v679
    %3312 = vmatprep.subr.mxu0 %v688
    %3313 = vmatpush1.msra.mxu0 %v687
    %3314 = vmatprep.subr.mxu0 %v696
    %3315 = vmatpush1.msra.mxu0 %v695
    %3316 = vmatprep.subr.mxu0 %v704
    %3317 = vmatpush1.msra.mxu0 %v703
    %3318 = vmatprep.subr.mxu0 %v712
    %3319 = vmatpush1.msra.mxu0 %v711
    %3320 = vmatprep.subr.mxu0 %v720
    %3321 = vmatpush1.msra.mxu0 %v719
    %3322 = vmatprep.subr.mxu0 %v728
    %3323 = vmatpush1.msra.mxu0 %v727
    %3324 = vmatprep.subr.mxu0 %v736
    %3325 = vmatpush1.msra.mxu0 %v735
    %3326 = vmatprep.subr.mxu0 %v744
    %3327 = vmatpush1.msra.mxu0 %v743
    %3328 = vmatprep.subr.mxu0 %v752
    %3329 = vmatpush1.msra.mxu0 %v751
    %3330 = vmatprep.subr.mxu0 %v760
    %3331 = vmatpush1.msra.mxu0 %v759
    %3332 = vmatprep.subr.mxu0 %v768
    %3333 = vmatpush1.msra.mxu0 %v767
    %3334 = vmatprep.subr.mxu0 %v776
    %3335 = vmatpush1.msra.mxu0 %v775
    %3336 = vmatprep.subr.mxu0 %v784
    %3337 = vmatpush1.msra.mxu0 %v783
    %3338 = vmatprep.subr.mxu0 %v792
    %3339 = vmatpush1.msra.mxu0 %v791
    %3340 = vmatprep.subr.mxu0 %v800
    %3341 = vmatpush1.msra.mxu0 %v799
    %3342 = vmatprep.subr.mxu0 %v808
    %3343 = vmatpush1.msra.mxu0 %v807
    %3344 = vmatprep.subr.mxu0 %v816
    %3345 = vmatpush1.msra.mxu0 %v815
    %3346 = vmatprep.subr.mxu0 %v824
    %3347 = vmatpush1.msra.mxu0 %v823
    %3348 = vmatprep.subr.mxu0 %v832
    %3349 = vmatpush1.msra.mxu0 %v831
    %3350 = vmatprep.subr.mxu0 %v840
    %3351 = vmatpush1.msra.mxu0 %v839
    %3352 = vmatprep.subr.mxu0 %v848
    %3353 = vmatpush1.msra.mxu0 %v847
    %3354 = vmatprep.subr.mxu0 %v856
    %3355 = vmatpush1.msra.mxu0 %v855
    %3356 = vmatprep.subr.mxu0 %v864
    %3357 = vmatpush1.msra.mxu0 %v863
    %3358 = vmatprep.subr.mxu0 %v872
    %3359 = vmatpush1.msra.mxu0 %v871
    %3360 = vmatprep.subr.mxu0 %v880
    %3361 = vmatpush1.msra.mxu0 %v879
    %3362 = vmatprep.mubr.f32.mxu0 %v3224
    %3363 = vmatmul.mubr.f32.gmra.mrb[0].mxu0 %v3223
    %v3364 = vpop.f32.mrb[0].mxu0
    %v3365 = vadd.f32 0.0, %v3364
    %v3366 = vpop.f32.mrb[0].mxu0
    %v3367 = vadd.f32 0.0, %v3366
    %3368 = vdwg.mxu0
    %3369 = vmatprep.subr.mxu0 %v634
    %3370 = vmatpush1.msra.mxu0 %v633
    %3371 = vmatprep.subr.mxu0 %v642
    %3372 = vmatpush1.msra.mxu0 %v641
    %3373 = vmatprep.subr.mxu0 %v650
    %3374 = vmatpush1.msra.mxu0 %v649
    %3375 = vmatprep.subr.mxu0 %v658
    %3376 = vmatpush1.msra.mxu0 %v657
    %3377 = vmatprep.subr.mxu0 %v666
    %3378 = vmatpush1.msra.mxu0 %v665
    %3379 = vmatprep.subr.mxu0 %v674
    %3380 = vmatpush1.msra.mxu0 %v673
    %3381 = vmatprep.subr.mxu0 %v682
    %3382 = vmatpush1.msra.mxu0 %v681
    %3383 = vmatprep.subr.mxu0 %v690
    %3384 = vmatpush1.msra.mxu0 %v689
    %3385 = vmatprep.subr.mxu0 %v698
    %3386 = vmatpush1.msra.mxu0 %v697
    %3387 = vmatprep.subr.mxu0 %v706
    %3388 = vmatpush1.msra.mxu0 %v705
    %3389 = vmatprep.subr.mxu0 %v714
    %3390 = vmatpush1.msra.mxu0 %v713
    %3391 = vmatprep.subr.mxu0 %v722
    %3392 = vmatpush1.msra.mxu0 %v721
    %3393 = vmatprep.subr.mxu0 %v730
    %3394 = vmatpush1.msra.mxu0 %v729
    %3395 = vmatprep.subr.mxu0 %v738
    %3396 = vmatpush1.msra.mxu0 %v737
    %3397 = vmatprep.subr.mxu0 %v746
    %3398 = vmatpush1.msra.mxu0 %v745
    %3399 = vmatprep.subr.mxu0 %v754
    %3400 = vmatpush1.msra.mxu0 %v753
    %3401 = vmatprep.subr.mxu0 %v762
    %3402 = vmatpush1.msra.mxu0 %v761
    %3403 = vmatprep.subr.mxu0 %v770
    %3404 = vmatpush1.msra.mxu0 %v769
    %3405 = vmatprep.subr.mxu0 %v778
    %3406 = vmatpush1.msra.mxu0 %v777
    %3407 = vmatprep.subr.mxu0 %v786
    %3408 = vmatpush1.msra.mxu0 %v785
    %3409 = vmatprep.subr.mxu0 %v794
    %3410 = vmatpush1.msra.mxu0 %v793
    %3411 = vmatprep.subr.mxu0 %v802
    %3412 = vmatpush1.msra.mxu0 %v801
    %3413 = vmatprep.subr.mxu0 %v810
    %3414 = vmatpush1.msra.mxu0 %v809
    %3415 = vmatprep.subr.mxu0 %v818
    %3416 = vmatpush1.msra.mxu0 %v817
    %3417 = vmatprep.subr.mxu0 %v826
    %3418 = vmatpush1.msra.mxu0 %v825
    %3419 = vmatprep.subr.mxu0 %v834
    %3420 = vmatpush1.msra.mxu0 %v833
    %3421 = vmatprep.subr.mxu0 %v842
    %3422 = vmatpush1.msra.mxu0 %v841
    %3423 = vmatprep.subr.mxu0 %v850
    %3424 = vmatpush1.msra.mxu0 %v849
    %3425 = vmatprep.subr.mxu0 %v858
    %3426 = vmatpush1.msra.mxu0 %v857
    %3427 = vmatprep.subr.mxu0 %v866
    %3428 = vmatpush1.msra.mxu0 %v865
    %3429 = vmatprep.subr.mxu0 %v874
    %3430 = vmatpush1.msra.mxu0 %v873
    %3431 = vmatprep.subr.mxu0 %v882
    %3432 = vmatpush1.msra.mxu0 %v881
    %3433 = vmatprep.mubr.f32.mxu0 %v3224
    %3434 = vmatmul.mubr.f32.gmra.mrb[0].mxu0 %v3223
    %v3435 = vpop.f32.mrb[0].mxu0
    %v3436 = vadd.f32 0.0, %v3435
    %v3437 = vpop.f32.mrb[0].mxu0
    %v3438 = vadd.f32 0.0, %v3437
    %3439 = vdwg.mxu0
    %3440 = vmatprep.subr.mxu0 %v636
    %3441 = vmatpush1.msra.mxu0 %v635
    %3442 = vmatprep.subr.mxu0 %v644
    %3443 = vmatpush1.msra.mxu0 %v643
    %3444 = vmatprep.subr.mxu0 %v652
    %3445 = vmatpush1.msra.mxu0 %v651
    %3446 = vmatprep.subr.mxu0 %v660
    %3447 = vmatpush1.msra.mxu0 %v659
    %3448 = vmatprep.subr.mxu0 %v668
    %3449 = vmatpush1.msra.mxu0 %v667
    %3450 = vmatprep.subr.mxu0 %v676
    %3451 = vmatpush1.msra.mxu0 %v675
    %3452 = vmatprep.subr.mxu0 %v684
    %3453 = vmatpush1.msra.mxu0 %v683
    %3454 = vmatprep.subr.mxu0 %v692
    %3455 = vmatpush1.msra.mxu0 %v691
    %3456 = vmatprep.subr.mxu0 %v700
    %3457 = vmatpush1.msra.mxu0 %v699
    %3458 = vmatprep.subr.mxu0 %v708
    %3459 = vmatpush1.msra.mxu0 %v707
    %3460 = vmatprep.subr.mxu0 %v716
    %3461 = vmatpush1.msra.mxu0 %v715
    %3462 = vmatprep.subr.mxu0 %v724
    %3463 = vmatpush1.msra.mxu0 %v723
    %3464 = vmatprep.subr.mxu0 %v732
    %3465 = vmatpush1.msra.mxu0 %v731
    %3466 = vmatprep.subr.mxu0 %v740
    %3467 = vmatpush1.msra.mxu0 %v739
    %3468 = vmatprep.subr.mxu0 %v748
    %3469 = vmatpush1.msra.mxu0 %v747
    %3470 = vmatprep.subr.mxu0 %v756
    %3471 = vmatpush1.msra.mxu0 %v755
    %3472 = vmatprep.subr.mxu0 %v764
    %3473 = vmatpush1.msra.mxu0 %v763
    %3474 = vmatprep.subr.mxu0 %v772
    %3475 = vmatpush1.msra.mxu0 %v771
    %3476 = vmatprep.subr.mxu0 %v780
    %3477 = vmatpush1.msra.mxu0 %v779
    %3478 = vmatprep.subr.mxu0 %v788
    %3479 = vmatpush1.msra.mxu0 %v787
    %3480 = vmatprep.subr.mxu0 %v796
    %3481 = vmatpush1.msra.mxu0 %v795
    %3482 = vmatprep.subr.mxu0 %v804
    %3483 = vmatpush1.msra.mxu0 %v803
    %3484 = vmatprep.subr.mxu0 %v812
    %3485 = vmatpush1.msra.mxu0 %v811
    %3486 = vmatprep.subr.mxu0 %v820
    %3487 = vmatpush1.msra.mxu0 %v819
    %3488 = vmatprep.subr.mxu0 %v828
    %3489 = vmatpush1.msra.mxu0 %v827
    %3490 = vmatprep.subr.mxu0 %v836
    %3491 = vmatpush1.msra.mxu0 %v835
    %3492 = vmatprep.subr.mxu0 %v844
    %3493 = vmatpush1.msra.mxu0 %v843
    %3494 = vmatprep.subr.mxu0 %v852
    %3495 = vmatpush1.msra.mxu0 %v851
    %3496 = vmatprep.subr.mxu0 %v860
    %3497 = vmatpush1.msra.mxu0 %v859
    %3498 = vmatprep.subr.mxu0 %v868
    %3499 = vmatpush1.msra.mxu0 %v867
    %3500 = vmatprep.subr.mxu0 %v876
    %3501 = vmatpush1.msra.mxu0 %v875
    %3502 = vmatprep.subr.mxu0 %v884
    %3503 = vmatpush1.msra.mxu0 %v883
    %3504 = vmatprep.mubr.f32.mxu0 %v3224
    %3505 = vmatmul.mubr.f32.gmra.mrb[0].mxu0 %v3223
    %v3506 = vpop.f32.mrb[0].mxu0
    %v3507 = vadd.f32 0.0, %v3506
    %v3508 = vpop.f32.mrb[0].mxu0
    %v3509 = vadd.f32 0.0, %v3508
    %3510 = vdwg.mxu0
    %v3511 = vld [vmem:[#allocation2 + $0x40] sm:$0x30]
    %v3512 = vld [vmem:[#allocation2 + $0x48] sm:$0x30]
    %v3513 = vld [vmem:[#allocation2 + $0x50] sm:$0x30]
    %v3514 = vld [vmem:[#allocation2 + $0x58] sm:$0x30]
    %v3519 = vrot.slane %v3511, 4
    %v3520 = vrot.slane %v3512, 4
    %v3521 = vrot.slane %v3513, 4
    %v3522 = vrot.slane %v3514, 4
    %v3527 = vadd.f32 %v3294, %v3519
    %v3528 = vadd.f32 %v3296, %v3520
    %v3529 = vadd.f32 %v3365, %v3521
    %v3530 = vadd.f32 %v3367, %v3522
    %v3531 = vxor.u32 %v3527, 2147483648
    %v3532 = vmul.f32 %v3531, 1.442695
    %v3533 = vpow.pop %v3532
    %v3534 = vadd.f32 %v3533, 1.0
    %v3535 = vrcp.pop %v3534
    %v3536 = vmul.f32 1.0, %v3535
    %v3537 = vxor.u32 %v3528, 2147483648
    %v3538 = vmul.f32 %v3537, 1.442695
    %v3539 = vpow.pop %v3538
    %v3540 = vadd.f32 %v3539, 1.0
    %v3541 = vrcp.pop %v3540
    %v3542 = vmul.f32 1.0, %v3541
    %v3543 = vtanh.pop %v3529
    %v3544 = vxor.u32 %v3530, 2147483648
    %v3545 = vmul.f32 %v3544, 1.442695
    %v3546 = vpow.pop %v3545
    %v3547 = vadd.f32 %v3546, 1.0
    %v3548 = vrcp.pop %v3547
    %v3549 = vmul.f32 1.0, %v3548
    %v3550 = vld [vmem:[#allocation4] sm:$0x3]
    %v3551 = vmul.f32 %v3542, %v3550
    %v3552 = vmul.f32 %v3536, %v3543
    %v3553 = vadd.f32 %v3551, %v3552
    %v3554 = vtanh.pop %v3553
    %v3555 = vmul.f32 %v3549, %v3554
    %3556 = vst [vmem:[#allocation4] sm:$0x3] %v3553
    %3557 = vst [vmem:[#allocation3] sm:$0x3] %v3555
    %v3558 = vtanh.pop %v3555
    %3559 = vst [vmem:[#allocation5 + $0x18] sm:$0x3] %v3558
    %v3560 = vld [vmem:[#allocation2 + $0x20] sm:$0x3]
    %v3561 = vld [vmem:[#allocation2 + $0x28] sm:$0x3]
    %v3562 = vld [vmem:[#allocation2 + $0x30] sm:$0x3]
    %v3563 = vld [vmem:[#allocation2 + $0x38] sm:$0x3]
    %v3564 = vadd.f32 %v3436, %v3560
    %v3565 = vadd.f32 %v3438, %v3561
    %v3566 = vadd.f32 %v3507, %v3562
    %v3567 = vadd.f32 %v3509, %v3563
    %v3568 = vxor.u32 %v3564, 2147483648
    %v3569 = vmul.f32 %v3568, 1.442695
    %v3570 = vpow.pop %v3569
    %v3571 = vadd.f32 %v3570, 1.0
    %v3572 = vrcp.pop %v3571
    %v3573 = vmul.f32 1.0, %v3572
    %v3574 = vxor.u32 %v3565, 2147483648
    %v3575 = vmul.f32 %v3574, 1.442695
    %v3576 = vpow.pop %v3575
    %v3577 = vadd.f32 %v3576, 1.0
    %v3578 = vrcp.pop %v3577
    %v3579 = vmul.f32 1.0, %v3578
    %v3580 = vtanh.pop %v3566
    %v3581 = vxor.u32 %v3567, 2147483648
    %v3582 = vmul.f32 %v3581, 1.442695
    %v3583 = vpow.pop %v3582
    %v3584 = vadd.f32 %v3583, 1.0
    %v3585 = vrcp.pop %v3584
    %v3586 = vmul.f32 1.0, %v3585
    %v3587 = vld [vmem:[#allocation4 + $0x2] sm:$0x3]
    %v3588 = vmul.f32 %v3579, %v3587
    %v3589 = vmul.f32 %v3573, %v3580
    %v3590 = vadd.f32 %v3588, %v3589
    %v3591 = vtanh.pop %v3590
    %v3592 = vmul.f32 %v3586, %v3591
    %3593 = vst [vmem:[#allocation4 + $0x2] sm:$0x3] %v3590
    %3594 = vst [vmem:[#allocation3 + $0x2] sm:$0x3] %v3592
    %v3595 = vtanh.pop %v3592
    %3596 = vst [vmem:[#allocation5 + $0x2] sm:$0x3] %v3595
    %v3597 = vld [vmem:[#allocation5] sm:$0xff]
    %v3598 = vld [vmem:[#allocation5 + $0x8] sm:$0xff]
    %v3599 = vld [vmem:[#allocation5 + $0x10] sm:$0xff]
    %v3600 = vld [vmem:[#allocation5 + $0x18] sm:$0xf]
    %v3601 = vld [vmem:[#allocation9] sm:$0xff]
    %v3602 = vld [vmem:[#allocation9 + $0x8] sm:$0xff]
    %v3603 = vld [vmem:[#allocation9 + $0x10] sm:$0xff]
    %v3604 = vld [vmem:[#allocation9 + $0x18] sm:$0xff]
    %v3605 = vld [vmem:[#allocation9 + $0x20] sm:$0xff]
    %v3606 = vld [vmem:[#allocation9 + $0x28] sm:$0xff]
    %v3607 = vld [vmem:[#allocation9 + $0x30] sm:$0xff]
    %v3608 = vld [vmem:[#allocation9 + $0x38] sm:$0xff]
    %v3609 = vld [vmem:[#allocation9 + $0x40] sm:$0xff]
    %v3610 = vld [vmem:[#allocation9 + $0x48] sm:$0xff]
    %v3611 = vld [vmem:[#allocation9 + $0x50] sm:$0xff]
    %v3612 = vld [vmem:[#allocation9 + $0x58] sm:$0xff]
    %v3613 = vld [vmem:[#allocation9 + $0x60] sm:$0xff]
    %v3614 = vld [vmem:[#allocation9 + $0x68] sm:$0xff]
    %v3615 = vld [vmem:[#allocation9 + $0x70] sm:$0xff]
    %v3616 = vld [vmem:[#allocation9 + $0x78] sm:$0xff]
    %v3617 = vld [vmem:[#allocation9 + $0x80] sm:$0xff]
    %v3618 = vld [vmem:[#allocation9 + $0x88] sm:$0xff]
    %v3619 = vld [vmem:[#allocation9 + $0x90] sm:$0xff]
    %v3620 = vld [vmem:[#allocation9 + $0x98] sm:$0xff]
    %v3621 = vld [vmem:[#allocation9 + $0xa0] sm:$0xff]
    %v3622 = vld [vmem:[#allocation9 + $0xa8] sm:$0xff]
    %v3623 = vld [vmem:[#allocation9 + $0xb0] sm:$0xff]
    %v3624 = vld [vmem:[#allocation9 + $0xb8] sm:$0xff]
    %v3625 = vld [vmem:[#allocation9 + $0xc0] sm:$0xff]
    %v3626 = vld [vmem:[#allocation9 + $0xc8] sm:$0xff]
    %v3627 = vld [vmem:[#allocation9 + $0xd0] sm:$0xff]
    %v3628 = vld [vmem:[#allocation9 + $0xd8] sm:$0xff]
    %v3629 = vld [vmem:[#allocation9 + $0xe0] sm:$0xff]
    %v3630 = vld [vmem:[#allocation9 + $0xe8] sm:$0xff]
    %v3631 = vld [vmem:[#allocation9 + $0xf0] sm:$0xff]
    %v3632 = vld [vmem:[#allocation9 + $0xf8] sm:$0xff]
    %v3633 = vld [vmem:[#allocation9 + $0x100] sm:$0xff]
    %v3634 = vld [vmem:[#allocation9 + $0x108] sm:$0xff]
    %v3635 = vld [vmem:[#allocation9 + $0x110] sm:$0xff]
    %v3636 = vld [vmem:[#allocation9 + $0x118] sm:$0xff]
    %v3637 = vld [vmem:[#allocation9 + $0x120] sm:$0xff]
    %v3638 = vld [vmem:[#allocation9 + $0x128] sm:$0xff]
    %v3639 = vld [vmem:[#allocation9 + $0x130] sm:$0xff]
    %v3640 = vld [vmem:[#allocation9 + $0x138] sm:$0xff]
    %v3641 = vld [vmem:[#allocation9 + $0x140] sm:$0xff]
    %v3642 = vld [vmem:[#allocation9 + $0x148] sm:$0xff]
    %v3643 = vld [vmem:[#allocation9 + $0x150] sm:$0xff]
    %v3644 = vld [vmem:[#allocation9 + $0x158] sm:$0xff]
    %v3645 = vld [vmem:[#allocation9 + $0x160] sm:$0xff]
    %v3646 = vld [vmem:[#allocation9 + $0x168] sm:$0xff]
    %v3647 = vld [vmem:[#allocation9 + $0x170] sm:$0xff]
    %v3648 = vld [vmem:[#allocation9 + $0x178] sm:$0xff]
    %v3649 = vld [vmem:[#allocation9 + $0x180] sm:$0xff]
    %v3650 = vld [vmem:[#allocation9 + $0x188] sm:$0xff]
    %v3651 = vld [vmem:[#allocation9 + $0x190] sm:$0xff]
    %v3652 = vld [vmem:[#allocation9 + $0x198] sm:$0xff]
    %v3653 = vld [vmem:[#allocation9 + $0x1a0] sm:$0xff]
    %v3654 = vld [vmem:[#allocation9 + $0x1a8] sm:$0xff]
    %v3655 = vld [vmem:[#allocation9 + $0x1b0] sm:$0xff]
    %v3656 = vld [vmem:[#allocation9 + $0x1b8] sm:$0xff]
    %v3657 = vld [vmem:[#allocation9 + $0x1c0] sm:$0xff]
    %v3658 = vld [vmem:[#allocation9 + $0x1c8] sm:$0xff]
    %v3659 = vld [vmem:[#allocation9 + $0x1d0] sm:$0xff]
    %v3660 = vld [vmem:[#allocation9 + $0x1d8] sm:$0xff]
    %v3661 = vld [vmem:[#allocation9 + $0x1e0] sm:$0xff]
    %v3662 = vld [vmem:[#allocation9 + $0x1e8] sm:$0xff]
    %v3663 = vld [vmem:[#allocation9 + $0x1f0] sm:$0xff]
    %v3664 = vld [vmem:[#allocation9 + $0x1f8] sm:$0xff]
    %v3665 = vld [vmem:[#allocation9 + $0x200] sm:$0xff]
    %v3666 = vld [vmem:[#allocation9 + $0x208] sm:$0xff]
    %v3667 = vld [vmem:[#allocation9 + $0x210] sm:$0xff]
    %v3668 = vld [vmem:[#allocation9 + $0x218] sm:$0xff]
    %v3669 = vld [vmem:[#allocation9 + $0x220] sm:$0xff]
    %v3670 = vld [vmem:[#allocation9 + $0x228] sm:$0xff]
    %v3671 = vld [vmem:[#allocation9 + $0x230] sm:$0xff]
    %v3672 = vld [vmem:[#allocation9 + $0x238] sm:$0xff]
    %v3673 = vld [vmem:[#allocation9 + $0x240] sm:$0xff]
    %v3674 = vld [vmem:[#allocation9 + $0x248] sm:$0xff]
    %v3675 = vld [vmem:[#allocation9 + $0x250] sm:$0xff]
    %v3676 = vld [vmem:[#allocation9 + $0x258] sm:$0xff]
    %v3677 = vld [vmem:[#allocation9 + $0x260] sm:$0xff]
    %v3678 = vld [vmem:[#allocation9 + $0x268] sm:$0xff]
    %v3679 = vld [vmem:[#allocation9 + $0x270] sm:$0xff]
    %v3680 = vld [vmem:[#allocation9 + $0x278] sm:$0xff]
    %v3681 = vld [vmem:[#allocation9 + $0x280] sm:$0xff]
    %v3682 = vld [vmem:[#allocation9 + $0x288] sm:$0xff]
    %v3683 = vld [vmem:[#allocation9 + $0x290] sm:$0xff]
    %v3684 = vld [vmem:[#allocation9 + $0x298] sm:$0xff]
    %v3685 = vld [vmem:[#allocation9 + $0x2a0] sm:$0xff]
    %v3686 = vld [vmem:[#allocation9 + $0x2a8] sm:$0xff]
    %v3687 = vld [vmem:[#allocation9 + $0x2b0] sm:$0xff]
    %v3688 = vld [vmem:[#allocation9 + $0x2b8] sm:$0xff]
    %v3689 = vld [vmem:[#allocation9 + $0x2c0] sm:$0xff]
    %v3690 = vld [vmem:[#allocation9 + $0x2c8] sm:$0xff]
    %v3691 = vld [vmem:[#allocation9 + $0x2d0] sm:$0xff]
    %v3692 = vld [vmem:[#allocation9 + $0x2d8] sm:$0xff]
    %v3693 = vld [vmem:[#allocation9 + $0x2e0] sm:$0xff]
    %v3694 = vld [vmem:[#allocation9 + $0x2e8] sm:$0xff]
    %v3695 = vld [vmem:[#allocation9 + $0x2f0] sm:$0xff]
    %v3696 = vld [vmem:[#allocation9 + $0x2f8] sm:$0xff]
    %v3697 = vld [vmem:[#allocation9 + $0x300] sm:$0xff]
    %v3698 = vld [vmem:[#allocation9 + $0x308] sm:$0xff]
    %v3699 = vld [vmem:[#allocation9 + $0x310] sm:$0xff]
    %v3700 = vld [vmem:[#allocation9 + $0x318] sm:$0xff]
    %v3701 = vld [vmem:[#allocation9 + $0x320] sm:$0xff]
    %v3702 = vld [vmem:[#allocation9 + $0x328] sm:$0xff]
    %v3703 = vld [vmem:[#allocation9 + $0x330] sm:$0xff]
    %v3704 = vld [vmem:[#allocation9 + $0x338] sm:$0xff]
    %v3705 = vld [vmem:[#allocation9 + $0x340] sm:$0xff]
    %v3706 = vld [vmem:[#allocation9 + $0x348] sm:$0xff]
    %v3707 = vld [vmem:[#allocation9 + $0x350] sm:$0xff]
    %v3708 = vld [vmem:[#allocation9 + $0x358] sm:$0xff]
    %v3709 = vld [vmem:[#allocation9 + $0x360] sm:$0xff]
    %v3710 = vld [vmem:[#allocation9 + $0x368] sm:$0xff]
    %v3711 = vld [vmem:[#allocation9 + $0x370] sm:$0xff]
    %v3712 = vld [vmem:[#allocation9 + $0x378] sm:$0xff]
    %v3713 = vld [vmem:[#allocation9 + $0x380] sm:$0xff]
    %v3714 = vld [vmem:[#allocation9 + $0x388] sm:$0xff]
    %v3715 = vld [vmem:[#allocation9 + $0x390] sm:$0xff]
    %v3716 = vld [vmem:[#allocation9 + $0x398] sm:$0xff]
    %v3717 = vld [vmem:[#allocation9 + $0x3a0] sm:$0xff]
    %v3718 = vld [vmem:[#allocation9 + $0x3a8] sm:$0xff]
    %v3719 = vld [vmem:[#allocation9 + $0x3b0] sm:$0xff]
    %v3720 = vld [vmem:[#allocation9 + $0x3b8] sm:$0xff]
    %v3721 = vld [vmem:[#allocation9 + $0x3c0] sm:$0xff]
    %v3722 = vld [vmem:[#allocation9 + $0x3c8] sm:$0xff]
    %v3723 = vld [vmem:[#allocation9 + $0x3d0] sm:$0xff]
    %v3724 = vld [vmem:[#allocation9 + $0x3d8] sm:$0xff]
    %v3725 = vld [vmem:[#allocation9 + $0x3e0] sm:$0xff]
    %v3726 = vld [vmem:[#allocation9 + $0x3e8] sm:$0xff]
    %v3727 = vld [vmem:[#allocation9 + $0x3f0] sm:$0xff]
    %v3728 = vld [vmem:[#allocation9 + $0x3f8] sm:$0xff]
    %v3729 = vld [vmem:[#allocation9 + $0x400] sm:$0xff]
    %v3730 = vld [vmem:[#allocation9 + $0x408] sm:$0xff]
    %v3731 = vld [vmem:[#allocation9 + $0x410] sm:$0xff]
    %v3732 = vld [vmem:[#allocation9 + $0x418] sm:$0xff]
    %v3733 = vld [vmem:[#allocation9 + $0x420] sm:$0xff]
    %v3734 = vld [vmem:[#allocation9 + $0x428] sm:$0xff]
    %v3735 = vld [vmem:[#allocation9 + $0x430] sm:$0xff]
    %v3736 = vld [vmem:[#allocation9 + $0x438] sm:$0xff]
    %v3737 = vld [vmem:[#allocation9 + $0x440] sm:$0xff]
    %v3738 = vld [vmem:[#allocation9 + $0x448] sm:$0xff]
    %v3739 = vld [vmem:[#allocation9 + $0x450] sm:$0xff]
    %v3740 = vld [vmem:[#allocation9 + $0x458] sm:$0xff]
    %v3741 = vld [vmem:[#allocation9 + $0x460] sm:$0xff]
    %v3742 = vld [vmem:[#allocation9 + $0x468] sm:$0xff]
    %v3743 = vld [vmem:[#allocation9 + $0x470] sm:$0xff]
    %v3744 = vld [vmem:[#allocation9 + $0x478] sm:$0xff]
    %v3745 = vld [vmem:[#allocation9 + $0x480] sm:$0xff]
    %v3746 = vld [vmem:[#allocation9 + $0x488] sm:$0xff]
    %v3747 = vld [vmem:[#allocation9 + $0x490] sm:$0xff]
    %v3748 = vld [vmem:[#allocation9 + $0x498] sm:$0xff]
    %v3749 = vld [vmem:[#allocation9 + $0x4a0] sm:$0xff]
    %v3750 = vld [vmem:[#allocation9 + $0x4a8] sm:$0xff]
    %v3751 = vld [vmem:[#allocation9 + $0x4b0] sm:$0xff]
    %v3752 = vld [vmem:[#allocation9 + $0x4b8] sm:$0xff]
    %v3753 = vld [vmem:[#allocation9 + $0x4c0] sm:$0xff]
    %v3754 = vld [vmem:[#allocation9 + $0x4c8] sm:$0xff]
    %v3755 = vld [vmem:[#allocation9 + $0x4d0] sm:$0xff]
    %v3756 = vld [vmem:[#allocation9 + $0x4d8] sm:$0xff]
    %v3757 = vld [vmem:[#allocation9 + $0x4e0] sm:$0xff]
    %v3758 = vld [vmem:[#allocation9 + $0x4e8] sm:$0xff]
    %v3759 = vld [vmem:[#allocation9 + $0x4f0] sm:$0xff]
    %v3760 = vld [vmem:[#allocation9 + $0x4f8] sm:$0xff]
    %v3761 = vld [vmem:[#allocation9 + $0x500] sm:$0xff]
    %v3762 = vld [vmem:[#allocation9 + $0x508] sm:$0xff]
    %v3763 = vld [vmem:[#allocation9 + $0x510] sm:$0xff]
    %v3764 = vld [vmem:[#allocation9 + $0x518] sm:$0xff]
    %v3765 = vld [vmem:[#allocation9 + $0x520] sm:$0xff]
    %v3766 = vld [vmem:[#allocation9 + $0x528] sm:$0xff]
    %v3767 = vld [vmem:[#allocation9 + $0x530] sm:$0xff]
    %v3768 = vld [vmem:[#allocation9 + $0x538] sm:$0xff]
    %v3769 = vld [vmem:[#allocation9 + $0x540] sm:$0xff]
    %v3770 = vld [vmem:[#allocation9 + $0x548] sm:$0xff]
    %v3771 = vld [vmem:[#allocation9 + $0x550] sm:$0xff]
    %v3772 = vld [vmem:[#allocation9 + $0x558] sm:$0xff]
    %v3773 = vld [vmem:[#allocation9 + $0x560] sm:$0xff]
    %v3774 = vld [vmem:[#allocation9 + $0x568] sm:$0xff]
    %v3775 = vld [vmem:[#allocation9 + $0x570] sm:$0xff]
    %v3776 = vld [vmem:[#allocation9 + $0x578] sm:$0xff]
    %v3777 = vld [vmem:[#allocation9 + $0x580] sm:$0xff]
    %v3778 = vld [vmem:[#allocation9 + $0x588] sm:$0xff]
    %v3779 = vld [vmem:[#allocation9 + $0x590] sm:$0xff]
    %v3780 = vld [vmem:[#allocation9 + $0x598] sm:$0xff]
    %v3781 = vld [vmem:[#allocation9 + $0x5a0] sm:$0xff]
    %v3782 = vld [vmem:[#allocation9 + $0x5a8] sm:$0xff]
    %v3783 = vld [vmem:[#allocation9 + $0x5b0] sm:$0xff]
    %v3784 = vld [vmem:[#allocation9 + $0x5b8] sm:$0xff]
    %v3785 = vld [vmem:[#allocation9 + $0x5c0] sm:$0xff]
    %v3786 = vld [vmem:[#allocation9 + $0x5c8] sm:$0xff]
    %v3787 = vld [vmem:[#allocation9 + $0x5d0] sm:$0xff]
    %v3788 = vld [vmem:[#allocation9 + $0x5d8] sm:$0xff]
    %v3789 = vld [vmem:[#allocation9 + $0x5e0] sm:$0xff]
    %v3790 = vld [vmem:[#allocation9 + $0x5e8] sm:$0xff]
    %v3791 = vld [vmem:[#allocation9 + $0x5f0] sm:$0xff]
    %v3792 = vld [vmem:[#allocation9 + $0x5f8] sm:$0xff]
    %v3793 = vld [vmem:[#allocation9 + $0x600] sm:$0xff]
    %v3794 = vld [vmem:[#allocation9 + $0x608] sm:$0xff]
    %v3795 = vld [vmem:[#allocation9 + $0x610] sm:$0xff]
    %v3796 = vld [vmem:[#allocation9 + $0x618] sm:$0xff]
    %v3797 = vld [vmem:[#allocation9 + $0x620] sm:$0xff]
    %v3798 = vld [vmem:[#allocation9 + $0x628] sm:$0xff]
    %v3799 = vld [vmem:[#allocation9 + $0x630] sm:$0xff]
    %v3800 = vld [vmem:[#allocation9 + $0x638] sm:$0xff]
    %v3801 = vld [vmem:[#allocation9 + $0x640] sm:$0xff]
    %v3802 = vld [vmem:[#allocation9 + $0x648] sm:$0xff]
    %v3803 = vld [vmem:[#allocation9 + $0x650] sm:$0xff]
    %v3804 = vld [vmem:[#allocation9 + $0x658] sm:$0xff]
    %v3805 = vld [vmem:[#allocation9 + $0x660] sm:$0xff]
    %v3806 = vld [vmem:[#allocation9 + $0x668] sm:$0xff]
    %v3807 = vld [vmem:[#allocation9 + $0x670] sm:$0xff]
    %v3808 = vld [vmem:[#allocation9 + $0x678] sm:$0xff]
    %v3809 = vld [vmem:[#allocation9 + $0x680] sm:$0xff]
    %v3810 = vld [vmem:[#allocation9 + $0x688] sm:$0xff]
    %v3811 = vld [vmem:[#allocation9 + $0x690] sm:$0xff]
    %v3812 = vld [vmem:[#allocation9 + $0x698] sm:$0xff]
    %v3813 = vld [vmem:[#allocation9 + $0x6a0] sm:$0xff]
    %v3814 = vld [vmem:[#allocation9 + $0x6a8] sm:$0xff]
    %v3815 = vld [vmem:[#allocation9 + $0x6b0] sm:$0xff]
    %v3816 = vld [vmem:[#allocation9 + $0x6b8] sm:$0xff]
    %v3817 = vld [vmem:[#allocation9 + $0x6c0] sm:$0xff]
    %v3818 = vld [vmem:[#allocation9 + $0x6c8] sm:$0xff]
    %v3819 = vld [vmem:[#allocation9 + $0x6d0] sm:$0xff]
    %v3820 = vld [vmem:[#allocation9 + $0x6d8] sm:$0xff]
    %v3821 = vld [vmem:[#allocation9 + $0x6e0] sm:$0xff]
    %v3822 = vld [vmem:[#allocation9 + $0x6e8] sm:$0xff]
    %v3823 = vld [vmem:[#allocation9 + $0x6f0] sm:$0xff]
    %v3824 = vld [vmem:[#allocation9 + $0x6f8] sm:$0xff]
    %v3825 = vld [vmem:[%s5] sm:$0x1]
    %v3827 = vlaneseq
    %v3828 = vshrl.u32 %v3827, 7
    %v3829 = vsub.s32 0, %v3828
    %v3830 = vrot.slane %v3825, %v3829
    %v3836 = vcombine.high %v3597, %v3597
    %v3838 = vunpack.c.l.s4 1983009808
    %v3839 = vunpack.c.0.s8 %v3838
    %v3840 = vlaneseq
    %v3841 = vshrl.u32 %v3840, 7
    %v3842 = vsub.s32 %v3839, %v3841
    %v3843 = vrot.slane %v3597, %v3842
    %v3845 = vunpack.c.l.s4 1983009808
    %v3846 = vunpack.c.0.s8 %v3845
    %v3847 = vlaneseq
    %v3848 = vshrl.u32 %v3847, 7
    %v3849 = vsub.s32 %v3846, %v3848
    %v3850 = vrot.slane %v3836, %v3849
    %v3851 = vcombine.high %v3843, %v3843
    %v3852 = vcombine.high %v3850, %v3850
    %v3853 = vcombine.high %v3598, %v3598
    %v3855 = vunpack.c.l.s4 1983009808
    %v3856 = vunpack.c.0.s8 %v3855
    %v3857 = vlaneseq
    %v3858 = vshrl.u32 %v3857, 7
    %v3859 = vsub.s32 %v3856, %v3858
    %v3860 = vrot.slane %v3598, %v3859
    %v3862 = vunpack.c.l.s4 1983009808
    %v3863 = vunpack.c.0.s8 %v3862
    %v3864 = vlaneseq
    %v3865 = vshrl.u32 %v3864, 7
    %v3866 = vsub.s32 %v3863, %v3865
    %v3867 = vrot.slane %v3853, %v3866
    %v3868 = vcombine.high %v3860, %v3860
    %v3869 = vcombine.high %v3867, %v3867
    %v3870 = vcombine.high %v3599, %v3599
    %v3872 = vunpack.c.l.s4 1983009808
    %v3873 = vunpack.c.0.s8 %v3872
    %v3874 = vlaneseq
    %v3875 = vshrl.u32 %v3874, 7
    %v3876 = vsub.s32 %v3873, %v3875
    %v3877 = vrot.slane %v3599, %v3876
    %v3879 = vunpack.c.l.s4 1983009808
    %v3880 = vunpack.c.0.s8 %v3879
    %v3881 = vlaneseq
    %v3882 = vshrl.u32 %v3881, 7
    %v3883 = vsub.s32 %v3880, %v3882
    %v3884 = vrot.slane %v3870, %v3883
    %v3885 = vcombine.high %v3877, %v3877
    %v3886 = vcombine.high %v3884, %v3884
    %v3888 = vunpack.c.l.s4 1983009808
    %v3889 = vunpack.c.0.s8 %v3888
    %v3890 = vlaneseq
    %v3891 = vshrl.u32 %v3890, 7
    %v3892 = vsub.s32 %v3889, %v3891
    %v3893 = vrot.slane %v3600, %v3892
    %v3894 = vcombine.high %v3893, %v3893
    %3909 = vmatprep.subr.mxu0 0.0
    %3910 = vmatpush1.msra.mxu0 %v3601
    %3911 = vmatprep.subr.mxu0 0.0
    %3912 = vmatpush1.msra.mxu0 %v3602
    %3913 = vmatprep.subr.mxu0 0.0
    %3914 = vmatpush1.msra.mxu0 %v3603
    %3915 = vmatprep.subr.mxu0 0.0
    %3916 = vmatpush1.msra.mxu0 %v3604
    %3917 = vmatprep.subr.mxu0 0.0
    %3918 = vmatpush1.msra.mxu0 %v3605
    %3919 = vmatprep.subr.mxu0 0.0
    %3920 = vmatpush1.msra.mxu0 %v3606
    %3921 = vmatprep.subr.mxu0 0.0
    %3922 = vmatpush1.msra.mxu0 %v3607
    %3923 = vmatprep.subr.mxu0 0.0
    %3924 = vmatpush1.msra.mxu0 %v3608
    %3925 = vmatprep.subr.mxu0 0.0
    %3926 = vmatpush1.msra.mxu0 %v3609
    %3927 = vmatprep.subr.mxu0 0.0
    %3928 = vmatpush1.msra.mxu0 %v3610
    %3929 = vmatprep.subr.mxu0 0.0
    %3930 = vmatpush1.msra.mxu0 %v3611
    %3931 = vmatprep.subr.mxu0 0.0
    %3932 = vmatpush1.msra.mxu0 %v3612
    %3933 = vmatprep.subr.mxu0 0.0
    %3934 = vmatpush1.msra.mxu0 %v3613
    %3935 = vmatprep.subr.mxu0 0.0
    %3936 = vmatpush1.msra.mxu0 %v3614
    %3937 = vmatprep.subr.mxu0 0.0
    %3938 = vmatpush1.msra.mxu0 %v3615
    %3939 = vmatprep.subr.mxu0 0.0
    %3940 = vmatpush1.msra.mxu0 %v3616
    %3941 = vmatprep.subr.mxu0 0.0
    %3942 = vmatpush1.msra.mxu0 %v3617
    %3943 = vmatprep.subr.mxu0 0.0
    %3944 = vmatpush1.msra.mxu0 %v3618
    %3945 = vmatprep.subr.mxu0 0.0
    %3946 = vmatpush1.msra.mxu0 %v3619
    %3947 = vmatprep.subr.mxu0 0.0
    %3948 = vmatpush1.msra.mxu0 %v3620
    %3949 = vmatprep.subr.mxu0 0.0
    %3950 = vmatpush1.msra.mxu0 %v3621
    %3951 = vmatprep.subr.mxu0 0.0
    %3952 = vmatpush1.msra.mxu0 %v3622
    %3953 = vmatprep.subr.mxu0 0.0
    %3954 = vmatpush1.msra.mxu0 %v3623
    %3955 = vmatprep.subr.mxu0 0.0
    %3956 = vmatpush1.msra.mxu0 %v3624
    %3957 = vmatprep.subr.mxu0 0.0
    %3958 = vmatpush1.msra.mxu0 %v3625
    %3959 = vmatprep.subr.mxu0 0.0
    %3960 = vmatpush1.msra.mxu0 %v3626
    %3961 = vmatprep.subr.mxu0 0.0
    %3962 = vmatpush1.msra.mxu0 %v3627
    %3963 = vmatprep.subr.mxu0 0.0
    %3964 = vmatpush1.msra.mxu0 %v3628
    %3965 = vmatprep.subr.mxu0 0.0
    %3966 = vmatpush1.msra.mxu0 %v3629
    %3967 = vmatprep.subr.mxu0 0.0
    %3968 = vmatpush1.msra.mxu0 %v3630
    %3969 = vmatprep.subr.mxu0 0.0
    %3970 = vmatpush1.msra.mxu0 %v3631
    %3971 = vmatprep.subr.mxu0 0.0
    %3972 = vmatpush1.msra.mxu0 %v3632
    %3973 = vmatprep.mubr.f32.mxu0 %v3851
    %3974 = vmatmul.mubr.f32.gmra.mrb[0].mxu0 %v3843
    %v3975 = vpop.f32.mrb[0].mxu0
    %v3976 = vadd.f32 %v3830, %v3975
    %v3977 = vpop.f32.mrb[0].mxu0
    %3978 = vdwg.mxu0
    %3979 = vmatprep.subr.mxu0 0.0
    %3980 = vmatpush1.msra.mxu0 %v3633
    %3981 = vmatprep.subr.mxu0 0.0
    %3982 = vmatpush1.msra.mxu0 %v3634
    %3983 = vmatprep.subr.mxu0 0.0
    %3984 = vmatpush1.msra.mxu0 %v3635
    %3985 = vmatprep.subr.mxu0 0.0
    %3986 = vmatpush1.msra.mxu0 %v3636
    %3987 = vmatprep.subr.mxu0 0.0
    %3988 = vmatpush1.msra.mxu0 %v3637
    %3989 = vmatprep.subr.mxu0 0.0
    %3990 = vmatpush1.msra.mxu0 %v3638
    %3991 = vmatprep.subr.mxu0 0.0
    %3992 = vmatpush1.msra.mxu0 %v3639
    %3993 = vmatprep.subr.mxu0 0.0
    %3994 = vmatpush1.msra.mxu0 %v3640
    %3995 = vmatprep.subr.mxu0 0.0
    %3996 = vmatpush1.msra.mxu0 %v3641
    %3997 = vmatprep.subr.mxu0 0.0
    %3998 = vmatpush1.msra.mxu0 %v3642
    %3999 = vmatprep.subr.mxu0 0.0
    %4000 = vmatpush1.msra.mxu0 %v3643
    %4001 = vmatprep.subr.mxu0 0.0
    %4002 = vmatpush1.msra.mxu0 %v3644
    %4003 = vmatprep.subr.mxu0 0.0
    %4004 = vmatpush1.msra.mxu0 %v3645
    %4005 = vmatprep.subr.mxu0 0.0
    %4006 = vmatpush1.msra.mxu0 %v3646
    %4007 = vmatprep.subr.mxu0 0.0
    %4008 = vmatpush1.msra.mxu0 %v3647
    %4009 = vmatprep.subr.mxu0 0.0
    %4010 = vmatpush1.msra.mxu0 %v3648
    %4011 = vmatprep.subr.mxu0 0.0
    %4012 = vmatpush1.msra.mxu0 %v3649
    %4013 = vmatprep.subr.mxu0 0.0
    %4014 = vmatpush1.msra.mxu0 %v3650
    %4015 = vmatprep.subr.mxu0 0.0
    %4016 = vmatpush1.msra.mxu0 %v3651
    %4017 = vmatprep.subr.mxu0 0.0
    %4018 = vmatpush1.msra.mxu0 %v3652
    %4019 = vmatprep.subr.mxu0 0.0
    %4020 = vmatpush1.msra.mxu0 %v3653
    %4021 = vmatprep.subr.mxu0 0.0
    %4022 = vmatpush1.msra.mxu0 %v3654
    %4023 = vmatprep.subr.mxu0 0.0
    %4024 = vmatpush1.msra.mxu0 %v3655
    %4025 = vmatprep.subr.mxu0 0.0
    %4026 = vmatpush1.msra.mxu0 %v3656
    %4027 = vmatprep.subr.mxu0 0.0
    %4028 = vmatpush1.msra.mxu0 %v3657
    %4029 = vmatprep.subr.mxu0 0.0
    %4030 = vmatpush1.msra.mxu0 %v3658
    %4031 = vmatprep.subr.mxu0 0.0
    %4032 = vmatpush1.msra.mxu0 %v3659
    %4033 = vmatprep.subr.mxu0 0.0
    %4034 = vmatpush1.msra.mxu0 %v3660
    %4035 = vmatprep.subr.mxu0 0.0
    %4036 = vmatpush1.msra.mxu0 %v3661
    %4037 = vmatprep.subr.mxu0 0.0
    %4038 = vmatpush1.msra.mxu0 %v3662
    %4039 = vmatprep.subr.mxu0 0.0
    %4040 = vmatpush1.msra.mxu0 %v3663
    %4041 = vmatprep.subr.mxu0 0.0
    %4042 = vmatpush1.msra.mxu0 %v3664
    %4043 = vmatprep.mubr.f32.mxu0 %v3852
    %4044 = vmatmul.mubr.f32.gmra.mrb[0].mxu0 %v3850
    %v4045 = vpop.f32.mrb[0].mxu0
    %v4046 = vadd.f32 %v3976, %v4045
    %v4047 = vpop.f32.mrb[0].mxu0
    %4048 = vdwg.mxu0
    %4049 = vmatprep.subr.mxu0 0.0
    %4050 = vmatpush1.msra.mxu0 %v3665
    %4051 = vmatprep.subr.mxu0 0.0
    %4052 = vmatpush1.msra.mxu0 %v3666
    %4053 = vmatprep.subr.mxu0 0.0
    %4054 = vmatpush1.msra.mxu0 %v3667
    %4055 = vmatprep.subr.mxu0 0.0
    %4056 = vmatpush1.msra.mxu0 %v3668
    %4057 = vmatprep.subr.mxu0 0.0
    %4058 = vmatpush1.msra.mxu0 %v3669
    %4059 = vmatprep.subr.mxu0 0.0
    %4060 = vmatpush1.msra.mxu0 %v3670
    %4061 = vmatprep.subr.mxu0 0.0
    %4062 = vmatpush1.msra.mxu0 %v3671
    %4063 = vmatprep.subr.mxu0 0.0
    %4064 = vmatpush1.msra.mxu0 %v3672
    %4065 = vmatprep.subr.mxu0 0.0
    %4066 = vmatpush1.msra.mxu0 %v3673
    %4067 = vmatprep.subr.mxu0 0.0
    %4068 = vmatpush1.msra.mxu0 %v3674
    %4069 = vmatprep.subr.mxu0 0.0
    %4070 = vmatpush1.msra.mxu0 %v3675
    %4071 = vmatprep.subr.mxu0 0.0
    %4072 = vmatpush1.msra.mxu0 %v3676
    %4073 = vmatprep.subr.mxu0 0.0
    %4074 = vmatpush1.msra.mxu0 %v3677
    %4075 = vmatprep.subr.mxu0 0.0
    %4076 = vmatpush1.msra.mxu0 %v3678
    %4077 = vmatprep.subr.mxu0 0.0
    %4078 = vmatpush1.msra.mxu0 %v3679
    %4079 = vmatprep.subr.mxu0 0.0
    %4080 = vmatpush1.msra.mxu0 %v3680
    %4081 = vmatprep.subr.mxu0 0.0
    %4082 = vmatpush1.msra.mxu0 %v3681
    %4083 = vmatprep.subr.mxu0 0.0
    %4084 = vmatpush1.msra.mxu0 %v3682
    %4085 = vmatprep.subr.mxu0 0.0
    %4086 = vmatpush1.msra.mxu0 %v3683
    %4087 = vmatprep.subr.mxu0 0.0
    %4088 = vmatpush1.msra.mxu0 %v3684
    %4089 = vmatprep.subr.mxu0 0.0
    %4090 = vmatpush1.msra.mxu0 %v3685
    %4091 = vmatprep.subr.mxu0 0.0
    %4092 = vmatpush1.msra.mxu0 %v3686
    %4093 = vmatprep.subr.mxu0 0.0
    %4094 = vmatpush1.msra.mxu0 %v3687
    %4095 = vmatprep.subr.mxu0 0.0
    %4096 = vmatpush1.msra.mxu0 %v3688
    %4097 = vmatprep.subr.mxu0 0.0
    %4098 = vmatpush1.msra.mxu0 %v3689
    %4099 = vmatprep.subr.mxu0 0.0
    %4100 = vmatpush1.msra.mxu0 %v3690
    %4101 = vmatprep.subr.mxu0 0.0
    %4102 = vmatpush1.msra.mxu0 %v3691
    %4103 = vmatprep.subr.mxu0 0.0
    %4104 = vmatpush1.msra.mxu0 %v3692
    %4105 = vmatprep.subr.mxu0 0.0
    %4106 = vmatpush1.msra.mxu0 %v3693
    %4107 = vmatprep.subr.mxu0 0.0
    %4108 = vmatpush1.msra.mxu0 %v3694
    %4109 = vmatprep.subr.mxu0 0.0
    %4110 = vmatpush1.msra.mxu0 %v3695
    %4111 = vmatprep.subr.mxu0 0.0
    %4112 = vmatpush1.msra.mxu0 %v3696
    %4113 = vmatprep.mubr.f32.mxu0 %v3868
    %4114 = vmatmul.mubr.f32.gmra.mrb[0].mxu0 %v3860
    %v4115 = vpop.f32.mrb[0].mxu0
    %v4116 = vadd.f32 %v4046, %v4115
    %v4117 = vpop.f32.mrb[0].mxu0
    %4118 = vdwg.mxu0
    %4119 = vmatprep.subr.mxu0 0.0
    %4120 = vmatpush1.msra.mxu0 %v3697
    %4121 = vmatprep.subr.mxu0 0.0
    %4122 = vmatpush1.msra.mxu0 %v3698
    %4123 = vmatprep.subr.mxu0 0.0
    %4124 = vmatpush1.msra.mxu0 %v3699
    %4125 = vmatprep.subr.mxu0 0.0
    %4126 = vmatpush1.msra.mxu0 %v3700
    %4127 = vmatprep.subr.mxu0 0.0
    %4128 = vmatpush1.msra.mxu0 %v3701
    %4129 = vmatprep.subr.mxu0 0.0
    %4130 = vmatpush1.msra.mxu0 %v3702
    %4131 = vmatprep.subr.mxu0 0.0
    %4132 = vmatpush1.msra.mxu0 %v3703
    %4133 = vmatprep.subr.mxu0 0.0
    %4134 = vmatpush1.msra.mxu0 %v3704
    %4135 = vmatprep.subr.mxu0 0.0
    %4136 = vmatpush1.msra.mxu0 %v3705
    %4137 = vmatprep.subr.mxu0 0.0
    %4138 = vmatpush1.msra.mxu0 %v3706
    %4139 = vmatprep.subr.mxu0 0.0
    %4140 = vmatpush1.msra.mxu0 %v3707
    %4141 = vmatprep.subr.mxu0 0.0
    %4142 = vmatpush1.msra.mxu0 %v3708
    %4143 = vmatprep.subr.mxu0 0.0
    %4144 = vmatpush1.msra.mxu0 %v3709
    %4145 = vmatprep.subr.mxu0 0.0
    %4146 = vmatpush1.msra.mxu0 %v3710
    %4147 = vmatprep.subr.mxu0 0.0
    %4148 = vmatpush1.msra.mxu0 %v3711
    %4149 = vmatprep.subr.mxu0 0.0
    %4150 = vmatpush1.msra.mxu0 %v3712
    %4151 = vmatprep.subr.mxu0 0.0
    %4152 = vmatpush1.msra.mxu0 %v3713
    %4153 = vmatprep.subr.mxu0 0.0
    %4154 = vmatpush1.msra.mxu0 %v3714
    %4155 = vmatprep.subr.mxu0 0.0
    %4156 = vmatpush1.msra.mxu0 %v3715
    %4157 = vmatprep.subr.mxu0 0.0
    %4158 = vmatpush1.msra.mxu0 %v3716
    %4159 = vmatprep.subr.mxu0 0.0
    %4160 = vmatpush1.msra.mxu0 %v3717
    %4161 = vmatprep.subr.mxu0 0.0
    %4162 = vmatpush1.msra.mxu0 %v3718
    %4163 = vmatprep.subr.mxu0 0.0
    %4164 = vmatpush1.msra.mxu0 %v3719
    %4165 = vmatprep.subr.mxu0 0.0
    %4166 = vmatpush1.msra.mxu0 %v3720
    %4167 = vmatprep.subr.mxu0 0.0
    %4168 = vmatpush1.msra.mxu0 %v3721
    %4169 = vmatprep.subr.mxu0 0.0
    %4170 = vmatpush1.msra.mxu0 %v3722
    %4171 = vmatprep.subr.mxu0 0.0
    %4172 = vmatpush1.msra.mxu0 %v3723
    %4173 = vmatprep.subr.mxu0 0.0
    %4174 = vmatpush1.msra.mxu0 %v3724
    %4175 = vmatprep.subr.mxu0 0.0
    %4176 = vmatpush1.msra.mxu0 %v3725
    %4177 = vmatprep.subr.mxu0 0.0
    %4178 = vmatpush1.msra.mxu0 %v3726
    %4179 = vmatprep.subr.mxu0 0.0
    %4180 = vmatpush1.msra.mxu0 %v3727
    %4181 = vmatprep.subr.mxu0 0.0
    %4182 = vmatpush1.msra.mxu0 %v3728
    %4183 = vmatprep.mubr.f32.mxu0 %v3869
    %4184 = vmatmul.mubr.f32.gmra.mrb[0].mxu0 %v3867
    %v4185 = vpop.f32.mrb[0].mxu0
    %v4186 = vadd.f32 %v4116, %v4185
    %v4187 = vpop.f32.mrb[0].mxu0
    %4188 = vdwg.mxu0
    %4189 = vmatprep.subr.mxu0 0.0
    %4190 = vmatpush1.msra.mxu0 %v3729
    %4191 = vmatprep.subr.mxu0 0.0
    %4192 = vmatpush1.msra.mxu0 %v3730
    %4193 = vmatprep.subr.mxu0 0.0
    %4194 = vmatpush1.msra.mxu0 %v3731
    %4195 = vmatprep.subr.mxu0 0.0
    %4196 = vmatpush1.msra.mxu0 %v3732
    %4197 = vmatprep.subr.mxu0 0.0
    %4198 = vmatpush1.msra.mxu0 %v3733
    %4199 = vmatprep.subr.mxu0 0.0
    %4200 = vmatpush1.msra.mxu0 %v3734
    %4201 = vmatprep.subr.mxu0 0.0
    %4202 = vmatpush1.msra.mxu0 %v3735
    %4203 = vmatprep.subr.mxu0 0.0
    %4204 = vmatpush1.msra.mxu0 %v3736
    %4205 = vmatprep.subr.mxu0 0.0
    %4206 = vmatpush1.msra.mxu0 %v3737
    %4207 = vmatprep.subr.mxu0 0.0
    %4208 = vmatpush1.msra.mxu0 %v3738
    %4209 = vmatprep.subr.mxu0 0.0
    %4210 = vmatpush1.msra.mxu0 %v3739
    %4211 = vmatprep.subr.mxu0 0.0
    %4212 = vmatpush1.msra.mxu0 %v3740
    %4213 = vmatprep.subr.mxu0 0.0
    %4214 = vmatpush1.msra.mxu0 %v3741
    %4215 = vmatprep.subr.mxu0 0.0
    %4216 = vmatpush1.msra.mxu0 %v3742
    %4217 = vmatprep.subr.mxu0 0.0
    %4218 = vmatpush1.msra.mxu0 %v3743
    %4219 = vmatprep.subr.mxu0 0.0
    %4220 = vmatpush1.msra.mxu0 %v3744
    %4221 = vmatprep.subr.mxu0 0.0
    %4222 = vmatpush1.msra.mxu0 %v3745
    %4223 = vmatprep.subr.mxu0 0.0
    %4224 = vmatpush1.msra.mxu0 %v3746
    %4225 = vmatprep.subr.mxu0 0.0
    %4226 = vmatpush1.msra.mxu0 %v3747
    %4227 = vmatprep.subr.mxu0 0.0
    %4228 = vmatpush1.msra.mxu0 %v3748
    %4229 = vmatprep.subr.mxu0 0.0
    %4230 = vmatpush1.msra.mxu0 %v3749
    %4231 = vmatprep.subr.mxu0 0.0
    %4232 = vmatpush1.msra.mxu0 %v3750
    %4233 = vmatprep.subr.mxu0 0.0
    %4234 = vmatpush1.msra.mxu0 %v3751
    %4235 = vmatprep.subr.mxu0 0.0
    %4236 = vmatpush1.msra.mxu0 %v3752
    %4237 = vmatprep.subr.mxu0 0.0
    %4238 = vmatpush1.msra.mxu0 %v3753
    %4239 = vmatprep.subr.mxu0 0.0
    %4240 = vmatpush1.msra.mxu0 %v3754
    %4241 = vmatprep.subr.mxu0 0.0
    %4242 = vmatpush1.msra.mxu0 %v3755
    %4243 = vmatprep.subr.mxu0 0.0
    %4244 = vmatpush1.msra.mxu0 %v3756
    %4245 = vmatprep.subr.mxu0 0.0
    %4246 = vmatpush1.msra.mxu0 %v3757
    %4247 = vmatprep.subr.mxu0 0.0
    %4248 = vmatpush1.msra.mxu0 %v3758
    %4249 = vmatprep.subr.mxu0 0.0
    %4250 = vmatpush1.msra.mxu0 %v3759
    %4251 = vmatprep.subr.mxu0 0.0
    %4252 = vmatpush1.msra.mxu0 %v3760
    %4253 = vmatprep.mubr.f32.mxu0 %v3885
    %4254 = vmatmul.mubr.f32.gmra.mrb[0].mxu0 %v3877
    %v4255 = vpop.f32.mrb[0].mxu0
    %v4256 = vadd.f32 %v4186, %v4255
    %v4257 = vpop.f32.mrb[0].mxu0
    %4258 = vdwg.mxu0
    %4259 = vmatprep.subr.mxu0 0.0
    %4260 = vmatpush1.msra.mxu0 %v3761
    %4261 = vmatprep.subr.mxu0 0.0
    %4262 = vmatpush1.msra.mxu0 %v3762
    %4263 = vmatprep.subr.mxu0 0.0
    %4264 = vmatpush1.msra.mxu0 %v3763
    %4265 = vmatprep.subr.mxu0 0.0
    %4266 = vmatpush1.msra.mxu0 %v3764
    %4267 = vmatprep.subr.mxu0 0.0
    %4268 = vmatpush1.msra.mxu0 %v3765
    %4269 = vmatprep.subr.mxu0 0.0
    %4270 = vmatpush1.msra.mxu0 %v3766
    %4271 = vmatprep.subr.mxu0 0.0
    %4272 = vmatpush1.msra.mxu0 %v3767
    %4273 = vmatprep.subr.mxu0 0.0
    %4274 = vmatpush1.msra.mxu0 %v3768
    %4275 = vmatprep.subr.mxu0 0.0
    %4276 = vmatpush1.msra.mxu0 %v3769
    %4277 = vmatprep.subr.mxu0 0.0
    %4278 = vmatpush1.msra.mxu0 %v3770
    %4279 = vmatprep.subr.mxu0 0.0
    %4280 = vmatpush1.msra.mxu0 %v3771
    %4281 = vmatprep.subr.mxu0 0.0
    %4282 = vmatpush1.msra.mxu0 %v3772
    %4283 = vmatprep.subr.mxu0 0.0
    %4284 = vmatpush1.msra.mxu0 %v3773
    %4285 = vmatprep.subr.mxu0 0.0
    %4286 = vmatpush1.msra.mxu0 %v3774
    %4287 = vmatprep.subr.mxu0 0.0
    %4288 = vmatpush1.msra.mxu0 %v3775
    %4289 = vmatprep.subr.mxu0 0.0
    %4290 = vmatpush1.msra.mxu0 %v3776
    %4291 = vmatprep.subr.mxu0 0.0
    %4292 = vmatpush1.msra.mxu0 %v3777
    %4293 = vmatprep.subr.mxu0 0.0
    %4294 = vmatpush1.msra.mxu0 %v3778
    %4295 = vmatprep.subr.mxu0 0.0
    %4296 = vmatpush1.msra.mxu0 %v3779
    %4297 = vmatprep.subr.mxu0 0.0
    %4298 = vmatpush1.msra.mxu0 %v3780
    %4299 = vmatprep.subr.mxu0 0.0
    %4300 = vmatpush1.msra.mxu0 %v3781
    %4301 = vmatprep.subr.mxu0 0.0
    %4302 = vmatpush1.msra.mxu0 %v3782
    %4303 = vmatprep.subr.mxu0 0.0
    %4304 = vmatpush1.msra.mxu0 %v3783
    %4305 = vmatprep.subr.mxu0 0.0
    %4306 = vmatpush1.msra.mxu0 %v3784
    %4307 = vmatprep.subr.mxu0 0.0
    %4308 = vmatpush1.msra.mxu0 %v3785
    %4309 = vmatprep.subr.mxu0 0.0
    %4310 = vmatpush1.msra.mxu0 %v3786
    %4311 = vmatprep.subr.mxu0 0.0
    %4312 = vmatpush1.msra.mxu0 %v3787
    %4313 = vmatprep.subr.mxu0 0.0
    %4314 = vmatpush1.msra.mxu0 %v3788
    %4315 = vmatprep.subr.mxu0 0.0
    %4316 = vmatpush1.msra.mxu0 %v3789
    %4317 = vmatprep.subr.mxu0 0.0
    %4318 = vmatpush1.msra.mxu0 %v3790
    %4319 = vmatprep.subr.mxu0 0.0
    %4320 = vmatpush1.msra.mxu0 %v3791
    %4321 = vmatprep.subr.mxu0 0.0
    %4322 = vmatpush1.msra.mxu0 %v3792
    %4323 = vmatprep.mubr.f32.mxu0 %v3886
    %4324 = vmatmul.mubr.f32.gmra.mrb[0].mxu0 %v3884
    %v4325 = vpop.f32.mrb[0].mxu0
    %v4326 = vadd.f32 %v4256, %v4325
    %v4327 = vpop.f32.mrb[0].mxu0
    %4328 = vdwg.mxu0
    %4329 = vmatprep.subr.mxu0 0.0
    %4330 = vmatpush1.msra.mxu0 %v3793
    %4331 = vmatprep.subr.mxu0 0.0
    %4332 = vmatpush1.msra.mxu0 %v3794
    %4333 = vmatprep.subr.mxu0 0.0
    %4334 = vmatpush1.msra.mxu0 %v3795
    %4335 = vmatprep.subr.mxu0 0.0
    %4336 = vmatpush1.msra.mxu0 %v3796
    %4337 = vmatprep.subr.mxu0 0.0
    %4338 = vmatpush1.msra.mxu0 %v3797
    %4339 = vmatprep.subr.mxu0 0.0
    %4340 = vmatpush1.msra.mxu0 %v3798
    %4341 = vmatprep.subr.mxu0 0.0
    %4342 = vmatpush1.msra.mxu0 %v3799
    %4343 = vmatprep.subr.mxu0 0.0
    %4344 = vmatpush1.msra.mxu0 %v3800
    %4345 = vmatprep.subr.mxu0 0.0
    %4346 = vmatpush1.msra.mxu0 %v3801
    %4347 = vmatprep.subr.mxu0 0.0
    %4348 = vmatpush1.msra.mxu0 %v3802
    %4349 = vmatprep.subr.mxu0 0.0
    %4350 = vmatpush1.msra.mxu0 %v3803
    %4351 = vmatprep.subr.mxu0 0.0
    %4352 = vmatpush1.msra.mxu0 %v3804
    %4353 = vmatprep.subr.mxu0 0.0
    %4354 = vmatpush1.msra.mxu0 %v3805
    %4355 = vmatprep.subr.mxu0 0.0
    %4356 = vmatpush1.msra.mxu0 %v3806
    %4357 = vmatprep.subr.mxu0 0.0
    %4358 = vmatpush1.msra.mxu0 %v3807
    %4359 = vmatprep.subr.mxu0 0.0
    %4360 = vmatpush1.msra.mxu0 %v3808
    %4361 = vmatprep.subr.mxu0 0.0
    %4362 = vmatpush1.msra.mxu0 %v3809
    %4363 = vmatprep.subr.mxu0 0.0
    %4364 = vmatpush1.msra.mxu0 %v3810
    %4365 = vmatprep.subr.mxu0 0.0
    %4366 = vmatpush1.msra.mxu0 %v3811
    %4367 = vmatprep.subr.mxu0 0.0
    %4368 = vmatpush1.msra.mxu0 %v3812
    %4369 = vmatprep.subr.mxu0 0.0
    %4370 = vmatpush1.msra.mxu0 %v3813
    %4371 = vmatprep.subr.mxu0 0.0
    %4372 = vmatpush1.msra.mxu0 %v3814
    %4373 = vmatprep.subr.mxu0 0.0
    %4374 = vmatpush1.msra.mxu0 %v3815
    %4375 = vmatprep.subr.mxu0 0.0
    %4376 = vmatpush1.msra.mxu0 %v3816
    %4377 = vmatprep.subr.mxu0 0.0
    %4378 = vmatpush1.msra.mxu0 %v3817
    %4379 = vmatprep.subr.mxu0 0.0
    %4380 = vmatpush1.msra.mxu0 %v3818
    %4381 = vmatprep.subr.mxu0 0.0
    %4382 = vmatpush1.msra.mxu0 %v3819
    %4383 = vmatprep.subr.mxu0 0.0
    %4384 = vmatpush1.msra.mxu0 %v3820
    %4385 = vmatprep.subr.mxu0 0.0
    %4386 = vmatpush1.msra.mxu0 %v3821
    %4387 = vmatprep.subr.mxu0 0.0
    %4388 = vmatpush1.msra.mxu0 %v3822
    %4389 = vmatprep.subr.mxu0 0.0
    %4390 = vmatpush1.msra.mxu0 %v3823
    %4391 = vmatprep.subr.mxu0 0.0
    %4392 = vmatpush1.msra.mxu0 %v3824
    %4393 = vmatprep.mubr.f32.mxu0 %v3894
    %4394 = vmatmul.mubr.f32.gmra.mrb[0].mxu0 %v3893
    %v4395 = vpop.f32.mrb[0].mxu0
    %v4396 = vadd.f32 %v4326, %v4395
    %v4397 = vpop.f32.mrb[0].mxu0
    %4398 = vdwg.mxu0
    %v4399 = vmax.f32 %v4396, 0.0
    %v4400 = vld [vmem:[%s6] sm:$0x1]
    %v4402 = vlaneseq
    %v4403 = vshrl.u32 %v4402, 7
    %v4404 = vsub.s32 0, %v4403
    %v4405 = vrot.slane %v4400, %v4404
    %v4407 = vmul.f32 %v4399, %v4405
    %vm4408 = vcmask 1041408
    %v4409 = vsel %vm4408, %v4407, 0.0
    %4410 = vadd.xlane.f32.xlu0 %v4409
    %v4411 = vpop.xlane.xlu0 %4410
    %v4412 = vld [vmem:[#allocation6] sm:$0x1]
    %v4414 = vlaneseq
    %v4415 = vshrl.u32 %v4414, 7
    %v4416 = vsub.s32 0, %v4415
    %v4417 = vrot.slane %v4412, %v4416
    %v4419 = vadd.f32 %v4411, %v4417
    %v4420 = vxor.u32 %v4419, 2147483648
    %v4421 = vmul.f32 %v4420, 1.442695
    %v4422 = vpow.pop %v4421
    %v4423 = vadd.f32 %v4422, 1.0
    %v4424 = vrcp.pop %v4423
    %v4425 = vmul.f32 1.0, %v4424
    %vm4426 = vcmask 1024
    %4427 = vst.msk [vmem:[%s8] sm:$0x3] %vm4426, %v4425
    // Predicated region
    $region42: #{cblstm_forward.3} parent=1 // pred_check
      _
    $region43: #{cblstm_forward.3} parent=1 // pred_check_branch
      %4429 = sbr.rel (0) target = $region45
    $region44: #{cblstm_forward.3} parent=1 // pred_region
      _
    $region45: #{cblstm_forward.3} parent=1 // pred_fallthru
      _
    // Predicated region
    $region46: #{cblstm_forward.3} parent=1 // pred_check
      _
    $region47: #{cblstm_forward.3} parent=1 // pred_check_branch
      %4431 = sbr.rel (0) target = $region49
    $region48: #{cblstm_forward.3} parent=1 // pred_region
      _
    $region49: #{cblstm_forward.3} parent=1 // pred_fallthru
      _
    %4432 = vsyncpa [#allocation8], 1
    %4433 = vsyncpa [#allocation10], 1

</llo_original>
